<compile_context>
chip_gen: v7x
topology: tpu7x:2x2x1
jax: 0.10.0
libtpu: 0.0.40
codegen_flags: <defaults>
</compile_context>

<pallas_src>
import functools

import jax
import jax.numpy as jnp
import numpy as np
from jax import lax
from jax.experimental import pallas as pl
from jax.experimental.pallas import tpu as pltpu

EPS = 1e-5


# ----------------------------------------------------------------------------
# Compiler params: explicit scoped-VMEM budget per generation
# (~96 MiB on v5e/v6e's 128 MiB, ~48 MiB on v7x's 64 MiB); the batch grid axis
# is marked parallel so v7x's two TensorCores both get work.
# ----------------------------------------------------------------------------
@functools.lru_cache(maxsize=None)
def _vmem_limit_bytes():
    cap = 64 * 1024 * 1024  # conservative fallback = v7x physical per-TC VMEM
    try:
        cap = int(getattr(pltpu.get_tpu_info(), "vmem_capacity_bytes", cap))
    except Exception:
        pass
    return max(32 * 1024 * 1024, (cap * 3) // 4)  # headroom for compiler scratch


def _compiler_params():
    return pltpu.CompilerParams(
        dimension_semantics=("parallel",),
        vmem_limit_bytes=_vmem_limit_bytes())


# ----------------------------------------------------------------------------
# Kernel A/B: [optional fused BN+ReLU prelude] -> 3x3 conv (pad=1, no bias)
#             -> conv output + per-image BN partial statistics.
# One image per grid step.  Zero padding is built in a VMEM scratch (no HBM
# jnp.pad pass).  The BN sum / sum-of-squares are computed from the f32
# accumulator already in vregs (VPU/XLU filler under the MXU slot), and both
# partials are packed into a single (N, 2, C) output to keep the small-store
# epilogue to one DMA.
#
# TODO(synk): for production H/W/C, tile spatially over H with a 2-row halo
#             (element-offset index_map) and use an im2col K=9*Cin single
#             matmul / bf16 operands; whole-image blocks are fine at these
#             test sizes and keep the lowering simple.
# ----------------------------------------------------------------------------
def _conv_body(x, w_ref, prelude, y_ref, stats_ref, xpad_ref):
    H, W, Cout = y_ref.shape[1], y_ref.shape[2], y_ref.shape[3]
    x = x.astype(jnp.float32)                                  # (H, W, Cin)

    if prelude is not None:                                    # fused BN+ReLU of previous layer
        scale_ref, bias_ref = prelude
        scale = scale_ref[0][None, None, :]                    # (1, 1, Cin)
        bias = bias_ref[0][None, None, :]
        x = jnp.maximum(x * scale + bias, 0.0)

    # Zero-pad into persistent VMEM scratch.  The full fill is repeated every
    # grid step on purpose: zeroing only at program_id==0 would be wrong under
    # megacore grid sharding (each TensorCore has its own scratch), and the
    # fill is cheap VPU filler hidden under the MXU slot.  Padding stays zero
    # (as in PyTorch) because the prelude activation is applied before padding.
    xpad_ref[...] = jnp.zeros(xpad_ref.shape, xpad_ref.dtype)
    xpad_ref[pl.ds(1, H), pl.ds(1, W), :] = x
    xp = xpad_ref[...]                                         # (H+2, W+2, Cin)

    # Direct conv as 9 shifted matmuls accumulated in f32.
    acc = None
    for dh in range(3):
        for dw in range(3):
            patch = xp[dh:dh + H, dw:dw + W, :].reshape(H * W, -1)
            term = jnp.dot(patch, w_ref[dh, dw],
                           preferred_element_type=jnp.float32)
            acc = term if acc is None else acc + term          # (H*W, Cout)

    y_ref[0] = acc.reshape(H, W, Cout).astype(y_ref.dtype)

    # Per-image BN partials, packed: row 0 = sum, row 1 = sum of squares.
    s = jnp.sum(acc, axis=0, keepdims=True)                    # (1, Cout)
    sq = jnp.sum(acc * acc, axis=0, keepdims=True)             # (1, Cout)
    stats_ref[0] = jnp.concatenate([s, sq], axis=0)            # (2, Cout)


def _conv_stats_kernel(x_ref, w_ref, y_ref, stats_ref, xpad_ref):
    _conv_body(x_ref[0], w_ref, None, y_ref, stats_ref, xpad_ref)


def _act_conv_stats_kernel(x_ref, w_ref, scale_ref, bias_ref,
                           y_ref, stats_ref, xpad_ref):
    _conv_body(x_ref[0], w_ref, (scale_ref, bias_ref),
               y_ref, stats_ref, xpad_ref)


def conv3x3_bn_stats(x_nhwc, w_hwio, prelude_scale=None, prelude_bias=None):
    """Fused [prelude BN+ReLU] -> conv3x3 -> (y, batch mean, batch var)."""
    N, H, W, Cin = x_nhwc.shape
    Cout = w_hwio.shape[-1]

    in_specs = [
        pl.BlockSpec((1, H, W, Cin), lambda n: (n, 0, 0, 0)),
        pl.BlockSpec((3, 3, Cin, Cout), lambda n: (0, 0, 0, 0)),
    ]
    args = [x_nhwc, w_hwio]
    kernel = _conv_stats_kernel
    if prelude_scale is not None:
        kernel = _act_conv_stats_kernel
        in_specs += [pl.BlockSpec((1, Cin), lambda n: (0, 0)),
                     pl.BlockSpec((1, Cin), lambda n: (0, 0))]
        args += [prelude_scale.reshape(1, Cin).astype(jnp.float32),
                 prelude_bias.reshape(1, Cin).astype(jnp.float32)]

    y, stats = pl.pallas_call(
        kernel,
        out_shape=(jax.ShapeDtypeStruct((N, H, W, Cout), jnp.float32),
                   jax.ShapeDtypeStruct((N, 2, Cout), jnp.float32)),
        grid=(N,),
        in_specs=in_specs,
        out_specs=(pl.BlockSpec((1, H, W, Cout), lambda n: (n, 0, 0, 0)),
                   pl.BlockSpec((1, 2, Cout), lambda n: (n, 0, 0))),
        scratch_shapes=[pltpu.VMEM((H + 2, W + 2, Cin), jnp.float32)],
        compiler_params=_compiler_params(),
    )(*args)

    count = float(N * H * W)
    mean = jnp.sum(stats[:, 0, :], axis=0) / count
    ex2 = jnp.sum(stats[:, 1, :], axis=0) / count
    # Biased variance (PyTorch BN training normalization). Single-pass form;
    # acceptable in f32 at these scales.
    var = jnp.maximum(ex2 - mean * mean, 0.0)
    return y, mean, var


# ----------------------------------------------------------------------------
# Kernel C: final folded BatchNorm + ReLU epilogue (layer 2 only).
# ----------------------------------------------------------------------------
def _bn_relu_kernel(y_ref, scale_ref, bias_ref, o_ref):
    y = y_ref[0].astype(jnp.float32)                      # (H, W, C)
    scale = scale_ref[0][None, None, :]
    bias = bias_ref[0][None, None, :]
    o_ref[0] = jnp.maximum(y * scale + bias, 0.0).astype(o_ref.dtype)


def bn_relu(y_nhwc, scale, bias):
    N, H, W, C = y_nhwc.shape
    return pl.pallas_call(
        _bn_relu_kernel,
        out_shape=jax.ShapeDtypeStruct((N, H, W, C), jnp.float32),
        grid=(N,),
        in_specs=[pl.BlockSpec((1, H, W, C), lambda n: (n, 0, 0, 0)),
                  pl.BlockSpec((1, C), lambda n: (0, 0)),
                  pl.BlockSpec((1, C), lambda n: (0, 0))],
        out_specs=pl.BlockSpec((1, H, W, C), lambda n: (n, 0, 0, 0)),
        compiler_params=_compiler_params(),
    )(y_nhwc, scale.reshape(1, C).astype(jnp.float32),
      bias.reshape(1, C).astype(jnp.float32))


# ----------------------------------------------------------------------------
# Module: DoubleConvBlock forward.
# ----------------------------------------------------------------------------
def _fold_bn(gamma, beta, mean, var):
    inv_std = lax.rsqrt(var + EPS)
    scale = gamma * inv_std
    bias = beta - mean * scale
    return scale, bias


def double_conv_block(x_nchw, params):
    # PyTorch NCHW at the boundary -> NHWC internally (channels on lanes).
    # TODO(synk): fold these boundary transposes into the first read / last
    #             store when the caller cannot supply NHWC directly.
    x = jnp.transpose(x_nchw, (0, 2, 3, 1))

    # Layer 1: conv + fused BN partial statistics (single pass over x / y1).
    y1, mean1, var1 = conv3x3_bn_stats(x, params["w1"])
    scale1, bias1 = _fold_bn(params["gamma1"], params["beta1"], mean1, var1)

    # Layer 2: layer-1 BN+ReLU fused into the conv's input read (the activated
    # intermediate never touches HBM), plus fused BN partial stats for y2.
    y2, mean2, var2 = conv3x3_bn_stats(y1, params["w2"], scale1, bias1)
    scale2, bias2 = _fold_bn(params["gamma2"], params["beta2"], mean2, var2)

    # Final BN+ReLU epilogue.
    out = bn_relu(y2, scale2, bias2)
    return jnp.transpose(out, (0, 3, 1, 2))  # back to NCHW


def init_params(key, in_channels, out_channels):
    ks = jax.random.split(key, 6)
    b1 = 1.0 / np.sqrt(3 * 3 * in_channels)
    b2 = 1.0 / np.sqrt(3 * 3 * out_channels)
    return {
        "w1": jax.random.uniform(ks[0], (3, 3, in_channels, out_channels),
                                 jnp.float32, -b1, b1),
        "gamma1": 1.0 + 0.1 * jax.random.normal(ks[1], (out_channels,), jnp.float32),
        "beta1": 0.1 * jax.random.normal(ks[2], (out_channels,), jnp.float32),
        "w2": jax.random.uniform(ks[3], (3, 3, out_channels, out_channels),
                                 jnp.float32, -b2, b2),
        "gamma2": 1.0 + 0.1 * jax.random.normal(ks[4], (out_channels,), jnp.float32),
        "beta2": 0.1 * jax.random.normal(ks[5], (out_channels,), jnp.float32),
    }


# Pure-JAX reference (same semantics) for verification.
def _reference(x_nchw, params):
    def block(x, w, g, b):
        y = lax.conv_general_dilated(
            x, w, window_strides=(1, 1), padding="SAME",
            dimension_numbers=("NHWC", "HWIO", "NHWC"))
        mean = y.mean(axis=(0, 1, 2))
        var = ((y - mean) ** 2).mean(axis=(0, 1, 2))
        return jnp.maximum((y - mean) / jnp.sqrt(var + EPS) * g + b, 0.0)

    x = jnp.transpose(x_nchw, (0, 2, 3, 1))
    x = block(x, params["w1"], params["gamma1"], params["beta1"])
    x = block(x, params["w2"], params["gamma2"], params["beta2"])
    return jnp.transpose(x, (0, 3, 1, 2))


if __name__ == "__main__":
    key = jax.random.PRNGKey(0)
    kx, kp = jax.random.split(key)

    N, Cin, Cout, H, W = 2, 4, 8, 16, 16
    x = jax.random.normal(kx, (N, Cin, H, W), jnp.float32)   # NCHW, like PyTorch
    params = init_params(kp, Cin, Cout)

    out = jax.jit(double_conv_block)(x, params)
    out = jax.block_until_ready(out)
    assert out.shape == (N, Cout, H, W), out.shape

    ref = jax.block_until_ready(_reference(x, params))
    np.testing.assert_allclose(np.asarray(out), np.asarray(ref),
                               rtol=1e-4, atol=1e-4)

    print("KERNEL_OK")
</pallas_src>

<mosaic_0001>
module attributes {stable_mosaic.version = 11 : i64} {
  func.func @_conv_stats_kernel(%arg0: i32, %arg1: memref<1x16x16x4xf32, #tpu.memory_space<vmem>>, %arg2: memref<3x3x4x8xf32, #tpu.memory_space<vmem>>, %arg3: memref<1x16x16x8xf32, #tpu.memory_space<vmem>>, %arg4: memref<1x2x8xf32, #tpu.memory_space<vmem>>, %arg5: memref<18x18x4xf32, #tpu.memory_space<vmem>>) attributes {dimension_semantics = [#tpu.dimension_semantics<parallel>], iteration_bounds = array<i64: 2>, scalar_prefetch = 0 : i64, scratch_operands = 1 : i64, tpu.core_type = #tpu.core_type<tc>, window_params = [{transform_indices = @transform_0, window_bounds = array<i64: 1, 16, 16, 4>}, {pipeline_mode = #tpu.pipeline_mode<synchronous>, transform_indices = @transform_1, window_bounds = array<i64: 3, 3, 4, 8>}, {transform_indices = @transform_2, window_bounds = array<i64: 1, 16, 16, 8>}, {transform_indices = @transform_3, window_bounds = array<i64: 1, 2, 8>}]} {
    %c0 = arith.constant 0 : index
    %c0_0 = arith.constant 0 : index
    %c0_1 = arith.constant 0 : index
    %c0_2 = arith.constant 0 : index
    %0 = vector.load %arg1[%c0, %c0_0, %c0_1, %c0_2] : memref<1x16x16x4xf32, #tpu.memory_space<vmem>>, vector<1x16x16x4xf32>
    %1 = vector.shape_cast %0 : vector<1x16x16x4xf32> to vector<16x16x4xf32>
    %cst = arith.constant 0.000000e+00 : f32
    %2 = vector.broadcast %cst : f32 to vector<18x18x4xf32>
    %c0_3 = arith.constant 0 : index
    %c0_4 = arith.constant 0 : index
    %c0_5 = arith.constant 0 : index
    %3 = vector.load %arg5[%c0_3, %c0_4, %c0_5] : memref<18x18x4xf32, #tpu.memory_space<vmem>>, vector<18x18x4xf32>
    tpu.vector_store %arg5[%c0_3, %c0_4, %c0_5], %2 {strides = array<i32>} : memref<18x18x4xf32, #tpu.memory_space<vmem>>, vector<18x18x4xf32>,
    %c1 = arith.constant 1 : index
    %c1_6 = arith.constant 1 : index
    %c0_7 = arith.constant 0 : index
    %4 = vector.load %arg5[%c1, %c1_6, %c0_7] : memref<18x18x4xf32, #tpu.memory_space<vmem>>, vector<16x16x4xf32>
    tpu.vector_store %arg5[%c1, %c1_6, %c0_7], %1 {strides = array<i32>} : memref<18x18x4xf32, #tpu.memory_space<vmem>>, vector<16x16x4xf32>,
    %c0_8 = arith.constant 0 : index
    %c0_9 = arith.constant 0 : index
    %c0_10 = arith.constant 0 : index
    %5 = vector.load %arg5[%c0_8, %c0_9, %c0_10] : memref<18x18x4xf32, #tpu.memory_space<vmem>>, vector<18x18x4xf32>
    %6 = vector.extract_strided_slice %5 {offsets = [0, 0, 0], sizes = [16, 16, 4], strides = [1, 1, 1]} : vector<18x18x4xf32> to vector<16x16x4xf32>
    %7 = vector.shape_cast %6 : vector<16x16x4xf32> to vector<256x4xf32>
    %c0_11 = arith.constant 0 : index
    %c0_12 = arith.constant 0 : index
    %c0_13 = arith.constant 0 : index
    %c0_14 = arith.constant 0 : index
    %8 = vector.load %arg2[%c0_11, %c0_12, %c0_13, %c0_14] : memref<3x3x4x8xf32, #tpu.memory_space<vmem>>, vector<1x1x4x8xf32>
    %9 = vector.shape_cast %8 : vector<1x1x4x8xf32> to vector<4x8xf32>
    %cst_15 = arith.constant dense<0.000000e+00> : vector<256x8xf32>
    %10 = tpu.matmul %7, %9, %cst_15 {dimension_numbers = #tpu.dot_dimension_numbers<[1], [0], [0], [1], [0, 0, 1, 1], [], []>} : vector<256x4xf32>, vector<4x8xf32>, vector<256x8xf32> -> vector<256x8xf32>
    %11 = vector.extract_strided_slice %5 {offsets = [0, 1, 0], sizes = [16, 16, 4], strides = [1, 1, 1]} : vector<18x18x4xf32> to vector<16x16x4xf32>
    %12 = vector.shape_cast %11 : vector<16x16x4xf32> to vector<256x4xf32>
    %c0_16 = arith.constant 0 : index
    %c1_17 = arith.constant 1 : index
    %c0_18 = arith.constant 0 : index
    %c0_19 = arith.constant 0 : index
    %13 = vector.load %arg2[%c0_16, %c1_17, %c0_18, %c0_19] : memref<3x3x4x8xf32, #tpu.memory_space<vmem>>, vector<1x1x4x8xf32>
    %14 = vector.shape_cast %13 : vector<1x1x4x8xf32> to vector<4x8xf32>
    %cst_20 = arith.constant dense<0.000000e+00> : vector<256x8xf32>
    %15 = tpu.matmul %12, %14, %cst_20 {dimension_numbers = #tpu.dot_dimension_numbers<[1], [0], [0], [1], [0, 0, 1, 1], [], []>} : vector<256x4xf32>, vector<4x8xf32>, vector<256x8xf32> -> vector<256x8xf32>
    %16 = arith.addf %10, %15 : vector<256x8xf32>
    %17 = vector.extract_strided_slice %5 {offsets = [0, 2, 0], sizes = [16, 16, 4], strides = [1, 1, 1]} : vector<18x18x4xf32> to vector<16x16x4xf32>
    %18 = vector.shape_cast %17 : vector<16x16x4xf32> to vector<256x4xf32>
    %c0_21 = arith.constant 0 : index
    %c2 = arith.constant 2 : index
    %c0_22 = arith.constant 0 : index
    %c0_23 = arith.constant 0 : index
    %19 = vector.load %arg2[%c0_21, %c2, %c0_22, %c0_23] : memref<3x3x4x8xf32, #tpu.memory_space<vmem>>, vector<1x1x4x8xf32>
    %20 = vector.shape_cast %19 : vector<1x1x4x8xf32> to vector<4x8xf32>
    %cst_24 = arith.constant dense<0.000000e+00> : vector<256x8xf32>
    %21 = tpu.matmul %18, %20, %cst_24 {dimension_numbers = #tpu.dot_dimension_numbers<[1], [0], [0], [1], [0, 0, 1, 1], [], []>} : vector<256x4xf32>, vector<4x8xf32>, vector<256x8xf32> -> vector<256x8xf32>
    %22 = arith.addf %16, %21 : vector<256x8xf32>
    %23 = vector.extract_strided_slice %5 {offsets = [1, 0, 0], sizes = [16, 16, 4], strides = [1, 1, 1]} : vector<18x18x4xf32> to vector<16x16x4xf32>
    %24 = vector.shape_cast %23 : vector<16x16x4xf32> to vector<256x4xf32>
    %c1_25 = arith.constant 1 : index
    %c0_26 = arith.constant 0 : index
    %c0_27 = arith.constant 0 : index
    %c0_28 = arith.constant 0 : index
    %25 = vector.load %arg2[%c1_25, %c0_26, %c0_27, %c0_28] : memref<3x3x4x8xf32, #tpu.memory_space<vmem>>, vector<1x1x4x8xf32>
    %26 = vector.shape_cast %25 : vector<1x1x4x8xf32> to vector<4x8xf32>
    %cst_29 = arith.constant dense<0.000000e+00> : vector<256x8xf32>
    %27 = tpu.matmul %24, %26, %cst_29 {dimension_numbers = #tpu.dot_dimension_numbers<[1], [0], [0], [1], [0, 0, 1, 1], [], []>} : vector<256x4xf32>, vector<4x8xf32>, vector<256x8xf32> -> vector<256x8xf32>
    %28 = arith.addf %22, %27 : vector<256x8xf32>
    %29 = vector.extract_strided_slice %5 {offsets = [1, 1, 0], sizes = [16, 16, 4], strides = [1, 1, 1]} : vector<18x18x4xf32> to vector<16x16x4xf32>
    %30 = vector.shape_cast %29 : vector<16x16x4xf32> to vector<256x4xf32>
    %c1_30 = arith.constant 1 : index
    %c1_31 = arith.constant 1 : index
    %c0_32 = arith.constant 0 : index
    %c0_33 = arith.constant 0 : index
    %31 = vector.load %arg2[%c1_30, %c1_31, %c0_32, %c0_33] : memref<3x3x4x8xf32, #tpu.memory_space<vmem>>, vector<1x1x4x8xf32>
    %32 = vector.shape_cast %31 : vector<1x1x4x8xf32> to vector<4x8xf32>
    %cst_34 = arith.constant dense<0.000000e+00> : vector<256x8xf32>
    %33 = tpu.matmul %30, %32, %cst_34 {dimension_numbers = #tpu.dot_dimension_numbers<[1], [0], [0], [1], [0, 0, 1, 1], [], []>} : vector<256x4xf32>, vector<4x8xf32>, vector<256x8xf32> -> vector<256x8xf32>
    %34 = arith.addf %28, %33 : vector<256x8xf32>
    %35 = vector.extract_strided_slice %5 {offsets = [1, 2, 0], sizes = [16, 16, 4], strides = [1, 1, 1]} : vector<18x18x4xf32> to vector<16x16x4xf32>
    %36 = vector.shape_cast %35 : vector<16x16x4xf32> to vector<256x4xf32>
    %c1_35 = arith.constant 1 : index
    %c2_36 = arith.constant 2 : index
    %c0_37 = arith.constant 0 : index
    %c0_38 = arith.constant 0 : index
    %37 = vector.load %arg2[%c1_35, %c2_36, %c0_37, %c0_38] : memref<3x3x4x8xf32, #tpu.memory_space<vmem>>, vector<1x1x4x8xf32>
    %38 = vector.shape_cast %37 : vector<1x1x4x8xf32> to vector<4x8xf32>
    %cst_39 = arith.constant dense<0.000000e+00> : vector<256x8xf32>
    %39 = tpu.matmul %36, %38, %cst_39 {dimension_numbers = #tpu.dot_dimension_numbers<[1], [0], [0], [1], [0, 0, 1, 1], [], []>} : vector<256x4xf32>, vector<4x8xf32>, vector<256x8xf32> -> vector<256x8xf32>
    %40 = arith.addf %34, %39 : vector<256x8xf32>
    %41 = vector.extract_strided_slice %5 {offsets = [2, 0, 0], sizes = [16, 16, 4], strides = [1, 1, 1]} : vector<18x18x4xf32> to vector<16x16x4xf32>
    %42 = vector.shape_cast %41 : vector<16x16x4xf32> to vector<256x4xf32>
    %c2_40 = arith.constant 2 : index
    %c0_41 = arith.constant 0 : index
    %c0_42 = arith.constant 0 : index
    %c0_43 = arith.constant 0 : index
    %43 = vector.load %arg2[%c2_40, %c0_41, %c0_42, %c0_43] : memref<3x3x4x8xf32, #tpu.memory_space<vmem>>, vector<1x1x4x8xf32>
    %44 = vector.shape_cast %43 : vector<1x1x4x8xf32> to vector<4x8xf32>
    %cst_44 = arith.constant dense<0.000000e+00> : vector<256x8xf32>
    %45 = tpu.matmul %42, %44, %cst_44 {dimension_numbers = #tpu.dot_dimension_numbers<[1], [0], [0], [1], [0, 0, 1, 1], [], []>} : vector<256x4xf32>, vector<4x8xf32>, vector<256x8xf32> -> vector<256x8xf32>
    %46 = arith.addf %40, %45 : vector<256x8xf32>
    %47 = vector.extract_strided_slice %5 {offsets = [2, 1, 0], sizes = [16, 16, 4], strides = [1, 1, 1]} : vector<18x18x4xf32> to vector<16x16x4xf32>
    %48 = vector.shape_cast %47 : vector<16x16x4xf32> to vector<256x4xf32>
    %c2_45 = arith.constant 2 : index
    %c1_46 = arith.constant 1 : index
    %c0_47 = arith.constant 0 : index
    %c0_48 = arith.constant 0 : index
    %49 = vector.load %arg2[%c2_45, %c1_46, %c0_47, %c0_48] : memref<3x3x4x8xf32, #tpu.memory_space<vmem>>, vector<1x1x4x8xf32>
    %50 = vector.shape_cast %49 : vector<1x1x4x8xf32> to vector<4x8xf32>
    %cst_49 = arith.constant dense<0.000000e+00> : vector<256x8xf32>
    %51 = tpu.matmul %48, %50, %cst_49 {dimension_numbers = #tpu.dot_dimension_numbers<[1], [0], [0], [1], [0, 0, 1, 1], [], []>} : vector<256x4xf32>, vector<4x8xf32>, vector<256x8xf32> -> vector<256x8xf32>
    %52 = arith.addf %46, %51 : vector<256x8xf32>
    %53 = vector.extract_strided_slice %5 {offsets = [2, 2, 0], sizes = [16, 16, 4], strides = [1, 1, 1]} : vector<18x18x4xf32> to vector<16x16x4xf32>
    %54 = vector.shape_cast %53 : vector<16x16x4xf32> to vector<256x4xf32>
    %c2_50 = arith.constant 2 : index
    %c2_51 = arith.constant 2 : index
    %c0_52 = arith.constant 0 : index
    %c0_53 = arith.constant 0 : index
    %55 = vector.load %arg2[%c2_50, %c2_51, %c0_52, %c0_53] : memref<3x3x4x8xf32, #tpu.memory_space<vmem>>, vector<1x1x4x8xf32>
    %56 = vector.shape_cast %55 : vector<1x1x4x8xf32> to vector<4x8xf32>
    %cst_54 = arith.constant dense<0.000000e+00> : vector<256x8xf32>
    %57 = tpu.matmul %54, %56, %cst_54 {dimension_numbers = #tpu.dot_dimension_numbers<[1], [0], [0], [1], [0, 0, 1, 1], [], []>} : vector<256x4xf32>, vector<4x8xf32>, vector<256x8xf32> -> vector<256x8xf32>
    %58 = arith.addf %52, %57 : vector<256x8xf32>
    %59 = vector.shape_cast %58 : vector<256x8xf32> to vector<16x16x8xf32>
    %c0_55 = arith.constant 0 : index
    %c0_56 = arith.constant 0 : index
    %c0_57 = arith.constant 0 : index
    %c0_58 = arith.constant 0 : index
    %60 = vector.load %arg3[%c0_55, %c0_56, %c0_57, %c0_58] : memref<1x16x16x8xf32, #tpu.memory_space<vmem>>, vector<1x16x16x8xf32>
    %61 = vector.shape_cast %60 : vector<1x16x16x8xf32> to vector<16x16x8xf32>
    %62 = vector.shape_cast %59 : vector<16x16x8xf32> to vector<1x16x16x8xf32>
    tpu.vector_store %arg3[%c0_55, %c0_56, %c0_57, %c0_58], %62 {strides = array<i32>} : memref<1x16x16x8xf32, #tpu.memory_space<vmem>>, vector<1x16x16x8xf32>,
    %cst_59 = arith.constant dense<0.000000e+00> : vector<8xf32>
    %63 = vector.multi_reduction <add>, %58, %cst_59 [0] : vector<256x8xf32> to vector<8xf32>
    %64 = vector.shape_cast %63 : vector<8xf32> to vector<1x8xf32>
    %65 = arith.mulf %58, %58 : vector<256x8xf32>
    %cst_60 = arith.constant dense<0.000000e+00> : vector<8xf32>
    %66 = vector.multi_reduction <add>, %65, %cst_60 [0] : vector<256x8xf32> to vector<8xf32>
    %67 = vector.shape_cast %66 : vector<8xf32> to vector<1x8xf32>
    %68 = tpu.concatenate %64, %67 in 0 : vector<1x8xf32>, vector<1x8xf32> -> vector<2x8xf32>
    %c0_61 = arith.constant 0 : index
    %c0_62 = arith.constant 0 : index
    %c0_63 = arith.constant 0 : index
    %69 = vector.load %arg4[%c0_61, %c0_62, %c0_63] : memref<1x2x8xf32, #tpu.memory_space<vmem>>, vector<1x2x8xf32>
    %70 = vector.shape_cast %69 : vector<1x2x8xf32> to vector<2x8xf32>
    %71 = vector.shape_cast %68 : vector<2x8xf32> to vector<1x2x8xf32>
    tpu.vector_store %arg4[%c0_61, %c0_62, %c0_63], %71 {strides = array<i32>} : memref<1x2x8xf32, #tpu.memory_space<vmem>>, vector<1x2x8xf32>,
    return
  }
  func.func @transform_0(%arg0: i32) -> (i32, i32, i32, i32) {
    %c0_i32 = arith.constant 0 : i32
    %c0_i32_0 = arith.constant 0 : i32
    %c0_i32_1 = arith.constant 0 : i32
    %c0_i32_2 = arith.constant 0 : i32
    return %arg0, %c0_i32, %c0_i32_0, %c0_i32_1 : i32, i32, i32, i32
  }
  func.func @transform_1(%arg0: i32) -> (i32, i32, i32, i32) {
    %c0_i32 = arith.constant 0 : i32
    %c0_i32_0 = arith.constant 0 : i32
    %c0_i32_1 = arith.constant 0 : i32
    %c0_i32_2 = arith.constant 0 : i32
    %c0_i32_3 = arith.constant 0 : i32
    return %c0_i32, %c0_i32_0, %c0_i32_1, %c0_i32_2 : i32, i32, i32, i32
  }
  func.func @transform_2(%arg0: i32) -> (i32, i32, i32, i32) {
    %c0_i32 = arith.constant 0 : i32
    %c0_i32_0 = arith.constant 0 : i32
    %c0_i32_1 = arith.constant 0 : i32
    %c0_i32_2 = arith.constant 0 : i32
    return %arg0, %c0_i32, %c0_i32_0, %c0_i32_1 : i32, i32, i32, i32
  }
  func.func @transform_3(%arg0: i32) -> (i32, i32, i32) {
    %c0_i32 = arith.constant 0 : i32
    %c0_i32_0 = arith.constant 0 : i32
    %c0_i32_1 = arith.constant 0 : i32
    return %arg0, %c0_i32, %c0_i32_0 : i32, i32, i32
  }
}

module attributes {stable_mosaic.version = 11 : i64} {
  func.func @_act_conv_stats_kernel(%arg0: i32, %arg1: memref<1x16x16x8xf32, #tpu.memory_space<vmem>>, %arg2: memref<3x3x8x8xf32, #tpu.memory_space<vmem>>, %arg3: memref<1x8xf32, #tpu.memory_space<vmem>>, %arg4: memref<1x8xf32, #tpu.memory_space<vmem>>, %arg5: memref<1x16x16x8xf32, #tpu.memory_space<vmem>>, %arg6: memref<1x2x8xf32, #tpu.memory_space<vmem>>, %arg7: memref<18x18x8xf32, #tpu.memory_space<vmem>>) attributes {dimension_semantics = [#tpu.dimension_semantics<parallel>], iteration_bounds = array<i64: 2>, scalar_prefetch = 0 : i64, scratch_operands = 1 : i64, tpu.core_type = #tpu.core_type<tc>, window_params = [{transform_indices = @transform_0, window_bounds = array<i64: 1, 16, 16, 8>}, {pipeline_mode = #tpu.pipeline_mode<synchronous>, transform_indices = @transform_1, window_bounds = array<i64: 3, 3, 8, 8>}, {pipeline_mode = #tpu.pipeline_mode<synchronous>, transform_indices = @transform_2, window_bounds = array<i64: 1, 8>}, {pipeline_mode = #tpu.pipeline_mode<synchronous>, transform_indices = @transform_3, window_bounds = array<i64: 1, 8>}, {transform_indices = @transform_4, window_bounds = array<i64: 1, 16, 16, 8>}, {transform_indices = @transform_5, window_bounds = array<i64: 1, 2, 8>}]} {
    %c0 = arith.constant 0 : index
    %c0_0 = arith.constant 0 : index
    %c0_1 = arith.constant 0 : index
    %c0_2 = arith.constant 0 : index
    %0 = vector.load %arg1[%c0, %c0_0, %c0_1, %c0_2] : memref<1x16x16x8xf32, #tpu.memory_space<vmem>>, vector<1x16x16x8xf32>
    %1 = vector.shape_cast %0 : vector<1x16x16x8xf32> to vector<16x16x8xf32>
    %c0_3 = arith.constant 0 : index
    %c0_4 = arith.constant 0 : index
    %2 = vector.load %arg3[%c0_3, %c0_4] : memref<1x8xf32, #tpu.memory_space<vmem>>, vector<1x8xf32>
    %3 = vector.shape_cast %2 : vector<1x8xf32> to vector<8xf32>
    %4 = vector.shape_cast %3 : vector<8xf32> to vector<1x1x8xf32>
    %c0_5 = arith.constant 0 : index
    %c0_6 = arith.constant 0 : index
    %5 = vector.load %arg4[%c0_5, %c0_6] : memref<1x8xf32, #tpu.memory_space<vmem>>, vector<1x8xf32>
    %6 = vector.shape_cast %5 : vector<1x8xf32> to vector<8xf32>
    %7 = vector.shape_cast %6 : vector<8xf32> to vector<1x1x8xf32>
    %8 = vector.broadcast %4 : vector<1x1x8xf32> to vector<16x16x8xf32>
    %9 = arith.mulf %1, %8 : vector<16x16x8xf32>
    %10 = vector.broadcast %7 : vector<1x1x8xf32> to vector<16x16x8xf32>
    %11 = arith.addf %9, %10 : vector<16x16x8xf32>
    %cst = arith.constant 0.000000e+00 : f32
    %12 = vector.broadcast %cst : f32 to vector<16x16x8xf32>
    %13 = arith.maximumf %11, %12 : vector<16x16x8xf32>
    %cst_7 = arith.constant 0.000000e+00 : f32
    %14 = vector.broadcast %cst_7 : f32 to vector<18x18x8xf32>
    %c0_8 = arith.constant 0 : index
    %c0_9 = arith.constant 0 : index
    %c0_10 = arith.constant 0 : index
    %15 = vector.load %arg7[%c0_8, %c0_9, %c0_10] : memref<18x18x8xf32, #tpu.memory_space<vmem>>, vector<18x18x8xf32>
    tpu.vector_store %arg7[%c0_8, %c0_9, %c0_10], %14 {strides = array<i32>} : memref<18x18x8xf32, #tpu.memory_space<vmem>>, vector<18x18x8xf32>,
    %c1 = arith.constant 1 : index
    %c1_11 = arith.constant 1 : index
    %c0_12 = arith.constant 0 : index
    %16 = vector.load %arg7[%c1, %c1_11, %c0_12] : memref<18x18x8xf32, #tpu.memory_space<vmem>>, vector<16x16x8xf32>
    tpu.vector_store %arg7[%c1, %c1_11, %c0_12], %13 {strides = array<i32>} : memref<18x18x8xf32, #tpu.memory_space<vmem>>, vector<16x16x8xf32>,
    %c0_13 = arith.constant 0 : index
    %c0_14 = arith.constant 0 : index
    %c0_15 = arith.constant 0 : index
    %17 = vector.load %arg7[%c0_13, %c0_14, %c0_15] : memref<18x18x8xf32, #tpu.memory_space<vmem>>, vector<18x18x8xf32>
    %18 = vector.extract_strided_slice %17 {offsets = [0, 0, 0], sizes = [16, 16, 8], strides = [1, 1, 1]} : vector<18x18x8xf32> to vector<16x16x8xf32>
    %19 = vector.shape_cast %18 : vector<16x16x8xf32> to vector<256x8xf32>
    %c0_16 = arith.constant 0 : index
    %c0_17 = arith.constant 0 : index
    %c0_18 = arith.constant 0 : index
    %c0_19 = arith.constant 0 : index
    %20 = vector.load %arg2[%c0_16, %c0_17, %c0_18, %c0_19] : memref<3x3x8x8xf32, #tpu.memory_space<vmem>>, vector<1x1x8x8xf32>
    %21 = vector.shape_cast %20 : vector<1x1x8x8xf32> to vector<8x8xf32>
    %cst_20 = arith.constant dense<0.000000e+00> : vector<256x8xf32>
    %22 = tpu.matmul %19, %21, %cst_20 {dimension_numbers = #tpu.dot_dimension_numbers<[1], [0], [0], [1], [0, 0, 1, 1], [], []>} : vector<256x8xf32>, vector<8x8xf32>, vector<256x8xf32> -> vector<256x8xf32>
    %23 = vector.extract_strided_slice %17 {offsets = [0, 1, 0], sizes = [16, 16, 8], strides = [1, 1, 1]} : vector<18x18x8xf32> to vector<16x16x8xf32>
    %24 = vector.shape_cast %23 : vector<16x16x8xf32> to vector<256x8xf32>
    %c0_21 = arith.constant 0 : index
    %c1_22 = arith.constant 1 : index
    %c0_23 = arith.constant 0 : index
    %c0_24 = arith.constant 0 : index
    %25 = vector.load %arg2[%c0_21, %c1_22, %c0_23, %c0_24] : memref<3x3x8x8xf32, #tpu.memory_space<vmem>>, vector<1x1x8x8xf32>
    %26 = vector.shape_cast %25 : vector<1x1x8x8xf32> to vector<8x8xf32>
    %cst_25 = arith.constant dense<0.000000e+00> : vector<256x8xf32>
    %27 = tpu.matmul %24, %26, %cst_25 {dimension_numbers = #tpu.dot_dimension_numbers<[1], [0], [0], [1], [0, 0, 1, 1], [], []>} : vector<256x8xf32>, vector<8x8xf32>, vector<256x8xf32> -> vector<256x8xf32>
    %28 = arith.addf %22, %27 : vector<256x8xf32>
    %29 = vector.extract_strided_slice %17 {offsets = [0, 2, 0], sizes = [16, 16, 8], strides = [1, 1, 1]} : vector<18x18x8xf32> to vector<16x16x8xf32>
    %30 = vector.shape_cast %29 : vector<16x16x8xf32> to vector<256x8xf32>
    %c0_26 = arith.constant 0 : index
    %c2 = arith.constant 2 : index
    %c0_27 = arith.constant 0 : index
    %c0_28 = arith.constant 0 : index
    %31 = vector.load %arg2[%c0_26, %c2, %c0_27, %c0_28] : memref<3x3x8x8xf32, #tpu.memory_space<vmem>>, vector<1x1x8x8xf32>
    %32 = vector.shape_cast %31 : vector<1x1x8x8xf32> to vector<8x8xf32>
    %cst_29 = arith.constant dense<0.000000e+00> : vector<256x8xf32>
    %33 = tpu.matmul %30, %32, %cst_29 {dimension_numbers = #tpu.dot_dimension_numbers<[1], [0], [0], [1], [0, 0, 1, 1], [], []>} : vector<256x8xf32>, vector<8x8xf32>, vector<256x8xf32> -> vector<256x8xf32>
    %34 = arith.addf %28, %33 : vector<256x8xf32>
    %35 = vector.extract_strided_slice %17 {offsets = [1, 0, 0], sizes = [16, 16, 8], strides = [1, 1, 1]} : vector<18x18x8xf32> to vector<16x16x8xf32>
    %36 = vector.shape_cast %35 : vector<16x16x8xf32> to vector<256x8xf32>
    %c1_30 = arith.constant 1 : index
    %c0_31 = arith.constant 0 : index
    %c0_32 = arith.constant 0 : index
    %c0_33 = arith.constant 0 : index
    %37 = vector.load %arg2[%c1_30, %c0_31, %c0_32, %c0_33] : memref<3x3x8x8xf32, #tpu.memory_space<vmem>>, vector<1x1x8x8xf32>
    %38 = vector.shape_cast %37 : vector<1x1x8x8xf32> to vector<8x8xf32>
    %cst_34 = arith.constant dense<0.000000e+00> : vector<256x8xf32>
    %39 = tpu.matmul %36, %38, %cst_34 {dimension_numbers = #tpu.dot_dimension_numbers<[1], [0], [0], [1], [0, 0, 1, 1], [], []>} : vector<256x8xf32>, vector<8x8xf32>, vector<256x8xf32> -> vector<256x8xf32>
    %40 = arith.addf %34, %39 : vector<256x8xf32>
    %41 = vector.extract_strided_slice %17 {offsets = [1, 1, 0], sizes = [16, 16, 8], strides = [1, 1, 1]} : vector<18x18x8xf32> to vector<16x16x8xf32>
    %42 = vector.shape_cast %41 : vector<16x16x8xf32> to vector<256x8xf32>
    %c1_35 = arith.constant 1 : index
    %c1_36 = arith.constant 1 : index
    %c0_37 = arith.constant 0 : index
    %c0_38 = arith.constant 0 : index
    %43 = vector.load %arg2[%c1_35, %c1_36, %c0_37, %c0_38] : memref<3x3x8x8xf32, #tpu.memory_space<vmem>>, vector<1x1x8x8xf32>
    %44 = vector.shape_cast %43 : vector<1x1x8x8xf32> to vector<8x8xf32>
    %cst_39 = arith.constant dense<0.000000e+00> : vector<256x8xf32>
    %45 = tpu.matmul %42, %44, %cst_39 {dimension_numbers = #tpu.dot_dimension_numbers<[1], [0], [0], [1], [0, 0, 1, 1], [], []>} : vector<256x8xf32>, vector<8x8xf32>, vector<256x8xf32> -> vector<256x8xf32>
    %46 = arith.addf %40, %45 : vector<256x8xf32>
    %47 = vector.extract_strided_slice %17 {offsets = [1, 2, 0], sizes = [16, 16, 8], strides = [1, 1, 1]} : vector<18x18x8xf32> to vector<16x16x8xf32>
    %48 = vector.shape_cast %47 : vector<16x16x8xf32> to vector<256x8xf32>
    %c1_40 = arith.constant 1 : index
    %c2_41 = arith.constant 2 : index
    %c0_42 = arith.constant 0 : index
    %c0_43 = arith.constant 0 : index
    %49 = vector.load %arg2[%c1_40, %c2_41, %c0_42, %c0_43] : memref<3x3x8x8xf32, #tpu.memory_space<vmem>>, vector<1x1x8x8xf32>
    %50 = vector.shape_cast %49 : vector<1x1x8x8xf32> to vector<8x8xf32>
    %cst_44 = arith.constant dense<0.000000e+00> : vector<256x8xf32>
    %51 = tpu.matmul %48, %50, %cst_44 {dimension_numbers = #tpu.dot_dimension_numbers<[1], [0], [0], [1], [0, 0, 1, 1], [], []>} : vector<256x8xf32>, vector<8x8xf32>, vector<256x8xf32> -> vector<256x8xf32>
    %52 = arith.addf %46, %51 : vector<256x8xf32>
    %53 = vector.extract_strided_slice %17 {offsets = [2, 0, 0], sizes = [16, 16, 8], strides = [1, 1, 1]} : vector<18x18x8xf32> to vector<16x16x8xf32>
    %54 = vector.shape_cast %53 : vector<16x16x8xf32> to vector<256x8xf32>
    %c2_45 = arith.constant 2 : index
    %c0_46 = arith.constant 0 : index
    %c0_47 = arith.constant 0 : index
    %c0_48 = arith.constant 0 : index
    %55 = vector.load %arg2[%c2_45, %c0_46, %c0_47, %c0_48] : memref<3x3x8x8xf32, #tpu.memory_space<vmem>>, vector<1x1x8x8xf32>
    %56 = vector.shape_cast %55 : vector<1x1x8x8xf32> to vector<8x8xf32>
    %cst_49 = arith.constant dense<0.000000e+00> : vector<256x8xf32>
    %57 = tpu.matmul %54, %56, %cst_49 {dimension_numbers = #tpu.dot_dimension_numbers<[1], [0], [0], [1], [0, 0, 1, 1], [], []>} : vector<256x8xf32>, vector<8x8xf32>, vector<256x8xf32> -> vector<256x8xf32>
    %58 = arith.addf %52, %57 : vector<256x8xf32>
    %59 = vector.extract_strided_slice %17 {offsets = [2, 1, 0], sizes = [16, 16, 8], strides = [1, 1, 1]} : vector<18x18x8xf32> to vector<16x16x8xf32>
    %60 = vector.shape_cast %59 : vector<16x16x8xf32> to vector<256x8xf32>
    %c2_50 = arith.constant 2 : index
    %c1_51 = arith.constant 1 : index
    %c0_52 = arith.constant 0 : index
    %c0_53 = arith.constant 0 : index
    %61 = vector.load %arg2[%c2_50, %c1_51, %c0_52, %c0_53] : memref<3x3x8x8xf32, #tpu.memory_space<vmem>>, vector<1x1x8x8xf32>
    %62 = vector.shape_cast %61 : vector<1x1x8x8xf32> to vector<8x8xf32>
    %cst_54 = arith.constant dense<0.000000e+00> : vector<256x8xf32>
    %63 = tpu.matmul %60, %62, %cst_54 {dimension_numbers = #tpu.dot_dimension_numbers<[1], [0], [0], [1], [0, 0, 1, 1], [], []>} : vector<256x8xf32>, vector<8x8xf32>, vector<256x8xf32> -> vector<256x8xf32>
    %64 = arith.addf %58, %63 : vector<256x8xf32>
    %65 = vector.extract_strided_slice %17 {offsets = [2, 2, 0], sizes = [16, 16, 8], strides = [1, 1, 1]} : vector<18x18x8xf32> to vector<16x16x8xf32>
    %66 = vector.shape_cast %65 : vector<16x16x8xf32> to vector<256x8xf32>
    %c2_55 = arith.constant 2 : index
    %c2_56 = arith.constant 2 : index
    %c0_57 = arith.constant 0 : index
    %c0_58 = arith.constant 0 : index
    %67 = vector.load %arg2[%c2_55, %c2_56, %c0_57, %c0_58] : memref<3x3x8x8xf32, #tpu.memory_space<vmem>>, vector<1x1x8x8xf32>
    %68 = vector.shape_cast %67 : vector<1x1x8x8xf32> to vector<8x8xf32>
    %cst_59 = arith.constant dense<0.000000e+00> : vector<256x8xf32>
    %69 = tpu.matmul %66, %68, %cst_59 {dimension_numbers = #tpu.dot_dimension_numbers<[1], [0], [0], [1], [0, 0, 1, 1], [], []>} : vector<256x8xf32>, vector<8x8xf32>, vector<256x8xf32> -> vector<256x8xf32>
    %70 = arith.addf %64, %69 : vector<256x8xf32>
    %71 = vector.shape_cast %70 : vector<256x8xf32> to vector<16x16x8xf32>
    %c0_60 = arith.constant 0 : index
    %c0_61 = arith.constant 0 : index
    %c0_62 = arith.constant 0 : index
    %c0_63 = arith.constant 0 : index
    %72 = vector.load %arg5[%c0_60, %c0_61, %c0_62, %c0_63] : memref<1x16x16x8xf32, #tpu.memory_space<vmem>>, vector<1x16x16x8xf32>
    %73 = vector.shape_cast %72 : vector<1x16x16x8xf32> to vector<16x16x8xf32>
    %74 = vector.shape_cast %71 : vector<16x16x8xf32> to vector<1x16x16x8xf32>
    tpu.vector_store %arg5[%c0_60, %c0_61, %c0_62, %c0_63], %74 {strides = array<i32>} : memref<1x16x16x8xf32, #tpu.memory_space<vmem>>, vector<1x16x16x8xf32>,
    %cst_64 = arith.constant dense<0.000000e+00> : vector<8xf32>
    %75 = vector.multi_reduction <add>, %70, %cst_64 [0] : vector<256x8xf32> to vector<8xf32>
    %76 = vector.shape_cast %75 : vector<8xf32> to vector<1x8xf32>
    %77 = arith.mulf %70, %70 : vector<256x8xf32>
    %cst_65 = arith.constant dense<0.000000e+00> : vector<8xf32>
    %78 = vector.multi_reduction <add>, %77, %cst_65 [0] : vector<256x8xf32> to vector<8xf32>
    %79 = vector.shape_cast %78 : vector<8xf32> to vector<1x8xf32>
    %80 = tpu.concatenate %76, %79 in 0 : vector<1x8xf32>, vector<1x8xf32> -> vector<2x8xf32>
    %c0_66 = arith.constant 0 : index
    %c0_67 = arith.constant 0 : index
    %c0_68 = arith.constant 0 : index
    %81 = vector.load %arg6[%c0_66, %c0_67, %c0_68] : memref<1x2x8xf32, #tpu.memory_space<vmem>>, vector<1x2x8xf32>
    %82 = vector.shape_cast %81 : vector<1x2x8xf32> to vector<2x8xf32>
    %83 = vector.shape_cast %80 : vector<2x8xf32> to vector<1x2x8xf32>
    tpu.vector_store %arg6[%c0_66, %c0_67, %c0_68], %83 {strides = array<i32>} : memref<1x2x8xf32, #tpu.memory_space<vmem>>, vector<1x2x8xf32>,
    return
  }
  func.func @transform_0(%arg0: i32) -> (i32, i32, i32, i32) {
    %c0_i32 = arith.constant 0 : i32
    %c0_i32_0 = arith.constant 0 : i32
    %c0_i32_1 = arith.constant 0 : i32
    %c0_i32_2 = arith.constant 0 : i32
    return %arg0, %c0_i32, %c0_i32_0, %c0_i32_1 : i32, i32, i32, i32
  }
  func.func @transform_1(%arg0: i32) -> (i32, i32, i32, i32) {
    %c0_i32 = arith.constant 0 : i32
    %c0_i32_0 = arith.constant 0 : i32
    %c0_i32_1 = arith.constant 0 : i32
    %c0_i32_2 = arith.constant 0 : i32
    %c0_i32_3 = arith.constant 0 : i32
    return %c0_i32, %c0_i32_0, %c0_i32_1, %c0_i32_2 : i32, i32, i32, i32
  }
  func.func @transform_2(%arg0: i32) -> (i32, i32) {
    %c0_i32 = arith.constant 0 : i32
    %c0_i32_0 = arith.constant 0 : i32
    %c0_i32_1 = arith.constant 0 : i32
    return %c0_i32, %c0_i32_0 : i32, i32
  }
  func.func @transform_3(%arg0: i32) -> (i32, i32) {
    %c0_i32 = arith.constant 0 : i32
    %c0_i32_0 = arith.constant 0 : i32
    %c0_i32_1 = arith.constant 0 : i32
    return %c0_i32, %c0_i32_0 : i32, i32
  }
  func.func @transform_4(%arg0: i32) -> (i32, i32, i32, i32) {
    %c0_i32 = arith.constant 0 : i32
    %c0_i32_0 = arith.constant 0 : i32
    %c0_i32_1 = arith.constant 0 : i32
    %c0_i32_2 = arith.constant 0 : i32
    return %arg0, %c0_i32, %c0_i32_0, %c0_i32_1 : i32, i32, i32, i32
  }
  func.func @transform_5(%arg0: i32) -> (i32, i32, i32) {
    %c0_i32 = arith.constant 0 : i32
    %c0_i32_0 = arith.constant 0 : i32
    %c0_i32_1 = arith.constant 0 : i32
    return %arg0, %c0_i32, %c0_i32_0 : i32, i32, i32
  }
}

module attributes {stable_mosaic.version = 11 : i64} {
  func.func @_bn_relu_kernel(%arg0: i32, %arg1: memref<1x16x16x8xf32, #tpu.memory_space<vmem>>, %arg2: memref<1x8xf32, #tpu.memory_space<vmem>>, %arg3: memref<1x8xf32, #tpu.memory_space<vmem>>, %arg4: memref<1x16x16x8xf32, #tpu.memory_space<vmem>>) attributes {dimension_semantics = [#tpu.dimension_semantics<parallel>], iteration_bounds = array<i64: 2>, scalar_prefetch = 0 : i64, scratch_operands = 0 : i64, tpu.core_type = #tpu.core_type<tc>, window_params = [{transform_indices = @transform_0, window_bounds = array<i64: 1, 16, 16, 8>}, {pipeline_mode = #tpu.pipeline_mode<synchronous>, transform_indices = @transform_1, window_bounds = array<i64: 1, 8>}, {pipeline_mode = #tpu.pipeline_mode<synchronous>, transform_indices = @transform_2, window_bounds = array<i64: 1, 8>}, {transform_indices = @transform_3, window_bounds = array<i64: 1, 16, 16, 8>}]} {
    %c0 = arith.constant 0 : index
    %c0_0 = arith.constant 0 : index
    %c0_1 = arith.constant 0 : index
    %c0_2 = arith.constant 0 : index
    %0 = vector.load %arg1[%c0, %c0_0, %c0_1, %c0_2] : memref<1x16x16x8xf32, #tpu.memory_space<vmem>>, vector<1x16x16x8xf32>
    %1 = vector.shape_cast %0 : vector<1x16x16x8xf32> to vector<16x16x8xf32>
    %c0_3 = arith.constant 0 : index
    %c0_4 = arith.constant 0 : index
    %2 = vector.load %arg2[%c0_3, %c0_4] : memref<1x8xf32, #tpu.memory_space<vmem>>, vector<1x8xf32>
    %3 = vector.shape_cast %2 : vector<1x8xf32> to vector<8xf32>
    %4 = vector.shape_cast %3 : vector<8xf32> to vector<1x1x8xf32>
    %c0_5 = arith.constant 0 : index
    %c0_6 = arith.constant 0 : index
    %5 = vector.load %arg3[%c0_5, %c0_6] : memref<1x8xf32, #tpu.memory_space<vmem>>, vector<1x8xf32>
    %6 = vector.shape_cast %5 : vector<1x8xf32> to vector<8xf32>
    %7 = vector.shape_cast %6 : vector<8xf32> to vector<1x1x8xf32>
    %8 = vector.broadcast %4 : vector<1x1x8xf32> to vector<16x16x8xf32>
    %9 = arith.mulf %1, %8 : vector<16x16x8xf32>
    %10 = vector.broadcast %7 : vector<1x1x8xf32> to vector<16x16x8xf32>
    %11 = arith.addf %9, %10 : vector<16x16x8xf32>
    %cst = arith.constant 0.000000e+00 : f32
    %12 = vector.broadcast %cst : f32 to vector<16x16x8xf32>
    %13 = arith.maximumf %11, %12 : vector<16x16x8xf32>
    %c0_7 = arith.constant 0 : index
    %c0_8 = arith.constant 0 : index
    %c0_9 = arith.constant 0 : index
    %c0_10 = arith.constant 0 : index
    %14 = vector.load %arg4[%c0_7, %c0_8, %c0_9, %c0_10] : memref<1x16x16x8xf32, #tpu.memory_space<vmem>>, vector<1x16x16x8xf32>
    %15 = vector.shape_cast %14 : vector<1x16x16x8xf32> to vector<16x16x8xf32>
    %16 = vector.shape_cast %13 : vector<16x16x8xf32> to vector<1x16x16x8xf32>
    tpu.vector_store %arg4[%c0_7, %c0_8, %c0_9, %c0_10], %16 {strides = array<i32>} : memref<1x16x16x8xf32, #tpu.memory_space<vmem>>, vector<1x16x16x8xf32>,
    return
  }
  func.func @transform_0(%arg0: i32) -> (i32, i32, i32, i32) {
    %c0_i32 = arith.constant 0 : i32
    %c0_i32_0 = arith.constant 0 : i32
    %c0_i32_1 = arith.constant 0 : i32
    %c0_i32_2 = arith.constant 0 : i32
    return %arg0, %c0_i32, %c0_i32_0, %c0_i32_1 : i32, i32, i32, i32
  }
  func.func @transform_1(%arg0: i32) -> (i32, i32) {
    %c0_i32 = arith.constant 0 : i32
    %c0_i32_0 = arith.constant 0 : i32
    %c0_i32_1 = arith.constant 0 : i32
    return %c0_i32, %c0_i32_0 : i32, i32
  }
  func.func @transform_2(%arg0: i32) -> (i32, i32) {
    %c0_i32 = arith.constant 0 : i32
    %c0_i32_0 = arith.constant 0 : i32
    %c0_i32_1 = arith.constant 0 : i32
    return %c0_i32, %c0_i32_0 : i32, i32
  }
  func.func @transform_3(%arg0: i32) -> (i32, i32, i32, i32) {
    %c0_i32 = arith.constant 0 : i32
    %c0_i32_0 = arith.constant 0 : i32
    %c0_i32_1 = arith.constant 0 : i32
    %c0_i32_2 = arith.constant 0 : i32
    return %arg0, %c0_i32, %c0_i32_0, %c0_i32_1 : i32, i32, i32, i32
  }
}

</mosaic_0001>

<llo_original>
// kernel: double_conv_block.5
$region0: #{double_conv_block.5}
  #allocation0 [shape = 'u32[]', space=smem, size = 0x4, offset = 0x4, fixed_abs, tag = 'smem constant byte address 0x4 - core index']
  #allocation1 [shape = 'u32[144,128]{1,0:T(1,128)}', space=vmem, size = 0x12000, scoped, tag = 'internal scratch']
  %s0 = inlined_call_operand.vmem [shape: f32[2,16,16,8], index: 0, kind: input, shape index: {}]
  %s1 = inlined_call_operand.vmem [shape: f32[1,8], index: 1, kind: input, shape index: {}]
  %s2 = inlined_call_operand.vmem [shape: f32[1,8], index: 2, kind: input, shape index: {}]
  %s3 = inlined_call_operand.vmem [shape: f32[2,16,16,8], index: 3, kind: output, shape index: {}]
  %s4 = sld [smem:[#allocation0]]
  $region45: #{double_conv_block.5} parent=0
    _
  %s6 = ssub.s32 1, %s4
  %s7 = scalar_select 0, %s6, %s4
  loop: start=0, step=1, limit=4
  $region2: #{double_conv_block.5} parent=0 // loop_pre_header
    _
  $region3: #{double_conv_block.5} parent=0 // loop_header
    %s9 = sphi 0, %s13
    %p10 = scmp.ge.s32.totalorder %s9, 4
    %s19 = sphi 0, %s21
    %s22 = sphi 0, %s19
    %s23 = sphi 0, %s22
    %s39 = sphi 0, %s23
    %s43 = sphi 0, %s43
    %s45 = sphi 0, %s43
    %s46 = sphi 0, %s45
    %s60 = sphi 0, %s46
    %s64 = sphi 0, %s64
    %s66 = sphi 0, %s64
    %s67 = sphi 0, %s66
    %s81 = sphi 0, %s67
    %s87 = sphi 0, %s89
    %s90 = sphi 0, %s87
    %s91 = sphi 0, %s90
    %s107 = sphi 0, %s91
  $region4: #{double_conv_block.5} parent=0 // loop_header_branch
    %12 = sbr.rel (%p10) target = $region8
  $region5: #{double_conv_block.5} parent=0 // loop_body
    %s14 = ssub.s32 %s9, 1
    %s15 = ssub.s32 %s9, 2
    %s16 = sadd.s32 %s9, 1
    %s17 = ssub.s32 %s9, %s16
    %p18 = scmp.eq.s32.totalorder %s17, 0
    %s20 = sadd.s32 %s19, 1
    %s21 = scalar_select %p18, %s19, %s20
    %p24 = pneg %p18
    %p25 = scmp.eq.s32.totalorder %s9, 1
    %p26 = por %p24, %p25
    %p27 = scmp.ne.s32.totalorder %s19, %s22
    %p28 = scmp.eq.s32.totalorder %s9, 0
    %p29 = por %p27, %p28
    %p30 = scmp.ne.s32.totalorder %s19, %s22
    %p31 = scmp.eq.s32.totalorder %s14, 1
    %p32 = por %p30, %p31
    %p33 = scmp.ne.s32.totalorder %s22, %s23
    %p34 = scmp.eq.s32.totalorder %s14, 0
    %p35 = por %p33, %p34
    %p36 = scmp.ne.s32.totalorder %s22, %s23
    %p37 = scmp.eq.s32.totalorder %s15, 1
    %p38 = por %p36, %p37
    %p40 = scmp.ne.s32.totalorder %s23, %s39
    %p41 = scmp.eq.s32.totalorder %s15, 0
    %p42 = por %p40, %p41
    %s44 = sadd.s32 %s43, 1
    %p47 = scmp.eq.s32.totalorder %s9, 1
    %p48 = scmp.ne.s32.totalorder %s43, %s45
    %p49 = scmp.eq.s32.totalorder %s9, 0
    %p50 = por %p48, %p49
    %p51 = scmp.ne.s32.totalorder %s43, %s45
    %p52 = scmp.eq.s32.totalorder %s14, 1
    %p53 = por %p51, %p52
    %p54 = scmp.ne.s32.totalorder %s45, %s46
    %p55 = scmp.eq.s32.totalorder %s14, 0
    %p56 = por %p54, %p55
    %p57 = scmp.ne.s32.totalorder %s45, %s46
    %p58 = scmp.eq.s32.totalorder %s15, 1
    %p59 = por %p57, %p58
    %p61 = scmp.ne.s32.totalorder %s46, %s60
    %p62 = scmp.eq.s32.totalorder %s15, 0
    %p63 = por %p61, %p62
    %s65 = sadd.s32 %s64, 1
    %p68 = scmp.eq.s32.totalorder %s9, 1
    %p69 = scmp.ne.s32.totalorder %s64, %s66
    %p70 = scmp.eq.s32.totalorder %s9, 0
    %p71 = por %p69, %p70
    %p72 = scmp.ne.s32.totalorder %s64, %s66
    %p73 = scmp.eq.s32.totalorder %s14, 1
    %p74 = por %p72, %p73
    %p75 = scmp.ne.s32.totalorder %s66, %s67
    %p76 = scmp.eq.s32.totalorder %s14, 0
    %p77 = por %p75, %p76
    %p78 = scmp.ne.s32.totalorder %s66, %s67
    %p79 = scmp.eq.s32.totalorder %s15, 1
    %p80 = por %p78, %p79
    %p82 = scmp.ne.s32.totalorder %s67, %s81
    %p83 = scmp.eq.s32.totalorder %s15, 0
    %p84 = por %p82, %p83
    %s85 = ssub.s32 %s9, %s16
    %p86 = scmp.eq.s32.totalorder %s85, 0
    %s88 = sadd.s32 %s87, 1
    %s89 = scalar_select %p86, %s87, %s88
    %p92 = pneg %p86
    %p93 = scmp.eq.s32.totalorder %s9, 1
    %p94 = por %p92, %p93
    %p95 = scmp.ne.s32.totalorder %s87, %s90
    %p96 = scmp.eq.s32.totalorder %s9, 0
    %p97 = por %p95, %p96
    %p98 = scmp.ne.s32.totalorder %s87, %s90
    %p99 = scmp.eq.s32.totalorder %s14, 1
    %p100 = por %p98, %p99
    %p101 = scmp.ne.s32.totalorder %s90, %s91
    %p102 = scmp.eq.s32.totalorder %s14, 0
    %p103 = por %p101, %p102
    %p104 = scmp.ne.s32.totalorder %s90, %s91
    %p105 = scmp.eq.s32.totalorder %s15, 1
    %p106 = por %p104, %p105
    %p108 = scmp.ne.s32.totalorder %s91, %s107
    %p109 = scmp.eq.s32.totalorder %s15, 0
    %p110 = por %p108, %p109
    %p111 = scmp.le.s32.totalorder 1, %s9
    %p112 = scmp.lt.s32.totalorder %s9, 3
    %p113 = pnand %p111, %p112
    %p114 = pneg %p113
    // Predicated region
    $region9: #{double_conv_block.5} parent=5 // pred_check
      _
    $region10: #{double_conv_block.5} parent=5 // pred_check_branch
      %116 = sbr.rel (%p113) target = $region12
    $region11: #{double_conv_block.5} parent=5 // pred_region
      %s117 = ssub.s32 %s9, 1
      // Predicated region
      $region13: #{double_conv_block.5} parent=11 // pred_check
        %p118 = pneg %p56
      $region14: #{double_conv_block.5} parent=11 // pred_check_branch
        %120 = sbr.rel (%p118) target = $region16
      $region15: #{double_conv_block.5} parent=11 // pred_region
        _
      $region16: #{double_conv_block.5} parent=11 // pred_fallthru
        _
      // Predicated region
      $region17: #{double_conv_block.5} parent=11 // pred_check
        %p121 = pneg %p77
      $region18: #{double_conv_block.5} parent=11 // pred_check_branch
        %123 = sbr.rel (%p121) target = $region20
      $region19: #{double_conv_block.5} parent=11 // pred_region
        _
      $region20: #{double_conv_block.5} parent=11 // pred_fallthru
        _
    $region12: #{double_conv_block.5} parent=5 // pred_fallthru
      _
    %p124 = scmp.lt.s32.totalorder %s9, 2
    // Predicated region
    $region21: #{double_conv_block.5} parent=5 // pred_check
      %p125 = pneg %p124
    $region22: #{double_conv_block.5} parent=5 // pred_check_branch
      %127 = sbr.rel (%p125) target = $region24
    $region23: #{double_conv_block.5} parent=5 // pred_region
      // Predicated region
      $region25: #{double_conv_block.5} parent=23 // pred_check
        %p128 = pneg %p29
      $region26: #{double_conv_block.5} parent=23 // pred_check_branch
        %130 = sbr.rel (%p128) target = $region28
      $region27: #{double_conv_block.5} parent=23 // pred_region
        %p131 = scmp.lt.s32.totalorder %s9, 1
        %s132 = scalar_select %p131, %s9, 1
        %s133 = smul.addr %s132, 32
        %s134 = smul.addr %s133, 8
        %s135 = scalar_lea.vmem %s0, %s134
      $region28: #{double_conv_block.5} parent=23 // pred_fallthru
        _
    $region24: #{double_conv_block.5} parent=5 // pred_fallthru
      _
    %p136 = scmp.le.s32.totalorder 1, %s9
    %p137 = scmp.lt.s32.totalorder %s9, 3
    %p138 = pnand %p136, %p137
    %p139 = pneg %p138
    // Predicated region
    $region29: #{double_conv_block.5} parent=5 // pred_check
      _
    $region30: #{double_conv_block.5} parent=5 // pred_check_branch
      %141 = sbr.rel (%p138) target = $region32
    $region31: #{double_conv_block.5} parent=5 // pred_region
      %s142 = ssub.s32 %s9, 1
      %p143 = scmp.lt.s32.totalorder %s14, 1
      %s144 = scalar_select %p143, %s14, 1
      %s145 = smul.addr %s144, 32
      %s146 = smul.addr %s145, 8
      %s147 = scalar_lea.vmem %s0, %s146
      %p148 = pneg %p35
      %p149 = pneg %p32
      %p150 = pneg %p56
      %p151 = pneg %p53
      %p152 = pneg %p77
      %p153 = pneg %p74
      %p154 = pneg %p103
      %p155 = pneg %p100
      %p156 = scmp.lt.s32.totalorder %s14, 1
      %s157 = scalar_select %p156, %s14, 1
      %s158 = smul.addr %s157, 32
      %s159 = smul.addr %s158, 8
      %s160 = scalar_lea.vmem %s3, %s159
      %p161 = scmp.lt.s32.totalorder %s14, 1
      %s162 = scalar_select %p161, %s14, 1
      %s163 = smul.addr %s162, 32
      %s164 = smul.addr %s163, 8
      %s165 = scalar_lea.vmem %s0, %s164
      %p166 = scmp.lt.s32.totalorder %s14, 1
      %s167 = scalar_select %p166, %s14, 1
      %s168 = smul.addr %s167, 32
      %s169 = smul.addr %s168, 8
      %s170 = scalar_lea.vmem %s3, %s169
      %v171 = vld [vmem:[%s165] sm:$0xff]
      %v172 = vld [vmem:[%s165 + $0x8] sm:$0xff]
      %v173 = vld [vmem:[%s165 + $0x10] sm:$0xff]
      %v174 = vld [vmem:[%s165 + $0x18] sm:$0xff]
      %v175 = vld [vmem:[%s165 + $0x20] sm:$0xff]
      %v176 = vld [vmem:[%s165 + $0x28] sm:$0xff]
      %v177 = vld [vmem:[%s165 + $0x30] sm:$0xff]
      %v178 = vld [vmem:[%s165 + $0x38] sm:$0xff]
      %v179 = vld [vmem:[%s165 + $0x40] sm:$0xff]
      %v180 = vld [vmem:[%s165 + $0x48] sm:$0xff]
      %v181 = vld [vmem:[%s165 + $0x50] sm:$0xff]
      %v182 = vld [vmem:[%s165 + $0x58] sm:$0xff]
      %v183 = vld [vmem:[%s165 + $0x60] sm:$0xff]
      %v184 = vld [vmem:[%s165 + $0x68] sm:$0xff]
      %v185 = vld [vmem:[%s165 + $0x70] sm:$0xff]
      %v186 = vld [vmem:[%s165 + $0x78] sm:$0xff]
      %v187 = vld [vmem:[%s165 + $0x80] sm:$0xff]
      %v188 = vld [vmem:[%s165 + $0x88] sm:$0xff]
      %v189 = vld [vmem:[%s165 + $0x90] sm:$0xff]
      %v190 = vld [vmem:[%s165 + $0x98] sm:$0xff]
      %v191 = vld [vmem:[%s165 + $0xa0] sm:$0xff]
      %v192 = vld [vmem:[%s165 + $0xa8] sm:$0xff]
      %v193 = vld [vmem:[%s165 + $0xb0] sm:$0xff]
      %v194 = vld [vmem:[%s165 + $0xb8] sm:$0xff]
      %v195 = vld [vmem:[%s165 + $0xc0] sm:$0xff]
      %v196 = vld [vmem:[%s165 + $0xc8] sm:$0xff]
      %v197 = vld [vmem:[%s165 + $0xd0] sm:$0xff]
      %v198 = vld [vmem:[%s165 + $0xd8] sm:$0xff]
      %v199 = vld [vmem:[%s165 + $0xe0] sm:$0xff]
      %v200 = vld [vmem:[%s165 + $0xe8] sm:$0xff]
      %v201 = vld [vmem:[%s165 + $0xf0] sm:$0xff]
      %v202 = vld [vmem:[%s165 + $0xf8] sm:$0xff]
      %v203 = vld [vmem:[%s1] sm:$0x1]
      %v204 = vld [vmem:[%s2] sm:$0x1]
      %v206 = vlaneseq
      %v207 = vshrl.u32 %v206, 7
      %v208 = vsub.s32 0, %v207
      %v209 = vrot.slane %v203, %v208
      %v211 = vmul.f32 %v171, %v209
      %v212 = vmul.f32 %v172, %v209
      %v213 = vmul.f32 %v173, %v209
      %v214 = vmul.f32 %v174, %v209
      %v215 = vmul.f32 %v175, %v209
      %v216 = vmul.f32 %v176, %v209
      %v217 = vmul.f32 %v177, %v209
      %v218 = vmul.f32 %v178, %v209
      %v219 = vmul.f32 %v179, %v209
      %v220 = vmul.f32 %v180, %v209
      %v221 = vmul.f32 %v181, %v209
      %v222 = vmul.f32 %v182, %v209
      %v223 = vmul.f32 %v183, %v209
      %v224 = vmul.f32 %v184, %v209
      %v225 = vmul.f32 %v185, %v209
      %v226 = vmul.f32 %v186, %v209
      %v227 = vmul.f32 %v187, %v209
      %v228 = vmul.f32 %v188, %v209
      %v229 = vmul.f32 %v189, %v209
      %v230 = vmul.f32 %v190, %v209
      %v231 = vmul.f32 %v191, %v209
      %v232 = vmul.f32 %v192, %v209
      %v233 = vmul.f32 %v193, %v209
      %v234 = vmul.f32 %v194, %v209
      %v235 = vmul.f32 %v195, %v209
      %v236 = vmul.f32 %v196, %v209
      %v237 = vmul.f32 %v197, %v209
      %v238 = vmul.f32 %v198, %v209
      %v239 = vmul.f32 %v199, %v209
      %v240 = vmul.f32 %v200, %v209
      %v241 = vmul.f32 %v201, %v209
      %v242 = vmul.f32 %v202, %v209
      %v244 = vlaneseq
      %v245 = vshrl.u32 %v244, 7
      %v246 = vsub.s32 0, %v245
      %v247 = vrot.slane %v204, %v246
      %v249 = vadd.f32 %v211, %v247
      %v250 = vadd.f32 %v212, %v247
      %v251 = vadd.f32 %v213, %v247
      %v252 = vadd.f32 %v214, %v247
      %v253 = vadd.f32 %v215, %v247
      %v254 = vadd.f32 %v216, %v247
      %v255 = vadd.f32 %v217, %v247
      %v256 = vadd.f32 %v218, %v247
      %v257 = vadd.f32 %v219, %v247
      %v258 = vadd.f32 %v220, %v247
      %v259 = vadd.f32 %v221, %v247
      %v260 = vadd.f32 %v222, %v247
      %v261 = vadd.f32 %v223, %v247
      %v262 = vadd.f32 %v224, %v247
      %v263 = vadd.f32 %v225, %v247
      %v264 = vadd.f32 %v226, %v247
      %v265 = vadd.f32 %v227, %v247
      %v266 = vadd.f32 %v228, %v247
      %v267 = vadd.f32 %v229, %v247
      %v268 = vadd.f32 %v230, %v247
      %v269 = vadd.f32 %v231, %v247
      %v270 = vadd.f32 %v232, %v247
      %v271 = vadd.f32 %v233, %v247
      %v272 = vadd.f32 %v234, %v247
      %v273 = vadd.f32 %v235, %v247
      %v274 = vadd.f32 %v236, %v247
      %v275 = vadd.f32 %v237, %v247
      %v276 = vadd.f32 %v238, %v247
      %v277 = vadd.f32 %v239, %v247
      %v278 = vadd.f32 %v240, %v247
      %v279 = vadd.f32 %v241, %v247
      %v280 = vadd.f32 %v242, %v247
      %v281 = vmax.f32 %v249, 0.0
      %v282 = vmax.f32 %v250, 0.0
      %v283 = vmax.f32 %v251, 0.0
      %v284 = vmax.f32 %v252, 0.0
      %v285 = vmax.f32 %v253, 0.0
      %v286 = vmax.f32 %v254, 0.0
      %v287 = vmax.f32 %v255, 0.0
      %v288 = vmax.f32 %v256, 0.0
      %v289 = vmax.f32 %v257, 0.0
      %v290 = vmax.f32 %v258, 0.0
      %v291 = vmax.f32 %v259, 0.0
      %v292 = vmax.f32 %v260, 0.0
      %v293 = vmax.f32 %v261, 0.0
      %v294 = vmax.f32 %v262, 0.0
      %v295 = vmax.f32 %v263, 0.0
      %v296 = vmax.f32 %v264, 0.0
      %v297 = vmax.f32 %v265, 0.0
      %v298 = vmax.f32 %v266, 0.0
      %v299 = vmax.f32 %v267, 0.0
      %v300 = vmax.f32 %v268, 0.0
      %v301 = vmax.f32 %v269, 0.0
      %v302 = vmax.f32 %v270, 0.0
      %v303 = vmax.f32 %v271, 0.0
      %v304 = vmax.f32 %v272, 0.0
      %v305 = vmax.f32 %v273, 0.0
      %v306 = vmax.f32 %v274, 0.0
      %v307 = vmax.f32 %v275, 0.0
      %v308 = vmax.f32 %v276, 0.0
      %v309 = vmax.f32 %v277, 0.0
      %v310 = vmax.f32 %v278, 0.0
      %v311 = vmax.f32 %v279, 0.0
      %v312 = vmax.f32 %v280, 0.0
      %vm313 = vcmask 64512
      %314 = vst.msk [vmem:[%s170] sm:$0xff] %vm313, %v281
      %315 = vst.msk [vmem:[%s170 + $0x8] sm:$0xff] %vm313, %v282
      %316 = vst.msk [vmem:[%s170 + $0x10] sm:$0xff] %vm313, %v283
      %317 = vst.msk [vmem:[%s170 + $0x18] sm:$0xff] %vm313, %v284
      %318 = vst.msk [vmem:[%s170 + $0x20] sm:$0xff] %vm313, %v285
      %319 = vst.msk [vmem:[%s170 + $0x28] sm:$0xff] %vm313, %v286
      %320 = vst.msk [vmem:[%s170 + $0x30] sm:$0xff] %vm313, %v287
      %321 = vst.msk [vmem:[%s170 + $0x38] sm:$0xff] %vm313, %v288
      %322 = vst.msk [vmem:[%s170 + $0x40] sm:$0xff] %vm313, %v289
      %323 = vst.msk [vmem:[%s170 + $0x48] sm:$0xff] %vm313, %v290
      %324 = vst.msk [vmem:[%s170 + $0x50] sm:$0xff] %vm313, %v291
      %325 = vst.msk [vmem:[%s170 + $0x58] sm:$0xff] %vm313, %v292
      %326 = vst.msk [vmem:[%s170 + $0x60] sm:$0xff] %vm313, %v293
      %327 = vst.msk [vmem:[%s170 + $0x68] sm:$0xff] %vm313, %v294
      %328 = vst.msk [vmem:[%s170 + $0x70] sm:$0xff] %vm313, %v295
      %329 = vst.msk [vmem:[%s170 + $0x78] sm:$0xff] %vm313, %v296
      %330 = vst.msk [vmem:[%s170 + $0x80] sm:$0xff] %vm313, %v297
      %331 = vst.msk [vmem:[%s170 + $0x88] sm:$0xff] %vm313, %v298
      %332 = vst.msk [vmem:[%s170 + $0x90] sm:$0xff] %vm313, %v299
      %333 = vst.msk [vmem:[%s170 + $0x98] sm:$0xff] %vm313, %v300
      %334 = vst.msk [vmem:[%s170 + $0xa0] sm:$0xff] %vm313, %v301
      %335 = vst.msk [vmem:[%s170 + $0xa8] sm:$0xff] %vm313, %v302
      %336 = vst.msk [vmem:[%s170 + $0xb0] sm:$0xff] %vm313, %v303
      %337 = vst.msk [vmem:[%s170 + $0xb8] sm:$0xff] %vm313, %v304
      %338 = vst.msk [vmem:[%s170 + $0xc0] sm:$0xff] %vm313, %v305
      %339 = vst.msk [vmem:[%s170 + $0xc8] sm:$0xff] %vm313, %v306
      %340 = vst.msk [vmem:[%s170 + $0xd0] sm:$0xff] %vm313, %v307
      %341 = vst.msk [vmem:[%s170 + $0xd8] sm:$0xff] %vm313, %v308
      %342 = vst.msk [vmem:[%s170 + $0xe0] sm:$0xff] %vm313, %v309
      %343 = vst.msk [vmem:[%s170 + $0xe8] sm:$0xff] %vm313, %v310
      %344 = vst.msk [vmem:[%s170 + $0xf0] sm:$0xff] %vm313, %v311
      %345 = vst.msk [vmem:[%s170 + $0xf8] sm:$0xff] %vm313, %v312
      %p346 = scmp.lt.s32.totalorder %s14, 1
      %s347 = scalar_select %p346, %s14, 1
      %s348 = smul.addr %s347, 32
      %s349 = smul.addr %s348, 8
      %s350 = scalar_lea.vmem %s3, %s349
      // Predicated region
      $region33: #{double_conv_block.5} parent=31 // pred_check
        %p351 = pneg %p100
      $region34: #{double_conv_block.5} parent=31 // pred_check_branch
        %353 = sbr.rel (%p351) target = $region36
      $region35: #{double_conv_block.5} parent=31 // pred_region
        _
      $region36: #{double_conv_block.5} parent=31 // pred_fallthru
        _
    $region32: #{double_conv_block.5} parent=5 // pred_fallthru
      _
    %p354 = scmp.le.s32.totalorder 2, %s9
    // Predicated region
    $region37: #{double_conv_block.5} parent=5 // pred_check
      %p355 = pneg %p354
    $region38: #{double_conv_block.5} parent=5 // pred_check_branch
      %357 = sbr.rel (%p355) target = $region40
    $region39: #{double_conv_block.5} parent=5 // pred_region
      %s358 = ssub.s32 %s9, 2
      // Predicated region
      $region41: #{double_conv_block.5} parent=39 // pred_check
        %p359 = pneg %p106
      $region42: #{double_conv_block.5} parent=39 // pred_check_branch
        %361 = sbr.rel (%p359) target = $region44
      $region43: #{double_conv_block.5} parent=39 // pred_region
        %p362 = scmp.lt.s32.totalorder %s15, 1
        %s363 = scalar_select %p362, %s15, 1
        %s364 = smul.addr %s363, 32
        %s365 = smul.addr %s364, 8
        %s366 = scalar_lea.vmem %s3, %s365
      $region44: #{double_conv_block.5} parent=39 // pred_fallthru
        _
    $region40: #{double_conv_block.5} parent=5 // pred_fallthru
      _
  $region6: #{double_conv_block.5} parent=0 // loop_footer
    %s13 = sadd.s32 1, %s9
  $region7: #{double_conv_block.5} parent=0 // loop_footer_branch
    %8 = sbr.rel target = $region3
  $region8: #{double_conv_block.5} parent=0 // loop_exit
    _

// kernel: double_conv_block.3
$region0: #{double_conv_block.3}
  #allocation0 [shape = 'u32[]', space=smem, size = 0x4, offset = 0x4, fixed_abs, tag = 'smem constant byte address 0x4 - core index']
  #allocation1 [shape = 'u32[144,128]{1,0:T(1,128)}', space=vmem, size = 0x12000, scoped, tag = 'internal scratch']
  #allocation2 [shape = 'f32[18,18,4]{2,1,0:T(8,128)}', space=vmem, size = 0x36000, scoped, tag = 'scratch operand']
  %s0 = inlined_call_operand.vmem [shape: f32[2,16,16,4], index: 0, kind: input, shape index: {}]
  %s1 = inlined_call_operand.vmem [shape: f32[3,3,4,8], index: 1, kind: input, shape index: {}]
  %s2 = inlined_call_operand.vmem [shape: f32[2,16,16,8], index: 2, kind: output, shape index: {0}]
  %s3 = inlined_call_operand.vmem [shape: f32[2,2,8], index: 3, kind: output, shape index: {1}]
  %4 = xla_tuple %s2, %s3
  %s5 = sld [smem:[#allocation0]]
  $region49: #{double_conv_block.3} parent=0
    _
  %s7 = ssub.s32 1, %s5
  %s8 = scalar_select 0, %s7, %s5
  loop: start=0, step=1, limit=4
  $region2: #{double_conv_block.3} parent=0 // loop_pre_header
    _
  $region3: #{double_conv_block.3} parent=0 // loop_header
    %s10 = sphi 0, %s14
    %p11 = scmp.ge.s32.totalorder %s10, 4
    %s20 = sphi 0, %s22
    %s23 = sphi 0, %s20
    %s24 = sphi 0, %s23
    %s40 = sphi 0, %s24
    %s44 = sphi 0, %s44
    %s46 = sphi 0, %s44
    %s47 = sphi 0, %s46
    %s61 = sphi 0, %s47
    %s67 = sphi 0, %s69
    %s70 = sphi 0, %s67
    %s71 = sphi 0, %s70
    %s87 = sphi 0, %s71
    %s93 = sphi 0, %s95
    %s96 = sphi 0, %s93
    %s97 = sphi 0, %s96
    %s113 = sphi 0, %s97
  $region4: #{double_conv_block.3} parent=0 // loop_header_branch
    %13 = sbr.rel (%p11) target = $region8
  $region5: #{double_conv_block.3} parent=0 // loop_body
    %s15 = ssub.s32 %s10, 1
    %s16 = ssub.s32 %s10, 2
    %s17 = sadd.s32 %s10, 1
    %s18 = ssub.s32 %s10, %s17
    %p19 = scmp.eq.s32.totalorder %s18, 0
    %s21 = sadd.s32 %s20, 1
    %s22 = scalar_select %p19, %s20, %s21
    %p25 = pneg %p19
    %p26 = scmp.eq.s32.totalorder %s10, 1
    %p27 = por %p25, %p26
    %p28 = scmp.ne.s32.totalorder %s20, %s23
    %p29 = scmp.eq.s32.totalorder %s10, 0
    %p30 = por %p28, %p29
    %p31 = scmp.ne.s32.totalorder %s20, %s23
    %p32 = scmp.eq.s32.totalorder %s15, 1
    %p33 = por %p31, %p32
    %p34 = scmp.ne.s32.totalorder %s23, %s24
    %p35 = scmp.eq.s32.totalorder %s15, 0
    %p36 = por %p34, %p35
    %p37 = scmp.ne.s32.totalorder %s23, %s24
    %p38 = scmp.eq.s32.totalorder %s16, 1
    %p39 = por %p37, %p38
    %p41 = scmp.ne.s32.totalorder %s24, %s40
    %p42 = scmp.eq.s32.totalorder %s16, 0
    %p43 = por %p41, %p42
    %s45 = sadd.s32 %s44, 1
    %p48 = scmp.eq.s32.totalorder %s10, 1
    %p49 = scmp.ne.s32.totalorder %s44, %s46
    %p50 = scmp.eq.s32.totalorder %s10, 0
    %p51 = por %p49, %p50
    %p52 = scmp.ne.s32.totalorder %s44, %s46
    %p53 = scmp.eq.s32.totalorder %s15, 1
    %p54 = por %p52, %p53
    %p55 = scmp.ne.s32.totalorder %s46, %s47
    %p56 = scmp.eq.s32.totalorder %s15, 0
    %p57 = por %p55, %p56
    %p58 = scmp.ne.s32.totalorder %s46, %s47
    %p59 = scmp.eq.s32.totalorder %s16, 1
    %p60 = por %p58, %p59
    %p62 = scmp.ne.s32.totalorder %s47, %s61
    %p63 = scmp.eq.s32.totalorder %s16, 0
    %p64 = por %p62, %p63
    %s65 = ssub.s32 %s10, %s17
    %p66 = scmp.eq.s32.totalorder %s65, 0
    %s68 = sadd.s32 %s67, 1
    %s69 = scalar_select %p66, %s67, %s68
    %p72 = pneg %p66
    %p73 = scmp.eq.s32.totalorder %s10, 1
    %p74 = por %p72, %p73
    %p75 = scmp.ne.s32.totalorder %s67, %s70
    %p76 = scmp.eq.s32.totalorder %s10, 0
    %p77 = por %p75, %p76
    %p78 = scmp.ne.s32.totalorder %s67, %s70
    %p79 = scmp.eq.s32.totalorder %s15, 1
    %p80 = por %p78, %p79
    %p81 = scmp.ne.s32.totalorder %s70, %s71
    %p82 = scmp.eq.s32.totalorder %s15, 0
    %p83 = por %p81, %p82
    %p84 = scmp.ne.s32.totalorder %s70, %s71
    %p85 = scmp.eq.s32.totalorder %s16, 1
    %p86 = por %p84, %p85
    %p88 = scmp.ne.s32.totalorder %s71, %s87
    %p89 = scmp.eq.s32.totalorder %s16, 0
    %p90 = por %p88, %p89
    %s91 = ssub.s32 %s10, %s17
    %p92 = scmp.eq.s32.totalorder %s91, 0
    %s94 = sadd.s32 %s93, 1
    %s95 = scalar_select %p92, %s93, %s94
    %p98 = pneg %p92
    %p99 = scmp.eq.s32.totalorder %s10, 1
    %p100 = por %p98, %p99
    %p101 = scmp.ne.s32.totalorder %s93, %s96
    %p102 = scmp.eq.s32.totalorder %s10, 0
    %p103 = por %p101, %p102
    %p104 = scmp.ne.s32.totalorder %s93, %s96
    %p105 = scmp.eq.s32.totalorder %s15, 1
    %p106 = por %p104, %p105
    %p107 = scmp.ne.s32.totalorder %s96, %s97
    %p108 = scmp.eq.s32.totalorder %s15, 0
    %p109 = por %p107, %p108
    %p110 = scmp.ne.s32.totalorder %s96, %s97
    %p111 = scmp.eq.s32.totalorder %s16, 1
    %p112 = por %p110, %p111
    %p114 = scmp.ne.s32.totalorder %s97, %s113
    %p115 = scmp.eq.s32.totalorder %s16, 0
    %p116 = por %p114, %p115
    %p117 = scmp.le.s32.totalorder 1, %s10
    %p118 = scmp.lt.s32.totalorder %s10, 3
    %p119 = pnand %p117, %p118
    %p120 = pneg %p119
    // Predicated region
    $region9: #{double_conv_block.3} parent=5 // pred_check
      _
    $region10: #{double_conv_block.3} parent=5 // pred_check_branch
      %122 = sbr.rel (%p119) target = $region12
    $region11: #{double_conv_block.3} parent=5 // pred_region
      %s123 = ssub.s32 %s10, 1
      // Predicated region
      $region13: #{double_conv_block.3} parent=11 // pred_check
        %p124 = pneg %p57
      $region14: #{double_conv_block.3} parent=11 // pred_check_branch
        %126 = sbr.rel (%p124) target = $region16
      $region15: #{double_conv_block.3} parent=11 // pred_region
        _
      $region16: #{double_conv_block.3} parent=11 // pred_fallthru
        _
    $region12: #{double_conv_block.3} parent=5 // pred_fallthru
      _
    %p127 = scmp.lt.s32.totalorder %s10, 2
    // Predicated region
    $region17: #{double_conv_block.3} parent=5 // pred_check
      %p128 = pneg %p127
    $region18: #{double_conv_block.3} parent=5 // pred_check_branch
      %130 = sbr.rel (%p128) target = $region20
    $region19: #{double_conv_block.3} parent=5 // pred_region
      // Predicated region
      $region21: #{double_conv_block.3} parent=19 // pred_check
        %p131 = pneg %p30
      $region22: #{double_conv_block.3} parent=19 // pred_check_branch
        %133 = sbr.rel (%p131) target = $region24
      $region23: #{double_conv_block.3} parent=19 // pred_region
        %p134 = scmp.lt.s32.totalorder %s10, 1
        %s135 = scalar_select %p134, %s10, 1
        %s136 = smul.addr %s135, 32
        %s137 = smul.addr %s136, 8
        %s138 = scalar_lea.vmem %s0, %s137
      $region24: #{double_conv_block.3} parent=19 // pred_fallthru
        _
    $region20: #{double_conv_block.3} parent=5 // pred_fallthru
      _
    %p139 = scmp.le.s32.totalorder 1, %s10
    %p140 = scmp.lt.s32.totalorder %s10, 3
    %p141 = pnand %p139, %p140
    %p142 = pneg %p141
    // Predicated region
    $region25: #{double_conv_block.3} parent=5 // pred_check
      _
    $region26: #{double_conv_block.3} parent=5 // pred_check_branch
      %144 = sbr.rel (%p141) target = $region28
    $region27: #{double_conv_block.3} parent=5 // pred_region
      %s145 = ssub.s32 %s10, 1
      %p146 = scmp.lt.s32.totalorder %s15, 1
      %s147 = scalar_select %p146, %s15, 1
      %s148 = smul.addr %s147, 32
      %s149 = smul.addr %s148, 8
      %s150 = scalar_lea.vmem %s0, %s149
      %p151 = pneg %p36
      %p152 = pneg %p33
      %p153 = pneg %p57
      %p154 = pneg %p54
      %p155 = pneg %p83
      %p156 = pneg %p80
      %p157 = scmp.lt.s32.totalorder %s15, 1
      %s158 = scalar_select %p157, %s15, 1
      %s159 = smul.addr %s158, 32
      %s160 = smul.addr %s159, 8
      %s161 = scalar_lea.vmem %s2, %s160
      %p162 = pneg %p109
      %p163 = pneg %p106
      %p164 = scmp.lt.s32.totalorder %s15, 1
      %s165 = scalar_select %p164, %s15, 1
      %s166 = smul.addr %s165, 2
      %s167 = scalar_lea.vmem %s3, %s166
      %p168 = scmp.lt.s32.totalorder %s15, 1
      %s169 = scalar_select %p168, %s15, 1
      %s170 = smul.addr %s169, 32
      %s171 = smul.addr %s170, 8
      %s172 = scalar_lea.vmem %s0, %s171
      %p173 = scmp.lt.s32.totalorder %s15, 1
      %s174 = scalar_select %p173, %s15, 1
      %s175 = smul.addr %s174, 32
      %s176 = smul.addr %s175, 8
      %s177 = scalar_lea.vmem %s2, %s176
      %p178 = scmp.lt.s32.totalorder %s15, 1
      %s179 = scalar_select %p178, %s15, 1
      %s180 = smul.addr %s179, 2
      %s181 = scalar_lea.vmem %s3, %s180
      %v182 = vld [vmem:[%s172] sm:$0xff]
      %v183 = vld [vmem:[%s172 + $0x8] sm:$0xff]
      %v184 = vld [vmem:[%s172 + $0x10] sm:$0xff]
      %v185 = vld [vmem:[%s172 + $0x18] sm:$0xff]
      %v186 = vld [vmem:[%s172 + $0x20] sm:$0xff]
      %v187 = vld [vmem:[%s172 + $0x28] sm:$0xff]
      %v188 = vld [vmem:[%s172 + $0x30] sm:$0xff]
      %v189 = vld [vmem:[%s172 + $0x38] sm:$0xff]
      %v190 = vld [vmem:[%s172 + $0x40] sm:$0xff]
      %v191 = vld [vmem:[%s172 + $0x48] sm:$0xff]
      %v192 = vld [vmem:[%s172 + $0x50] sm:$0xff]
      %v193 = vld [vmem:[%s172 + $0x58] sm:$0xff]
      %v194 = vld [vmem:[%s172 + $0x60] sm:$0xff]
      %v195 = vld [vmem:[%s172 + $0x68] sm:$0xff]
      %v196 = vld [vmem:[%s172 + $0x70] sm:$0xff]
      %v197 = vld [vmem:[%s172 + $0x78] sm:$0xff]
      %v198 = vld [vmem:[%s172 + $0x80] sm:$0xff]
      %v199 = vld [vmem:[%s172 + $0x88] sm:$0xff]
      %v200 = vld [vmem:[%s172 + $0x90] sm:$0xff]
      %v201 = vld [vmem:[%s172 + $0x98] sm:$0xff]
      %v202 = vld [vmem:[%s172 + $0xa0] sm:$0xff]
      %v203 = vld [vmem:[%s172 + $0xa8] sm:$0xff]
      %v204 = vld [vmem:[%s172 + $0xb0] sm:$0xff]
      %v205 = vld [vmem:[%s172 + $0xb8] sm:$0xff]
      %v206 = vld [vmem:[%s172 + $0xc0] sm:$0xff]
      %v207 = vld [vmem:[%s172 + $0xc8] sm:$0xff]
      %v208 = vld [vmem:[%s172 + $0xd0] sm:$0xff]
      %v209 = vld [vmem:[%s172 + $0xd8] sm:$0xff]
      %v210 = vld [vmem:[%s172 + $0xe0] sm:$0xff]
      %v211 = vld [vmem:[%s172 + $0xe8] sm:$0xff]
      %v212 = vld [vmem:[%s172 + $0xf0] sm:$0xff]
      %v213 = vld [vmem:[%s172 + $0xf8] sm:$0xff]
      %vm214 = vcmask 31744
      %215 = vst.msk [vmem:[#allocation2] sm:$0xff] %vm214, 0.0
      %216 = vst.msk [vmem:[#allocation2 + $0x8] sm:$0xff] %vm214, 0.0
      %vm217 = vcmask 25600
      %218 = vst.msk [vmem:[#allocation2 + $0x10] sm:$0x3] %vm217, 0.0
      %219 = vst.msk [vmem:[#allocation2 + $0x18] sm:$0xff] %vm214, 0.0
      %220 = vst.msk [vmem:[#allocation2 + $0x20] sm:$0xff] %vm214, 0.0
      %221 = vst.msk [vmem:[#allocation2 + $0x28] sm:$0x3] %vm217, 0.0
      %222 = vst.msk [vmem:[#allocation2 + $0x30] sm:$0xff] %vm214, 0.0
      %223 = vst.msk [vmem:[#allocation2 + $0x38] sm:$0xff] %vm214, 0.0
      %224 = vst.msk [vmem:[#allocation2 + $0x40] sm:$0x3] %vm217, 0.0
      %225 = vst.msk [vmem:[#allocation2 + $0x48] sm:$0xff] %vm214, 0.0
      %226 = vst.msk [vmem:[#allocation2 + $0x50] sm:$0xff] %vm214, 0.0
      %227 = vst.msk [vmem:[#allocation2 + $0x58] sm:$0x3] %vm217, 0.0
      %228 = vst.msk [vmem:[#allocation2 + $0x60] sm:$0xff] %vm214, 0.0
      %229 = vst.msk [vmem:[#allocation2 + $0x68] sm:$0xff] %vm214, 0.0
      %230 = vst.msk [vmem:[#allocation2 + $0x70] sm:$0x3] %vm217, 0.0
      %231 = vst.msk [vmem:[#allocation2 + $0x78] sm:$0xff] %vm214, 0.0
      %232 = vst.msk [vmem:[#allocation2 + $0x80] sm:$0xff] %vm214, 0.0
      %233 = vst.msk [vmem:[#allocation2 + $0x88] sm:$0x3] %vm217, 0.0
      %234 = vst.msk [vmem:[#allocation2 + $0x90] sm:$0xff] %vm214, 0.0
      %235 = vst.msk [vmem:[#allocation2 + $0x98] sm:$0xff] %vm214, 0.0
      %236 = vst.msk [vmem:[#allocation2 + $0xa0] sm:$0x3] %vm217, 0.0
      %237 = vst.msk [vmem:[#allocation2 + $0xa8] sm:$0xff] %vm214, 0.0
      %238 = vst.msk [vmem:[#allocation2 + $0xb0] sm:$0xff] %vm214, 0.0
      %239 = vst.msk [vmem:[#allocation2 + $0xb8] sm:$0x3] %vm217, 0.0
      %240 = vst.msk [vmem:[#allocation2 + $0xc0] sm:$0xff] %vm214, 0.0
      %241 = vst.msk [vmem:[#allocation2 + $0xc8] sm:$0xff] %vm214, 0.0
      %242 = vst.msk [vmem:[#allocation2 + $0xd0] sm:$0x3] %vm217, 0.0
      %243 = vst.msk [vmem:[#allocation2 + $0xd8] sm:$0xff] %vm214, 0.0
      %244 = vst.msk [vmem:[#allocation2 + $0xe0] sm:$0xff] %vm214, 0.0
      %245 = vst.msk [vmem:[#allocation2 + $0xe8] sm:$0x3] %vm217, 0.0
      %246 = vst.msk [vmem:[#allocation2 + $0xf0] sm:$0xff] %vm214, 0.0
      %247 = vst.msk [vmem:[#allocation2 + $0xf8] sm:$0xff] %vm214, 0.0
      %248 = vst.msk [vmem:[#allocation2 + $0x100] sm:$0x3] %vm217, 0.0
      %249 = vst.msk [vmem:[#allocation2 + $0x108] sm:$0xff] %vm214, 0.0
      %250 = vst.msk [vmem:[#allocation2 + $0x110] sm:$0xff] %vm214, 0.0
      %251 = vst.msk [vmem:[#allocation2 + $0x118] sm:$0x3] %vm217, 0.0
      %252 = vst.msk [vmem:[#allocation2 + $0x120] sm:$0xff] %vm214, 0.0
      %253 = vst.msk [vmem:[#allocation2 + $0x128] sm:$0xff] %vm214, 0.0
      %254 = vst.msk [vmem:[#allocation2 + $0x130] sm:$0x3] %vm217, 0.0
      %255 = vst.msk [vmem:[#allocation2 + $0x138] sm:$0xff] %vm214, 0.0
      %256 = vst.msk [vmem:[#allocation2 + $0x140] sm:$0xff] %vm214, 0.0
      %257 = vst.msk [vmem:[#allocation2 + $0x148] sm:$0x3] %vm217, 0.0
      %258 = vst.msk [vmem:[#allocation2 + $0x150] sm:$0xff] %vm214, 0.0
      %259 = vst.msk [vmem:[#allocation2 + $0x158] sm:$0xff] %vm214, 0.0
      %260 = vst.msk [vmem:[#allocation2 + $0x160] sm:$0x3] %vm217, 0.0
      %261 = vst.msk [vmem:[#allocation2 + $0x168] sm:$0xff] %vm214, 0.0
      %262 = vst.msk [vmem:[#allocation2 + $0x170] sm:$0xff] %vm214, 0.0
      %263 = vst.msk [vmem:[#allocation2 + $0x178] sm:$0x3] %vm217, 0.0
      %264 = vst.msk [vmem:[#allocation2 + $0x180] sm:$0xff] %vm214, 0.0
      %265 = vst.msk [vmem:[#allocation2 + $0x188] sm:$0xff] %vm214, 0.0
      %266 = vst.msk [vmem:[#allocation2 + $0x190] sm:$0x3] %vm217, 0.0
      %267 = vst.msk [vmem:[#allocation2 + $0x198] sm:$0xff] %vm214, 0.0
      %268 = vst.msk [vmem:[#allocation2 + $0x1a0] sm:$0xff] %vm214, 0.0
      %269 = vst.msk [vmem:[#allocation2 + $0x1a8] sm:$0x3] %vm217, 0.0
      %s270 = scalar_lea.vmem [#allocation2], 24
      %271 = vst.msk [vmem:[%s270 + $0x1] sm:$0xff] %vm214, %v182
      %272 = vst.msk [vmem:[%s270 + $0x9] sm:$0xff] %vm214, %v183
      %273 = vst.msk [vmem:[%s270 + $0x19] sm:$0xff] %vm214, %v184
      %274 = vst.msk [vmem:[%s270 + $0x21] sm:$0xff] %vm214, %v185
      %275 = vst.msk [vmem:[%s270 + $0x31] sm:$0xff] %vm214, %v186
      %276 = vst.msk [vmem:[%s270 + $0x39] sm:$0xff] %vm214, %v187
      %277 = vst.msk [vmem:[%s270 + $0x49] sm:$0xff] %vm214, %v188
      %278 = vst.msk [vmem:[%s270 + $0x51] sm:$0xff] %vm214, %v189
      %279 = vst.msk [vmem:[%s270 + $0x61] sm:$0xff] %vm214, %v190
      %280 = vst.msk [vmem:[%s270 + $0x69] sm:$0xff] %vm214, %v191
      %281 = vst.msk [vmem:[%s270 + $0x79] sm:$0xff] %vm214, %v192
      %282 = vst.msk [vmem:[%s270 + $0x81] sm:$0xff] %vm214, %v193
      %283 = vst.msk [vmem:[%s270 + $0x91] sm:$0xff] %vm214, %v194
      %284 = vst.msk [vmem:[%s270 + $0x99] sm:$0xff] %vm214, %v195
      %285 = vst.msk [vmem:[%s270 + $0xa9] sm:$0xff] %vm214, %v196
      %286 = vst.msk [vmem:[%s270 + $0xb1] sm:$0xff] %vm214, %v197
      %287 = vst.msk [vmem:[%s270 + $0xc1] sm:$0xff] %vm214, %v198
      %288 = vst.msk [vmem:[%s270 + $0xc9] sm:$0xff] %vm214, %v199
      %289 = vst.msk [vmem:[%s270 + $0xd9] sm:$0xff] %vm214, %v200
      %290 = vst.msk [vmem:[%s270 + $0xe1] sm:$0xff] %vm214, %v201
      %291 = vst.msk [vmem:[%s270 + $0xf1] sm:$0xff] %vm214, %v202
      %292 = vst.msk [vmem:[%s270 + $0xf9] sm:$0xff] %vm214, %v203
      %293 = vst.msk [vmem:[%s270 + $0x109] sm:$0xff] %vm214, %v204
      %294 = vst.msk [vmem:[%s270 + $0x111] sm:$0xff] %vm214, %v205
      %295 = vst.msk [vmem:[%s270 + $0x121] sm:$0xff] %vm214, %v206
      %296 = vst.msk [vmem:[%s270 + $0x129] sm:$0xff] %vm214, %v207
      %297 = vst.msk [vmem:[%s270 + $0x139] sm:$0xff] %vm214, %v208
      %298 = vst.msk [vmem:[%s270 + $0x141] sm:$0xff] %vm214, %v209
      %299 = vst.msk [vmem:[%s270 + $0x151] sm:$0xff] %vm214, %v210
      %300 = vst.msk [vmem:[%s270 + $0x159] sm:$0xff] %vm214, %v211
      %301 = vst.msk [vmem:[%s270 + $0x169] sm:$0xff] %vm214, %v212
      %302 = vst.msk [vmem:[%s270 + $0x171] sm:$0xff] %vm214, %v213
      %v303 = vld [vmem:[#allocation2] sm:$0xff]
      %v304 = vld [vmem:[#allocation2 + $0x8] sm:$0xff]
      %v305 = vld [vmem:[#allocation2 + $0x10] sm:$0x3]
      %v306 = vld [vmem:[#allocation2 + $0x18] sm:$0xff]
      %v307 = vld [vmem:[#allocation2 + $0x20] sm:$0xff]
      %v308 = vld [vmem:[#allocation2 + $0x28] sm:$0x3]
      %v309 = vld [vmem:[#allocation2 + $0x30] sm:$0xff]
      %v310 = vld [vmem:[#allocation2 + $0x38] sm:$0xff]
      %v311 = vld [vmem:[#allocation2 + $0x40] sm:$0x3]
      %v312 = vld [vmem:[#allocation2 + $0x48] sm:$0xff]
      %v313 = vld [vmem:[#allocation2 + $0x50] sm:$0xff]
      %v314 = vld [vmem:[#allocation2 + $0x58] sm:$0x3]
      %v315 = vld [vmem:[#allocation2 + $0x60] sm:$0xff]
      %v316 = vld [vmem:[#allocation2 + $0x68] sm:$0xff]
      %v317 = vld [vmem:[#allocation2 + $0x70] sm:$0x3]
      %v318 = vld [vmem:[#allocation2 + $0x78] sm:$0xff]
      %v319 = vld [vmem:[#allocation2 + $0x80] sm:$0xff]
      %v320 = vld [vmem:[#allocation2 + $0x88] sm:$0x3]
      %v321 = vld [vmem:[#allocation2 + $0x90] sm:$0xff]
      %v322 = vld [vmem:[#allocation2 + $0x98] sm:$0xff]
      %v323 = vld [vmem:[#allocation2 + $0xa0] sm:$0x3]
      %v324 = vld [vmem:[#allocation2 + $0xa8] sm:$0xff]
      %v325 = vld [vmem:[#allocation2 + $0xb0] sm:$0xff]
      %v326 = vld [vmem:[#allocation2 + $0xb8] sm:$0x3]
      %v327 = vld [vmem:[#allocation2 + $0xc0] sm:$0xff]
      %v328 = vld [vmem:[#allocation2 + $0xc8] sm:$0xff]
      %v329 = vld [vmem:[#allocation2 + $0xd0] sm:$0x3]
      %v330 = vld [vmem:[#allocation2 + $0xd8] sm:$0xff]
      %v331 = vld [vmem:[#allocation2 + $0xe0] sm:$0xff]
      %v332 = vld [vmem:[#allocation2 + $0xe8] sm:$0x3]
      %v333 = vld [vmem:[#allocation2 + $0xf0] sm:$0xff]
      %v334 = vld [vmem:[#allocation2 + $0xf8] sm:$0xff]
      %v335 = vld [vmem:[#allocation2 + $0x100] sm:$0x3]
      %v336 = vld [vmem:[#allocation2 + $0x108] sm:$0xff]
      %v337 = vld [vmem:[#allocation2 + $0x110] sm:$0xff]
      %v338 = vld [vmem:[#allocation2 + $0x118] sm:$0x3]
      %v339 = vld [vmem:[#allocation2 + $0x120] sm:$0xff]
      %v340 = vld [vmem:[#allocation2 + $0x128] sm:$0xff]
      %v341 = vld [vmem:[#allocation2 + $0x130] sm:$0x3]
      %v342 = vld [vmem:[#allocation2 + $0x138] sm:$0xff]
      %v343 = vld [vmem:[#allocation2 + $0x140] sm:$0xff]
      %v344 = vld [vmem:[#allocation2 + $0x148] sm:$0x3]
      %v345 = vld [vmem:[#allocation2 + $0x150] sm:$0xff]
      %v346 = vld [vmem:[#allocation2 + $0x158] sm:$0xff]
      %v347 = vld [vmem:[#allocation2 + $0x160] sm:$0x3]
      %v348 = vld [vmem:[#allocation2 + $0x168] sm:$0xff]
      %v349 = vld [vmem:[#allocation2 + $0x170] sm:$0xff]
      %v350 = vld [vmem:[#allocation2 + $0x178] sm:$0x3]
      %v351 = vld [vmem:[#allocation2 + $0x180] sm:$0xff]
      %v352 = vld [vmem:[#allocation2 + $0x188] sm:$0xff]
      %v353 = vld [vmem:[#allocation2 + $0x190] sm:$0x3]
      %v354 = vld [vmem:[#allocation2 + $0x198] sm:$0xff]
      %v355 = vld [vmem:[#allocation2 + $0x1a0] sm:$0xff]
      %v356 = vld [vmem:[#allocation2 + $0x1a8] sm:$0x3]
      %v357 = vld [vmem:[%s1] sm:$0xf]
      %vm406 = vcmask 1046528
      %v407 = vrot.slane %v303, 1
      %v408 = vrot.slane %v304, 1
      %v409 = vsel %vm406, %v407, %v408
      %v410 = vrot.slane %v305, 1
      %v411 = vsel %vm406, %v408, %v410
      %v412 = vrot.slane %v306, 1
      %v413 = vrot.slane %v307, 1
      %v414 = vsel %vm406, %v412, %v413
      %v415 = vrot.slane %v308, 1
      %v416 = vsel %vm406, %v413, %v415
      %v417 = vrot.slane %v309, 1
      %v418 = vrot.slane %v310, 1
      %v419 = vsel %vm406, %v417, %v418
      %v420 = vrot.slane %v311, 1
      %v421 = vsel %vm406, %v418, %v420
      %v422 = vrot.slane %v312, 1
      %v423 = vrot.slane %v313, 1
      %v424 = vsel %vm406, %v422, %v423
      %v425 = vrot.slane %v314, 1
      %v426 = vsel %vm406, %v423, %v425
      %v427 = vrot.slane %v315, 1
      %v428 = vrot.slane %v316, 1
      %v429 = vsel %vm406, %v427, %v428
      %v430 = vrot.slane %v317, 1
      %v431 = vsel %vm406, %v428, %v430
      %v432 = vrot.slane %v318, 1
      %v433 = vrot.slane %v319, 1
      %v434 = vsel %vm406, %v432, %v433
      %v435 = vrot.slane %v320, 1
      %v436 = vsel %vm406, %v433, %v435
      %v437 = vrot.slane %v321, 1
      %v438 = vrot.slane %v322, 1
      %v439 = vsel %vm406, %v437, %v438
      %v440 = vrot.slane %v323, 1
      %v441 = vsel %vm406, %v438, %v440
      %v442 = vrot.slane %v324, 1
      %v443 = vrot.slane %v325, 1
      %v444 = vsel %vm406, %v442, %v443
      %v445 = vrot.slane %v326, 1
      %v446 = vsel %vm406, %v443, %v445
      %v447 = vrot.slane %v327, 1
      %v448 = vrot.slane %v328, 1
      %v449 = vsel %vm406, %v447, %v448
      %v450 = vrot.slane %v329, 1
      %v451 = vsel %vm406, %v448, %v450
      %v452 = vrot.slane %v330, 1
      %v453 = vrot.slane %v331, 1
      %v454 = vsel %vm406, %v452, %v453
      %v455 = vrot.slane %v332, 1
      %v456 = vsel %vm406, %v453, %v455
      %v457 = vrot.slane %v333, 1
      %v458 = vrot.slane %v334, 1
      %v459 = vsel %vm406, %v457, %v458
      %v460 = vrot.slane %v335, 1
      %v461 = vsel %vm406, %v458, %v460
      %v462 = vrot.slane %v336, 1
      %v463 = vrot.slane %v337, 1
      %v464 = vsel %vm406, %v462, %v463
      %v465 = vrot.slane %v338, 1
      %v466 = vsel %vm406, %v463, %v465
      %v467 = vrot.slane %v339, 1
      %v468 = vrot.slane %v340, 1
      %v469 = vsel %vm406, %v467, %v468
      %v470 = vrot.slane %v341, 1
      %v471 = vsel %vm406, %v468, %v470
      %v472 = vrot.slane %v342, 1
      %v473 = vrot.slane %v343, 1
      %v474 = vsel %vm406, %v472, %v473
      %v475 = vrot.slane %v344, 1
      %v476 = vsel %vm406, %v473, %v475
      %v477 = vrot.slane %v345, 1
      %v478 = vrot.slane %v346, 1
      %v479 = vsel %vm406, %v477, %v478
      %v480 = vrot.slane %v347, 1
      %v481 = vsel %vm406, %v478, %v480
      %v482 = vrot.slane %v348, 1
      %v483 = vrot.slane %v349, 1
      %v484 = vsel %vm406, %v482, %v483
      %v485 = vrot.slane %v350, 1
      %v486 = vsel %vm406, %v483, %v485
      %s487 = scalar_lea.vmem %s1, 4
      %v488 = vld [vmem:[%s487] sm:$0xf]
      %v489 = vsel %vm214, %v409, 0
      %v491 = vsel %vm214, %v411, 0
      %v493 = vsel %vm214, %v414, 0
      %v495 = vsel %vm214, %v416, 0
      %v497 = vsel %vm214, %v419, 0
      %v499 = vsel %vm214, %v421, 0
      %v501 = vsel %vm214, %v424, 0
      %v503 = vsel %vm214, %v426, 0
      %v505 = vsel %vm214, %v429, 0
      %v507 = vsel %vm214, %v431, 0
      %v509 = vsel %vm214, %v434, 0
      %v511 = vsel %vm214, %v436, 0
      %v513 = vsel %vm214, %v439, 0
      %v515 = vsel %vm214, %v441, 0
      %v517 = vsel %vm214, %v444, 0
      %v519 = vsel %vm214, %v446, 0
      %v521 = vsel %vm214, %v449, 0
      %v523 = vsel %vm214, %v451, 0
      %v525 = vsel %vm214, %v454, 0
      %v527 = vsel %vm214, %v456, 0
      %v529 = vsel %vm214, %v459, 0
      %v531 = vsel %vm214, %v461, 0
      %v533 = vsel %vm214, %v464, 0
      %v535 = vsel %vm214, %v466, 0
      %v537 = vsel %vm214, %v469, 0
      %v539 = vsel %vm214, %v471, 0
      %v541 = vsel %vm214, %v474, 0
      %v543 = vsel %vm214, %v476, 0
      %v545 = vsel %vm214, %v479, 0
      %v547 = vsel %vm214, %v481, 0
      %v549 = vsel %vm214, %v484, 0
      %v551 = vsel %vm214, %v486, 0
      %vm553 = vcmask 1043456
      %v555 = vsel %vm553, %v488, 0
      %557 = vmatprep.subr.mxu0 0.0
      %558 = vmatpush1.msra.mxu0 %v555
      %559 = vmatprep.subr.mxu0 0.0
      %560 = vmatpush1.msra.mxu0 0.0
      %561 = vmatprep.subr.mxu0 0.0
      %562 = vmatpush1.msra.mxu0 0.0
      %563 = vmatprep.subr.mxu0 0.0
      %564 = vmatpush1.msra.mxu0 0.0
      %565 = vmatprep.subr.mxu0 0.0
      %566 = vmatpush1.msra.mxu0 0.0
      %567 = vmatprep.subr.mxu0 0.0
      %568 = vmatpush1.msra.mxu0 0.0
      %569 = vmatprep.subr.mxu0 0.0
      %570 = vmatpush1.msra.mxu0 0.0
      %571 = vmatprep.subr.mxu0 0.0
      %572 = vmatpush1.msra.mxu0 0.0
      %573 = vmatprep.subr.mxu0 0.0
      %574 = vmatpush1.msra.mxu0 0.0
      %575 = vmatprep.subr.mxu0 0.0
      %576 = vmatpush1.msra.mxu0 0.0
      %577 = vmatprep.subr.mxu0 0.0
      %578 = vmatpush1.msra.mxu0 0.0
      %579 = vmatprep.subr.mxu0 0.0
      %580 = vmatpush1.msra.mxu0 0.0
      %581 = vmatprep.subr.mxu0 0.0
      %582 = vmatpush1.msra.mxu0 0.0
      %583 = vmatprep.subr.mxu0 0.0
      %584 = vmatpush1.msra.mxu0 0.0
      %585 = vmatprep.subr.mxu0 0.0
      %586 = vmatpush1.msra.mxu0 0.0
      %587 = vmatprep.subr.mxu0 0.0
      %588 = vmatpush1.msra.mxu0 0.0
      %589 = vmatprep.subr.mxu0 0.0
      %590 = vmatpush1.msra.mxu0 0.0
      %591 = vmatprep.subr.mxu0 0.0
      %592 = vmatpush1.msra.mxu0 0.0
      %593 = vmatprep.subr.mxu0 0.0
      %594 = vmatpush1.msra.mxu0 0.0
      %595 = vmatprep.subr.mxu0 0.0
      %596 = vmatpush1.msra.mxu0 0.0
      %597 = vmatprep.subr.mxu0 0.0
      %598 = vmatpush1.msra.mxu0 0.0
      %599 = vmatprep.subr.mxu0 0.0
      %600 = vmatpush1.msra.mxu0 0.0
      %601 = vmatprep.subr.mxu0 0.0
      %602 = vmatpush1.msra.mxu0 0.0
      %603 = vmatprep.subr.mxu0 0.0
      %604 = vmatpush1.msra.mxu0 0.0
      %605 = vmatprep.subr.mxu0 0.0
      %606 = vmatpush1.msra.mxu0 0.0
      %607 = vmatprep.subr.mxu0 0.0
      %608 = vmatpush1.msra.mxu0 0.0
      %609 = vmatprep.subr.mxu0 0.0
      %610 = vmatpush1.msra.mxu0 0.0
      %611 = vmatprep.subr.mxu0 0.0
      %612 = vmatpush1.msra.mxu0 0.0
      %613 = vmatprep.subr.mxu0 0.0
      %614 = vmatpush1.msra.mxu0 0.0
      %615 = vmatprep.subr.mxu0 0.0
      %616 = vmatpush1.msra.mxu0 0.0
      %617 = vmatprep.subr.mxu0 0.0
      %618 = vmatpush1.msra.mxu0 0.0
      %619 = vmatprep.subr.mxu0 0.0
      %620 = vmatpush1.msra.mxu0 0.0
      %621 = vmatprep.mubr.f32.mxu0 0.0
      %622 = vmatmul.mubr.f32.gmra.mrb[0].mxu0 %v489
      %v623 = vpop.f32.mrb[0].mxu0
      %v624 = vadd.f32 0.0, %v623
      %v625 = vpop.f32.mrb[0].mxu0
      %626 = vmatprep.mubr.f32.mxu0 0.0
      %627 = vmatmul.mubr.f32.gmra.mrb[0].mxu0 %v491
      %v628 = vpop.f32.mrb[0].mxu0
      %v629 = vadd.f32 0.0, %v628
      %v630 = vpop.f32.mrb[0].mxu0
      %631 = vmatprep.mubr.f32.mxu0 0.0
      %632 = vmatmul.mubr.f32.gmra.mrb[0].mxu0 %v493
      %v633 = vpop.f32.mrb[0].mxu0
      %v634 = vadd.f32 0.0, %v633
      %v635 = vpop.f32.mrb[0].mxu0
      %636 = vmatprep.mubr.f32.mxu0 0.0
      %637 = vmatmul.mubr.f32.gmra.mrb[0].mxu0 %v495
      %v638 = vpop.f32.mrb[0].mxu0
      %v639 = vadd.f32 0.0, %v638
      %v640 = vpop.f32.mrb[0].mxu0
      %641 = vmatprep.mubr.f32.mxu0 0.0
      %642 = vmatmul.mubr.f32.gmra.mrb[0].mxu0 %v497
      %v643 = vpop.f32.mrb[0].mxu0
      %v644 = vadd.f32 0.0, %v643
      %v645 = vpop.f32.mrb[0].mxu0
      %646 = vmatprep.mubr.f32.mxu0 0.0
      %647 = vmatmul.mubr.f32.gmra.mrb[0].mxu0 %v499
      %v648 = vpop.f32.mrb[0].mxu0
      %v649 = vadd.f32 0.0, %v648
      %v650 = vpop.f32.mrb[0].mxu0
      %651 = vmatprep.mubr.f32.mxu0 0.0
      %652 = vmatmul.mubr.f32.gmra.mrb[0].mxu0 %v501
      %v653 = vpop.f32.mrb[0].mxu0
      %v654 = vadd.f32 0.0, %v653
      %v655 = vpop.f32.mrb[0].mxu0
      %656 = vmatprep.mubr.f32.mxu0 0.0
      %657 = vmatmul.mubr.f32.gmra.mrb[0].mxu0 %v503
      %v658 = vpop.f32.mrb[0].mxu0
      %v659 = vadd.f32 0.0, %v658
      %v660 = vpop.f32.mrb[0].mxu0
      %661 = vmatprep.mubr.f32.mxu0 0.0
      %662 = vmatmul.mubr.f32.gmra.mrb[0].mxu0 %v505
      %v663 = vpop.f32.mrb[0].mxu0
      %v664 = vadd.f32 0.0, %v663
      %v665 = vpop.f32.mrb[0].mxu0
      %666 = vmatprep.mubr.f32.mxu0 0.0
      %667 = vmatmul.mubr.f32.gmra.mrb[0].mxu0 %v507
      %v668 = vpop.f32.mrb[0].mxu0
      %v669 = vadd.f32 0.0, %v668
      %v670 = vpop.f32.mrb[0].mxu0
      %671 = vmatprep.mubr.f32.mxu0 0.0
      %672 = vmatmul.mubr.f32.gmra.mrb[0].mxu0 %v509
      %v673 = vpop.f32.mrb[0].mxu0
      %v674 = vadd.f32 0.0, %v673
      %v675 = vpop.f32.mrb[0].mxu0
      %676 = vmatprep.mubr.f32.mxu0 0.0
      %677 = vmatmul.mubr.f32.gmra.mrb[0].mxu0 %v511
      %v678 = vpop.f32.mrb[0].mxu0
      %v679 = vadd.f32 0.0, %v678
      %v680 = vpop.f32.mrb[0].mxu0
      %681 = vmatprep.mubr.f32.mxu0 0.0
      %682 = vmatmul.mubr.f32.gmra.mrb[0].mxu0 %v513
      %v683 = vpop.f32.mrb[0].mxu0
      %v684 = vadd.f32 0.0, %v683
      %v685 = vpop.f32.mrb[0].mxu0
      %686 = vmatprep.mubr.f32.mxu0 0.0
      %687 = vmatmul.mubr.f32.gmra.mrb[0].mxu0 %v515
      %v688 = vpop.f32.mrb[0].mxu0
      %v689 = vadd.f32 0.0, %v688
      %v690 = vpop.f32.mrb[0].mxu0
      %691 = vmatprep.mubr.f32.mxu0 0.0
      %692 = vmatmul.mubr.f32.gmra.mrb[0].mxu0 %v517
      %v693 = vpop.f32.mrb[0].mxu0
      %v694 = vadd.f32 0.0, %v693
      %v695 = vpop.f32.mrb[0].mxu0
      %696 = vmatprep.mubr.f32.mxu0 0.0
      %697 = vmatmul.mubr.f32.gmra.mrb[0].mxu0 %v519
      %v698 = vpop.f32.mrb[0].mxu0
      %v699 = vadd.f32 0.0, %v698
      %v700 = vpop.f32.mrb[0].mxu0
      %701 = vmatprep.mubr.f32.mxu0 0.0
      %702 = vmatmul.mubr.f32.gmra.mrb[0].mxu0 %v521
      %v703 = vpop.f32.mrb[0].mxu0
      %v704 = vadd.f32 0.0, %v703
      %v705 = vpop.f32.mrb[0].mxu0
      %706 = vmatprep.mubr.f32.mxu0 0.0
      %707 = vmatmul.mubr.f32.gmra.mrb[0].mxu0 %v523
      %v708 = vpop.f32.mrb[0].mxu0
      %v709 = vadd.f32 0.0, %v708
      %v710 = vpop.f32.mrb[0].mxu0
      %711 = vmatprep.mubr.f32.mxu0 0.0
      %712 = vmatmul.mubr.f32.gmra.mrb[0].mxu0 %v525
      %v713 = vpop.f32.mrb[0].mxu0
      %v714 = vadd.f32 0.0, %v713
      %v715 = vpop.f32.mrb[0].mxu0
      %716 = vmatprep.mubr.f32.mxu0 0.0
      %717 = vmatmul.mubr.f32.gmra.mrb[0].mxu0 %v527
      %v718 = vpop.f32.mrb[0].mxu0
      %v719 = vadd.f32 0.0, %v718
      %v720 = vpop.f32.mrb[0].mxu0
      %721 = vmatprep.mubr.f32.mxu0 0.0
      %722 = vmatmul.mubr.f32.gmra.mrb[0].mxu0 %v529
      %v723 = vpop.f32.mrb[0].mxu0
      %v724 = vadd.f32 0.0, %v723
      %v725 = vpop.f32.mrb[0].mxu0
      %726 = vmatprep.mubr.f32.mxu0 0.0
      %727 = vmatmul.mubr.f32.gmra.mrb[0].mxu0 %v531
      %v728 = vpop.f32.mrb[0].mxu0
      %v729 = vadd.f32 0.0, %v728
      %v730 = vpop.f32.mrb[0].mxu0
      %731 = vmatprep.mubr.f32.mxu0 0.0
      %732 = vmatmul.mubr.f32.gmra.mrb[0].mxu0 %v533
      %v733 = vpop.f32.mrb[0].mxu0
      %v734 = vadd.f32 0.0, %v733
      %v735 = vpop.f32.mrb[0].mxu0
      %736 = vmatprep.mubr.f32.mxu0 0.0
      %737 = vmatmul.mubr.f32.gmra.mrb[0].mxu0 %v535
      %v738 = vpop.f32.mrb[0].mxu0
      %v739 = vadd.f32 0.0, %v738
      %v740 = vpop.f32.mrb[0].mxu0
      %741 = vmatprep.mubr.f32.mxu0 0.0
      %742 = vmatmul.mubr.f32.gmra.mrb[0].mxu0 %v537
      %v743 = vpop.f32.mrb[0].mxu0
      %v744 = vadd.f32 0.0, %v743
      %v745 = vpop.f32.mrb[0].mxu0
      %746 = vmatprep.mubr.f32.mxu0 0.0
      %747 = vmatmul.mubr.f32.gmra.mrb[0].mxu0 %v539
      %v748 = vpop.f32.mrb[0].mxu0
      %v749 = vadd.f32 0.0, %v748
      %v750 = vpop.f32.mrb[0].mxu0
      %751 = vmatprep.mubr.f32.mxu0 0.0
      %752 = vmatmul.mubr.f32.gmra.mrb[0].mxu0 %v541
      %v753 = vpop.f32.mrb[0].mxu0
      %v754 = vadd.f32 0.0, %v753
      %v755 = vpop.f32.mrb[0].mxu0
      %756 = vmatprep.mubr.f32.mxu0 0.0
      %757 = vmatmul.mubr.f32.gmra.mrb[0].mxu0 %v543
      %v758 = vpop.f32.mrb[0].mxu0
      %v759 = vadd.f32 0.0, %v758
      %v760 = vpop.f32.mrb[0].mxu0
      %761 = vmatprep.mubr.f32.mxu0 0.0
      %762 = vmatmul.mubr.f32.gmra.mrb[0].mxu0 %v545
      %v763 = vpop.f32.mrb[0].mxu0
      %v764 = vadd.f32 0.0, %v763
      %v765 = vpop.f32.mrb[0].mxu0
      %766 = vmatprep.mubr.f32.mxu0 0.0
      %767 = vmatmul.mubr.f32.gmra.mrb[0].mxu0 %v547
      %v768 = vpop.f32.mrb[0].mxu0
      %v769 = vadd.f32 0.0, %v768
      %v770 = vpop.f32.mrb[0].mxu0
      %771 = vmatprep.mubr.f32.mxu0 0.0
      %772 = vmatmul.mubr.f32.gmra.mrb[0].mxu0 %v549
      %v773 = vpop.f32.mrb[0].mxu0
      %v774 = vadd.f32 0.0, %v773
      %v775 = vpop.f32.mrb[0].mxu0
      %776 = vmatprep.mubr.f32.mxu0 0.0
      %777 = vmatmul.mubr.f32.gmra.mrb[0].mxu0 %v551
      %v778 = vpop.f32.mrb[0].mxu0
      %v779 = vadd.f32 0.0, %v778
      %v780 = vpop.f32.mrb[0].mxu0
      %781 = vdwg.mxu0
      %v782 = vsel %vm214, %v303, 0
      %v784 = vsel %vm214, %v304, 0
      %v786 = vsel %vm214, %v306, 0
      %v788 = vsel %vm214, %v307, 0
      %v790 = vsel %vm214, %v309, 0
      %v792 = vsel %vm214, %v310, 0
      %v794 = vsel %vm214, %v312, 0
      %v796 = vsel %vm214, %v313, 0
      %v798 = vsel %vm214, %v315, 0
      %v800 = vsel %vm214, %v316, 0
      %v802 = vsel %vm214, %v318, 0
      %v804 = vsel %vm214, %v319, 0
      %v806 = vsel %vm214, %v321, 0
      %v808 = vsel %vm214, %v322, 0
      %v810 = vsel %vm214, %v324, 0
      %v812 = vsel %vm214, %v325, 0
      %v814 = vsel %vm214, %v327, 0
      %v816 = vsel %vm214, %v328, 0
      %v818 = vsel %vm214, %v330, 0
      %v820 = vsel %vm214, %v331, 0
      %v822 = vsel %vm214, %v333, 0
      %v824 = vsel %vm214, %v334, 0
      %v826 = vsel %vm214, %v336, 0
      %v828 = vsel %vm214, %v337, 0
      %v830 = vsel %vm214, %v339, 0
      %v832 = vsel %vm214, %v340, 0
      %v834 = vsel %vm214, %v342, 0
      %v836 = vsel %vm214, %v343, 0
      %v838 = vsel %vm214, %v345, 0
      %v840 = vsel %vm214, %v346, 0
      %v842 = vsel %vm214, %v348, 0
      %v844 = vsel %vm214, %v349, 0
      %v847 = vsel %vm553, %v357, 0
      %849 = vmatprep.subr.mxu0 0.0
      %850 = vmatpush1.msra.mxu0 %v847
      %851 = vmatprep.subr.mxu0 0.0
      %852 = vmatpush1.msra.mxu0 0.0
      %853 = vmatprep.subr.mxu0 0.0
      %854 = vmatpush1.msra.mxu0 0.0
      %855 = vmatprep.subr.mxu0 0.0
      %856 = vmatpush1.msra.mxu0 0.0
      %857 = vmatprep.subr.mxu0 0.0
      %858 = vmatpush1.msra.mxu0 0.0
      %859 = vmatprep.subr.mxu0 0.0
      %860 = vmatpush1.msra.mxu0 0.0
      %861 = vmatprep.subr.mxu0 0.0
      %862 = vmatpush1.msra.mxu0 0.0
      %863 = vmatprep.subr.mxu0 0.0
      %864 = vmatpush1.msra.mxu0 0.0
      %865 = vmatprep.subr.mxu0 0.0
      %866 = vmatpush1.msra.mxu0 0.0
      %867 = vmatprep.subr.mxu0 0.0
      %868 = vmatpush1.msra.mxu0 0.0
      %869 = vmatprep.subr.mxu0 0.0
      %870 = vmatpush1.msra.mxu0 0.0
      %871 = vmatprep.subr.mxu0 0.0
      %872 = vmatpush1.msra.mxu0 0.0
      %873 = vmatprep.subr.mxu0 0.0
      %874 = vmatpush1.msra.mxu0 0.0
      %875 = vmatprep.subr.mxu0 0.0
      %876 = vmatpush1.msra.mxu0 0.0
      %877 = vmatprep.subr.mxu0 0.0
      %878 = vmatpush1.msra.mxu0 0.0
      %879 = vmatprep.subr.mxu0 0.0
      %880 = vmatpush1.msra.mxu0 0.0
      %881 = vmatprep.subr.mxu0 0.0
      %882 = vmatpush1.msra.mxu0 0.0
      %883 = vmatprep.subr.mxu0 0.0
      %884 = vmatpush1.msra.mxu0 0.0
      %885 = vmatprep.subr.mxu0 0.0
      %886 = vmatpush1.msra.mxu0 0.0
      %887 = vmatprep.subr.mxu0 0.0
      %888 = vmatpush1.msra.mxu0 0.0
      %889 = vmatprep.subr.mxu0 0.0
      %890 = vmatpush1.msra.mxu0 0.0
      %891 = vmatprep.subr.mxu0 0.0
      %892 = vmatpush1.msra.mxu0 0.0
      %893 = vmatprep.subr.mxu0 0.0
      %894 = vmatpush1.msra.mxu0 0.0
      %895 = vmatprep.subr.mxu0 0.0
      %896 = vmatpush1.msra.mxu0 0.0
      %897 = vmatprep.subr.mxu0 0.0
      %898 = vmatpush1.msra.mxu0 0.0
      %899 = vmatprep.subr.mxu0 0.0
      %900 = vmatpush1.msra.mxu0 0.0
      %901 = vmatprep.subr.mxu0 0.0
      %902 = vmatpush1.msra.mxu0 0.0
      %903 = vmatprep.subr.mxu0 0.0
      %904 = vmatpush1.msra.mxu0 0.0
      %905 = vmatprep.subr.mxu0 0.0
      %906 = vmatpush1.msra.mxu0 0.0
      %907 = vmatprep.subr.mxu0 0.0
      %908 = vmatpush1.msra.mxu0 0.0
      %909 = vmatprep.subr.mxu0 0.0
      %910 = vmatpush1.msra.mxu0 0.0
      %911 = vmatprep.subr.mxu0 0.0
      %912 = vmatpush1.msra.mxu0 0.0
      %913 = vmatprep.mubr.f32.mxu0 0.0
      %914 = vmatmul.mubr.f32.gmra.mrb[0].mxu0 %v782
      %v915 = vpop.f32.mrb[0].mxu0
      %v916 = vadd.f32 %v624, %v915
      %v917 = vpop.f32.mrb[0].mxu0
      %918 = vmatprep.mubr.f32.mxu0 0.0
      %919 = vmatmul.mubr.f32.gmra.mrb[0].mxu0 %v784
      %v920 = vpop.f32.mrb[0].mxu0
      %v921 = vadd.f32 %v629, %v920
      %v922 = vpop.f32.mrb[0].mxu0
      %923 = vmatprep.mubr.f32.mxu0 0.0
      %924 = vmatmul.mubr.f32.gmra.mrb[0].mxu0 %v786
      %v925 = vpop.f32.mrb[0].mxu0
      %v926 = vadd.f32 %v634, %v925
      %v927 = vpop.f32.mrb[0].mxu0
      %928 = vmatprep.mubr.f32.mxu0 0.0
      %929 = vmatmul.mubr.f32.gmra.mrb[0].mxu0 %v788
      %v930 = vpop.f32.mrb[0].mxu0
      %v931 = vadd.f32 %v639, %v930
      %v932 = vpop.f32.mrb[0].mxu0
      %933 = vmatprep.mubr.f32.mxu0 0.0
      %934 = vmatmul.mubr.f32.gmra.mrb[0].mxu0 %v790
      %v935 = vpop.f32.mrb[0].mxu0
      %v936 = vadd.f32 %v644, %v935
      %v937 = vpop.f32.mrb[0].mxu0
      %938 = vmatprep.mubr.f32.mxu0 0.0
      %939 = vmatmul.mubr.f32.gmra.mrb[0].mxu0 %v792
      %v940 = vpop.f32.mrb[0].mxu0
      %v941 = vadd.f32 %v649, %v940
      %v942 = vpop.f32.mrb[0].mxu0
      %943 = vmatprep.mubr.f32.mxu0 0.0
      %944 = vmatmul.mubr.f32.gmra.mrb[0].mxu0 %v794
      %v945 = vpop.f32.mrb[0].mxu0
      %v946 = vadd.f32 %v654, %v945
      %v947 = vpop.f32.mrb[0].mxu0
      %948 = vmatprep.mubr.f32.mxu0 0.0
      %949 = vmatmul.mubr.f32.gmra.mrb[0].mxu0 %v796
      %v950 = vpop.f32.mrb[0].mxu0
      %v951 = vadd.f32 %v659, %v950
      %v952 = vpop.f32.mrb[0].mxu0
      %953 = vmatprep.mubr.f32.mxu0 0.0
      %954 = vmatmul.mubr.f32.gmra.mrb[0].mxu0 %v798
      %v955 = vpop.f32.mrb[0].mxu0
      %v956 = vadd.f32 %v664, %v955
      %v957 = vpop.f32.mrb[0].mxu0
      %958 = vmatprep.mubr.f32.mxu0 0.0
      %959 = vmatmul.mubr.f32.gmra.mrb[0].mxu0 %v800
      %v960 = vpop.f32.mrb[0].mxu0
      %v961 = vadd.f32 %v669, %v960
      %v962 = vpop.f32.mrb[0].mxu0
      %963 = vmatprep.mubr.f32.mxu0 0.0
      %964 = vmatmul.mubr.f32.gmra.mrb[0].mxu0 %v802
      %v965 = vpop.f32.mrb[0].mxu0
      %v966 = vadd.f32 %v674, %v965
      %v967 = vpop.f32.mrb[0].mxu0
      %968 = vmatprep.mubr.f32.mxu0 0.0
      %969 = vmatmul.mubr.f32.gmra.mrb[0].mxu0 %v804
      %v970 = vpop.f32.mrb[0].mxu0
      %v971 = vadd.f32 %v679, %v970
      %v972 = vpop.f32.mrb[0].mxu0
      %973 = vmatprep.mubr.f32.mxu0 0.0
      %974 = vmatmul.mubr.f32.gmra.mrb[0].mxu0 %v806
      %v975 = vpop.f32.mrb[0].mxu0
      %v976 = vadd.f32 %v684, %v975
      %v977 = vpop.f32.mrb[0].mxu0
      %978 = vmatprep.mubr.f32.mxu0 0.0
      %979 = vmatmul.mubr.f32.gmra.mrb[0].mxu0 %v808
      %v980 = vpop.f32.mrb[0].mxu0
      %v981 = vadd.f32 %v689, %v980
      %v982 = vpop.f32.mrb[0].mxu0
      %983 = vmatprep.mubr.f32.mxu0 0.0
      %984 = vmatmul.mubr.f32.gmra.mrb[0].mxu0 %v810
      %v985 = vpop.f32.mrb[0].mxu0
      %v986 = vadd.f32 %v694, %v985
      %v987 = vpop.f32.mrb[0].mxu0
      %988 = vmatprep.mubr.f32.mxu0 0.0
      %989 = vmatmul.mubr.f32.gmra.mrb[0].mxu0 %v812
      %v990 = vpop.f32.mrb[0].mxu0
      %v991 = vadd.f32 %v699, %v990
      %v992 = vpop.f32.mrb[0].mxu0
      %993 = vmatprep.mubr.f32.mxu0 0.0
      %994 = vmatmul.mubr.f32.gmra.mrb[0].mxu0 %v814
      %v995 = vpop.f32.mrb[0].mxu0
      %v996 = vadd.f32 %v704, %v995
      %v997 = vpop.f32.mrb[0].mxu0
      %998 = vmatprep.mubr.f32.mxu0 0.0
      %999 = vmatmul.mubr.f32.gmra.mrb[0].mxu0 %v816
      %v1000 = vpop.f32.mrb[0].mxu0
      %v1001 = vadd.f32 %v709, %v1000
      %v1002 = vpop.f32.mrb[0].mxu0
      %1003 = vmatprep.mubr.f32.mxu0 0.0
      %1004 = vmatmul.mubr.f32.gmra.mrb[0].mxu0 %v818
      %v1005 = vpop.f32.mrb[0].mxu0
      %v1006 = vadd.f32 %v714, %v1005
      %v1007 = vpop.f32.mrb[0].mxu0
      %1008 = vmatprep.mubr.f32.mxu0 0.0
      %1009 = vmatmul.mubr.f32.gmra.mrb[0].mxu0 %v820
      %v1010 = vpop.f32.mrb[0].mxu0
      %v1011 = vadd.f32 %v719, %v1010
      %v1012 = vpop.f32.mrb[0].mxu0
      %1013 = vmatprep.mubr.f32.mxu0 0.0
      %1014 = vmatmul.mubr.f32.gmra.mrb[0].mxu0 %v822
      %v1015 = vpop.f32.mrb[0].mxu0
      %v1016 = vadd.f32 %v724, %v1015
      %v1017 = vpop.f32.mrb[0].mxu0
      %1018 = vmatprep.mubr.f32.mxu0 0.0
      %1019 = vmatmul.mubr.f32.gmra.mrb[0].mxu0 %v824
      %v1020 = vpop.f32.mrb[0].mxu0
      %v1021 = vadd.f32 %v729, %v1020
      %v1022 = vpop.f32.mrb[0].mxu0
      %1023 = vmatprep.mubr.f32.mxu0 0.0
      %1024 = vmatmul.mubr.f32.gmra.mrb[0].mxu0 %v826
      %v1025 = vpop.f32.mrb[0].mxu0
      %v1026 = vadd.f32 %v734, %v1025
      %v1027 = vpop.f32.mrb[0].mxu0
      %1028 = vmatprep.mubr.f32.mxu0 0.0
      %1029 = vmatmul.mubr.f32.gmra.mrb[0].mxu0 %v828
      %v1030 = vpop.f32.mrb[0].mxu0
      %v1031 = vadd.f32 %v739, %v1030
      %v1032 = vpop.f32.mrb[0].mxu0
      %1033 = vmatprep.mubr.f32.mxu0 0.0
      %1034 = vmatmul.mubr.f32.gmra.mrb[0].mxu0 %v830
      %v1035 = vpop.f32.mrb[0].mxu0
      %v1036 = vadd.f32 %v744, %v1035
      %v1037 = vpop.f32.mrb[0].mxu0
      %1038 = vmatprep.mubr.f32.mxu0 0.0
      %1039 = vmatmul.mubr.f32.gmra.mrb[0].mxu0 %v832
      %v1040 = vpop.f32.mrb[0].mxu0
      %v1041 = vadd.f32 %v749, %v1040
      %v1042 = vpop.f32.mrb[0].mxu0
      %1043 = vmatprep.mubr.f32.mxu0 0.0
      %1044 = vmatmul.mubr.f32.gmra.mrb[0].mxu0 %v834
      %v1045 = vpop.f32.mrb[0].mxu0
      %v1046 = vadd.f32 %v754, %v1045
      %v1047 = vpop.f32.mrb[0].mxu0
      %1048 = vmatprep.mubr.f32.mxu0 0.0
      %1049 = vmatmul.mubr.f32.gmra.mrb[0].mxu0 %v836
      %v1050 = vpop.f32.mrb[0].mxu0
      %v1051 = vadd.f32 %v759, %v1050
      %v1052 = vpop.f32.mrb[0].mxu0
      %1053 = vmatprep.mubr.f32.mxu0 0.0
      %1054 = vmatmul.mubr.f32.gmra.mrb[0].mxu0 %v838
      %v1055 = vpop.f32.mrb[0].mxu0
      %v1056 = vadd.f32 %v764, %v1055
      %v1057 = vpop.f32.mrb[0].mxu0
      %1058 = vmatprep.mubr.f32.mxu0 0.0
      %1059 = vmatmul.mubr.f32.gmra.mrb[0].mxu0 %v840
      %v1060 = vpop.f32.mrb[0].mxu0
      %v1061 = vadd.f32 %v769, %v1060
      %v1062 = vpop.f32.mrb[0].mxu0
      %1063 = vmatprep.mubr.f32.mxu0 0.0
      %1064 = vmatmul.mubr.f32.gmra.mrb[0].mxu0 %v842
      %v1065 = vpop.f32.mrb[0].mxu0
      %v1066 = vadd.f32 %v774, %v1065
      %v1067 = vpop.f32.mrb[0].mxu0
      %1068 = vmatprep.mubr.f32.mxu0 0.0
      %1069 = vmatmul.mubr.f32.gmra.mrb[0].mxu0 %v844
      %v1070 = vpop.f32.mrb[0].mxu0
      %v1071 = vadd.f32 %v779, %v1070
      %v1072 = vpop.f32.mrb[0].mxu0
      %1073 = vdwg.mxu0
      %vm1074 = vcmask 1045504
      %v1075 = vrot.slane %v303, 2
      %v1076 = vrot.slane %v304, 2
      %v1077 = vsel %vm1074, %v1075, %v1076
      %v1078 = vrot.slane %v305, 2
      %v1079 = vsel %vm1074, %v1076, %v1078
      %v1080 = vrot.slane %v306, 2
      %v1081 = vrot.slane %v307, 2
      %v1082 = vsel %vm1074, %v1080, %v1081
      %v1083 = vrot.slane %v308, 2
      %v1084 = vsel %vm1074, %v1081, %v1083
      %v1085 = vrot.slane %v309, 2
      %v1086 = vrot.slane %v310, 2
      %v1087 = vsel %vm1074, %v1085, %v1086
      %v1088 = vrot.slane %v311, 2
      %v1089 = vsel %vm1074, %v1086, %v1088
      %v1090 = vrot.slane %v312, 2
      %v1091 = vrot.slane %v313, 2
      %v1092 = vsel %vm1074, %v1090, %v1091
      %v1093 = vrot.slane %v314, 2
      %v1094 = vsel %vm1074, %v1091, %v1093
      %v1095 = vrot.slane %v315, 2
      %v1096 = vrot.slane %v316, 2
      %v1097 = vsel %vm1074, %v1095, %v1096
      %v1098 = vrot.slane %v317, 2
      %v1099 = vsel %vm1074, %v1096, %v1098
      %v1100 = vrot.slane %v318, 2
      %v1101 = vrot.slane %v319, 2
      %v1102 = vsel %vm1074, %v1100, %v1101
      %v1103 = vrot.slane %v320, 2
      %v1104 = vsel %vm1074, %v1101, %v1103
      %v1105 = vrot.slane %v321, 2
      %v1106 = vrot.slane %v322, 2
      %v1107 = vsel %vm1074, %v1105, %v1106
      %v1108 = vrot.slane %v323, 2
      %v1109 = vsel %vm1074, %v1106, %v1108
      %v1110 = vrot.slane %v324, 2
      %v1111 = vrot.slane %v325, 2
      %v1112 = vsel %vm1074, %v1110, %v1111
      %v1113 = vrot.slane %v326, 2
      %v1114 = vsel %vm1074, %v1111, %v1113
      %v1115 = vrot.slane %v327, 2
      %v1116 = vrot.slane %v328, 2
      %v1117 = vsel %vm1074, %v1115, %v1116
      %v1118 = vrot.slane %v329, 2
      %v1119 = vsel %vm1074, %v1116, %v1118
      %v1120 = vrot.slane %v330, 2
      %v1121 = vrot.slane %v331, 2
      %v1122 = vsel %vm1074, %v1120, %v1121
      %v1123 = vrot.slane %v332, 2
      %v1124 = vsel %vm1074, %v1121, %v1123
      %v1125 = vrot.slane %v333, 2
      %v1126 = vrot.slane %v334, 2
      %v1127 = vsel %vm1074, %v1125, %v1126
      %v1128 = vrot.slane %v335, 2
      %v1129 = vsel %vm1074, %v1126, %v1128
      %v1130 = vrot.slane %v336, 2
      %v1131 = vrot.slane %v337, 2
      %v1132 = vsel %vm1074, %v1130, %v1131
      %v1133 = vrot.slane %v338, 2
      %v1134 = vsel %vm1074, %v1131, %v1133
      %v1135 = vrot.slane %v339, 2
      %v1136 = vrot.slane %v340, 2
      %v1137 = vsel %vm1074, %v1135, %v1136
      %v1138 = vrot.slane %v341, 2
      %v1139 = vsel %vm1074, %v1136, %v1138
      %v1140 = vrot.slane %v342, 2
      %v1141 = vrot.slane %v343, 2
      %v1142 = vsel %vm1074, %v1140, %v1141
      %v1143 = vrot.slane %v344, 2
      %v1144 = vsel %vm1074, %v1141, %v1143
      %v1145 = vrot.slane %v345, 2
      %v1146 = vrot.slane %v346, 2
      %v1147 = vsel %vm1074, %v1145, %v1146
      %v1148 = vrot.slane %v347, 2
      %v1149 = vsel %vm1074, %v1146, %v1148
      %v1150 = vrot.slane %v348, 2
      %v1151 = vrot.slane %v349, 2
      %v1152 = vsel %vm1074, %v1150, %v1151
      %v1153 = vrot.slane %v350, 2
      %v1154 = vsel %vm1074, %v1151, %v1153
      %s1155 = scalar_lea.vmem %s1, 8
      %v1156 = vld [vmem:[%s1155] sm:$0xf]
      %v1157 = vsel %vm214, %v1077, 0
      %v1159 = vsel %vm214, %v1079, 0
      %v1161 = vsel %vm214, %v1082, 0
      %v1163 = vsel %vm214, %v1084, 0
      %v1165 = vsel %vm214, %v1087, 0
      %v1167 = vsel %vm214, %v1089, 0
      %v1169 = vsel %vm214, %v1092, 0
      %v1171 = vsel %vm214, %v1094, 0
      %v1173 = vsel %vm214, %v1097, 0
      %v1175 = vsel %vm214, %v1099, 0
      %v1177 = vsel %vm214, %v1102, 0
      %v1179 = vsel %vm214, %v1104, 0
      %v1181 = vsel %vm214, %v1107, 0
      %v1183 = vsel %vm214, %v1109, 0
      %v1185 = vsel %vm214, %v1112, 0
      %v1187 = vsel %vm214, %v1114, 0
      %v1189 = vsel %vm214, %v1117, 0
      %v1191 = vsel %vm214, %v1119, 0
      %v1193 = vsel %vm214, %v1122, 0
      %v1195 = vsel %vm214, %v1124, 0
      %v1197 = vsel %vm214, %v1127, 0
      %v1199 = vsel %vm214, %v1129, 0
      %v1201 = vsel %vm214, %v1132, 0
      %v1203 = vsel %vm214, %v1134, 0
      %v1205 = vsel %vm214, %v1137, 0
      %v1207 = vsel %vm214, %v1139, 0
      %v1209 = vsel %vm214, %v1142, 0
      %v1211 = vsel %vm214, %v1144, 0
      %v1213 = vsel %vm214, %v1147, 0
      %v1215 = vsel %vm214, %v1149, 0
      %v1217 = vsel %vm214, %v1152, 0
      %v1219 = vsel %vm214, %v1154, 0
      %v1222 = vsel %vm553, %v1156, 0
      %1224 = vmatprep.subr.mxu0 0.0
      %1225 = vmatpush1.msra.mxu0 %v1222
      %1226 = vmatprep.subr.mxu0 0.0
      %1227 = vmatpush1.msra.mxu0 0.0
      %1228 = vmatprep.subr.mxu0 0.0
      %1229 = vmatpush1.msra.mxu0 0.0
      %1230 = vmatprep.subr.mxu0 0.0
      %1231 = vmatpush1.msra.mxu0 0.0
      %1232 = vmatprep.subr.mxu0 0.0
      %1233 = vmatpush1.msra.mxu0 0.0
      %1234 = vmatprep.subr.mxu0 0.0
      %1235 = vmatpush1.msra.mxu0 0.0
      %1236 = vmatprep.subr.mxu0 0.0
      %1237 = vmatpush1.msra.mxu0 0.0
      %1238 = vmatprep.subr.mxu0 0.0
      %1239 = vmatpush1.msra.mxu0 0.0
      %1240 = vmatprep.subr.mxu0 0.0
      %1241 = vmatpush1.msra.mxu0 0.0
      %1242 = vmatprep.subr.mxu0 0.0
      %1243 = vmatpush1.msra.mxu0 0.0
      %1244 = vmatprep.subr.mxu0 0.0
      %1245 = vmatpush1.msra.mxu0 0.0
      %1246 = vmatprep.subr.mxu0 0.0
      %1247 = vmatpush1.msra.mxu0 0.0
      %1248 = vmatprep.subr.mxu0 0.0
      %1249 = vmatpush1.msra.mxu0 0.0
      %1250 = vmatprep.subr.mxu0 0.0
      %1251 = vmatpush1.msra.mxu0 0.0
      %1252 = vmatprep.subr.mxu0 0.0
      %1253 = vmatpush1.msra.mxu0 0.0
      %1254 = vmatprep.subr.mxu0 0.0
      %1255 = vmatpush1.msra.mxu0 0.0
      %1256 = vmatprep.subr.mxu0 0.0
      %1257 = vmatpush1.msra.mxu0 0.0
      %1258 = vmatprep.subr.mxu0 0.0
      %1259 = vmatpush1.msra.mxu0 0.0
      %1260 = vmatprep.subr.mxu0 0.0
      %1261 = vmatpush1.msra.mxu0 0.0
      %1262 = vmatprep.subr.mxu0 0.0
      %1263 = vmatpush1.msra.mxu0 0.0
      %1264 = vmatprep.subr.mxu0 0.0
      %1265 = vmatpush1.msra.mxu0 0.0
      %1266 = vmatprep.subr.mxu0 0.0
      %1267 = vmatpush1.msra.mxu0 0.0
      %1268 = vmatprep.subr.mxu0 0.0
      %1269 = vmatpush1.msra.mxu0 0.0
      %1270 = vmatprep.subr.mxu0 0.0
      %1271 = vmatpush1.msra.mxu0 0.0
      %1272 = vmatprep.subr.mxu0 0.0
      %1273 = vmatpush1.msra.mxu0 0.0
      %1274 = vmatprep.subr.mxu0 0.0
      %1275 = vmatpush1.msra.mxu0 0.0
      %1276 = vmatprep.subr.mxu0 0.0
      %1277 = vmatpush1.msra.mxu0 0.0
      %1278 = vmatprep.subr.mxu0 0.0
      %1279 = vmatpush1.msra.mxu0 0.0
      %1280 = vmatprep.subr.mxu0 0.0
      %1281 = vmatpush1.msra.mxu0 0.0
      %1282 = vmatprep.subr.mxu0 0.0
      %1283 = vmatpush1.msra.mxu0 0.0
      %1284 = vmatprep.subr.mxu0 0.0
      %1285 = vmatpush1.msra.mxu0 0.0
      %1286 = vmatprep.subr.mxu0 0.0
      %1287 = vmatpush1.msra.mxu0 0.0
      %1288 = vmatprep.mubr.f32.mxu0 0.0
      %1289 = vmatmul.mubr.f32.gmra.mrb[0].mxu0 %v1157
      %v1290 = vpop.f32.mrb[0].mxu0
      %v1291 = vadd.f32 0.0, %v1290
      %v1292 = vpop.f32.mrb[0].mxu0
      %1293 = vmatprep.mubr.f32.mxu0 0.0
      %1294 = vmatmul.mubr.f32.gmra.mrb[0].mxu0 %v1159
      %v1295 = vpop.f32.mrb[0].mxu0
      %v1296 = vadd.f32 0.0, %v1295
      %v1297 = vpop.f32.mrb[0].mxu0
      %1298 = vmatprep.mubr.f32.mxu0 0.0
      %1299 = vmatmul.mubr.f32.gmra.mrb[0].mxu0 %v1161
      %v1300 = vpop.f32.mrb[0].mxu0
      %v1301 = vadd.f32 0.0, %v1300
      %v1302 = vpop.f32.mrb[0].mxu0
      %1303 = vmatprep.mubr.f32.mxu0 0.0
      %1304 = vmatmul.mubr.f32.gmra.mrb[0].mxu0 %v1163
      %v1305 = vpop.f32.mrb[0].mxu0
      %v1306 = vadd.f32 0.0, %v1305
      %v1307 = vpop.f32.mrb[0].mxu0
      %1308 = vmatprep.mubr.f32.mxu0 0.0
      %1309 = vmatmul.mubr.f32.gmra.mrb[0].mxu0 %v1165
      %v1310 = vpop.f32.mrb[0].mxu0
      %v1311 = vadd.f32 0.0, %v1310
      %v1312 = vpop.f32.mrb[0].mxu0
      %1313 = vmatprep.mubr.f32.mxu0 0.0
      %1314 = vmatmul.mubr.f32.gmra.mrb[0].mxu0 %v1167
      %v1315 = vpop.f32.mrb[0].mxu0
      %v1316 = vadd.f32 0.0, %v1315
      %v1317 = vpop.f32.mrb[0].mxu0
      %1318 = vmatprep.mubr.f32.mxu0 0.0
      %1319 = vmatmul.mubr.f32.gmra.mrb[0].mxu0 %v1169
      %v1320 = vpop.f32.mrb[0].mxu0
      %v1321 = vadd.f32 0.0, %v1320
      %v1322 = vpop.f32.mrb[0].mxu0
      %1323 = vmatprep.mubr.f32.mxu0 0.0
      %1324 = vmatmul.mubr.f32.gmra.mrb[0].mxu0 %v1171
      %v1325 = vpop.f32.mrb[0].mxu0
      %v1326 = vadd.f32 0.0, %v1325
      %v1327 = vpop.f32.mrb[0].mxu0
      %1328 = vmatprep.mubr.f32.mxu0 0.0
      %1329 = vmatmul.mubr.f32.gmra.mrb[0].mxu0 %v1173
      %v1330 = vpop.f32.mrb[0].mxu0
      %v1331 = vadd.f32 0.0, %v1330
      %v1332 = vpop.f32.mrb[0].mxu0
      %1333 = vmatprep.mubr.f32.mxu0 0.0
      %1334 = vmatmul.mubr.f32.gmra.mrb[0].mxu0 %v1175
      %v1335 = vpop.f32.mrb[0].mxu0
      %v1336 = vadd.f32 0.0, %v1335
      %v1337 = vpop.f32.mrb[0].mxu0
      %1338 = vmatprep.mubr.f32.mxu0 0.0
      %1339 = vmatmul.mubr.f32.gmra.mrb[0].mxu0 %v1177
      %v1340 = vpop.f32.mrb[0].mxu0
      %v1341 = vadd.f32 0.0, %v1340
      %v1342 = vpop.f32.mrb[0].mxu0
      %1343 = vmatprep.mubr.f32.mxu0 0.0
      %1344 = vmatmul.mubr.f32.gmra.mrb[0].mxu0 %v1179
      %v1345 = vpop.f32.mrb[0].mxu0
      %v1346 = vadd.f32 0.0, %v1345
      %v1347 = vpop.f32.mrb[0].mxu0
      %1348 = vmatprep.mubr.f32.mxu0 0.0
      %1349 = vmatmul.mubr.f32.gmra.mrb[0].mxu0 %v1181
      %v1350 = vpop.f32.mrb[0].mxu0
      %v1351 = vadd.f32 0.0, %v1350
      %v1352 = vpop.f32.mrb[0].mxu0
      %1353 = vmatprep.mubr.f32.mxu0 0.0
      %1354 = vmatmul.mubr.f32.gmra.mrb[0].mxu0 %v1183
      %v1355 = vpop.f32.mrb[0].mxu0
      %v1356 = vadd.f32 0.0, %v1355
      %v1357 = vpop.f32.mrb[0].mxu0
      %1358 = vmatprep.mubr.f32.mxu0 0.0
      %1359 = vmatmul.mubr.f32.gmra.mrb[0].mxu0 %v1185
      %v1360 = vpop.f32.mrb[0].mxu0
      %v1361 = vadd.f32 0.0, %v1360
      %v1362 = vpop.f32.mrb[0].mxu0
      %1363 = vmatprep.mubr.f32.mxu0 0.0
      %1364 = vmatmul.mubr.f32.gmra.mrb[0].mxu0 %v1187
      %v1365 = vpop.f32.mrb[0].mxu0
      %v1366 = vadd.f32 0.0, %v1365
      %v1367 = vpop.f32.mrb[0].mxu0
      %1368 = vmatprep.mubr.f32.mxu0 0.0
      %1369 = vmatmul.mubr.f32.gmra.mrb[0].mxu0 %v1189
      %v1370 = vpop.f32.mrb[0].mxu0
      %v1371 = vadd.f32 0.0, %v1370
      %v1372 = vpop.f32.mrb[0].mxu0
      %1373 = vmatprep.mubr.f32.mxu0 0.0
      %1374 = vmatmul.mubr.f32.gmra.mrb[0].mxu0 %v1191
      %v1375 = vpop.f32.mrb[0].mxu0
      %v1376 = vadd.f32 0.0, %v1375
      %v1377 = vpop.f32.mrb[0].mxu0
      %1378 = vmatprep.mubr.f32.mxu0 0.0
      %1379 = vmatmul.mubr.f32.gmra.mrb[0].mxu0 %v1193
      %v1380 = vpop.f32.mrb[0].mxu0
      %v1381 = vadd.f32 0.0, %v1380
      %v1382 = vpop.f32.mrb[0].mxu0
      %1383 = vmatprep.mubr.f32.mxu0 0.0
      %1384 = vmatmul.mubr.f32.gmra.mrb[0].mxu0 %v1195
      %v1385 = vpop.f32.mrb[0].mxu0
      %v1386 = vadd.f32 0.0, %v1385
      %v1387 = vpop.f32.mrb[0].mxu0
      %1388 = vmatprep.mubr.f32.mxu0 0.0
      %1389 = vmatmul.mubr.f32.gmra.mrb[0].mxu0 %v1197
      %v1390 = vpop.f32.mrb[0].mxu0
      %v1391 = vadd.f32 0.0, %v1390
      %v1392 = vpop.f32.mrb[0].mxu0
      %1393 = vmatprep.mubr.f32.mxu0 0.0
      %1394 = vmatmul.mubr.f32.gmra.mrb[0].mxu0 %v1199
      %v1395 = vpop.f32.mrb[0].mxu0
      %v1396 = vadd.f32 0.0, %v1395
      %v1397 = vpop.f32.mrb[0].mxu0
      %1398 = vmatprep.mubr.f32.mxu0 0.0
      %1399 = vmatmul.mubr.f32.gmra.mrb[0].mxu0 %v1201
      %v1400 = vpop.f32.mrb[0].mxu0
      %v1401 = vadd.f32 0.0, %v1400
      %v1402 = vpop.f32.mrb[0].mxu0
      %1403 = vmatprep.mubr.f32.mxu0 0.0
      %1404 = vmatmul.mubr.f32.gmra.mrb[0].mxu0 %v1203
      %v1405 = vpop.f32.mrb[0].mxu0
      %v1406 = vadd.f32 0.0, %v1405
      %v1407 = vpop.f32.mrb[0].mxu0
      %1408 = vmatprep.mubr.f32.mxu0 0.0
      %1409 = vmatmul.mubr.f32.gmra.mrb[0].mxu0 %v1205
      %v1410 = vpop.f32.mrb[0].mxu0
      %v1411 = vadd.f32 0.0, %v1410
      %v1412 = vpop.f32.mrb[0].mxu0
      %1413 = vmatprep.mubr.f32.mxu0 0.0
      %1414 = vmatmul.mubr.f32.gmra.mrb[0].mxu0 %v1207
      %v1415 = vpop.f32.mrb[0].mxu0
      %v1416 = vadd.f32 0.0, %v1415
      %v1417 = vpop.f32.mrb[0].mxu0
      %1418 = vmatprep.mubr.f32.mxu0 0.0
      %1419 = vmatmul.mubr.f32.gmra.mrb[0].mxu0 %v1209
      %v1420 = vpop.f32.mrb[0].mxu0
      %v1421 = vadd.f32 0.0, %v1420
      %v1422 = vpop.f32.mrb[0].mxu0
      %1423 = vmatprep.mubr.f32.mxu0 0.0
      %1424 = vmatmul.mubr.f32.gmra.mrb[0].mxu0 %v1211
      %v1425 = vpop.f32.mrb[0].mxu0
      %v1426 = vadd.f32 0.0, %v1425
      %v1427 = vpop.f32.mrb[0].mxu0
      %1428 = vmatprep.mubr.f32.mxu0 0.0
      %1429 = vmatmul.mubr.f32.gmra.mrb[0].mxu0 %v1213
      %v1430 = vpop.f32.mrb[0].mxu0
      %v1431 = vadd.f32 0.0, %v1430
      %v1432 = vpop.f32.mrb[0].mxu0
      %1433 = vmatprep.mubr.f32.mxu0 0.0
      %1434 = vmatmul.mubr.f32.gmra.mrb[0].mxu0 %v1215
      %v1435 = vpop.f32.mrb[0].mxu0
      %v1436 = vadd.f32 0.0, %v1435
      %v1437 = vpop.f32.mrb[0].mxu0
      %1438 = vmatprep.mubr.f32.mxu0 0.0
      %1439 = vmatmul.mubr.f32.gmra.mrb[0].mxu0 %v1217
      %v1440 = vpop.f32.mrb[0].mxu0
      %v1441 = vadd.f32 0.0, %v1440
      %v1442 = vpop.f32.mrb[0].mxu0
      %1443 = vmatprep.mubr.f32.mxu0 0.0
      %1444 = vmatmul.mubr.f32.gmra.mrb[0].mxu0 %v1219
      %v1445 = vpop.f32.mrb[0].mxu0
      %v1446 = vadd.f32 0.0, %v1445
      %v1447 = vpop.f32.mrb[0].mxu0
      %1448 = vdwg.mxu0
      %v1449 = vadd.f32 %v916, %v1291
      %v1450 = vadd.f32 %v921, %v1296
      %v1451 = vadd.f32 %v926, %v1301
      %v1452 = vadd.f32 %v931, %v1306
      %v1453 = vadd.f32 %v936, %v1311
      %v1454 = vadd.f32 %v941, %v1316
      %v1455 = vadd.f32 %v946, %v1321
      %v1456 = vadd.f32 %v951, %v1326
      %v1457 = vadd.f32 %v956, %v1331
      %v1458 = vadd.f32 %v961, %v1336
      %v1459 = vadd.f32 %v966, %v1341
      %v1460 = vadd.f32 %v971, %v1346
      %v1461 = vadd.f32 %v976, %v1351
      %v1462 = vadd.f32 %v981, %v1356
      %v1463 = vadd.f32 %v986, %v1361
      %v1464 = vadd.f32 %v991, %v1366
      %v1465 = vadd.f32 %v996, %v1371
      %v1466 = vadd.f32 %v1001, %v1376
      %v1467 = vadd.f32 %v1006, %v1381
      %v1468 = vadd.f32 %v1011, %v1386
      %v1469 = vadd.f32 %v1016, %v1391
      %v1470 = vadd.f32 %v1021, %v1396
      %v1471 = vadd.f32 %v1026, %v1401
      %v1472 = vadd.f32 %v1031, %v1406
      %v1473 = vadd.f32 %v1036, %v1411
      %v1474 = vadd.f32 %v1041, %v1416
      %v1475 = vadd.f32 %v1046, %v1421
      %v1476 = vadd.f32 %v1051, %v1426
      %v1477 = vadd.f32 %v1056, %v1431
      %v1478 = vadd.f32 %v1061, %v1436
      %v1479 = vadd.f32 %v1066, %v1441
      %v1480 = vadd.f32 %v1071, %v1446
      %s1481 = scalar_lea.vmem %s1, 12
      %v1482 = vld [vmem:[%s1481] sm:$0xf]
      %v1484 = vsel %vm214, %v351, 0
      %v1487 = vsel %vm214, %v352, 0
      %v1490 = vsel %vm553, %v1482, 0
      %1492 = vmatprep.subr.mxu0 0.0
      %1493 = vmatpush1.msra.mxu0 %v1490
      %1494 = vmatprep.subr.mxu0 0.0
      %1495 = vmatpush1.msra.mxu0 0.0
      %1496 = vmatprep.subr.mxu0 0.0
      %1497 = vmatpush1.msra.mxu0 0.0
      %1498 = vmatprep.subr.mxu0 0.0
      %1499 = vmatpush1.msra.mxu0 0.0
      %1500 = vmatprep.subr.mxu0 0.0
      %1501 = vmatpush1.msra.mxu0 0.0
      %1502 = vmatprep.subr.mxu0 0.0
      %1503 = vmatpush1.msra.mxu0 0.0
      %1504 = vmatprep.subr.mxu0 0.0
      %1505 = vmatpush1.msra.mxu0 0.0
      %1506 = vmatprep.subr.mxu0 0.0
      %1507 = vmatpush1.msra.mxu0 0.0
      %1508 = vmatprep.subr.mxu0 0.0
      %1509 = vmatpush1.msra.mxu0 0.0
      %1510 = vmatprep.subr.mxu0 0.0
      %1511 = vmatpush1.msra.mxu0 0.0
      %1512 = vmatprep.subr.mxu0 0.0
      %1513 = vmatpush1.msra.mxu0 0.0
      %1514 = vmatprep.subr.mxu0 0.0
      %1515 = vmatpush1.msra.mxu0 0.0
      %1516 = vmatprep.subr.mxu0 0.0
      %1517 = vmatpush1.msra.mxu0 0.0
      %1518 = vmatprep.subr.mxu0 0.0
      %1519 = vmatpush1.msra.mxu0 0.0
      %1520 = vmatprep.subr.mxu0 0.0
      %1521 = vmatpush1.msra.mxu0 0.0
      %1522 = vmatprep.subr.mxu0 0.0
      %1523 = vmatpush1.msra.mxu0 0.0
      %1524 = vmatprep.subr.mxu0 0.0
      %1525 = vmatpush1.msra.mxu0 0.0
      %1526 = vmatprep.subr.mxu0 0.0
      %1527 = vmatpush1.msra.mxu0 0.0
      %1528 = vmatprep.subr.mxu0 0.0
      %1529 = vmatpush1.msra.mxu0 0.0
      %1530 = vmatprep.subr.mxu0 0.0
      %1531 = vmatpush1.msra.mxu0 0.0
      %1532 = vmatprep.subr.mxu0 0.0
      %1533 = vmatpush1.msra.mxu0 0.0
      %1534 = vmatprep.subr.mxu0 0.0
      %1535 = vmatpush1.msra.mxu0 0.0
      %1536 = vmatprep.subr.mxu0 0.0
      %1537 = vmatpush1.msra.mxu0 0.0
      %1538 = vmatprep.subr.mxu0 0.0
      %1539 = vmatpush1.msra.mxu0 0.0
      %1540 = vmatprep.subr.mxu0 0.0
      %1541 = vmatpush1.msra.mxu0 0.0
      %1542 = vmatprep.subr.mxu0 0.0
      %1543 = vmatpush1.msra.mxu0 0.0
      %1544 = vmatprep.subr.mxu0 0.0
      %1545 = vmatpush1.msra.mxu0 0.0
      %1546 = vmatprep.subr.mxu0 0.0
      %1547 = vmatpush1.msra.mxu0 0.0
      %1548 = vmatprep.subr.mxu0 0.0
      %1549 = vmatpush1.msra.mxu0 0.0
      %1550 = vmatprep.subr.mxu0 0.0
      %1551 = vmatpush1.msra.mxu0 0.0
      %1552 = vmatprep.subr.mxu0 0.0
      %1553 = vmatpush1.msra.mxu0 0.0
      %1554 = vmatprep.subr.mxu0 0.0
      %1555 = vmatpush1.msra.mxu0 0.0
      %1556 = vmatprep.mubr.f32.mxu0 0.0
      %1557 = vmatmul.mubr.f32.gmra.mrb[0].mxu0 %v786
      %v1558 = vpop.f32.mrb[0].mxu0
      %v1559 = vadd.f32 0.0, %v1558
      %v1560 = vpop.f32.mrb[0].mxu0
      %1561 = vmatprep.mubr.f32.mxu0 0.0
      %1562 = vmatmul.mubr.f32.gmra.mrb[0].mxu0 %v788
      %v1563 = vpop.f32.mrb[0].mxu0
      %v1564 = vadd.f32 0.0, %v1563
      %v1565 = vpop.f32.mrb[0].mxu0
      %1566 = vmatprep.mubr.f32.mxu0 0.0
      %1567 = vmatmul.mubr.f32.gmra.mrb[0].mxu0 %v790
      %v1568 = vpop.f32.mrb[0].mxu0
      %v1569 = vadd.f32 0.0, %v1568
      %v1570 = vpop.f32.mrb[0].mxu0
      %1571 = vmatprep.mubr.f32.mxu0 0.0
      %1572 = vmatmul.mubr.f32.gmra.mrb[0].mxu0 %v792
      %v1573 = vpop.f32.mrb[0].mxu0
      %v1574 = vadd.f32 0.0, %v1573
      %v1575 = vpop.f32.mrb[0].mxu0
      %1576 = vmatprep.mubr.f32.mxu0 0.0
      %1577 = vmatmul.mubr.f32.gmra.mrb[0].mxu0 %v794
      %v1578 = vpop.f32.mrb[0].mxu0
      %v1579 = vadd.f32 0.0, %v1578
      %v1580 = vpop.f32.mrb[0].mxu0
      %1581 = vmatprep.mubr.f32.mxu0 0.0
      %1582 = vmatmul.mubr.f32.gmra.mrb[0].mxu0 %v796
      %v1583 = vpop.f32.mrb[0].mxu0
      %v1584 = vadd.f32 0.0, %v1583
      %v1585 = vpop.f32.mrb[0].mxu0
      %1586 = vmatprep.mubr.f32.mxu0 0.0
      %1587 = vmatmul.mubr.f32.gmra.mrb[0].mxu0 %v798
      %v1588 = vpop.f32.mrb[0].mxu0
      %v1589 = vadd.f32 0.0, %v1588
      %v1590 = vpop.f32.mrb[0].mxu0
      %1591 = vmatprep.mubr.f32.mxu0 0.0
      %1592 = vmatmul.mubr.f32.gmra.mrb[0].mxu0 %v800
      %v1593 = vpop.f32.mrb[0].mxu0
      %v1594 = vadd.f32 0.0, %v1593
      %v1595 = vpop.f32.mrb[0].mxu0
      %1596 = vmatprep.mubr.f32.mxu0 0.0
      %1597 = vmatmul.mubr.f32.gmra.mrb[0].mxu0 %v802
      %v1598 = vpop.f32.mrb[0].mxu0
      %v1599 = vadd.f32 0.0, %v1598
      %v1600 = vpop.f32.mrb[0].mxu0
      %1601 = vmatprep.mubr.f32.mxu0 0.0
      %1602 = vmatmul.mubr.f32.gmra.mrb[0].mxu0 %v804
      %v1603 = vpop.f32.mrb[0].mxu0
      %v1604 = vadd.f32 0.0, %v1603
      %v1605 = vpop.f32.mrb[0].mxu0
      %1606 = vmatprep.mubr.f32.mxu0 0.0
      %1607 = vmatmul.mubr.f32.gmra.mrb[0].mxu0 %v806
      %v1608 = vpop.f32.mrb[0].mxu0
      %v1609 = vadd.f32 0.0, %v1608
      %v1610 = vpop.f32.mrb[0].mxu0
      %1611 = vmatprep.mubr.f32.mxu0 0.0
      %1612 = vmatmul.mubr.f32.gmra.mrb[0].mxu0 %v808
      %v1613 = vpop.f32.mrb[0].mxu0
      %v1614 = vadd.f32 0.0, %v1613
      %v1615 = vpop.f32.mrb[0].mxu0
      %1616 = vmatprep.mubr.f32.mxu0 0.0
      %1617 = vmatmul.mubr.f32.gmra.mrb[0].mxu0 %v810
      %v1618 = vpop.f32.mrb[0].mxu0
      %v1619 = vadd.f32 0.0, %v1618
      %v1620 = vpop.f32.mrb[0].mxu0
      %1621 = vmatprep.mubr.f32.mxu0 0.0
      %1622 = vmatmul.mubr.f32.gmra.mrb[0].mxu0 %v812
      %v1623 = vpop.f32.mrb[0].mxu0
      %v1624 = vadd.f32 0.0, %v1623
      %v1625 = vpop.f32.mrb[0].mxu0
      %1626 = vmatprep.mubr.f32.mxu0 0.0
      %1627 = vmatmul.mubr.f32.gmra.mrb[0].mxu0 %v814
      %v1628 = vpop.f32.mrb[0].mxu0
      %v1629 = vadd.f32 0.0, %v1628
      %v1630 = vpop.f32.mrb[0].mxu0
      %1631 = vmatprep.mubr.f32.mxu0 0.0
      %1632 = vmatmul.mubr.f32.gmra.mrb[0].mxu0 %v816
      %v1633 = vpop.f32.mrb[0].mxu0
      %v1634 = vadd.f32 0.0, %v1633
      %v1635 = vpop.f32.mrb[0].mxu0
      %1636 = vmatprep.mubr.f32.mxu0 0.0
      %1637 = vmatmul.mubr.f32.gmra.mrb[0].mxu0 %v818
      %v1638 = vpop.f32.mrb[0].mxu0
      %v1639 = vadd.f32 0.0, %v1638
      %v1640 = vpop.f32.mrb[0].mxu0
      %1641 = vmatprep.mubr.f32.mxu0 0.0
      %1642 = vmatmul.mubr.f32.gmra.mrb[0].mxu0 %v820
      %v1643 = vpop.f32.mrb[0].mxu0
      %v1644 = vadd.f32 0.0, %v1643
      %v1645 = vpop.f32.mrb[0].mxu0
      %1646 = vmatprep.mubr.f32.mxu0 0.0
      %1647 = vmatmul.mubr.f32.gmra.mrb[0].mxu0 %v822
      %v1648 = vpop.f32.mrb[0].mxu0
      %v1649 = vadd.f32 0.0, %v1648
      %v1650 = vpop.f32.mrb[0].mxu0
      %1651 = vmatprep.mubr.f32.mxu0 0.0
      %1652 = vmatmul.mubr.f32.gmra.mrb[0].mxu0 %v824
      %v1653 = vpop.f32.mrb[0].mxu0
      %v1654 = vadd.f32 0.0, %v1653
      %v1655 = vpop.f32.mrb[0].mxu0
      %1656 = vmatprep.mubr.f32.mxu0 0.0
      %1657 = vmatmul.mubr.f32.gmra.mrb[0].mxu0 %v826
      %v1658 = vpop.f32.mrb[0].mxu0
      %v1659 = vadd.f32 0.0, %v1658
      %v1660 = vpop.f32.mrb[0].mxu0
      %1661 = vmatprep.mubr.f32.mxu0 0.0
      %1662 = vmatmul.mubr.f32.gmra.mrb[0].mxu0 %v828
      %v1663 = vpop.f32.mrb[0].mxu0
      %v1664 = vadd.f32 0.0, %v1663
      %v1665 = vpop.f32.mrb[0].mxu0
      %1666 = vmatprep.mubr.f32.mxu0 0.0
      %1667 = vmatmul.mubr.f32.gmra.mrb[0].mxu0 %v830
      %v1668 = vpop.f32.mrb[0].mxu0
      %v1669 = vadd.f32 0.0, %v1668
      %v1670 = vpop.f32.mrb[0].mxu0
      %1671 = vmatprep.mubr.f32.mxu0 0.0
      %1672 = vmatmul.mubr.f32.gmra.mrb[0].mxu0 %v832
      %v1673 = vpop.f32.mrb[0].mxu0
      %v1674 = vadd.f32 0.0, %v1673
      %v1675 = vpop.f32.mrb[0].mxu0
      %1676 = vmatprep.mubr.f32.mxu0 0.0
      %1677 = vmatmul.mubr.f32.gmra.mrb[0].mxu0 %v834
      %v1678 = vpop.f32.mrb[0].mxu0
      %v1679 = vadd.f32 0.0, %v1678
      %v1680 = vpop.f32.mrb[0].mxu0
      %1681 = vmatprep.mubr.f32.mxu0 0.0
      %1682 = vmatmul.mubr.f32.gmra.mrb[0].mxu0 %v836
      %v1683 = vpop.f32.mrb[0].mxu0
      %v1684 = vadd.f32 0.0, %v1683
      %v1685 = vpop.f32.mrb[0].mxu0
      %1686 = vmatprep.mubr.f32.mxu0 0.0
      %1687 = vmatmul.mubr.f32.gmra.mrb[0].mxu0 %v838
      %v1688 = vpop.f32.mrb[0].mxu0
      %v1689 = vadd.f32 0.0, %v1688
      %v1690 = vpop.f32.mrb[0].mxu0
      %1691 = vmatprep.mubr.f32.mxu0 0.0
      %1692 = vmatmul.mubr.f32.gmra.mrb[0].mxu0 %v840
      %v1693 = vpop.f32.mrb[0].mxu0
      %v1694 = vadd.f32 0.0, %v1693
      %v1695 = vpop.f32.mrb[0].mxu0
      %1696 = vmatprep.mubr.f32.mxu0 0.0
      %1697 = vmatmul.mubr.f32.gmra.mrb[0].mxu0 %v842
      %v1698 = vpop.f32.mrb[0].mxu0
      %v1699 = vadd.f32 0.0, %v1698
      %v1700 = vpop.f32.mrb[0].mxu0
      %1701 = vmatprep.mubr.f32.mxu0 0.0
      %1702 = vmatmul.mubr.f32.gmra.mrb[0].mxu0 %v844
      %v1703 = vpop.f32.mrb[0].mxu0
      %v1704 = vadd.f32 0.0, %v1703
      %v1705 = vpop.f32.mrb[0].mxu0
      %1706 = vmatprep.mubr.f32.mxu0 0.0
      %1707 = vmatmul.mubr.f32.gmra.mrb[0].mxu0 %v1484
      %v1708 = vpop.f32.mrb[0].mxu0
      %v1709 = vadd.f32 0.0, %v1708
      %v1710 = vpop.f32.mrb[0].mxu0
      %1711 = vmatprep.mubr.f32.mxu0 0.0
      %1712 = vmatmul.mubr.f32.gmra.mrb[0].mxu0 %v1487
      %v1713 = vpop.f32.mrb[0].mxu0
      %v1714 = vadd.f32 0.0, %v1713
      %v1715 = vpop.f32.mrb[0].mxu0
      %1716 = vdwg.mxu0
      %v1717 = vadd.f32 %v1449, %v1559
      %v1718 = vadd.f32 %v1450, %v1564
      %v1719 = vadd.f32 %v1451, %v1569
      %v1720 = vadd.f32 %v1452, %v1574
      %v1721 = vadd.f32 %v1453, %v1579
      %v1722 = vadd.f32 %v1454, %v1584
      %v1723 = vadd.f32 %v1455, %v1589
      %v1724 = vadd.f32 %v1456, %v1594
      %v1725 = vadd.f32 %v1457, %v1599
      %v1726 = vadd.f32 %v1458, %v1604
      %v1727 = vadd.f32 %v1459, %v1609
      %v1728 = vadd.f32 %v1460, %v1614
      %v1729 = vadd.f32 %v1461, %v1619
      %v1730 = vadd.f32 %v1462, %v1624
      %v1731 = vadd.f32 %v1463, %v1629
      %v1732 = vadd.f32 %v1464, %v1634
      %v1733 = vadd.f32 %v1465, %v1639
      %v1734 = vadd.f32 %v1466, %v1644
      %v1735 = vadd.f32 %v1467, %v1649
      %v1736 = vadd.f32 %v1468, %v1654
      %v1737 = vadd.f32 %v1469, %v1659
      %v1738 = vadd.f32 %v1470, %v1664
      %v1739 = vadd.f32 %v1471, %v1669
      %v1740 = vadd.f32 %v1472, %v1674
      %v1741 = vadd.f32 %v1473, %v1679
      %v1742 = vadd.f32 %v1474, %v1684
      %v1743 = vadd.f32 %v1475, %v1689
      %v1744 = vadd.f32 %v1476, %v1694
      %v1745 = vadd.f32 %v1477, %v1699
      %v1746 = vadd.f32 %v1478, %v1704
      %v1747 = vadd.f32 %v1479, %v1709
      %v1748 = vadd.f32 %v1480, %v1714
      %v1750 = vrot.slane %v351, 1
      %v1751 = vrot.slane %v352, 1
      %v1752 = vsel %vm406, %v1750, %v1751
      %v1753 = vrot.slane %v353, 1
      %v1754 = vsel %vm406, %v1751, %v1753
      %s1755 = scalar_lea.vmem %s1, 16
      %v1756 = vld [vmem:[%s1755] sm:$0xf]
      %v1757 = vsel %vm214, %v1752, 0
      %v1759 = vsel %vm214, %v1754, 0
      %v1762 = vsel %vm553, %v1756, 0
      %1764 = vmatprep.subr.mxu0 0.0
      %1765 = vmatpush1.msra.mxu0 %v1762
      %1766 = vmatprep.subr.mxu0 0.0
      %1767 = vmatpush1.msra.mxu0 0.0
      %1768 = vmatprep.subr.mxu0 0.0
      %1769 = vmatpush1.msra.mxu0 0.0
      %1770 = vmatprep.subr.mxu0 0.0
      %1771 = vmatpush1.msra.mxu0 0.0
      %1772 = vmatprep.subr.mxu0 0.0
      %1773 = vmatpush1.msra.mxu0 0.0
      %1774 = vmatprep.subr.mxu0 0.0
      %1775 = vmatpush1.msra.mxu0 0.0
      %1776 = vmatprep.subr.mxu0 0.0
      %1777 = vmatpush1.msra.mxu0 0.0
      %1778 = vmatprep.subr.mxu0 0.0
      %1779 = vmatpush1.msra.mxu0 0.0
      %1780 = vmatprep.subr.mxu0 0.0
      %1781 = vmatpush1.msra.mxu0 0.0
      %1782 = vmatprep.subr.mxu0 0.0
      %1783 = vmatpush1.msra.mxu0 0.0
      %1784 = vmatprep.subr.mxu0 0.0
      %1785 = vmatpush1.msra.mxu0 0.0
      %1786 = vmatprep.subr.mxu0 0.0
      %1787 = vmatpush1.msra.mxu0 0.0
      %1788 = vmatprep.subr.mxu0 0.0
      %1789 = vmatpush1.msra.mxu0 0.0
      %1790 = vmatprep.subr.mxu0 0.0
      %1791 = vmatpush1.msra.mxu0 0.0
      %1792 = vmatprep.subr.mxu0 0.0
      %1793 = vmatpush1.msra.mxu0 0.0
      %1794 = vmatprep.subr.mxu0 0.0
      %1795 = vmatpush1.msra.mxu0 0.0
      %1796 = vmatprep.subr.mxu0 0.0
      %1797 = vmatpush1.msra.mxu0 0.0
      %1798 = vmatprep.subr.mxu0 0.0
      %1799 = vmatpush1.msra.mxu0 0.0
      %1800 = vmatprep.subr.mxu0 0.0
      %1801 = vmatpush1.msra.mxu0 0.0
      %1802 = vmatprep.subr.mxu0 0.0
      %1803 = vmatpush1.msra.mxu0 0.0
      %1804 = vmatprep.subr.mxu0 0.0
      %1805 = vmatpush1.msra.mxu0 0.0
      %1806 = vmatprep.subr.mxu0 0.0
      %1807 = vmatpush1.msra.mxu0 0.0
      %1808 = vmatprep.subr.mxu0 0.0
      %1809 = vmatpush1.msra.mxu0 0.0
      %1810 = vmatprep.subr.mxu0 0.0
      %1811 = vmatpush1.msra.mxu0 0.0
      %1812 = vmatprep.subr.mxu0 0.0
      %1813 = vmatpush1.msra.mxu0 0.0
      %1814 = vmatprep.subr.mxu0 0.0
      %1815 = vmatpush1.msra.mxu0 0.0
      %1816 = vmatprep.subr.mxu0 0.0
      %1817 = vmatpush1.msra.mxu0 0.0
      %1818 = vmatprep.subr.mxu0 0.0
      %1819 = vmatpush1.msra.mxu0 0.0
      %1820 = vmatprep.subr.mxu0 0.0
      %1821 = vmatpush1.msra.mxu0 0.0
      %1822 = vmatprep.subr.mxu0 0.0
      %1823 = vmatpush1.msra.mxu0 0.0
      %1824 = vmatprep.subr.mxu0 0.0
      %1825 = vmatpush1.msra.mxu0 0.0
      %1826 = vmatprep.subr.mxu0 0.0
      %1827 = vmatpush1.msra.mxu0 0.0
      %1828 = vmatprep.mubr.f32.mxu0 0.0
      %1829 = vmatmul.mubr.f32.gmra.mrb[0].mxu0 %v493
      %v1830 = vpop.f32.mrb[0].mxu0
      %v1831 = vadd.f32 0.0, %v1830
      %v1832 = vpop.f32.mrb[0].mxu0
      %1833 = vmatprep.mubr.f32.mxu0 0.0
      %1834 = vmatmul.mubr.f32.gmra.mrb[0].mxu0 %v495
      %v1835 = vpop.f32.mrb[0].mxu0
      %v1836 = vadd.f32 0.0, %v1835
      %v1837 = vpop.f32.mrb[0].mxu0
      %1838 = vmatprep.mubr.f32.mxu0 0.0
      %1839 = vmatmul.mubr.f32.gmra.mrb[0].mxu0 %v497
      %v1840 = vpop.f32.mrb[0].mxu0
      %v1841 = vadd.f32 0.0, %v1840
      %v1842 = vpop.f32.mrb[0].mxu0
      %1843 = vmatprep.mubr.f32.mxu0 0.0
      %1844 = vmatmul.mubr.f32.gmra.mrb[0].mxu0 %v499
      %v1845 = vpop.f32.mrb[0].mxu0
      %v1846 = vadd.f32 0.0, %v1845
      %v1847 = vpop.f32.mrb[0].mxu0
      %1848 = vmatprep.mubr.f32.mxu0 0.0
      %1849 = vmatmul.mubr.f32.gmra.mrb[0].mxu0 %v501
      %v1850 = vpop.f32.mrb[0].mxu0
      %v1851 = vadd.f32 0.0, %v1850
      %v1852 = vpop.f32.mrb[0].mxu0
      %1853 = vmatprep.mubr.f32.mxu0 0.0
      %1854 = vmatmul.mubr.f32.gmra.mrb[0].mxu0 %v503
      %v1855 = vpop.f32.mrb[0].mxu0
      %v1856 = vadd.f32 0.0, %v1855
      %v1857 = vpop.f32.mrb[0].mxu0
      %1858 = vmatprep.mubr.f32.mxu0 0.0
      %1859 = vmatmul.mubr.f32.gmra.mrb[0].mxu0 %v505
      %v1860 = vpop.f32.mrb[0].mxu0
      %v1861 = vadd.f32 0.0, %v1860
      %v1862 = vpop.f32.mrb[0].mxu0
      %1863 = vmatprep.mubr.f32.mxu0 0.0
      %1864 = vmatmul.mubr.f32.gmra.mrb[0].mxu0 %v507
      %v1865 = vpop.f32.mrb[0].mxu0
      %v1866 = vadd.f32 0.0, %v1865
      %v1867 = vpop.f32.mrb[0].mxu0
      %1868 = vmatprep.mubr.f32.mxu0 0.0
      %1869 = vmatmul.mubr.f32.gmra.mrb[0].mxu0 %v509
      %v1870 = vpop.f32.mrb[0].mxu0
      %v1871 = vadd.f32 0.0, %v1870
      %v1872 = vpop.f32.mrb[0].mxu0
      %1873 = vmatprep.mubr.f32.mxu0 0.0
      %1874 = vmatmul.mubr.f32.gmra.mrb[0].mxu0 %v511
      %v1875 = vpop.f32.mrb[0].mxu0
      %v1876 = vadd.f32 0.0, %v1875
      %v1877 = vpop.f32.mrb[0].mxu0
      %1878 = vmatprep.mubr.f32.mxu0 0.0
      %1879 = vmatmul.mubr.f32.gmra.mrb[0].mxu0 %v513
      %v1880 = vpop.f32.mrb[0].mxu0
      %v1881 = vadd.f32 0.0, %v1880
      %v1882 = vpop.f32.mrb[0].mxu0
      %1883 = vmatprep.mubr.f32.mxu0 0.0
      %1884 = vmatmul.mubr.f32.gmra.mrb[0].mxu0 %v515
      %v1885 = vpop.f32.mrb[0].mxu0
      %v1886 = vadd.f32 0.0, %v1885
      %v1887 = vpop.f32.mrb[0].mxu0
      %1888 = vmatprep.mubr.f32.mxu0 0.0
      %1889 = vmatmul.mubr.f32.gmra.mrb[0].mxu0 %v517
      %v1890 = vpop.f32.mrb[0].mxu0
      %v1891 = vadd.f32 0.0, %v1890
      %v1892 = vpop.f32.mrb[0].mxu0
      %1893 = vmatprep.mubr.f32.mxu0 0.0
      %1894 = vmatmul.mubr.f32.gmra.mrb[0].mxu0 %v519
      %v1895 = vpop.f32.mrb[0].mxu0
      %v1896 = vadd.f32 0.0, %v1895
      %v1897 = vpop.f32.mrb[0].mxu0
      %1898 = vmatprep.mubr.f32.mxu0 0.0
      %1899 = vmatmul.mubr.f32.gmra.mrb[0].mxu0 %v521
      %v1900 = vpop.f32.mrb[0].mxu0
      %v1901 = vadd.f32 0.0, %v1900
      %v1902 = vpop.f32.mrb[0].mxu0
      %1903 = vmatprep.mubr.f32.mxu0 0.0
      %1904 = vmatmul.mubr.f32.gmra.mrb[0].mxu0 %v523
      %v1905 = vpop.f32.mrb[0].mxu0
      %v1906 = vadd.f32 0.0, %v1905
      %v1907 = vpop.f32.mrb[0].mxu0
      %1908 = vmatprep.mubr.f32.mxu0 0.0
      %1909 = vmatmul.mubr.f32.gmra.mrb[0].mxu0 %v525
      %v1910 = vpop.f32.mrb[0].mxu0
      %v1911 = vadd.f32 0.0, %v1910
      %v1912 = vpop.f32.mrb[0].mxu0
      %1913 = vmatprep.mubr.f32.mxu0 0.0
      %1914 = vmatmul.mubr.f32.gmra.mrb[0].mxu0 %v527
      %v1915 = vpop.f32.mrb[0].mxu0
      %v1916 = vadd.f32 0.0, %v1915
      %v1917 = vpop.f32.mrb[0].mxu0
      %1918 = vmatprep.mubr.f32.mxu0 0.0
      %1919 = vmatmul.mubr.f32.gmra.mrb[0].mxu0 %v529
      %v1920 = vpop.f32.mrb[0].mxu0
      %v1921 = vadd.f32 0.0, %v1920
      %v1922 = vpop.f32.mrb[0].mxu0
      %1923 = vmatprep.mubr.f32.mxu0 0.0
      %1924 = vmatmul.mubr.f32.gmra.mrb[0].mxu0 %v531
      %v1925 = vpop.f32.mrb[0].mxu0
      %v1926 = vadd.f32 0.0, %v1925
      %v1927 = vpop.f32.mrb[0].mxu0
      %1928 = vmatprep.mubr.f32.mxu0 0.0
      %1929 = vmatmul.mubr.f32.gmra.mrb[0].mxu0 %v533
      %v1930 = vpop.f32.mrb[0].mxu0
      %v1931 = vadd.f32 0.0, %v1930
      %v1932 = vpop.f32.mrb[0].mxu0
      %1933 = vmatprep.mubr.f32.mxu0 0.0
      %1934 = vmatmul.mubr.f32.gmra.mrb[0].mxu0 %v535
      %v1935 = vpop.f32.mrb[0].mxu0
      %v1936 = vadd.f32 0.0, %v1935
      %v1937 = vpop.f32.mrb[0].mxu0
      %1938 = vmatprep.mubr.f32.mxu0 0.0
      %1939 = vmatmul.mubr.f32.gmra.mrb[0].mxu0 %v537
      %v1940 = vpop.f32.mrb[0].mxu0
      %v1941 = vadd.f32 0.0, %v1940
      %v1942 = vpop.f32.mrb[0].mxu0
      %1943 = vmatprep.mubr.f32.mxu0 0.0
      %1944 = vmatmul.mubr.f32.gmra.mrb[0].mxu0 %v539
      %v1945 = vpop.f32.mrb[0].mxu0
      %v1946 = vadd.f32 0.0, %v1945
      %v1947 = vpop.f32.mrb[0].mxu0
      %1948 = vmatprep.mubr.f32.mxu0 0.0
      %1949 = vmatmul.mubr.f32.gmra.mrb[0].mxu0 %v541
      %v1950 = vpop.f32.mrb[0].mxu0
      %v1951 = vadd.f32 0.0, %v1950
      %v1952 = vpop.f32.mrb[0].mxu0
      %1953 = vmatprep.mubr.f32.mxu0 0.0
      %1954 = vmatmul.mubr.f32.gmra.mrb[0].mxu0 %v543
      %v1955 = vpop.f32.mrb[0].mxu0
      %v1956 = vadd.f32 0.0, %v1955
      %v1957 = vpop.f32.mrb[0].mxu0
      %1958 = vmatprep.mubr.f32.mxu0 0.0
      %1959 = vmatmul.mubr.f32.gmra.mrb[0].mxu0 %v545
      %v1960 = vpop.f32.mrb[0].mxu0
      %v1961 = vadd.f32 0.0, %v1960
      %v1962 = vpop.f32.mrb[0].mxu0
      %1963 = vmatprep.mubr.f32.mxu0 0.0
      %1964 = vmatmul.mubr.f32.gmra.mrb[0].mxu0 %v547
      %v1965 = vpop.f32.mrb[0].mxu0
      %v1966 = vadd.f32 0.0, %v1965
      %v1967 = vpop.f32.mrb[0].mxu0
      %1968 = vmatprep.mubr.f32.mxu0 0.0
      %1969 = vmatmul.mubr.f32.gmra.mrb[0].mxu0 %v549
      %v1970 = vpop.f32.mrb[0].mxu0
      %v1971 = vadd.f32 0.0, %v1970
      %v1972 = vpop.f32.mrb[0].mxu0
      %1973 = vmatprep.mubr.f32.mxu0 0.0
      %1974 = vmatmul.mubr.f32.gmra.mrb[0].mxu0 %v551
      %v1975 = vpop.f32.mrb[0].mxu0
      %v1976 = vadd.f32 0.0, %v1975
      %v1977 = vpop.f32.mrb[0].mxu0
      %1978 = vmatprep.mubr.f32.mxu0 0.0
      %1979 = vmatmul.mubr.f32.gmra.mrb[0].mxu0 %v1757
      %v1980 = vpop.f32.mrb[0].mxu0
      %v1981 = vadd.f32 0.0, %v1980
      %v1982 = vpop.f32.mrb[0].mxu0
      %1983 = vmatprep.mubr.f32.mxu0 0.0
      %1984 = vmatmul.mubr.f32.gmra.mrb[0].mxu0 %v1759
      %v1985 = vpop.f32.mrb[0].mxu0
      %v1986 = vadd.f32 0.0, %v1985
      %v1987 = vpop.f32.mrb[0].mxu0
      %1988 = vdwg.mxu0
      %v1989 = vadd.f32 %v1717, %v1831
      %v1990 = vadd.f32 %v1718, %v1836
      %v1991 = vadd.f32 %v1719, %v1841
      %v1992 = vadd.f32 %v1720, %v1846
      %v1993 = vadd.f32 %v1721, %v1851
      %v1994 = vadd.f32 %v1722, %v1856
      %v1995 = vadd.f32 %v1723, %v1861
      %v1996 = vadd.f32 %v1724, %v1866
      %v1997 = vadd.f32 %v1725, %v1871
      %v1998 = vadd.f32 %v1726, %v1876
      %v1999 = vadd.f32 %v1727, %v1881
      %v2000 = vadd.f32 %v1728, %v1886
      %v2001 = vadd.f32 %v1729, %v1891
      %v2002 = vadd.f32 %v1730, %v1896
      %v2003 = vadd.f32 %v1731, %v1901
      %v2004 = vadd.f32 %v1732, %v1906
      %v2005 = vadd.f32 %v1733, %v1911
      %v2006 = vadd.f32 %v1734, %v1916
      %v2007 = vadd.f32 %v1735, %v1921
      %v2008 = vadd.f32 %v1736, %v1926
      %v2009 = vadd.f32 %v1737, %v1931
      %v2010 = vadd.f32 %v1738, %v1936
      %v2011 = vadd.f32 %v1739, %v1941
      %v2012 = vadd.f32 %v1740, %v1946
      %v2013 = vadd.f32 %v1741, %v1951
      %v2014 = vadd.f32 %v1742, %v1956
      %v2015 = vadd.f32 %v1743, %v1961
      %v2016 = vadd.f32 %v1744, %v1966
      %v2017 = vadd.f32 %v1745, %v1971
      %v2018 = vadd.f32 %v1746, %v1976
      %v2019 = vadd.f32 %v1747, %v1981
      %v2020 = vadd.f32 %v1748, %v1986
      %v2021 = vrot.slane %v351, 2
      %v2022 = vrot.slane %v352, 2
      %v2023 = vsel %vm1074, %v2021, %v2022
      %v2024 = vrot.slane %v353, 2
      %v2025 = vsel %vm1074, %v2022, %v2024
      %s2026 = scalar_lea.vmem %s1, 20
      %v2027 = vld [vmem:[%s2026] sm:$0xf]
      %v2028 = vsel %vm214, %v2023, 0
      %v2030 = vsel %vm214, %v2025, 0
      %v2033 = vsel %vm553, %v2027, 0
      %2035 = vmatprep.subr.mxu0 0.0
      %2036 = vmatpush1.msra.mxu0 %v2033
      %2037 = vmatprep.subr.mxu0 0.0
      %2038 = vmatpush1.msra.mxu0 0.0
      %2039 = vmatprep.subr.mxu0 0.0
      %2040 = vmatpush1.msra.mxu0 0.0
      %2041 = vmatprep.subr.mxu0 0.0
      %2042 = vmatpush1.msra.mxu0 0.0
      %2043 = vmatprep.subr.mxu0 0.0
      %2044 = vmatpush1.msra.mxu0 0.0
      %2045 = vmatprep.subr.mxu0 0.0
      %2046 = vmatpush1.msra.mxu0 0.0
      %2047 = vmatprep.subr.mxu0 0.0
      %2048 = vmatpush1.msra.mxu0 0.0
      %2049 = vmatprep.subr.mxu0 0.0
      %2050 = vmatpush1.msra.mxu0 0.0
      %2051 = vmatprep.subr.mxu0 0.0
      %2052 = vmatpush1.msra.mxu0 0.0
      %2053 = vmatprep.subr.mxu0 0.0
      %2054 = vmatpush1.msra.mxu0 0.0
      %2055 = vmatprep.subr.mxu0 0.0
      %2056 = vmatpush1.msra.mxu0 0.0
      %2057 = vmatprep.subr.mxu0 0.0
      %2058 = vmatpush1.msra.mxu0 0.0
      %2059 = vmatprep.subr.mxu0 0.0
      %2060 = vmatpush1.msra.mxu0 0.0
      %2061 = vmatprep.subr.mxu0 0.0
      %2062 = vmatpush1.msra.mxu0 0.0
      %2063 = vmatprep.subr.mxu0 0.0
      %2064 = vmatpush1.msra.mxu0 0.0
      %2065 = vmatprep.subr.mxu0 0.0
      %2066 = vmatpush1.msra.mxu0 0.0
      %2067 = vmatprep.subr.mxu0 0.0
      %2068 = vmatpush1.msra.mxu0 0.0
      %2069 = vmatprep.subr.mxu0 0.0
      %2070 = vmatpush1.msra.mxu0 0.0
      %2071 = vmatprep.subr.mxu0 0.0
      %2072 = vmatpush1.msra.mxu0 0.0
      %2073 = vmatprep.subr.mxu0 0.0
      %2074 = vmatpush1.msra.mxu0 0.0
      %2075 = vmatprep.subr.mxu0 0.0
      %2076 = vmatpush1.msra.mxu0 0.0
      %2077 = vmatprep.subr.mxu0 0.0
      %2078 = vmatpush1.msra.mxu0 0.0
      %2079 = vmatprep.subr.mxu0 0.0
      %2080 = vmatpush1.msra.mxu0 0.0
      %2081 = vmatprep.subr.mxu0 0.0
      %2082 = vmatpush1.msra.mxu0 0.0
      %2083 = vmatprep.subr.mxu0 0.0
      %2084 = vmatpush1.msra.mxu0 0.0
      %2085 = vmatprep.subr.mxu0 0.0
      %2086 = vmatpush1.msra.mxu0 0.0
      %2087 = vmatprep.subr.mxu0 0.0
      %2088 = vmatpush1.msra.mxu0 0.0
      %2089 = vmatprep.subr.mxu0 0.0
      %2090 = vmatpush1.msra.mxu0 0.0
      %2091 = vmatprep.subr.mxu0 0.0
      %2092 = vmatpush1.msra.mxu0 0.0
      %2093 = vmatprep.subr.mxu0 0.0
      %2094 = vmatpush1.msra.mxu0 0.0
      %2095 = vmatprep.subr.mxu0 0.0
      %2096 = vmatpush1.msra.mxu0 0.0
      %2097 = vmatprep.subr.mxu0 0.0
      %2098 = vmatpush1.msra.mxu0 0.0
      %2099 = vmatprep.mubr.f32.mxu0 0.0
      %2100 = vmatmul.mubr.f32.gmra.mrb[0].mxu0 %v1161
      %v2101 = vpop.f32.mrb[0].mxu0
      %v2102 = vadd.f32 0.0, %v2101
      %v2103 = vpop.f32.mrb[0].mxu0
      %2104 = vmatprep.mubr.f32.mxu0 0.0
      %2105 = vmatmul.mubr.f32.gmra.mrb[0].mxu0 %v1163
      %v2106 = vpop.f32.mrb[0].mxu0
      %v2107 = vadd.f32 0.0, %v2106
      %v2108 = vpop.f32.mrb[0].mxu0
      %2109 = vmatprep.mubr.f32.mxu0 0.0
      %2110 = vmatmul.mubr.f32.gmra.mrb[0].mxu0 %v1165
      %v2111 = vpop.f32.mrb[0].mxu0
      %v2112 = vadd.f32 0.0, %v2111
      %v2113 = vpop.f32.mrb[0].mxu0
      %2114 = vmatprep.mubr.f32.mxu0 0.0
      %2115 = vmatmul.mubr.f32.gmra.mrb[0].mxu0 %v1167
      %v2116 = vpop.f32.mrb[0].mxu0
      %v2117 = vadd.f32 0.0, %v2116
      %v2118 = vpop.f32.mrb[0].mxu0
      %2119 = vmatprep.mubr.f32.mxu0 0.0
      %2120 = vmatmul.mubr.f32.gmra.mrb[0].mxu0 %v1169
      %v2121 = vpop.f32.mrb[0].mxu0
      %v2122 = vadd.f32 0.0, %v2121
      %v2123 = vpop.f32.mrb[0].mxu0
      %2124 = vmatprep.mubr.f32.mxu0 0.0
      %2125 = vmatmul.mubr.f32.gmra.mrb[0].mxu0 %v1171
      %v2126 = vpop.f32.mrb[0].mxu0
      %v2127 = vadd.f32 0.0, %v2126
      %v2128 = vpop.f32.mrb[0].mxu0
      %2129 = vmatprep.mubr.f32.mxu0 0.0
      %2130 = vmatmul.mubr.f32.gmra.mrb[0].mxu0 %v1173
      %v2131 = vpop.f32.mrb[0].mxu0
      %v2132 = vadd.f32 0.0, %v2131
      %v2133 = vpop.f32.mrb[0].mxu0
      %2134 = vmatprep.mubr.f32.mxu0 0.0
      %2135 = vmatmul.mubr.f32.gmra.mrb[0].mxu0 %v1175
      %v2136 = vpop.f32.mrb[0].mxu0
      %v2137 = vadd.f32 0.0, %v2136
      %v2138 = vpop.f32.mrb[0].mxu0
      %2139 = vmatprep.mubr.f32.mxu0 0.0
      %2140 = vmatmul.mubr.f32.gmra.mrb[0].mxu0 %v1177
      %v2141 = vpop.f32.mrb[0].mxu0
      %v2142 = vadd.f32 0.0, %v2141
      %v2143 = vpop.f32.mrb[0].mxu0
      %2144 = vmatprep.mubr.f32.mxu0 0.0
      %2145 = vmatmul.mubr.f32.gmra.mrb[0].mxu0 %v1179
      %v2146 = vpop.f32.mrb[0].mxu0
      %v2147 = vadd.f32 0.0, %v2146
      %v2148 = vpop.f32.mrb[0].mxu0
      %2149 = vmatprep.mubr.f32.mxu0 0.0
      %2150 = vmatmul.mubr.f32.gmra.mrb[0].mxu0 %v1181
      %v2151 = vpop.f32.mrb[0].mxu0
      %v2152 = vadd.f32 0.0, %v2151
      %v2153 = vpop.f32.mrb[0].mxu0
      %2154 = vmatprep.mubr.f32.mxu0 0.0
      %2155 = vmatmul.mubr.f32.gmra.mrb[0].mxu0 %v1183
      %v2156 = vpop.f32.mrb[0].mxu0
      %v2157 = vadd.f32 0.0, %v2156
      %v2158 = vpop.f32.mrb[0].mxu0
      %2159 = vmatprep.mubr.f32.mxu0 0.0
      %2160 = vmatmul.mubr.f32.gmra.mrb[0].mxu0 %v1185
      %v2161 = vpop.f32.mrb[0].mxu0
      %v2162 = vadd.f32 0.0, %v2161
      %v2163 = vpop.f32.mrb[0].mxu0
      %2164 = vmatprep.mubr.f32.mxu0 0.0
      %2165 = vmatmul.mubr.f32.gmra.mrb[0].mxu0 %v1187
      %v2166 = vpop.f32.mrb[0].mxu0
      %v2167 = vadd.f32 0.0, %v2166
      %v2168 = vpop.f32.mrb[0].mxu0
      %2169 = vmatprep.mubr.f32.mxu0 0.0
      %2170 = vmatmul.mubr.f32.gmra.mrb[0].mxu0 %v1189
      %v2171 = vpop.f32.mrb[0].mxu0
      %v2172 = vadd.f32 0.0, %v2171
      %v2173 = vpop.f32.mrb[0].mxu0
      %2174 = vmatprep.mubr.f32.mxu0 0.0
      %2175 = vmatmul.mubr.f32.gmra.mrb[0].mxu0 %v1191
      %v2176 = vpop.f32.mrb[0].mxu0
      %v2177 = vadd.f32 0.0, %v2176
      %v2178 = vpop.f32.mrb[0].mxu0
      %2179 = vmatprep.mubr.f32.mxu0 0.0
      %2180 = vmatmul.mubr.f32.gmra.mrb[0].mxu0 %v1193
      %v2181 = vpop.f32.mrb[0].mxu0
      %v2182 = vadd.f32 0.0, %v2181
      %v2183 = vpop.f32.mrb[0].mxu0
      %2184 = vmatprep.mubr.f32.mxu0 0.0
      %2185 = vmatmul.mubr.f32.gmra.mrb[0].mxu0 %v1195
      %v2186 = vpop.f32.mrb[0].mxu0
      %v2187 = vadd.f32 0.0, %v2186
      %v2188 = vpop.f32.mrb[0].mxu0
      %2189 = vmatprep.mubr.f32.mxu0 0.0
      %2190 = vmatmul.mubr.f32.gmra.mrb[0].mxu0 %v1197
      %v2191 = vpop.f32.mrb[0].mxu0
      %v2192 = vadd.f32 0.0, %v2191
      %v2193 = vpop.f32.mrb[0].mxu0
      %2194 = vmatprep.mubr.f32.mxu0 0.0
      %2195 = vmatmul.mubr.f32.gmra.mrb[0].mxu0 %v1199
      %v2196 = vpop.f32.mrb[0].mxu0
      %v2197 = vadd.f32 0.0, %v2196
      %v2198 = vpop.f32.mrb[0].mxu0
      %2199 = vmatprep.mubr.f32.mxu0 0.0
      %2200 = vmatmul.mubr.f32.gmra.mrb[0].mxu0 %v1201
      %v2201 = vpop.f32.mrb[0].mxu0
      %v2202 = vadd.f32 0.0, %v2201
      %v2203 = vpop.f32.mrb[0].mxu0
      %2204 = vmatprep.mubr.f32.mxu0 0.0
      %2205 = vmatmul.mubr.f32.gmra.mrb[0].mxu0 %v1203
      %v2206 = vpop.f32.mrb[0].mxu0
      %v2207 = vadd.f32 0.0, %v2206
      %v2208 = vpop.f32.mrb[0].mxu0
      %2209 = vmatprep.mubr.f32.mxu0 0.0
      %2210 = vmatmul.mubr.f32.gmra.mrb[0].mxu0 %v1205
      %v2211 = vpop.f32.mrb[0].mxu0
      %v2212 = vadd.f32 0.0, %v2211
      %v2213 = vpop.f32.mrb[0].mxu0
      %2214 = vmatprep.mubr.f32.mxu0 0.0
      %2215 = vmatmul.mubr.f32.gmra.mrb[0].mxu0 %v1207
      %v2216 = vpop.f32.mrb[0].mxu0
      %v2217 = vadd.f32 0.0, %v2216
      %v2218 = vpop.f32.mrb[0].mxu0
      %2219 = vmatprep.mubr.f32.mxu0 0.0
      %2220 = vmatmul.mubr.f32.gmra.mrb[0].mxu0 %v1209
      %v2221 = vpop.f32.mrb[0].mxu0
      %v2222 = vadd.f32 0.0, %v2221
      %v2223 = vpop.f32.mrb[0].mxu0
      %2224 = vmatprep.mubr.f32.mxu0 0.0
      %2225 = vmatmul.mubr.f32.gmra.mrb[0].mxu0 %v1211
      %v2226 = vpop.f32.mrb[0].mxu0
      %v2227 = vadd.f32 0.0, %v2226
      %v2228 = vpop.f32.mrb[0].mxu0
      %2229 = vmatprep.mubr.f32.mxu0 0.0
      %2230 = vmatmul.mubr.f32.gmra.mrb[0].mxu0 %v1213
      %v2231 = vpop.f32.mrb[0].mxu0
      %v2232 = vadd.f32 0.0, %v2231
      %v2233 = vpop.f32.mrb[0].mxu0
      %2234 = vmatprep.mubr.f32.mxu0 0.0
      %2235 = vmatmul.mubr.f32.gmra.mrb[0].mxu0 %v1215
      %v2236 = vpop.f32.mrb[0].mxu0
      %v2237 = vadd.f32 0.0, %v2236
      %v2238 = vpop.f32.mrb[0].mxu0
      %2239 = vmatprep.mubr.f32.mxu0 0.0
      %2240 = vmatmul.mubr.f32.gmra.mrb[0].mxu0 %v1217
      %v2241 = vpop.f32.mrb[0].mxu0
      %v2242 = vadd.f32 0.0, %v2241
      %v2243 = vpop.f32.mrb[0].mxu0
      %2244 = vmatprep.mubr.f32.mxu0 0.0
      %2245 = vmatmul.mubr.f32.gmra.mrb[0].mxu0 %v1219
      %v2246 = vpop.f32.mrb[0].mxu0
      %v2247 = vadd.f32 0.0, %v2246
      %v2248 = vpop.f32.mrb[0].mxu0
      %2249 = vmatprep.mubr.f32.mxu0 0.0
      %2250 = vmatmul.mubr.f32.gmra.mrb[0].mxu0 %v2028
      %v2251 = vpop.f32.mrb[0].mxu0
      %v2252 = vadd.f32 0.0, %v2251
      %v2253 = vpop.f32.mrb[0].mxu0
      %2254 = vmatprep.mubr.f32.mxu0 0.0
      %2255 = vmatmul.mubr.f32.gmra.mrb[0].mxu0 %v2030
      %v2256 = vpop.f32.mrb[0].mxu0
      %v2257 = vadd.f32 0.0, %v2256
      %v2258 = vpop.f32.mrb[0].mxu0
      %2259 = vdwg.mxu0
      %v2260 = vadd.f32 %v1989, %v2102
      %v2261 = vadd.f32 %v1990, %v2107
      %v2262 = vadd.f32 %v1991, %v2112
      %v2263 = vadd.f32 %v1992, %v2117
      %v2264 = vadd.f32 %v1993, %v2122
      %v2265 = vadd.f32 %v1994, %v2127
      %v2266 = vadd.f32 %v1995, %v2132
      %v2267 = vadd.f32 %v1996, %v2137
      %v2268 = vadd.f32 %v1997, %v2142
      %v2269 = vadd.f32 %v1998, %v2147
      %v2270 = vadd.f32 %v1999, %v2152
      %v2271 = vadd.f32 %v2000, %v2157
      %v2272 = vadd.f32 %v2001, %v2162
      %v2273 = vadd.f32 %v2002, %v2167
      %v2274 = vadd.f32 %v2003, %v2172
      %v2275 = vadd.f32 %v2004, %v2177
      %v2276 = vadd.f32 %v2005, %v2182
      %v2277 = vadd.f32 %v2006, %v2187
      %v2278 = vadd.f32 %v2007, %v2192
      %v2279 = vadd.f32 %v2008, %v2197
      %v2280 = vadd.f32 %v2009, %v2202
      %v2281 = vadd.f32 %v2010, %v2207
      %v2282 = vadd.f32 %v2011, %v2212
      %v2283 = vadd.f32 %v2012, %v2217
      %v2284 = vadd.f32 %v2013, %v2222
      %v2285 = vadd.f32 %v2014, %v2227
      %v2286 = vadd.f32 %v2015, %v2232
      %v2287 = vadd.f32 %v2016, %v2237
      %v2288 = vadd.f32 %v2017, %v2242
      %v2289 = vadd.f32 %v2018, %v2247
      %v2290 = vadd.f32 %v2019, %v2252
      %v2291 = vadd.f32 %v2020, %v2257
      %s2292 = scalar_lea.vmem %s1, 24
      %v2293 = vld [vmem:[%s2292] sm:$0xf]
      %v2295 = vsel %vm214, %v354, 0
      %v2298 = vsel %vm214, %v355, 0
      %v2301 = vsel %vm553, %v2293, 0
      %2303 = vmatprep.subr.mxu0 0.0
      %2304 = vmatpush1.msra.mxu0 %v2301
      %2305 = vmatprep.subr.mxu0 0.0
      %2306 = vmatpush1.msra.mxu0 0.0
      %2307 = vmatprep.subr.mxu0 0.0
      %2308 = vmatpush1.msra.mxu0 0.0
      %2309 = vmatprep.subr.mxu0 0.0
      %2310 = vmatpush1.msra.mxu0 0.0
      %2311 = vmatprep.subr.mxu0 0.0
      %2312 = vmatpush1.msra.mxu0 0.0
      %2313 = vmatprep.subr.mxu0 0.0
      %2314 = vmatpush1.msra.mxu0 0.0
      %2315 = vmatprep.subr.mxu0 0.0
      %2316 = vmatpush1.msra.mxu0 0.0
      %2317 = vmatprep.subr.mxu0 0.0
      %2318 = vmatpush1.msra.mxu0 0.0
      %2319 = vmatprep.subr.mxu0 0.0
      %2320 = vmatpush1.msra.mxu0 0.0
      %2321 = vmatprep.subr.mxu0 0.0
      %2322 = vmatpush1.msra.mxu0 0.0
      %2323 = vmatprep.subr.mxu0 0.0
      %2324 = vmatpush1.msra.mxu0 0.0
      %2325 = vmatprep.subr.mxu0 0.0
      %2326 = vmatpush1.msra.mxu0 0.0
      %2327 = vmatprep.subr.mxu0 0.0
      %2328 = vmatpush1.msra.mxu0 0.0
      %2329 = vmatprep.subr.mxu0 0.0
      %2330 = vmatpush1.msra.mxu0 0.0
      %2331 = vmatprep.subr.mxu0 0.0
      %2332 = vmatpush1.msra.mxu0 0.0
      %2333 = vmatprep.subr.mxu0 0.0
      %2334 = vmatpush1.msra.mxu0 0.0
      %2335 = vmatprep.subr.mxu0 0.0
      %2336 = vmatpush1.msra.mxu0 0.0
      %2337 = vmatprep.subr.mxu0 0.0
      %2338 = vmatpush1.msra.mxu0 0.0
      %2339 = vmatprep.subr.mxu0 0.0
      %2340 = vmatpush1.msra.mxu0 0.0
      %2341 = vmatprep.subr.mxu0 0.0
      %2342 = vmatpush1.msra.mxu0 0.0
      %2343 = vmatprep.subr.mxu0 0.0
      %2344 = vmatpush1.msra.mxu0 0.0
      %2345 = vmatprep.subr.mxu0 0.0
      %2346 = vmatpush1.msra.mxu0 0.0
      %2347 = vmatprep.subr.mxu0 0.0
      %2348 = vmatpush1.msra.mxu0 0.0
      %2349 = vmatprep.subr.mxu0 0.0
      %2350 = vmatpush1.msra.mxu0 0.0
      %2351 = vmatprep.subr.mxu0 0.0
      %2352 = vmatpush1.msra.mxu0 0.0
      %2353 = vmatprep.subr.mxu0 0.0
      %2354 = vmatpush1.msra.mxu0 0.0
      %2355 = vmatprep.subr.mxu0 0.0
      %2356 = vmatpush1.msra.mxu0 0.0
      %2357 = vmatprep.subr.mxu0 0.0
      %2358 = vmatpush1.msra.mxu0 0.0
      %2359 = vmatprep.subr.mxu0 0.0
      %2360 = vmatpush1.msra.mxu0 0.0
      %2361 = vmatprep.subr.mxu0 0.0
      %2362 = vmatpush1.msra.mxu0 0.0
      %2363 = vmatprep.subr.mxu0 0.0
      %2364 = vmatpush1.msra.mxu0 0.0
      %2365 = vmatprep.subr.mxu0 0.0
      %2366 = vmatpush1.msra.mxu0 0.0
      %2367 = vmatprep.mubr.f32.mxu0 0.0
      %2368 = vmatmul.mubr.f32.gmra.mrb[0].mxu0 %v790
      %v2369 = vpop.f32.mrb[0].mxu0
      %v2370 = vadd.f32 0.0, %v2369
      %v2371 = vpop.f32.mrb[0].mxu0
      %2372 = vmatprep.mubr.f32.mxu0 0.0
      %2373 = vmatmul.mubr.f32.gmra.mrb[0].mxu0 %v792
      %v2374 = vpop.f32.mrb[0].mxu0
      %v2375 = vadd.f32 0.0, %v2374
      %v2376 = vpop.f32.mrb[0].mxu0
      %2377 = vmatprep.mubr.f32.mxu0 0.0
      %2378 = vmatmul.mubr.f32.gmra.mrb[0].mxu0 %v794
      %v2379 = vpop.f32.mrb[0].mxu0
      %v2380 = vadd.f32 0.0, %v2379
      %v2381 = vpop.f32.mrb[0].mxu0
      %2382 = vmatprep.mubr.f32.mxu0 0.0
      %2383 = vmatmul.mubr.f32.gmra.mrb[0].mxu0 %v796
      %v2384 = vpop.f32.mrb[0].mxu0
      %v2385 = vadd.f32 0.0, %v2384
      %v2386 = vpop.f32.mrb[0].mxu0
      %2387 = vmatprep.mubr.f32.mxu0 0.0
      %2388 = vmatmul.mubr.f32.gmra.mrb[0].mxu0 %v798
      %v2389 = vpop.f32.mrb[0].mxu0
      %v2390 = vadd.f32 0.0, %v2389
      %v2391 = vpop.f32.mrb[0].mxu0
      %2392 = vmatprep.mubr.f32.mxu0 0.0
      %2393 = vmatmul.mubr.f32.gmra.mrb[0].mxu0 %v800
      %v2394 = vpop.f32.mrb[0].mxu0
      %v2395 = vadd.f32 0.0, %v2394
      %v2396 = vpop.f32.mrb[0].mxu0
      %2397 = vmatprep.mubr.f32.mxu0 0.0
      %2398 = vmatmul.mubr.f32.gmra.mrb[0].mxu0 %v802
      %v2399 = vpop.f32.mrb[0].mxu0
      %v2400 = vadd.f32 0.0, %v2399
      %v2401 = vpop.f32.mrb[0].mxu0
      %2402 = vmatprep.mubr.f32.mxu0 0.0
      %2403 = vmatmul.mubr.f32.gmra.mrb[0].mxu0 %v804
      %v2404 = vpop.f32.mrb[0].mxu0
      %v2405 = vadd.f32 0.0, %v2404
      %v2406 = vpop.f32.mrb[0].mxu0
      %2407 = vmatprep.mubr.f32.mxu0 0.0
      %2408 = vmatmul.mubr.f32.gmra.mrb[0].mxu0 %v806
      %v2409 = vpop.f32.mrb[0].mxu0
      %v2410 = vadd.f32 0.0, %v2409
      %v2411 = vpop.f32.mrb[0].mxu0
      %2412 = vmatprep.mubr.f32.mxu0 0.0
      %2413 = vmatmul.mubr.f32.gmra.mrb[0].mxu0 %v808
      %v2414 = vpop.f32.mrb[0].mxu0
      %v2415 = vadd.f32 0.0, %v2414
      %v2416 = vpop.f32.mrb[0].mxu0
      %2417 = vmatprep.mubr.f32.mxu0 0.0
      %2418 = vmatmul.mubr.f32.gmra.mrb[0].mxu0 %v810
      %v2419 = vpop.f32.mrb[0].mxu0
      %v2420 = vadd.f32 0.0, %v2419
      %v2421 = vpop.f32.mrb[0].mxu0
      %2422 = vmatprep.mubr.f32.mxu0 0.0
      %2423 = vmatmul.mubr.f32.gmra.mrb[0].mxu0 %v812
      %v2424 = vpop.f32.mrb[0].mxu0
      %v2425 = vadd.f32 0.0, %v2424
      %v2426 = vpop.f32.mrb[0].mxu0
      %2427 = vmatprep.mubr.f32.mxu0 0.0
      %2428 = vmatmul.mubr.f32.gmra.mrb[0].mxu0 %v814
      %v2429 = vpop.f32.mrb[0].mxu0
      %v2430 = vadd.f32 0.0, %v2429
      %v2431 = vpop.f32.mrb[0].mxu0
      %2432 = vmatprep.mubr.f32.mxu0 0.0
      %2433 = vmatmul.mubr.f32.gmra.mrb[0].mxu0 %v816
      %v2434 = vpop.f32.mrb[0].mxu0
      %v2435 = vadd.f32 0.0, %v2434
      %v2436 = vpop.f32.mrb[0].mxu0
      %2437 = vmatprep.mubr.f32.mxu0 0.0
      %2438 = vmatmul.mubr.f32.gmra.mrb[0].mxu0 %v818
      %v2439 = vpop.f32.mrb[0].mxu0
      %v2440 = vadd.f32 0.0, %v2439
      %v2441 = vpop.f32.mrb[0].mxu0
      %2442 = vmatprep.mubr.f32.mxu0 0.0
      %2443 = vmatmul.mubr.f32.gmra.mrb[0].mxu0 %v820
      %v2444 = vpop.f32.mrb[0].mxu0
      %v2445 = vadd.f32 0.0, %v2444
      %v2446 = vpop.f32.mrb[0].mxu0
      %2447 = vmatprep.mubr.f32.mxu0 0.0
      %2448 = vmatmul.mubr.f32.gmra.mrb[0].mxu0 %v822
      %v2449 = vpop.f32.mrb[0].mxu0
      %v2450 = vadd.f32 0.0, %v2449
      %v2451 = vpop.f32.mrb[0].mxu0
      %2452 = vmatprep.mubr.f32.mxu0 0.0
      %2453 = vmatmul.mubr.f32.gmra.mrb[0].mxu0 %v824
      %v2454 = vpop.f32.mrb[0].mxu0
      %v2455 = vadd.f32 0.0, %v2454
      %v2456 = vpop.f32.mrb[0].mxu0
      %2457 = vmatprep.mubr.f32.mxu0 0.0
      %2458 = vmatmul.mubr.f32.gmra.mrb[0].mxu0 %v826
      %v2459 = vpop.f32.mrb[0].mxu0
      %v2460 = vadd.f32 0.0, %v2459
      %v2461 = vpop.f32.mrb[0].mxu0
      %2462 = vmatprep.mubr.f32.mxu0 0.0
      %2463 = vmatmul.mubr.f32.gmra.mrb[0].mxu0 %v828
      %v2464 = vpop.f32.mrb[0].mxu0
      %v2465 = vadd.f32 0.0, %v2464
      %v2466 = vpop.f32.mrb[0].mxu0
      %2467 = vmatprep.mubr.f32.mxu0 0.0
      %2468 = vmatmul.mubr.f32.gmra.mrb[0].mxu0 %v830
      %v2469 = vpop.f32.mrb[0].mxu0
      %v2470 = vadd.f32 0.0, %v2469
      %v2471 = vpop.f32.mrb[0].mxu0
      %2472 = vmatprep.mubr.f32.mxu0 0.0
      %2473 = vmatmul.mubr.f32.gmra.mrb[0].mxu0 %v832
      %v2474 = vpop.f32.mrb[0].mxu0
      %v2475 = vadd.f32 0.0, %v2474
      %v2476 = vpop.f32.mrb[0].mxu0
      %2477 = vmatprep.mubr.f32.mxu0 0.0
      %2478 = vmatmul.mubr.f32.gmra.mrb[0].mxu0 %v834
      %v2479 = vpop.f32.mrb[0].mxu0
      %v2480 = vadd.f32 0.0, %v2479
      %v2481 = vpop.f32.mrb[0].mxu0
      %2482 = vmatprep.mubr.f32.mxu0 0.0
      %2483 = vmatmul.mubr.f32.gmra.mrb[0].mxu0 %v836
      %v2484 = vpop.f32.mrb[0].mxu0
      %v2485 = vadd.f32 0.0, %v2484
      %v2486 = vpop.f32.mrb[0].mxu0
      %2487 = vmatprep.mubr.f32.mxu0 0.0
      %2488 = vmatmul.mubr.f32.gmra.mrb[0].mxu0 %v838
      %v2489 = vpop.f32.mrb[0].mxu0
      %v2490 = vadd.f32 0.0, %v2489
      %v2491 = vpop.f32.mrb[0].mxu0
      %2492 = vmatprep.mubr.f32.mxu0 0.0
      %2493 = vmatmul.mubr.f32.gmra.mrb[0].mxu0 %v840
      %v2494 = vpop.f32.mrb[0].mxu0
      %v2495 = vadd.f32 0.0, %v2494
      %v2496 = vpop.f32.mrb[0].mxu0
      %2497 = vmatprep.mubr.f32.mxu0 0.0
      %2498 = vmatmul.mubr.f32.gmra.mrb[0].mxu0 %v842
      %v2499 = vpop.f32.mrb[0].mxu0
      %v2500 = vadd.f32 0.0, %v2499
      %v2501 = vpop.f32.mrb[0].mxu0
      %2502 = vmatprep.mubr.f32.mxu0 0.0
      %2503 = vmatmul.mubr.f32.gmra.mrb[0].mxu0 %v844
      %v2504 = vpop.f32.mrb[0].mxu0
      %v2505 = vadd.f32 0.0, %v2504
      %v2506 = vpop.f32.mrb[0].mxu0
      %2507 = vmatprep.mubr.f32.mxu0 0.0
      %2508 = vmatmul.mubr.f32.gmra.mrb[0].mxu0 %v1484
      %v2509 = vpop.f32.mrb[0].mxu0
      %v2510 = vadd.f32 0.0, %v2509
      %v2511 = vpop.f32.mrb[0].mxu0
      %2512 = vmatprep.mubr.f32.mxu0 0.0
      %2513 = vmatmul.mubr.f32.gmra.mrb[0].mxu0 %v1487
      %v2514 = vpop.f32.mrb[0].mxu0
      %v2515 = vadd.f32 0.0, %v2514
      %v2516 = vpop.f32.mrb[0].mxu0
      %2517 = vmatprep.mubr.f32.mxu0 0.0
      %2518 = vmatmul.mubr.f32.gmra.mrb[0].mxu0 %v2295
      %v2519 = vpop.f32.mrb[0].mxu0
      %v2520 = vadd.f32 0.0, %v2519
      %v2521 = vpop.f32.mrb[0].mxu0
      %2522 = vmatprep.mubr.f32.mxu0 0.0
      %2523 = vmatmul.mubr.f32.gmra.mrb[0].mxu0 %v2298
      %v2524 = vpop.f32.mrb[0].mxu0
      %v2525 = vadd.f32 0.0, %v2524
      %v2526 = vpop.f32.mrb[0].mxu0
      %2527 = vdwg.mxu0
      %v2528 = vadd.f32 %v2260, %v2370
      %v2529 = vadd.f32 %v2261, %v2375
      %v2530 = vadd.f32 %v2262, %v2380
      %v2531 = vadd.f32 %v2263, %v2385
      %v2532 = vadd.f32 %v2264, %v2390
      %v2533 = vadd.f32 %v2265, %v2395
      %v2534 = vadd.f32 %v2266, %v2400
      %v2535 = vadd.f32 %v2267, %v2405
      %v2536 = vadd.f32 %v2268, %v2410
      %v2537 = vadd.f32 %v2269, %v2415
      %v2538 = vadd.f32 %v2270, %v2420
      %v2539 = vadd.f32 %v2271, %v2425
      %v2540 = vadd.f32 %v2272, %v2430
      %v2541 = vadd.f32 %v2273, %v2435
      %v2542 = vadd.f32 %v2274, %v2440
      %v2543 = vadd.f32 %v2275, %v2445
      %v2544 = vadd.f32 %v2276, %v2450
      %v2545 = vadd.f32 %v2277, %v2455
      %v2546 = vadd.f32 %v2278, %v2460
      %v2547 = vadd.f32 %v2279, %v2465
      %v2548 = vadd.f32 %v2280, %v2470
      %v2549 = vadd.f32 %v2281, %v2475
      %v2550 = vadd.f32 %v2282, %v2480
      %v2551 = vadd.f32 %v2283, %v2485
      %v2552 = vadd.f32 %v2284, %v2490
      %v2553 = vadd.f32 %v2285, %v2495
      %v2554 = vadd.f32 %v2286, %v2500
      %v2555 = vadd.f32 %v2287, %v2505
      %v2556 = vadd.f32 %v2288, %v2510
      %v2557 = vadd.f32 %v2289, %v2515
      %v2558 = vadd.f32 %v2290, %v2520
      %v2559 = vadd.f32 %v2291, %v2525
      %v2561 = vrot.slane %v354, 1
      %v2562 = vrot.slane %v355, 1
      %v2563 = vsel %vm406, %v2561, %v2562
      %v2564 = vrot.slane %v356, 1
      %v2565 = vsel %vm406, %v2562, %v2564
      %s2566 = scalar_lea.vmem %s1, 28
      %v2567 = vld [vmem:[%s2566] sm:$0xf]
      %v2568 = vsel %vm214, %v2563, 0
      %v2570 = vsel %vm214, %v2565, 0
      %v2573 = vsel %vm553, %v2567, 0
      %2575 = vmatprep.subr.mxu0 0.0
      %2576 = vmatpush1.msra.mxu0 %v2573
      %2577 = vmatprep.subr.mxu0 0.0
      %2578 = vmatpush1.msra.mxu0 0.0
      %2579 = vmatprep.subr.mxu0 0.0
      %2580 = vmatpush1.msra.mxu0 0.0
      %2581 = vmatprep.subr.mxu0 0.0
      %2582 = vmatpush1.msra.mxu0 0.0
      %2583 = vmatprep.subr.mxu0 0.0
      %2584 = vmatpush1.msra.mxu0 0.0
      %2585 = vmatprep.subr.mxu0 0.0
      %2586 = vmatpush1.msra.mxu0 0.0
      %2587 = vmatprep.subr.mxu0 0.0
      %2588 = vmatpush1.msra.mxu0 0.0
      %2589 = vmatprep.subr.mxu0 0.0
      %2590 = vmatpush1.msra.mxu0 0.0
      %2591 = vmatprep.subr.mxu0 0.0
      %2592 = vmatpush1.msra.mxu0 0.0
      %2593 = vmatprep.subr.mxu0 0.0
      %2594 = vmatpush1.msra.mxu0 0.0
      %2595 = vmatprep.subr.mxu0 0.0
      %2596 = vmatpush1.msra.mxu0 0.0
      %2597 = vmatprep.subr.mxu0 0.0
      %2598 = vmatpush1.msra.mxu0 0.0
      %2599 = vmatprep.subr.mxu0 0.0
      %2600 = vmatpush1.msra.mxu0 0.0
      %2601 = vmatprep.subr.mxu0 0.0
      %2602 = vmatpush1.msra.mxu0 0.0
      %2603 = vmatprep.subr.mxu0 0.0
      %2604 = vmatpush1.msra.mxu0 0.0
      %2605 = vmatprep.subr.mxu0 0.0
      %2606 = vmatpush1.msra.mxu0 0.0
      %2607 = vmatprep.subr.mxu0 0.0
      %2608 = vmatpush1.msra.mxu0 0.0
      %2609 = vmatprep.subr.mxu0 0.0
      %2610 = vmatpush1.msra.mxu0 0.0
      %2611 = vmatprep.subr.mxu0 0.0
      %2612 = vmatpush1.msra.mxu0 0.0
      %2613 = vmatprep.subr.mxu0 0.0
      %2614 = vmatpush1.msra.mxu0 0.0
      %2615 = vmatprep.subr.mxu0 0.0
      %2616 = vmatpush1.msra.mxu0 0.0
      %2617 = vmatprep.subr.mxu0 0.0
      %2618 = vmatpush1.msra.mxu0 0.0
      %2619 = vmatprep.subr.mxu0 0.0
      %2620 = vmatpush1.msra.mxu0 0.0
      %2621 = vmatprep.subr.mxu0 0.0
      %2622 = vmatpush1.msra.mxu0 0.0
      %2623 = vmatprep.subr.mxu0 0.0
      %2624 = vmatpush1.msra.mxu0 0.0
      %2625 = vmatprep.subr.mxu0 0.0
      %2626 = vmatpush1.msra.mxu0 0.0
      %2627 = vmatprep.subr.mxu0 0.0
      %2628 = vmatpush1.msra.mxu0 0.0
      %2629 = vmatprep.subr.mxu0 0.0
      %2630 = vmatpush1.msra.mxu0 0.0
      %2631 = vmatprep.subr.mxu0 0.0
      %2632 = vmatpush1.msra.mxu0 0.0
      %2633 = vmatprep.subr.mxu0 0.0
      %2634 = vmatpush1.msra.mxu0 0.0
      %2635 = vmatprep.subr.mxu0 0.0
      %2636 = vmatpush1.msra.mxu0 0.0
      %2637 = vmatprep.subr.mxu0 0.0
      %2638 = vmatpush1.msra.mxu0 0.0
      %2639 = vmatprep.mubr.f32.mxu0 0.0
      %2640 = vmatmul.mubr.f32.gmra.mrb[0].mxu0 %v497
      %v2641 = vpop.f32.mrb[0].mxu0
      %v2642 = vadd.f32 0.0, %v2641
      %v2643 = vpop.f32.mrb[0].mxu0
      %2644 = vmatprep.mubr.f32.mxu0 0.0
      %2645 = vmatmul.mubr.f32.gmra.mrb[0].mxu0 %v499
      %v2646 = vpop.f32.mrb[0].mxu0
      %v2647 = vadd.f32 0.0, %v2646
      %v2648 = vpop.f32.mrb[0].mxu0
      %2649 = vmatprep.mubr.f32.mxu0 0.0
      %2650 = vmatmul.mubr.f32.gmra.mrb[0].mxu0 %v501
      %v2651 = vpop.f32.mrb[0].mxu0
      %v2652 = vadd.f32 0.0, %v2651
      %v2653 = vpop.f32.mrb[0].mxu0
      %2654 = vmatprep.mubr.f32.mxu0 0.0
      %2655 = vmatmul.mubr.f32.gmra.mrb[0].mxu0 %v503
      %v2656 = vpop.f32.mrb[0].mxu0
      %v2657 = vadd.f32 0.0, %v2656
      %v2658 = vpop.f32.mrb[0].mxu0
      %2659 = vmatprep.mubr.f32.mxu0 0.0
      %2660 = vmatmul.mubr.f32.gmra.mrb[0].mxu0 %v505
      %v2661 = vpop.f32.mrb[0].mxu0
      %v2662 = vadd.f32 0.0, %v2661
      %v2663 = vpop.f32.mrb[0].mxu0
      %2664 = vmatprep.mubr.f32.mxu0 0.0
      %2665 = vmatmul.mubr.f32.gmra.mrb[0].mxu0 %v507
      %v2666 = vpop.f32.mrb[0].mxu0
      %v2667 = vadd.f32 0.0, %v2666
      %v2668 = vpop.f32.mrb[0].mxu0
      %2669 = vmatprep.mubr.f32.mxu0 0.0
      %2670 = vmatmul.mubr.f32.gmra.mrb[0].mxu0 %v509
      %v2671 = vpop.f32.mrb[0].mxu0
      %v2672 = vadd.f32 0.0, %v2671
      %v2673 = vpop.f32.mrb[0].mxu0
      %2674 = vmatprep.mubr.f32.mxu0 0.0
      %2675 = vmatmul.mubr.f32.gmra.mrb[0].mxu0 %v511
      %v2676 = vpop.f32.mrb[0].mxu0
      %v2677 = vadd.f32 0.0, %v2676
      %v2678 = vpop.f32.mrb[0].mxu0
      %2679 = vmatprep.mubr.f32.mxu0 0.0
      %2680 = vmatmul.mubr.f32.gmra.mrb[0].mxu0 %v513
      %v2681 = vpop.f32.mrb[0].mxu0
      %v2682 = vadd.f32 0.0, %v2681
      %v2683 = vpop.f32.mrb[0].mxu0
      %2684 = vmatprep.mubr.f32.mxu0 0.0
      %2685 = vmatmul.mubr.f32.gmra.mrb[0].mxu0 %v515
      %v2686 = vpop.f32.mrb[0].mxu0
      %v2687 = vadd.f32 0.0, %v2686
      %v2688 = vpop.f32.mrb[0].mxu0
      %2689 = vmatprep.mubr.f32.mxu0 0.0
      %2690 = vmatmul.mubr.f32.gmra.mrb[0].mxu0 %v517
      %v2691 = vpop.f32.mrb[0].mxu0
      %v2692 = vadd.f32 0.0, %v2691
      %v2693 = vpop.f32.mrb[0].mxu0
      %2694 = vmatprep.mubr.f32.mxu0 0.0
      %2695 = vmatmul.mubr.f32.gmra.mrb[0].mxu0 %v519
      %v2696 = vpop.f32.mrb[0].mxu0
      %v2697 = vadd.f32 0.0, %v2696
      %v2698 = vpop.f32.mrb[0].mxu0
      %2699 = vmatprep.mubr.f32.mxu0 0.0
      %2700 = vmatmul.mubr.f32.gmra.mrb[0].mxu0 %v521
      %v2701 = vpop.f32.mrb[0].mxu0
      %v2702 = vadd.f32 0.0, %v2701
      %v2703 = vpop.f32.mrb[0].mxu0
      %2704 = vmatprep.mubr.f32.mxu0 0.0
      %2705 = vmatmul.mubr.f32.gmra.mrb[0].mxu0 %v523
      %v2706 = vpop.f32.mrb[0].mxu0
      %v2707 = vadd.f32 0.0, %v2706
      %v2708 = vpop.f32.mrb[0].mxu0
      %2709 = vmatprep.mubr.f32.mxu0 0.0
      %2710 = vmatmul.mubr.f32.gmra.mrb[0].mxu0 %v525
      %v2711 = vpop.f32.mrb[0].mxu0
      %v2712 = vadd.f32 0.0, %v2711
      %v2713 = vpop.f32.mrb[0].mxu0
      %2714 = vmatprep.mubr.f32.mxu0 0.0
      %2715 = vmatmul.mubr.f32.gmra.mrb[0].mxu0 %v527
      %v2716 = vpop.f32.mrb[0].mxu0
      %v2717 = vadd.f32 0.0, %v2716
      %v2718 = vpop.f32.mrb[0].mxu0
      %2719 = vmatprep.mubr.f32.mxu0 0.0
      %2720 = vmatmul.mubr.f32.gmra.mrb[0].mxu0 %v529
      %v2721 = vpop.f32.mrb[0].mxu0
      %v2722 = vadd.f32 0.0, %v2721
      %v2723 = vpop.f32.mrb[0].mxu0
      %2724 = vmatprep.mubr.f32.mxu0 0.0
      %2725 = vmatmul.mubr.f32.gmra.mrb[0].mxu0 %v531
      %v2726 = vpop.f32.mrb[0].mxu0
      %v2727 = vadd.f32 0.0, %v2726
      %v2728 = vpop.f32.mrb[0].mxu0
      %2729 = vmatprep.mubr.f32.mxu0 0.0
      %2730 = vmatmul.mubr.f32.gmra.mrb[0].mxu0 %v533
      %v2731 = vpop.f32.mrb[0].mxu0
      %v2732 = vadd.f32 0.0, %v2731
      %v2733 = vpop.f32.mrb[0].mxu0
      %2734 = vmatprep.mubr.f32.mxu0 0.0
      %2735 = vmatmul.mubr.f32.gmra.mrb[0].mxu0 %v535
      %v2736 = vpop.f32.mrb[0].mxu0
      %v2737 = vadd.f32 0.0, %v2736
      %v2738 = vpop.f32.mrb[0].mxu0
      %2739 = vmatprep.mubr.f32.mxu0 0.0
      %2740 = vmatmul.mubr.f32.gmra.mrb[0].mxu0 %v537
      %v2741 = vpop.f32.mrb[0].mxu0
      %v2742 = vadd.f32 0.0, %v2741
      %v2743 = vpop.f32.mrb[0].mxu0
      %2744 = vmatprep.mubr.f32.mxu0 0.0
      %2745 = vmatmul.mubr.f32.gmra.mrb[0].mxu0 %v539
      %v2746 = vpop.f32.mrb[0].mxu0
      %v2747 = vadd.f32 0.0, %v2746
      %v2748 = vpop.f32.mrb[0].mxu0
      %2749 = vmatprep.mubr.f32.mxu0 0.0
      %2750 = vmatmul.mubr.f32.gmra.mrb[0].mxu0 %v541
      %v2751 = vpop.f32.mrb[0].mxu0
      %v2752 = vadd.f32 0.0, %v2751
      %v2753 = vpop.f32.mrb[0].mxu0
      %2754 = vmatprep.mubr.f32.mxu0 0.0
      %2755 = vmatmul.mubr.f32.gmra.mrb[0].mxu0 %v543
      %v2756 = vpop.f32.mrb[0].mxu0
      %v2757 = vadd.f32 0.0, %v2756
      %v2758 = vpop.f32.mrb[0].mxu0
      %2759 = vmatprep.mubr.f32.mxu0 0.0
      %2760 = vmatmul.mubr.f32.gmra.mrb[0].mxu0 %v545
      %v2761 = vpop.f32.mrb[0].mxu0
      %v2762 = vadd.f32 0.0, %v2761
      %v2763 = vpop.f32.mrb[0].mxu0
      %2764 = vmatprep.mubr.f32.mxu0 0.0
      %2765 = vmatmul.mubr.f32.gmra.mrb[0].mxu0 %v547
      %v2766 = vpop.f32.mrb[0].mxu0
      %v2767 = vadd.f32 0.0, %v2766
      %v2768 = vpop.f32.mrb[0].mxu0
      %2769 = vmatprep.mubr.f32.mxu0 0.0
      %2770 = vmatmul.mubr.f32.gmra.mrb[0].mxu0 %v549
      %v2771 = vpop.f32.mrb[0].mxu0
      %v2772 = vadd.f32 0.0, %v2771
      %v2773 = vpop.f32.mrb[0].mxu0
      %2774 = vmatprep.mubr.f32.mxu0 0.0
      %2775 = vmatmul.mubr.f32.gmra.mrb[0].mxu0 %v551
      %v2776 = vpop.f32.mrb[0].mxu0
      %v2777 = vadd.f32 0.0, %v2776
      %v2778 = vpop.f32.mrb[0].mxu0
      %2779 = vmatprep.mubr.f32.mxu0 0.0
      %2780 = vmatmul.mubr.f32.gmra.mrb[0].mxu0 %v1757
      %v2781 = vpop.f32.mrb[0].mxu0
      %v2782 = vadd.f32 0.0, %v2781
      %v2783 = vpop.f32.mrb[0].mxu0
      %2784 = vmatprep.mubr.f32.mxu0 0.0
      %2785 = vmatmul.mubr.f32.gmra.mrb[0].mxu0 %v1759
      %v2786 = vpop.f32.mrb[0].mxu0
      %v2787 = vadd.f32 0.0, %v2786
      %v2788 = vpop.f32.mrb[0].mxu0
      %2789 = vmatprep.mubr.f32.mxu0 0.0
      %2790 = vmatmul.mubr.f32.gmra.mrb[0].mxu0 %v2568
      %v2791 = vpop.f32.mrb[0].mxu0
      %v2792 = vadd.f32 0.0, %v2791
      %v2793 = vpop.f32.mrb[0].mxu0
      %2794 = vmatprep.mubr.f32.mxu0 0.0
      %2795 = vmatmul.mubr.f32.gmra.mrb[0].mxu0 %v2570
      %v2796 = vpop.f32.mrb[0].mxu0
      %v2797 = vadd.f32 0.0, %v2796
      %v2798 = vpop.f32.mrb[0].mxu0
      %2799 = vdwg.mxu0
      %v2800 = vadd.f32 %v2528, %v2642
      %v2801 = vadd.f32 %v2529, %v2647
      %v2802 = vadd.f32 %v2530, %v2652
      %v2803 = vadd.f32 %v2531, %v2657
      %v2804 = vadd.f32 %v2532, %v2662
      %v2805 = vadd.f32 %v2533, %v2667
      %v2806 = vadd.f32 %v2534, %v2672
      %v2807 = vadd.f32 %v2535, %v2677
      %v2808 = vadd.f32 %v2536, %v2682
      %v2809 = vadd.f32 %v2537, %v2687
      %v2810 = vadd.f32 %v2538, %v2692
      %v2811 = vadd.f32 %v2539, %v2697
      %v2812 = vadd.f32 %v2540, %v2702
      %v2813 = vadd.f32 %v2541, %v2707
      %v2814 = vadd.f32 %v2542, %v2712
      %v2815 = vadd.f32 %v2543, %v2717
      %v2816 = vadd.f32 %v2544, %v2722
      %v2817 = vadd.f32 %v2545, %v2727
      %v2818 = vadd.f32 %v2546, %v2732
      %v2819 = vadd.f32 %v2547, %v2737
      %v2820 = vadd.f32 %v2548, %v2742
      %v2821 = vadd.f32 %v2549, %v2747
      %v2822 = vadd.f32 %v2550, %v2752
      %v2823 = vadd.f32 %v2551, %v2757
      %v2824 = vadd.f32 %v2552, %v2762
      %v2825 = vadd.f32 %v2553, %v2767
      %v2826 = vadd.f32 %v2554, %v2772
      %v2827 = vadd.f32 %v2555, %v2777
      %v2828 = vadd.f32 %v2556, %v2782
      %v2829 = vadd.f32 %v2557, %v2787
      %v2830 = vadd.f32 %v2558, %v2792
      %v2831 = vadd.f32 %v2559, %v2797
      %v2832 = vrot.slane %v354, 2
      %v2833 = vrot.slane %v355, 2
      %v2834 = vsel %vm1074, %v2832, %v2833
      %v2835 = vrot.slane %v356, 2
      %v2836 = vsel %vm1074, %v2833, %v2835
      %s2837 = scalar_lea.vmem %s1, 32
      %v2838 = vld [vmem:[%s2837] sm:$0xf]
      %v2839 = vsel %vm214, %v2834, 0
      %v2841 = vsel %vm214, %v2836, 0
      %v2844 = vsel %vm553, %v2838, 0
      %2846 = vmatprep.subr.mxu0 0.0
      %2847 = vmatpush1.msra.mxu0 %v2844
      %2848 = vmatprep.subr.mxu0 0.0
      %2849 = vmatpush1.msra.mxu0 0.0
      %2850 = vmatprep.subr.mxu0 0.0
      %2851 = vmatpush1.msra.mxu0 0.0
      %2852 = vmatprep.subr.mxu0 0.0
      %2853 = vmatpush1.msra.mxu0 0.0
      %2854 = vmatprep.subr.mxu0 0.0
      %2855 = vmatpush1.msra.mxu0 0.0
      %2856 = vmatprep.subr.mxu0 0.0
      %2857 = vmatpush1.msra.mxu0 0.0
      %2858 = vmatprep.subr.mxu0 0.0
      %2859 = vmatpush1.msra.mxu0 0.0
      %2860 = vmatprep.subr.mxu0 0.0
      %2861 = vmatpush1.msra.mxu0 0.0
      %2862 = vmatprep.subr.mxu0 0.0
      %2863 = vmatpush1.msra.mxu0 0.0
      %2864 = vmatprep.subr.mxu0 0.0
      %2865 = vmatpush1.msra.mxu0 0.0
      %2866 = vmatprep.subr.mxu0 0.0
      %2867 = vmatpush1.msra.mxu0 0.0
      %2868 = vmatprep.subr.mxu0 0.0
      %2869 = vmatpush1.msra.mxu0 0.0
      %2870 = vmatprep.subr.mxu0 0.0
      %2871 = vmatpush1.msra.mxu0 0.0
      %2872 = vmatprep.subr.mxu0 0.0
      %2873 = vmatpush1.msra.mxu0 0.0
      %2874 = vmatprep.subr.mxu0 0.0
      %2875 = vmatpush1.msra.mxu0 0.0
      %2876 = vmatprep.subr.mxu0 0.0
      %2877 = vmatpush1.msra.mxu0 0.0
      %2878 = vmatprep.subr.mxu0 0.0
      %2879 = vmatpush1.msra.mxu0 0.0
      %2880 = vmatprep.subr.mxu0 0.0
      %2881 = vmatpush1.msra.mxu0 0.0
      %2882 = vmatprep.subr.mxu0 0.0
      %2883 = vmatpush1.msra.mxu0 0.0
      %2884 = vmatprep.subr.mxu0 0.0
      %2885 = vmatpush1.msra.mxu0 0.0
      %2886 = vmatprep.subr.mxu0 0.0
      %2887 = vmatpush1.msra.mxu0 0.0
      %2888 = vmatprep.subr.mxu0 0.0
      %2889 = vmatpush1.msra.mxu0 0.0
      %2890 = vmatprep.subr.mxu0 0.0
      %2891 = vmatpush1.msra.mxu0 0.0
      %2892 = vmatprep.subr.mxu0 0.0
      %2893 = vmatpush1.msra.mxu0 0.0
      %2894 = vmatprep.subr.mxu0 0.0
      %2895 = vmatpush1.msra.mxu0 0.0
      %2896 = vmatprep.subr.mxu0 0.0
      %2897 = vmatpush1.msra.mxu0 0.0
      %2898 = vmatprep.subr.mxu0 0.0
      %2899 = vmatpush1.msra.mxu0 0.0
      %2900 = vmatprep.subr.mxu0 0.0
      %2901 = vmatpush1.msra.mxu0 0.0
      %2902 = vmatprep.subr.mxu0 0.0
      %2903 = vmatpush1.msra.mxu0 0.0
      %2904 = vmatprep.subr.mxu0 0.0
      %2905 = vmatpush1.msra.mxu0 0.0
      %2906 = vmatprep.subr.mxu0 0.0
      %2907 = vmatpush1.msra.mxu0 0.0
      %2908 = vmatprep.subr.mxu0 0.0
      %2909 = vmatpush1.msra.mxu0 0.0
      %2910 = vmatprep.mubr.f32.mxu0 0.0
      %2911 = vmatmul.mubr.f32.gmra.mrb[0].mxu0 %v1165
      %v2912 = vpop.f32.mrb[0].mxu0
      %v2913 = vadd.f32 0.0, %v2912
      %v2914 = vpop.f32.mrb[0].mxu0
      %2915 = vmatprep.mubr.f32.mxu0 0.0
      %2916 = vmatmul.mubr.f32.gmra.mrb[0].mxu0 %v1167
      %v2917 = vpop.f32.mrb[0].mxu0
      %v2918 = vadd.f32 0.0, %v2917
      %v2919 = vpop.f32.mrb[0].mxu0
      %2920 = vmatprep.mubr.f32.mxu0 0.0
      %2921 = vmatmul.mubr.f32.gmra.mrb[0].mxu0 %v1169
      %v2922 = vpop.f32.mrb[0].mxu0
      %v2923 = vadd.f32 0.0, %v2922
      %v2924 = vpop.f32.mrb[0].mxu0
      %2925 = vmatprep.mubr.f32.mxu0 0.0
      %2926 = vmatmul.mubr.f32.gmra.mrb[0].mxu0 %v1171
      %v2927 = vpop.f32.mrb[0].mxu0
      %v2928 = vadd.f32 0.0, %v2927
      %v2929 = vpop.f32.mrb[0].mxu0
      %2930 = vmatprep.mubr.f32.mxu0 0.0
      %2931 = vmatmul.mubr.f32.gmra.mrb[0].mxu0 %v1173
      %v2932 = vpop.f32.mrb[0].mxu0
      %v2933 = vadd.f32 0.0, %v2932
      %v2934 = vpop.f32.mrb[0].mxu0
      %2935 = vmatprep.mubr.f32.mxu0 0.0
      %2936 = vmatmul.mubr.f32.gmra.mrb[0].mxu0 %v1175
      %v2937 = vpop.f32.mrb[0].mxu0
      %v2938 = vadd.f32 0.0, %v2937
      %v2939 = vpop.f32.mrb[0].mxu0
      %2940 = vmatprep.mubr.f32.mxu0 0.0
      %2941 = vmatmul.mubr.f32.gmra.mrb[0].mxu0 %v1177
      %v2942 = vpop.f32.mrb[0].mxu0
      %v2943 = vadd.f32 0.0, %v2942
      %v2944 = vpop.f32.mrb[0].mxu0
      %2945 = vmatprep.mubr.f32.mxu0 0.0
      %2946 = vmatmul.mubr.f32.gmra.mrb[0].mxu0 %v1179
      %v2947 = vpop.f32.mrb[0].mxu0
      %v2948 = vadd.f32 0.0, %v2947
      %v2949 = vpop.f32.mrb[0].mxu0
      %2950 = vmatprep.mubr.f32.mxu0 0.0
      %2951 = vmatmul.mubr.f32.gmra.mrb[0].mxu0 %v1181
      %v2952 = vpop.f32.mrb[0].mxu0
      %v2953 = vadd.f32 0.0, %v2952
      %v2954 = vpop.f32.mrb[0].mxu0
      %2955 = vmatprep.mubr.f32.mxu0 0.0
      %2956 = vmatmul.mubr.f32.gmra.mrb[0].mxu0 %v1183
      %v2957 = vpop.f32.mrb[0].mxu0
      %v2958 = vadd.f32 0.0, %v2957
      %v2959 = vpop.f32.mrb[0].mxu0
      %2960 = vmatprep.mubr.f32.mxu0 0.0
      %2961 = vmatmul.mubr.f32.gmra.mrb[0].mxu0 %v1185
      %v2962 = vpop.f32.mrb[0].mxu0
      %v2963 = vadd.f32 0.0, %v2962
      %v2964 = vpop.f32.mrb[0].mxu0
      %2965 = vmatprep.mubr.f32.mxu0 0.0
      %2966 = vmatmul.mubr.f32.gmra.mrb[0].mxu0 %v1187
      %v2967 = vpop.f32.mrb[0].mxu0
      %v2968 = vadd.f32 0.0, %v2967
      %v2969 = vpop.f32.mrb[0].mxu0
      %2970 = vmatprep.mubr.f32.mxu0 0.0
      %2971 = vmatmul.mubr.f32.gmra.mrb[0].mxu0 %v1189
      %v2972 = vpop.f32.mrb[0].mxu0
      %v2973 = vadd.f32 0.0, %v2972
      %v2974 = vpop.f32.mrb[0].mxu0
      %2975 = vmatprep.mubr.f32.mxu0 0.0
      %2976 = vmatmul.mubr.f32.gmra.mrb[0].mxu0 %v1191
      %v2977 = vpop.f32.mrb[0].mxu0
      %v2978 = vadd.f32 0.0, %v2977
      %v2979 = vpop.f32.mrb[0].mxu0
      %2980 = vmatprep.mubr.f32.mxu0 0.0
      %2981 = vmatmul.mubr.f32.gmra.mrb[0].mxu0 %v1193
      %v2982 = vpop.f32.mrb[0].mxu0
      %v2983 = vadd.f32 0.0, %v2982
      %v2984 = vpop.f32.mrb[0].mxu0
      %2985 = vmatprep.mubr.f32.mxu0 0.0
      %2986 = vmatmul.mubr.f32.gmra.mrb[0].mxu0 %v1195
      %v2987 = vpop.f32.mrb[0].mxu0
      %v2988 = vadd.f32 0.0, %v2987
      %v2989 = vpop.f32.mrb[0].mxu0
      %2990 = vmatprep.mubr.f32.mxu0 0.0
      %2991 = vmatmul.mubr.f32.gmra.mrb[0].mxu0 %v1197
      %v2992 = vpop.f32.mrb[0].mxu0
      %v2993 = vadd.f32 0.0, %v2992
      %v2994 = vpop.f32.mrb[0].mxu0
      %2995 = vmatprep.mubr.f32.mxu0 0.0
      %2996 = vmatmul.mubr.f32.gmra.mrb[0].mxu0 %v1199
      %v2997 = vpop.f32.mrb[0].mxu0
      %v2998 = vadd.f32 0.0, %v2997
      %v2999 = vpop.f32.mrb[0].mxu0
      %3000 = vmatprep.mubr.f32.mxu0 0.0
      %3001 = vmatmul.mubr.f32.gmra.mrb[0].mxu0 %v1201
      %v3002 = vpop.f32.mrb[0].mxu0
      %v3003 = vadd.f32 0.0, %v3002
      %v3004 = vpop.f32.mrb[0].mxu0
      %3005 = vmatprep.mubr.f32.mxu0 0.0
      %3006 = vmatmul.mubr.f32.gmra.mrb[0].mxu0 %v1203
      %v3007 = vpop.f32.mrb[0].mxu0
      %v3008 = vadd.f32 0.0, %v3007
      %v3009 = vpop.f32.mrb[0].mxu0
      %3010 = vmatprep.mubr.f32.mxu0 0.0
      %3011 = vmatmul.mubr.f32.gmra.mrb[0].mxu0 %v1205
      %v3012 = vpop.f32.mrb[0].mxu0
      %v3013 = vadd.f32 0.0, %v3012
      %v3014 = vpop.f32.mrb[0].mxu0
      %3015 = vmatprep.mubr.f32.mxu0 0.0
      %3016 = vmatmul.mubr.f32.gmra.mrb[0].mxu0 %v1207
      %v3017 = vpop.f32.mrb[0].mxu0
      %v3018 = vadd.f32 0.0, %v3017
      %v3019 = vpop.f32.mrb[0].mxu0
      %3020 = vmatprep.mubr.f32.mxu0 0.0
      %3021 = vmatmul.mubr.f32.gmra.mrb[0].mxu0 %v1209
      %v3022 = vpop.f32.mrb[0].mxu0
      %v3023 = vadd.f32 0.0, %v3022
      %v3024 = vpop.f32.mrb[0].mxu0
      %3025 = vmatprep.mubr.f32.mxu0 0.0
      %3026 = vmatmul.mubr.f32.gmra.mrb[0].mxu0 %v1211
      %v3027 = vpop.f32.mrb[0].mxu0
      %v3028 = vadd.f32 0.0, %v3027
      %v3029 = vpop.f32.mrb[0].mxu0
      %3030 = vmatprep.mubr.f32.mxu0 0.0
      %3031 = vmatmul.mubr.f32.gmra.mrb[0].mxu0 %v1213
      %v3032 = vpop.f32.mrb[0].mxu0
      %v3033 = vadd.f32 0.0, %v3032
      %v3034 = vpop.f32.mrb[0].mxu0
      %3035 = vmatprep.mubr.f32.mxu0 0.0
      %3036 = vmatmul.mubr.f32.gmra.mrb[0].mxu0 %v1215
      %v3037 = vpop.f32.mrb[0].mxu0
      %v3038 = vadd.f32 0.0, %v3037
      %v3039 = vpop.f32.mrb[0].mxu0
      %3040 = vmatprep.mubr.f32.mxu0 0.0
      %3041 = vmatmul.mubr.f32.gmra.mrb[0].mxu0 %v1217
      %v3042 = vpop.f32.mrb[0].mxu0
      %v3043 = vadd.f32 0.0, %v3042
      %v3044 = vpop.f32.mrb[0].mxu0
      %3045 = vmatprep.mubr.f32.mxu0 0.0
      %3046 = vmatmul.mubr.f32.gmra.mrb[0].mxu0 %v1219
      %v3047 = vpop.f32.mrb[0].mxu0
      %v3048 = vadd.f32 0.0, %v3047
      %v3049 = vpop.f32.mrb[0].mxu0
      %3050 = vmatprep.mubr.f32.mxu0 0.0
      %3051 = vmatmul.mubr.f32.gmra.mrb[0].mxu0 %v2028
      %v3052 = vpop.f32.mrb[0].mxu0
      %v3053 = vadd.f32 0.0, %v3052
      %v3054 = vpop.f32.mrb[0].mxu0
      %3055 = vmatprep.mubr.f32.mxu0 0.0
      %3056 = vmatmul.mubr.f32.gmra.mrb[0].mxu0 %v2030
      %v3057 = vpop.f32.mrb[0].mxu0
      %v3058 = vadd.f32 0.0, %v3057
      %v3059 = vpop.f32.mrb[0].mxu0
      %3060 = vmatprep.mubr.f32.mxu0 0.0
      %3061 = vmatmul.mubr.f32.gmra.mrb[0].mxu0 %v2839
      %v3062 = vpop.f32.mrb[0].mxu0
      %v3063 = vadd.f32 0.0, %v3062
      %v3064 = vpop.f32.mrb[0].mxu0
      %3065 = vmatprep.mubr.f32.mxu0 0.0
      %3066 = vmatmul.mubr.f32.gmra.mrb[0].mxu0 %v2841
      %v3067 = vpop.f32.mrb[0].mxu0
      %v3068 = vadd.f32 0.0, %v3067
      %v3069 = vpop.f32.mrb[0].mxu0
      %3070 = vdwg.mxu0
      %v3071 = vadd.f32 %v2800, %v2913
      %v3072 = vadd.f32 %v2801, %v2918
      %v3073 = vadd.f32 %v2802, %v2923
      %v3074 = vadd.f32 %v2803, %v2928
      %v3075 = vadd.f32 %v2804, %v2933
      %v3076 = vadd.f32 %v2805, %v2938
      %v3077 = vadd.f32 %v2806, %v2943
      %v3078 = vadd.f32 %v2807, %v2948
      %v3079 = vadd.f32 %v2808, %v2953
      %v3080 = vadd.f32 %v2809, %v2958
      %v3081 = vadd.f32 %v2810, %v2963
      %v3082 = vadd.f32 %v2811, %v2968
      %v3083 = vadd.f32 %v2812, %v2973
      %v3084 = vadd.f32 %v2813, %v2978
      %v3085 = vadd.f32 %v2814, %v2983
      %v3086 = vadd.f32 %v2815, %v2988
      %v3087 = vadd.f32 %v2816, %v2993
      %v3088 = vadd.f32 %v2817, %v2998
      %v3089 = vadd.f32 %v2818, %v3003
      %v3090 = vadd.f32 %v2819, %v3008
      %v3091 = vadd.f32 %v2820, %v3013
      %v3092 = vadd.f32 %v2821, %v3018
      %v3093 = vadd.f32 %v2822, %v3023
      %v3094 = vadd.f32 %v2823, %v3028
      %v3095 = vadd.f32 %v2824, %v3033
      %v3096 = vadd.f32 %v2825, %v3038
      %v3097 = vadd.f32 %v2826, %v3043
      %v3098 = vadd.f32 %v2827, %v3048
      %v3099 = vadd.f32 %v2828, %v3053
      %v3100 = vadd.f32 %v2829, %v3058
      %v3101 = vadd.f32 %v2830, %v3063
      %v3102 = vadd.f32 %v2831, %v3068
      %vm3103 = vcmask 64512
      %3104 = vst.msk [vmem:[%s177] sm:$0xff] %vm3103, %v3071
      %3105 = vst.msk [vmem:[%s177 + $0x8] sm:$0xff] %vm3103, %v3072
      %3106 = vst.msk [vmem:[%s177 + $0x10] sm:$0xff] %vm3103, %v3073
      %3107 = vst.msk [vmem:[%s177 + $0x18] sm:$0xff] %vm3103, %v3074
      %3108 = vst.msk [vmem:[%s177 + $0x20] sm:$0xff] %vm3103, %v3075
      %3109 = vst.msk [vmem:[%s177 + $0x28] sm:$0xff] %vm3103, %v3076
      %3110 = vst.msk [vmem:[%s177 + $0x30] sm:$0xff] %vm3103, %v3077
      %3111 = vst.msk [vmem:[%s177 + $0x38] sm:$0xff] %vm3103, %v3078
      %3112 = vst.msk [vmem:[%s177 + $0x40] sm:$0xff] %vm3103, %v3079
      %3113 = vst.msk [vmem:[%s177 + $0x48] sm:$0xff] %vm3103, %v3080
      %3114 = vst.msk [vmem:[%s177 + $0x50] sm:$0xff] %vm3103, %v3081
      %3115 = vst.msk [vmem:[%s177 + $0x58] sm:$0xff] %vm3103, %v3082
      %3116 = vst.msk [vmem:[%s177 + $0x60] sm:$0xff] %vm3103, %v3083
      %3117 = vst.msk [vmem:[%s177 + $0x68] sm:$0xff] %vm3103, %v3084
      %3118 = vst.msk [vmem:[%s177 + $0x70] sm:$0xff] %vm3103, %v3085
      %3119 = vst.msk [vmem:[%s177 + $0x78] sm:$0xff] %vm3103, %v3086
      %3120 = vst.msk [vmem:[%s177 + $0x80] sm:$0xff] %vm3103, %v3087
      %3121 = vst.msk [vmem:[%s177 + $0x88] sm:$0xff] %vm3103, %v3088
      %3122 = vst.msk [vmem:[%s177 + $0x90] sm:$0xff] %vm3103, %v3089
      %3123 = vst.msk [vmem:[%s177 + $0x98] sm:$0xff] %vm3103, %v3090
      %3124 = vst.msk [vmem:[%s177 + $0xa0] sm:$0xff] %vm3103, %v3091
      %3125 = vst.msk [vmem:[%s177 + $0xa8] sm:$0xff] %vm3103, %v3092
      %3126 = vst.msk [vmem:[%s177 + $0xb0] sm:$0xff] %vm3103, %v3093
      %3127 = vst.msk [vmem:[%s177 + $0xb8] sm:$0xff] %vm3103, %v3094
      %3128 = vst.msk [vmem:[%s177 + $0xc0] sm:$0xff] %vm3103, %v3095
      %3129 = vst.msk [vmem:[%s177 + $0xc8] sm:$0xff] %vm3103, %v3096
      %3130 = vst.msk [vmem:[%s177 + $0xd0] sm:$0xff] %vm3103, %v3097
      %3131 = vst.msk [vmem:[%s177 + $0xd8] sm:$0xff] %vm3103, %v3098
      %3132 = vst.msk [vmem:[%s177 + $0xe0] sm:$0xff] %vm3103, %v3099
      %3133 = vst.msk [vmem:[%s177 + $0xe8] sm:$0xff] %vm3103, %v3100
      %3134 = vst.msk [vmem:[%s177 + $0xf0] sm:$0xff] %vm3103, %v3101
      %3135 = vst.msk [vmem:[%s177 + $0xf8] sm:$0xff] %vm3103, %v3102
      %v3136 = vsel %vm3103, %v3071, 0.0
      %v3137 = vsel %vm3103, %v3072, 0.0
      %v3138 = vadd.f32 %v3136, %v3137
      %v3139 = vsel %vm3103, %v3073, 0.0
      %v3140 = vadd.f32 %v3138, %v3139
      %v3141 = vsel %vm3103, %v3074, 0.0
      %v3142 = vadd.f32 %v3140, %v3141
      %v3143 = vsel %vm3103, %v3075, 0.0
      %v3144 = vadd.f32 %v3142, %v3143
      %v3145 = vsel %vm3103, %v3076, 0.0
      %v3146 = vadd.f32 %v3144, %v3145
      %v3147 = vsel %vm3103, %v3077, 0.0
      %v3148 = vadd.f32 %v3146, %v3147
      %v3149 = vsel %vm3103, %v3078, 0.0
      %v3150 = vadd.f32 %v3148, %v3149
      %v3151 = vsel %vm3103, %v3079, 0.0
      %v3152 = vadd.f32 %v3150, %v3151
      %v3153 = vsel %vm3103, %v3080, 0.0
      %v3154 = vadd.f32 %v3152, %v3153
      %v3155 = vsel %vm3103, %v3081, 0.0
      %v3156 = vadd.f32 %v3154, %v3155
      %v3157 = vsel %vm3103, %v3082, 0.0
      %v3158 = vadd.f32 %v3156, %v3157
      %v3159 = vsel %vm3103, %v3083, 0.0
      %v3160 = vadd.f32 %v3158, %v3159
      %v3161 = vsel %vm3103, %v3084, 0.0
      %v3162 = vadd.f32 %v3160, %v3161
      %v3163 = vsel %vm3103, %v3085, 0.0
      %v3164 = vadd.f32 %v3162, %v3163
      %v3165 = vsel %vm3103, %v3086, 0.0
      %v3166 = vadd.f32 %v3164, %v3165
      %v3167 = vsel %vm3103, %v3087, 0.0
      %v3168 = vadd.f32 %v3166, %v3167
      %v3169 = vsel %vm3103, %v3088, 0.0
      %v3170 = vadd.f32 %v3168, %v3169
      %v3171 = vsel %vm3103, %v3089, 0.0
      %v3172 = vadd.f32 %v3170, %v3171
      %v3173 = vsel %vm3103, %v3090, 0.0
      %v3174 = vadd.f32 %v3172, %v3173
      %v3175 = vsel %vm3103, %v3091, 0.0
      %v3176 = vadd.f32 %v3174, %v3175
      %v3177 = vsel %vm3103, %v3092, 0.0
      %v3178 = vadd.f32 %v3176, %v3177
      %v3179 = vsel %vm3103, %v3093, 0.0
      %v3180 = vadd.f32 %v3178, %v3179
      %v3181 = vsel %vm3103, %v3094, 0.0
      %v3182 = vadd.f32 %v3180, %v3181
      %v3183 = vsel %vm3103, %v3095, 0.0
      %v3184 = vadd.f32 %v3182, %v3183
      %v3185 = vsel %vm3103, %v3096, 0.0
      %v3186 = vadd.f32 %v3184, %v3185
      %v3187 = vsel %vm3103, %v3097, 0.0
      %v3188 = vadd.f32 %v3186, %v3187
      %v3189 = vsel %vm3103, %v3098, 0.0
      %v3190 = vadd.f32 %v3188, %v3189
      %v3191 = vsel %vm3103, %v3099, 0.0
      %v3192 = vadd.f32 %v3190, %v3191
      %v3193 = vsel %vm3103, %v3100, 0.0
      %v3194 = vadd.f32 %v3192, %v3193
      %v3195 = vsel %vm3103, %v3101, 0.0
      %v3196 = vadd.f32 %v3194, %v3195
      %v3197 = vsel %vm3103, %v3102, 0.0
      %v3198 = vadd.f32 %v3196, %v3197
      %v3199 = vrot.slane %v3198, 4
      %v3200 = vadd.f32 %v3198, %v3199
      %v3201 = vrot.slane %v3200, 2
      %v3202 = vadd.f32 %v3200, %v3201
      %v3203 = vrot.slane %v3202, 1
      %v3204 = vadd.f32 %v3202, %v3203
      %v3205 = vmul.f32 %v3071, %v3071
      %v3206 = vmul.f32 %v3072, %v3072
      %v3207 = vmul.f32 %v3073, %v3073
      %v3208 = vmul.f32 %v3074, %v3074
      %v3209 = vmul.f32 %v3075, %v3075
      %v3210 = vmul.f32 %v3076, %v3076
      %v3211 = vmul.f32 %v3077, %v3077
      %v3212 = vmul.f32 %v3078, %v3078
      %v3213 = vmul.f32 %v3079, %v3079
      %v3214 = vmul.f32 %v3080, %v3080
      %v3215 = vmul.f32 %v3081, %v3081
      %v3216 = vmul.f32 %v3082, %v3082
      %v3217 = vmul.f32 %v3083, %v3083
      %v3218 = vmul.f32 %v3084, %v3084
      %v3219 = vmul.f32 %v3085, %v3085
      %v3220 = vmul.f32 %v3086, %v3086
      %v3221 = vmul.f32 %v3087, %v3087
      %v3222 = vmul.f32 %v3088, %v3088
      %v3223 = vmul.f32 %v3089, %v3089
      %v3224 = vmul.f32 %v3090, %v3090
      %v3225 = vmul.f32 %v3091, %v3091
      %v3226 = vmul.f32 %v3092, %v3092
      %v3227 = vmul.f32 %v3093, %v3093
      %v3228 = vmul.f32 %v3094, %v3094
      %v3229 = vmul.f32 %v3095, %v3095
      %v3230 = vmul.f32 %v3096, %v3096
      %v3231 = vmul.f32 %v3097, %v3097
      %v3232 = vmul.f32 %v3098, %v3098
      %v3233 = vmul.f32 %v3099, %v3099
      %v3234 = vmul.f32 %v3100, %v3100
      %v3235 = vmul.f32 %v3101, %v3101
      %v3236 = vmul.f32 %v3102, %v3102
      %v3237 = vsel %vm3103, %v3205, 0.0
      %v3238 = vsel %vm3103, %v3206, 0.0
      %v3239 = vadd.f32 %v3237, %v3238
      %v3240 = vsel %vm3103, %v3207, 0.0
      %v3241 = vadd.f32 %v3239, %v3240
      %v3242 = vsel %vm3103, %v3208, 0.0
      %v3243 = vadd.f32 %v3241, %v3242
      %v3244 = vsel %vm3103, %v3209, 0.0
      %v3245 = vadd.f32 %v3243, %v3244
      %v3246 = vsel %vm3103, %v3210, 0.0
      %v3247 = vadd.f32 %v3245, %v3246
      %v3248 = vsel %vm3103, %v3211, 0.0
      %v3249 = vadd.f32 %v3247, %v3248
      %v3250 = vsel %vm3103, %v3212, 0.0
      %v3251 = vadd.f32 %v3249, %v3250
      %v3252 = vsel %vm3103, %v3213, 0.0
      %v3253 = vadd.f32 %v3251, %v3252
      %v3254 = vsel %vm3103, %v3214, 0.0
      %v3255 = vadd.f32 %v3253, %v3254
      %v3256 = vsel %vm3103, %v3215, 0.0
      %v3257 = vadd.f32 %v3255, %v3256
      %v3258 = vsel %vm3103, %v3216, 0.0
      %v3259 = vadd.f32 %v3257, %v3258
      %v3260 = vsel %vm3103, %v3217, 0.0
      %v3261 = vadd.f32 %v3259, %v3260
      %v3262 = vsel %vm3103, %v3218, 0.0
      %v3263 = vadd.f32 %v3261, %v3262
      %v3264 = vsel %vm3103, %v3219, 0.0
      %v3265 = vadd.f32 %v3263, %v3264
      %v3266 = vsel %vm3103, %v3220, 0.0
      %v3267 = vadd.f32 %v3265, %v3266
      %v3268 = vsel %vm3103, %v3221, 0.0
      %v3269 = vadd.f32 %v3267, %v3268
      %v3270 = vsel %vm3103, %v3222, 0.0
      %v3271 = vadd.f32 %v3269, %v3270
      %v3272 = vsel %vm3103, %v3223, 0.0
      %v3273 = vadd.f32 %v3271, %v3272
      %v3274 = vsel %vm3103, %v3224, 0.0
      %v3275 = vadd.f32 %v3273, %v3274
      %v3276 = vsel %vm3103, %v3225, 0.0
      %v3277 = vadd.f32 %v3275, %v3276
      %v3278 = vsel %vm3103, %v3226, 0.0
      %v3279 = vadd.f32 %v3277, %v3278
      %v3280 = vsel %vm3103, %v3227, 0.0
      %v3281 = vadd.f32 %v3279, %v3280
      %v3282 = vsel %vm3103, %v3228, 0.0
      %v3283 = vadd.f32 %v3281, %v3282
      %v3284 = vsel %vm3103, %v3229, 0.0
      %v3285 = vadd.f32 %v3283, %v3284
      %v3286 = vsel %vm3103, %v3230, 0.0
      %v3287 = vadd.f32 %v3285, %v3286
      %v3288 = vsel %vm3103, %v3231, 0.0
      %v3289 = vadd.f32 %v3287, %v3288
      %v3290 = vsel %vm3103, %v3232, 0.0
      %v3291 = vadd.f32 %v3289, %v3290
      %v3292 = vsel %vm3103, %v3233, 0.0
      %v3293 = vadd.f32 %v3291, %v3292
      %v3294 = vsel %vm3103, %v3234, 0.0
      %v3295 = vadd.f32 %v3293, %v3294
      %v3296 = vsel %vm3103, %v3235, 0.0
      %v3297 = vadd.f32 %v3295, %v3296
      %v3298 = vsel %vm3103, %v3236, 0.0
      %v3299 = vadd.f32 %v3297, %v3298
      %v3300 = vrot.slane %v3299, 4
      %v3301 = vadd.f32 %v3299, %v3300
      %v3302 = vrot.slane %v3301, 2
      %v3303 = vadd.f32 %v3301, %v3302
      %v3304 = vrot.slane %v3303, 1
      %v3305 = vadd.f32 %v3303, %v3304
      %vm3306 = vcmask 1040384
      %v3307 = vsel %vm3306, %v3204, %v3305
      %vm3308 = vcmask 58368
      %3309 = vst.msk [vmem:[%s181] sm:$0x3] %vm3308, %v3307
      %p3310 = scmp.lt.s32.totalorder %s15, 1
      %s3311 = scalar_select %p3310, %s15, 1
      %s3312 = smul.addr %s3311, 32
      %s3313 = smul.addr %s3312, 8
      %s3314 = scalar_lea.vmem %s2, %s3313
      %p3315 = scmp.lt.s32.totalorder %s15, 1
      %s3316 = scalar_select %p3315, %s15, 1
      %s3317 = smul.addr %s3316, 2
      %s3318 = scalar_lea.vmem %s3, %s3317
      // Predicated region
      $region29: #{double_conv_block.3} parent=27 // pred_check
        %p3319 = pneg %p80
      $region30: #{double_conv_block.3} parent=27 // pred_check_branch
        %3321 = sbr.rel (%p3319) target = $region32
      $region31: #{double_conv_block.3} parent=27 // pred_region
        _
      $region32: #{double_conv_block.3} parent=27 // pred_fallthru
        _
      // Predicated region
      $region33: #{double_conv_block.3} parent=27 // pred_check
        %p3322 = pneg %p106
      $region34: #{double_conv_block.3} parent=27 // pred_check_branch
        %3324 = sbr.rel (%p3322) target = $region36
      $region35: #{double_conv_block.3} parent=27 // pred_region
        _
      $region36: #{double_conv_block.3} parent=27 // pred_fallthru
        _
    $region28: #{double_conv_block.3} parent=5 // pred_fallthru
      _
    %p3325 = scmp.le.s32.totalorder 2, %s10
    // Predicated region
    $region37: #{double_conv_block.3} parent=5 // pred_check
      %p3326 = pneg %p3325
    $region38: #{double_conv_block.3} parent=5 // pred_check_branch
      %3328 = sbr.rel (%p3326) target = $region40
    $region39: #{double_conv_block.3} parent=5 // pred_region
      %s3329 = ssub.s32 %s10, 2
      // Predicated region
      $region41: #{double_conv_block.3} parent=39 // pred_check
        %p3330 = pneg %p86
      $region42: #{double_conv_block.3} parent=39 // pred_check_branch
        %3332 = sbr.rel (%p3330) target = $region44
      $region43: #{double_conv_block.3} parent=39 // pred_region
        %p3333 = scmp.lt.s32.totalorder %s16, 1
        %s3334 = scalar_select %p3333, %s16, 1
        %s3335 = smul.addr %s3334, 32
        %s3336 = smul.addr %s3335, 8
        %s3337 = scalar_lea.vmem %s2, %s3336
      $region44: #{double_conv_block.3} parent=39 // pred_fallthru
        _
      // Predicated region
      $region45: #{double_conv_block.3} parent=39 // pred_check
        %p3338 = pneg %p112
      $region46: #{double_conv_block.3} parent=39 // pred_check_branch
        %3340 = sbr.rel (%p3338) target = $region48
      $region47: #{double_conv_block.3} parent=39 // pred_region
        %p3341 = scmp.lt.s32.totalorder %s16, 1
        %s3342 = scalar_select %p3341, %s16, 1
        %s3343 = smul.addr %s3342, 2
        %s3344 = scalar_lea.vmem %s3, %s3343
      $region48: #{double_conv_block.3} parent=39 // pred_fallthru
        _
    $region40: #{double_conv_block.3} parent=5 // pred_fallthru
      _
  $region6: #{double_conv_block.3} parent=0 // loop_footer
    %s14 = sadd.s32 1, %s10
  $region7: #{double_conv_block.3} parent=0 // loop_footer_branch
    %9 = sbr.rel target = $region3
  $region8: #{double_conv_block.3} parent=0 // loop_exit
    _

// kernel: double_conv_block.4
$region0: #{double_conv_block.4}
  #allocation0 [shape = 'u32[]', space=smem, size = 0x4, offset = 0x4, fixed_abs, tag = 'smem constant byte address 0x4 - core index']
  #allocation1 [shape = 'u32[144,128]{1,0:T(1,128)}', space=vmem, size = 0x12000, scoped, tag = 'internal scratch']
  #allocation2 [shape = 'f32[18,18,8]{2,1,0:T(8,128)}', space=vmem, size = 0x36000, scoped, tag = 'scratch operand']
  %s0 = inlined_call_operand.vmem [shape: f32[2,16,16,8], index: 0, kind: input, shape index: {}]
  %s1 = inlined_call_operand.vmem [shape: f32[3,3,8,8], index: 1, kind: input, shape index: {}]
  %s2 = inlined_call_operand.vmem [shape: f32[1,8], index: 2, kind: input, shape index: {}]
  %s3 = inlined_call_operand.vmem [shape: f32[1,8], index: 3, kind: input, shape index: {}]
  %s4 = inlined_call_operand.vmem [shape: f32[2,16,16,8], index: 4, kind: output, shape index: {0}]
  %s5 = inlined_call_operand.vmem [shape: f32[2,2,8], index: 5, kind: output, shape index: {1}]
  %6 = xla_tuple %s4, %s5
  %s7 = sld [smem:[#allocation0]]
  $region57: #{double_conv_block.4} parent=0
    _
  %s9 = ssub.s32 1, %s7
  %s10 = scalar_select 0, %s9, %s7
  loop: start=0, step=1, limit=4
  $region2: #{double_conv_block.4} parent=0 // loop_pre_header
    _
  $region3: #{double_conv_block.4} parent=0 // loop_header
    %s12 = sphi 0, %s16
    %p13 = scmp.ge.s32.totalorder %s12, 4
    %s22 = sphi 0, %s24
    %s25 = sphi 0, %s22
    %s26 = sphi 0, %s25
    %s42 = sphi 0, %s26
    %s46 = sphi 0, %s46
    %s48 = sphi 0, %s46
    %s49 = sphi 0, %s48
    %s63 = sphi 0, %s49
    %s67 = sphi 0, %s67
    %s69 = sphi 0, %s67
    %s70 = sphi 0, %s69
    %s84 = sphi 0, %s70
    %s88 = sphi 0, %s88
    %s90 = sphi 0, %s88
    %s91 = sphi 0, %s90
    %s105 = sphi 0, %s91
    %s111 = sphi 0, %s113
    %s114 = sphi 0, %s111
    %s115 = sphi 0, %s114
    %s131 = sphi 0, %s115
    %s137 = sphi 0, %s139
    %s140 = sphi 0, %s137
    %s141 = sphi 0, %s140
    %s157 = sphi 0, %s141
  $region4: #{double_conv_block.4} parent=0 // loop_header_branch
    %15 = sbr.rel (%p13) target = $region8
  $region5: #{double_conv_block.4} parent=0 // loop_body
    %s17 = ssub.s32 %s12, 1
    %s18 = ssub.s32 %s12, 2
    %s19 = sadd.s32 %s12, 1
    %s20 = ssub.s32 %s12, %s19
    %p21 = scmp.eq.s32.totalorder %s20, 0
    %s23 = sadd.s32 %s22, 1
    %s24 = scalar_select %p21, %s22, %s23
    %p27 = pneg %p21
    %p28 = scmp.eq.s32.totalorder %s12, 1
    %p29 = por %p27, %p28
    %p30 = scmp.ne.s32.totalorder %s22, %s25
    %p31 = scmp.eq.s32.totalorder %s12, 0
    %p32 = por %p30, %p31
    %p33 = scmp.ne.s32.totalorder %s22, %s25
    %p34 = scmp.eq.s32.totalorder %s17, 1
    %p35 = por %p33, %p34
    %p36 = scmp.ne.s32.totalorder %s25, %s26
    %p37 = scmp.eq.s32.totalorder %s17, 0
    %p38 = por %p36, %p37
    %p39 = scmp.ne.s32.totalorder %s25, %s26
    %p40 = scmp.eq.s32.totalorder %s18, 1
    %p41 = por %p39, %p40
    %p43 = scmp.ne.s32.totalorder %s26, %s42
    %p44 = scmp.eq.s32.totalorder %s18, 0
    %p45 = por %p43, %p44
    %s47 = sadd.s32 %s46, 1
    %p50 = scmp.eq.s32.totalorder %s12, 1
    %p51 = scmp.ne.s32.totalorder %s46, %s48
    %p52 = scmp.eq.s32.totalorder %s12, 0
    %p53 = por %p51, %p52
    %p54 = scmp.ne.s32.totalorder %s46, %s48
    %p55 = scmp.eq.s32.totalorder %s17, 1
    %p56 = por %p54, %p55
    %p57 = scmp.ne.s32.totalorder %s48, %s49
    %p58 = scmp.eq.s32.totalorder %s17, 0
    %p59 = por %p57, %p58
    %p60 = scmp.ne.s32.totalorder %s48, %s49
    %p61 = scmp.eq.s32.totalorder %s18, 1
    %p62 = por %p60, %p61
    %p64 = scmp.ne.s32.totalorder %s49, %s63
    %p65 = scmp.eq.s32.totalorder %s18, 0
    %p66 = por %p64, %p65
    %s68 = sadd.s32 %s67, 1
    %p71 = scmp.eq.s32.totalorder %s12, 1
    %p72 = scmp.ne.s32.totalorder %s67, %s69
    %p73 = scmp.eq.s32.totalorder %s12, 0
    %p74 = por %p72, %p73
    %p75 = scmp.ne.s32.totalorder %s67, %s69
    %p76 = scmp.eq.s32.totalorder %s17, 1
    %p77 = por %p75, %p76
    %p78 = scmp.ne.s32.totalorder %s69, %s70
    %p79 = scmp.eq.s32.totalorder %s17, 0
    %p80 = por %p78, %p79
    %p81 = scmp.ne.s32.totalorder %s69, %s70
    %p82 = scmp.eq.s32.totalorder %s18, 1
    %p83 = por %p81, %p82
    %p85 = scmp.ne.s32.totalorder %s70, %s84
    %p86 = scmp.eq.s32.totalorder %s18, 0
    %p87 = por %p85, %p86
    %s89 = sadd.s32 %s88, 1
    %p92 = scmp.eq.s32.totalorder %s12, 1
    %p93 = scmp.ne.s32.totalorder %s88, %s90
    %p94 = scmp.eq.s32.totalorder %s12, 0
    %p95 = por %p93, %p94
    %p96 = scmp.ne.s32.totalorder %s88, %s90
    %p97 = scmp.eq.s32.totalorder %s17, 1
    %p98 = por %p96, %p97
    %p99 = scmp.ne.s32.totalorder %s90, %s91
    %p100 = scmp.eq.s32.totalorder %s17, 0
    %p101 = por %p99, %p100
    %p102 = scmp.ne.s32.totalorder %s90, %s91
    %p103 = scmp.eq.s32.totalorder %s18, 1
    %p104 = por %p102, %p103
    %p106 = scmp.ne.s32.totalorder %s91, %s105
    %p107 = scmp.eq.s32.totalorder %s18, 0
    %p108 = por %p106, %p107
    %s109 = ssub.s32 %s12, %s19
    %p110 = scmp.eq.s32.totalorder %s109, 0
    %s112 = sadd.s32 %s111, 1
    %s113 = scalar_select %p110, %s111, %s112
    %p116 = pneg %p110
    %p117 = scmp.eq.s32.totalorder %s12, 1
    %p118 = por %p116, %p117
    %p119 = scmp.ne.s32.totalorder %s111, %s114
    %p120 = scmp.eq.s32.totalorder %s12, 0
    %p121 = por %p119, %p120
    %p122 = scmp.ne.s32.totalorder %s111, %s114
    %p123 = scmp.eq.s32.totalorder %s17, 1
    %p124 = por %p122, %p123
    %p125 = scmp.ne.s32.totalorder %s114, %s115
    %p126 = scmp.eq.s32.totalorder %s17, 0
    %p127 = por %p125, %p126
    %p128 = scmp.ne.s32.totalorder %s114, %s115
    %p129 = scmp.eq.s32.totalorder %s18, 1
    %p130 = por %p128, %p129
    %p132 = scmp.ne.s32.totalorder %s115, %s131
    %p133 = scmp.eq.s32.totalorder %s18, 0
    %p134 = por %p132, %p133
    %s135 = ssub.s32 %s12, %s19
    %p136 = scmp.eq.s32.totalorder %s135, 0
    %s138 = sadd.s32 %s137, 1
    %s139 = scalar_select %p136, %s137, %s138
    %p142 = pneg %p136
    %p143 = scmp.eq.s32.totalorder %s12, 1
    %p144 = por %p142, %p143
    %p145 = scmp.ne.s32.totalorder %s137, %s140
    %p146 = scmp.eq.s32.totalorder %s12, 0
    %p147 = por %p145, %p146
    %p148 = scmp.ne.s32.totalorder %s137, %s140
    %p149 = scmp.eq.s32.totalorder %s17, 1
    %p150 = por %p148, %p149
    %p151 = scmp.ne.s32.totalorder %s140, %s141
    %p152 = scmp.eq.s32.totalorder %s17, 0
    %p153 = por %p151, %p152
    %p154 = scmp.ne.s32.totalorder %s140, %s141
    %p155 = scmp.eq.s32.totalorder %s18, 1
    %p156 = por %p154, %p155
    %p158 = scmp.ne.s32.totalorder %s141, %s157
    %p159 = scmp.eq.s32.totalorder %s18, 0
    %p160 = por %p158, %p159
    %p161 = scmp.le.s32.totalorder 1, %s12
    %p162 = scmp.lt.s32.totalorder %s12, 3
    %p163 = pnand %p161, %p162
    %p164 = pneg %p163
    // Predicated region
    $region9: #{double_conv_block.4} parent=5 // pred_check
      _
    $region10: #{double_conv_block.4} parent=5 // pred_check_branch
      %166 = sbr.rel (%p163) target = $region12
    $region11: #{double_conv_block.4} parent=5 // pred_region
      %s167 = ssub.s32 %s12, 1
      // Predicated region
      $region13: #{double_conv_block.4} parent=11 // pred_check
        %p168 = pneg %p59
      $region14: #{double_conv_block.4} parent=11 // pred_check_branch
        %170 = sbr.rel (%p168) target = $region16
      $region15: #{double_conv_block.4} parent=11 // pred_region
        _
      $region16: #{double_conv_block.4} parent=11 // pred_fallthru
        _
      // Predicated region
      $region17: #{double_conv_block.4} parent=11 // pred_check
        %p171 = pneg %p80
      $region18: #{double_conv_block.4} parent=11 // pred_check_branch
        %173 = sbr.rel (%p171) target = $region20
      $region19: #{double_conv_block.4} parent=11 // pred_region
        _
      $region20: #{double_conv_block.4} parent=11 // pred_fallthru
        _
      // Predicated region
      $region21: #{double_conv_block.4} parent=11 // pred_check
        %p174 = pneg %p101
      $region22: #{double_conv_block.4} parent=11 // pred_check_branch
        %176 = sbr.rel (%p174) target = $region24
      $region23: #{double_conv_block.4} parent=11 // pred_region
        _
      $region24: #{double_conv_block.4} parent=11 // pred_fallthru
        _
    $region12: #{double_conv_block.4} parent=5 // pred_fallthru
      _
    %p177 = scmp.lt.s32.totalorder %s12, 2
    // Predicated region
    $region25: #{double_conv_block.4} parent=5 // pred_check
      %p178 = pneg %p177
    $region26: #{double_conv_block.4} parent=5 // pred_check_branch
      %180 = sbr.rel (%p178) target = $region28
    $region27: #{double_conv_block.4} parent=5 // pred_region
      // Predicated region
      $region29: #{double_conv_block.4} parent=27 // pred_check
        %p181 = pneg %p32
      $region30: #{double_conv_block.4} parent=27 // pred_check_branch
        %183 = sbr.rel (%p181) target = $region32
      $region31: #{double_conv_block.4} parent=27 // pred_region
        %p184 = scmp.lt.s32.totalorder %s12, 1
        %s185 = scalar_select %p184, %s12, 1
        %s186 = smul.addr %s185, 32
        %s187 = smul.addr %s186, 8
        %s188 = scalar_lea.vmem %s0, %s187
      $region32: #{double_conv_block.4} parent=27 // pred_fallthru
        _
    $region28: #{double_conv_block.4} parent=5 // pred_fallthru
      _
    %p189 = scmp.le.s32.totalorder 1, %s12
    %p190 = scmp.lt.s32.totalorder %s12, 3
    %p191 = pnand %p189, %p190
    %p192 = pneg %p191
    // Predicated region
    $region33: #{double_conv_block.4} parent=5 // pred_check
      _
    $region34: #{double_conv_block.4} parent=5 // pred_check_branch
      %194 = sbr.rel (%p191) target = $region36
    $region35: #{double_conv_block.4} parent=5 // pred_region
      %s195 = ssub.s32 %s12, 1
      %p196 = scmp.lt.s32.totalorder %s17, 1
      %s197 = scalar_select %p196, %s17, 1
      %s198 = smul.addr %s197, 32
      %s199 = smul.addr %s198, 8
      %s200 = scalar_lea.vmem %s0, %s199
      %p201 = pneg %p38
      %p202 = pneg %p35
      %p203 = pneg %p59
      %p204 = pneg %p56
      %p205 = pneg %p80
      %p206 = pneg %p77
      %p207 = pneg %p101
      %p208 = pneg %p98
      %p209 = pneg %p127
      %p210 = pneg %p124
      %p211 = scmp.lt.s32.totalorder %s17, 1
      %s212 = scalar_select %p211, %s17, 1
      %s213 = smul.addr %s212, 32
      %s214 = smul.addr %s213, 8
      %s215 = scalar_lea.vmem %s4, %s214
      %p216 = pneg %p153
      %p217 = pneg %p150
      %p218 = scmp.lt.s32.totalorder %s17, 1
      %s219 = scalar_select %p218, %s17, 1
      %s220 = smul.addr %s219, 2
      %s221 = scalar_lea.vmem %s5, %s220
      %p222 = scmp.lt.s32.totalorder %s17, 1
      %s223 = scalar_select %p222, %s17, 1
      %s224 = smul.addr %s223, 32
      %s225 = smul.addr %s224, 8
      %s226 = scalar_lea.vmem %s0, %s225
      %p227 = scmp.lt.s32.totalorder %s17, 1
      %s228 = scalar_select %p227, %s17, 1
      %s229 = smul.addr %s228, 32
      %s230 = smul.addr %s229, 8
      %s231 = scalar_lea.vmem %s4, %s230
      %p232 = scmp.lt.s32.totalorder %s17, 1
      %s233 = scalar_select %p232, %s17, 1
      %s234 = smul.addr %s233, 2
      %s235 = scalar_lea.vmem %s5, %s234
      %v236 = vld [vmem:[%s226] sm:$0xff]
      %v237 = vld [vmem:[%s226 + $0x8] sm:$0xff]
      %v238 = vld [vmem:[%s226 + $0x10] sm:$0xff]
      %v239 = vld [vmem:[%s226 + $0x18] sm:$0xff]
      %v240 = vld [vmem:[%s226 + $0x20] sm:$0xff]
      %v241 = vld [vmem:[%s226 + $0x28] sm:$0xff]
      %v242 = vld [vmem:[%s226 + $0x30] sm:$0xff]
      %v243 = vld [vmem:[%s226 + $0x38] sm:$0xff]
      %v244 = vld [vmem:[%s226 + $0x40] sm:$0xff]
      %v245 = vld [vmem:[%s226 + $0x48] sm:$0xff]
      %v246 = vld [vmem:[%s226 + $0x50] sm:$0xff]
      %v247 = vld [vmem:[%s226 + $0x58] sm:$0xff]
      %v248 = vld [vmem:[%s226 + $0x60] sm:$0xff]
      %v249 = vld [vmem:[%s226 + $0x68] sm:$0xff]
      %v250 = vld [vmem:[%s226 + $0x70] sm:$0xff]
      %v251 = vld [vmem:[%s226 + $0x78] sm:$0xff]
      %v252 = vld [vmem:[%s226 + $0x80] sm:$0xff]
      %v253 = vld [vmem:[%s226 + $0x88] sm:$0xff]
      %v254 = vld [vmem:[%s226 + $0x90] sm:$0xff]
      %v255 = vld [vmem:[%s226 + $0x98] sm:$0xff]
      %v256 = vld [vmem:[%s226 + $0xa0] sm:$0xff]
      %v257 = vld [vmem:[%s226 + $0xa8] sm:$0xff]
      %v258 = vld [vmem:[%s226 + $0xb0] sm:$0xff]
      %v259 = vld [vmem:[%s226 + $0xb8] sm:$0xff]
      %v260 = vld [vmem:[%s226 + $0xc0] sm:$0xff]
      %v261 = vld [vmem:[%s226 + $0xc8] sm:$0xff]
      %v262 = vld [vmem:[%s226 + $0xd0] sm:$0xff]
      %v263 = vld [vmem:[%s226 + $0xd8] sm:$0xff]
      %v264 = vld [vmem:[%s226 + $0xe0] sm:$0xff]
      %v265 = vld [vmem:[%s226 + $0xe8] sm:$0xff]
      %v266 = vld [vmem:[%s226 + $0xf0] sm:$0xff]
      %v267 = vld [vmem:[%s226 + $0xf8] sm:$0xff]
      %v268 = vld [vmem:[%s2] sm:$0x1]
      %v269 = vld [vmem:[%s3] sm:$0x1]
      %v271 = vlaneseq
      %v272 = vshrl.u32 %v271, 7
      %v273 = vsub.s32 0, %v272
      %v274 = vrot.slane %v268, %v273
      %v276 = vmul.f32 %v236, %v274
      %v277 = vmul.f32 %v237, %v274
      %v278 = vmul.f32 %v238, %v274
      %v279 = vmul.f32 %v239, %v274
      %v280 = vmul.f32 %v240, %v274
      %v281 = vmul.f32 %v241, %v274
      %v282 = vmul.f32 %v242, %v274
      %v283 = vmul.f32 %v243, %v274
      %v284 = vmul.f32 %v244, %v274
      %v285 = vmul.f32 %v245, %v274
      %v286 = vmul.f32 %v246, %v274
      %v287 = vmul.f32 %v247, %v274
      %v288 = vmul.f32 %v248, %v274
      %v289 = vmul.f32 %v249, %v274
      %v290 = vmul.f32 %v250, %v274
      %v291 = vmul.f32 %v251, %v274
      %v292 = vmul.f32 %v252, %v274
      %v293 = vmul.f32 %v253, %v274
      %v294 = vmul.f32 %v254, %v274
      %v295 = vmul.f32 %v255, %v274
      %v296 = vmul.f32 %v256, %v274
      %v297 = vmul.f32 %v257, %v274
      %v298 = vmul.f32 %v258, %v274
      %v299 = vmul.f32 %v259, %v274
      %v300 = vmul.f32 %v260, %v274
      %v301 = vmul.f32 %v261, %v274
      %v302 = vmul.f32 %v262, %v274
      %v303 = vmul.f32 %v263, %v274
      %v304 = vmul.f32 %v264, %v274
      %v305 = vmul.f32 %v265, %v274
      %v306 = vmul.f32 %v266, %v274
      %v307 = vmul.f32 %v267, %v274
      %v309 = vlaneseq
      %v310 = vshrl.u32 %v309, 7
      %v311 = vsub.s32 0, %v310
      %v312 = vrot.slane %v269, %v311
      %v314 = vadd.f32 %v276, %v312
      %v315 = vadd.f32 %v277, %v312
      %v316 = vadd.f32 %v278, %v312
      %v317 = vadd.f32 %v279, %v312
      %v318 = vadd.f32 %v280, %v312
      %v319 = vadd.f32 %v281, %v312
      %v320 = vadd.f32 %v282, %v312
      %v321 = vadd.f32 %v283, %v312
      %v322 = vadd.f32 %v284, %v312
      %v323 = vadd.f32 %v285, %v312
      %v324 = vadd.f32 %v286, %v312
      %v325 = vadd.f32 %v287, %v312
      %v326 = vadd.f32 %v288, %v312
      %v327 = vadd.f32 %v289, %v312
      %v328 = vadd.f32 %v290, %v312
      %v329 = vadd.f32 %v291, %v312
      %v330 = vadd.f32 %v292, %v312
      %v331 = vadd.f32 %v293, %v312
      %v332 = vadd.f32 %v294, %v312
      %v333 = vadd.f32 %v295, %v312
      %v334 = vadd.f32 %v296, %v312
      %v335 = vadd.f32 %v297, %v312
      %v336 = vadd.f32 %v298, %v312
      %v337 = vadd.f32 %v299, %v312
      %v338 = vadd.f32 %v300, %v312
      %v339 = vadd.f32 %v301, %v312
      %v340 = vadd.f32 %v302, %v312
      %v341 = vadd.f32 %v303, %v312
      %v342 = vadd.f32 %v304, %v312
      %v343 = vadd.f32 %v305, %v312
      %v344 = vadd.f32 %v306, %v312
      %v345 = vadd.f32 %v307, %v312
      %v346 = vmax.f32 %v314, 0.0
      %v347 = vmax.f32 %v315, 0.0
      %v348 = vmax.f32 %v316, 0.0
      %v349 = vmax.f32 %v317, 0.0
      %v350 = vmax.f32 %v318, 0.0
      %v351 = vmax.f32 %v319, 0.0
      %v352 = vmax.f32 %v320, 0.0
      %v353 = vmax.f32 %v321, 0.0
      %v354 = vmax.f32 %v322, 0.0
      %v355 = vmax.f32 %v323, 0.0
      %v356 = vmax.f32 %v324, 0.0
      %v357 = vmax.f32 %v325, 0.0
      %v358 = vmax.f32 %v326, 0.0
      %v359 = vmax.f32 %v327, 0.0
      %v360 = vmax.f32 %v328, 0.0
      %v361 = vmax.f32 %v329, 0.0
      %v362 = vmax.f32 %v330, 0.0
      %v363 = vmax.f32 %v331, 0.0
      %v364 = vmax.f32 %v332, 0.0
      %v365 = vmax.f32 %v333, 0.0
      %v366 = vmax.f32 %v334, 0.0
      %v367 = vmax.f32 %v335, 0.0
      %v368 = vmax.f32 %v336, 0.0
      %v369 = vmax.f32 %v337, 0.0
      %v370 = vmax.f32 %v338, 0.0
      %v371 = vmax.f32 %v339, 0.0
      %v372 = vmax.f32 %v340, 0.0
      %v373 = vmax.f32 %v341, 0.0
      %v374 = vmax.f32 %v342, 0.0
      %v375 = vmax.f32 %v343, 0.0
      %v376 = vmax.f32 %v344, 0.0
      %v377 = vmax.f32 %v345, 0.0
      %vm378 = vcmask 64512
      %379 = vst.msk [vmem:[#allocation2] sm:$0xff] %vm378, 0.0
      %380 = vst.msk [vmem:[#allocation2 + $0x8] sm:$0xff] %vm378, 0.0
      %vm381 = vcmask 58368
      %382 = vst.msk [vmem:[#allocation2 + $0x10] sm:$0x3] %vm381, 0.0
      %383 = vst.msk [vmem:[#allocation2 + $0x18] sm:$0xff] %vm378, 0.0
      %384 = vst.msk [vmem:[#allocation2 + $0x20] sm:$0xff] %vm378, 0.0
      %385 = vst.msk [vmem:[#allocation2 + $0x28] sm:$0x3] %vm381, 0.0
      %386 = vst.msk [vmem:[#allocation2 + $0x30] sm:$0xff] %vm378, 0.0
      %387 = vst.msk [vmem:[#allocation2 + $0x38] sm:$0xff] %vm378, 0.0
      %388 = vst.msk [vmem:[#allocation2 + $0x40] sm:$0x3] %vm381, 0.0
      %389 = vst.msk [vmem:[#allocation2 + $0x48] sm:$0xff] %vm378, 0.0
      %390 = vst.msk [vmem:[#allocation2 + $0x50] sm:$0xff] %vm378, 0.0
      %391 = vst.msk [vmem:[#allocation2 + $0x58] sm:$0x3] %vm381, 0.0
      %392 = vst.msk [vmem:[#allocation2 + $0x60] sm:$0xff] %vm378, 0.0
      %393 = vst.msk [vmem:[#allocation2 + $0x68] sm:$0xff] %vm378, 0.0
      %394 = vst.msk [vmem:[#allocation2 + $0x70] sm:$0x3] %vm381, 0.0
      %395 = vst.msk [vmem:[#allocation2 + $0x78] sm:$0xff] %vm378, 0.0
      %396 = vst.msk [vmem:[#allocation2 + $0x80] sm:$0xff] %vm378, 0.0
      %397 = vst.msk [vmem:[#allocation2 + $0x88] sm:$0x3] %vm381, 0.0
      %398 = vst.msk [vmem:[#allocation2 + $0x90] sm:$0xff] %vm378, 0.0
      %399 = vst.msk [vmem:[#allocation2 + $0x98] sm:$0xff] %vm378, 0.0
      %400 = vst.msk [vmem:[#allocation2 + $0xa0] sm:$0x3] %vm381, 0.0
      %401 = vst.msk [vmem:[#allocation2 + $0xa8] sm:$0xff] %vm378, 0.0
      %402 = vst.msk [vmem:[#allocation2 + $0xb0] sm:$0xff] %vm378, 0.0
      %403 = vst.msk [vmem:[#allocation2 + $0xb8] sm:$0x3] %vm381, 0.0
      %404 = vst.msk [vmem:[#allocation2 + $0xc0] sm:$0xff] %vm378, 0.0
      %405 = vst.msk [vmem:[#allocation2 + $0xc8] sm:$0xff] %vm378, 0.0
      %406 = vst.msk [vmem:[#allocation2 + $0xd0] sm:$0x3] %vm381, 0.0
      %407 = vst.msk [vmem:[#allocation2 + $0xd8] sm:$0xff] %vm378, 0.0
      %408 = vst.msk [vmem:[#allocation2 + $0xe0] sm:$0xff] %vm378, 0.0
      %409 = vst.msk [vmem:[#allocation2 + $0xe8] sm:$0x3] %vm381, 0.0
      %410 = vst.msk [vmem:[#allocation2 + $0xf0] sm:$0xff] %vm378, 0.0
      %411 = vst.msk [vmem:[#allocation2 + $0xf8] sm:$0xff] %vm378, 0.0
      %412 = vst.msk [vmem:[#allocation2 + $0x100] sm:$0x3] %vm381, 0.0
      %413 = vst.msk [vmem:[#allocation2 + $0x108] sm:$0xff] %vm378, 0.0
      %414 = vst.msk [vmem:[#allocation2 + $0x110] sm:$0xff] %vm378, 0.0
      %415 = vst.msk [vmem:[#allocation2 + $0x118] sm:$0x3] %vm381, 0.0
      %416 = vst.msk [vmem:[#allocation2 + $0x120] sm:$0xff] %vm378, 0.0
      %417 = vst.msk [vmem:[#allocation2 + $0x128] sm:$0xff] %vm378, 0.0
      %418 = vst.msk [vmem:[#allocation2 + $0x130] sm:$0x3] %vm381, 0.0
      %419 = vst.msk [vmem:[#allocation2 + $0x138] sm:$0xff] %vm378, 0.0
      %420 = vst.msk [vmem:[#allocation2 + $0x140] sm:$0xff] %vm378, 0.0
      %421 = vst.msk [vmem:[#allocation2 + $0x148] sm:$0x3] %vm381, 0.0
      %422 = vst.msk [vmem:[#allocation2 + $0x150] sm:$0xff] %vm378, 0.0
      %423 = vst.msk [vmem:[#allocation2 + $0x158] sm:$0xff] %vm378, 0.0
      %424 = vst.msk [vmem:[#allocation2 + $0x160] sm:$0x3] %vm381, 0.0
      %425 = vst.msk [vmem:[#allocation2 + $0x168] sm:$0xff] %vm378, 0.0
      %426 = vst.msk [vmem:[#allocation2 + $0x170] sm:$0xff] %vm378, 0.0
      %427 = vst.msk [vmem:[#allocation2 + $0x178] sm:$0x3] %vm381, 0.0
      %428 = vst.msk [vmem:[#allocation2 + $0x180] sm:$0xff] %vm378, 0.0
      %429 = vst.msk [vmem:[#allocation2 + $0x188] sm:$0xff] %vm378, 0.0
      %430 = vst.msk [vmem:[#allocation2 + $0x190] sm:$0x3] %vm381, 0.0
      %431 = vst.msk [vmem:[#allocation2 + $0x198] sm:$0xff] %vm378, 0.0
      %432 = vst.msk [vmem:[#allocation2 + $0x1a0] sm:$0xff] %vm378, 0.0
      %433 = vst.msk [vmem:[#allocation2 + $0x1a8] sm:$0x3] %vm381, 0.0
      %s434 = scalar_lea.vmem [#allocation2], 24
      %435 = vst.msk [vmem:[%s434 + $0x1] sm:$0xff] %vm378, %v346
      %436 = vst.msk [vmem:[%s434 + $0x9] sm:$0xff] %vm378, %v347
      %437 = vst.msk [vmem:[%s434 + $0x19] sm:$0xff] %vm378, %v348
      %438 = vst.msk [vmem:[%s434 + $0x21] sm:$0xff] %vm378, %v349
      %439 = vst.msk [vmem:[%s434 + $0x31] sm:$0xff] %vm378, %v350
      %440 = vst.msk [vmem:[%s434 + $0x39] sm:$0xff] %vm378, %v351
      %441 = vst.msk [vmem:[%s434 + $0x49] sm:$0xff] %vm378, %v352
      %442 = vst.msk [vmem:[%s434 + $0x51] sm:$0xff] %vm378, %v353
      %443 = vst.msk [vmem:[%s434 + $0x61] sm:$0xff] %vm378, %v354
      %444 = vst.msk [vmem:[%s434 + $0x69] sm:$0xff] %vm378, %v355
      %445 = vst.msk [vmem:[%s434 + $0x79] sm:$0xff] %vm378, %v356
      %446 = vst.msk [vmem:[%s434 + $0x81] sm:$0xff] %vm378, %v357
      %447 = vst.msk [vmem:[%s434 + $0x91] sm:$0xff] %vm378, %v358
      %448 = vst.msk [vmem:[%s434 + $0x99] sm:$0xff] %vm378, %v359
      %449 = vst.msk [vmem:[%s434 + $0xa9] sm:$0xff] %vm378, %v360
      %450 = vst.msk [vmem:[%s434 + $0xb1] sm:$0xff] %vm378, %v361
      %451 = vst.msk [vmem:[%s434 + $0xc1] sm:$0xff] %vm378, %v362
      %452 = vst.msk [vmem:[%s434 + $0xc9] sm:$0xff] %vm378, %v363
      %453 = vst.msk [vmem:[%s434 + $0xd9] sm:$0xff] %vm378, %v364
      %454 = vst.msk [vmem:[%s434 + $0xe1] sm:$0xff] %vm378, %v365
      %455 = vst.msk [vmem:[%s434 + $0xf1] sm:$0xff] %vm378, %v366
      %456 = vst.msk [vmem:[%s434 + $0xf9] sm:$0xff] %vm378, %v367
      %457 = vst.msk [vmem:[%s434 + $0x109] sm:$0xff] %vm378, %v368
      %458 = vst.msk [vmem:[%s434 + $0x111] sm:$0xff] %vm378, %v369
      %459 = vst.msk [vmem:[%s434 + $0x121] sm:$0xff] %vm378, %v370
      %460 = vst.msk [vmem:[%s434 + $0x129] sm:$0xff] %vm378, %v371
      %461 = vst.msk [vmem:[%s434 + $0x139] sm:$0xff] %vm378, %v372
      %462 = vst.msk [vmem:[%s434 + $0x141] sm:$0xff] %vm378, %v373
      %463 = vst.msk [vmem:[%s434 + $0x151] sm:$0xff] %vm378, %v374
      %464 = vst.msk [vmem:[%s434 + $0x159] sm:$0xff] %vm378, %v375
      %465 = vst.msk [vmem:[%s434 + $0x169] sm:$0xff] %vm378, %v376
      %466 = vst.msk [vmem:[%s434 + $0x171] sm:$0xff] %vm378, %v377
      %v467 = vld [vmem:[#allocation2] sm:$0xff]
      %v468 = vld [vmem:[#allocation2 + $0x8] sm:$0xff]
      %v469 = vld [vmem:[#allocation2 + $0x10] sm:$0x3]
      %v470 = vld [vmem:[#allocation2 + $0x18] sm:$0xff]
      %v471 = vld [vmem:[#allocation2 + $0x20] sm:$0xff]
      %v472 = vld [vmem:[#allocation2 + $0x28] sm:$0x3]
      %v473 = vld [vmem:[#allocation2 + $0x30] sm:$0xff]
      %v474 = vld [vmem:[#allocation2 + $0x38] sm:$0xff]
      %v475 = vld [vmem:[#allocation2 + $0x40] sm:$0x3]
      %v476 = vld [vmem:[#allocation2 + $0x48] sm:$0xff]
      %v477 = vld [vmem:[#allocation2 + $0x50] sm:$0xff]
      %v478 = vld [vmem:[#allocation2 + $0x58] sm:$0x3]
      %v479 = vld [vmem:[#allocation2 + $0x60] sm:$0xff]
      %v480 = vld [vmem:[#allocation2 + $0x68] sm:$0xff]
      %v481 = vld [vmem:[#allocation2 + $0x70] sm:$0x3]
      %v482 = vld [vmem:[#allocation2 + $0x78] sm:$0xff]
      %v483 = vld [vmem:[#allocation2 + $0x80] sm:$0xff]
      %v484 = vld [vmem:[#allocation2 + $0x88] sm:$0x3]
      %v485 = vld [vmem:[#allocation2 + $0x90] sm:$0xff]
      %v486 = vld [vmem:[#allocation2 + $0x98] sm:$0xff]
      %v487 = vld [vmem:[#allocation2 + $0xa0] sm:$0x3]
      %v488 = vld [vmem:[#allocation2 + $0xa8] sm:$0xff]
      %v489 = vld [vmem:[#allocation2 + $0xb0] sm:$0xff]
      %v490 = vld [vmem:[#allocation2 + $0xb8] sm:$0x3]
      %v491 = vld [vmem:[#allocation2 + $0xc0] sm:$0xff]
      %v492 = vld [vmem:[#allocation2 + $0xc8] sm:$0xff]
      %v493 = vld [vmem:[#allocation2 + $0xd0] sm:$0x3]
      %v494 = vld [vmem:[#allocation2 + $0xd8] sm:$0xff]
      %v495 = vld [vmem:[#allocation2 + $0xe0] sm:$0xff]
      %v496 = vld [vmem:[#allocation2 + $0xe8] sm:$0x3]
      %v497 = vld [vmem:[#allocation2 + $0xf0] sm:$0xff]
      %v498 = vld [vmem:[#allocation2 + $0xf8] sm:$0xff]
      %v499 = vld [vmem:[#allocation2 + $0x100] sm:$0x3]
      %v500 = vld [vmem:[#allocation2 + $0x108] sm:$0xff]
      %v501 = vld [vmem:[#allocation2 + $0x110] sm:$0xff]
      %v502 = vld [vmem:[#allocation2 + $0x118] sm:$0x3]
      %v503 = vld [vmem:[#allocation2 + $0x120] sm:$0xff]
      %v504 = vld [vmem:[#allocation2 + $0x128] sm:$0xff]
      %v505 = vld [vmem:[#allocation2 + $0x130] sm:$0x3]
      %v506 = vld [vmem:[#allocation2 + $0x138] sm:$0xff]
      %v507 = vld [vmem:[#allocation2 + $0x140] sm:$0xff]
      %v508 = vld [vmem:[#allocation2 + $0x148] sm:$0x3]
      %v509 = vld [vmem:[#allocation2 + $0x150] sm:$0xff]
      %v510 = vld [vmem:[#allocation2 + $0x158] sm:$0xff]
      %v511 = vld [vmem:[#allocation2 + $0x160] sm:$0x3]
      %v512 = vld [vmem:[#allocation2 + $0x168] sm:$0xff]
      %v513 = vld [vmem:[#allocation2 + $0x170] sm:$0xff]
      %v514 = vld [vmem:[#allocation2 + $0x178] sm:$0x3]
      %v515 = vld [vmem:[#allocation2 + $0x180] sm:$0xff]
      %v516 = vld [vmem:[#allocation2 + $0x188] sm:$0xff]
      %v517 = vld [vmem:[#allocation2 + $0x190] sm:$0x3]
      %v518 = vld [vmem:[#allocation2 + $0x198] sm:$0xff]
      %v519 = vld [vmem:[#allocation2 + $0x1a0] sm:$0xff]
      %v520 = vld [vmem:[#allocation2 + $0x1a8] sm:$0x3]
      %v521 = vld [vmem:[%s1] sm:$0xff]
      %vm570 = vcmask 1046528
      %v571 = vrot.slane %v467, 1
      %v572 = vrot.slane %v468, 1
      %v573 = vsel %vm570, %v571, %v572
      %v574 = vrot.slane %v469, 1
      %v575 = vsel %vm570, %v572, %v574
      %v576 = vrot.slane %v470, 1
      %v577 = vrot.slane %v471, 1
      %v578 = vsel %vm570, %v576, %v577
      %v579 = vrot.slane %v472, 1
      %v580 = vsel %vm570, %v577, %v579
      %v581 = vrot.slane %v473, 1
      %v582 = vrot.slane %v474, 1
      %v583 = vsel %vm570, %v581, %v582
      %v584 = vrot.slane %v475, 1
      %v585 = vsel %vm570, %v582, %v584
      %v586 = vrot.slane %v476, 1
      %v587 = vrot.slane %v477, 1
      %v588 = vsel %vm570, %v586, %v587
      %v589 = vrot.slane %v478, 1
      %v590 = vsel %vm570, %v587, %v589
      %v591 = vrot.slane %v479, 1
      %v592 = vrot.slane %v480, 1
      %v593 = vsel %vm570, %v591, %v592
      %v594 = vrot.slane %v481, 1
      %v595 = vsel %vm570, %v592, %v594
      %v596 = vrot.slane %v482, 1
      %v597 = vrot.slane %v483, 1
      %v598 = vsel %vm570, %v596, %v597
      %v599 = vrot.slane %v484, 1
      %v600 = vsel %vm570, %v597, %v599
      %v601 = vrot.slane %v485, 1
      %v602 = vrot.slane %v486, 1
      %v603 = vsel %vm570, %v601, %v602
      %v604 = vrot.slane %v487, 1
      %v605 = vsel %vm570, %v602, %v604
      %v606 = vrot.slane %v488, 1
      %v607 = vrot.slane %v489, 1
      %v608 = vsel %vm570, %v606, %v607
      %v609 = vrot.slane %v490, 1
      %v610 = vsel %vm570, %v607, %v609
      %v611 = vrot.slane %v491, 1
      %v612 = vrot.slane %v492, 1
      %v613 = vsel %vm570, %v611, %v612
      %v614 = vrot.slane %v493, 1
      %v615 = vsel %vm570, %v612, %v614
      %v616 = vrot.slane %v494, 1
      %v617 = vrot.slane %v495, 1
      %v618 = vsel %vm570, %v616, %v617
      %v619 = vrot.slane %v496, 1
      %v620 = vsel %vm570, %v617, %v619
      %v621 = vrot.slane %v497, 1
      %v622 = vrot.slane %v498, 1
      %v623 = vsel %vm570, %v621, %v622
      %v624 = vrot.slane %v499, 1
      %v625 = vsel %vm570, %v622, %v624
      %v626 = vrot.slane %v500, 1
      %v627 = vrot.slane %v501, 1
      %v628 = vsel %vm570, %v626, %v627
      %v629 = vrot.slane %v502, 1
      %v630 = vsel %vm570, %v627, %v629
      %v631 = vrot.slane %v503, 1
      %v632 = vrot.slane %v504, 1
      %v633 = vsel %vm570, %v631, %v632
      %v634 = vrot.slane %v505, 1
      %v635 = vsel %vm570, %v632, %v634
      %v636 = vrot.slane %v506, 1
      %v637 = vrot.slane %v507, 1
      %v638 = vsel %vm570, %v636, %v637
      %v639 = vrot.slane %v508, 1
      %v640 = vsel %vm570, %v637, %v639
      %v641 = vrot.slane %v509, 1
      %v642 = vrot.slane %v510, 1
      %v643 = vsel %vm570, %v641, %v642
      %v644 = vrot.slane %v511, 1
      %v645 = vsel %vm570, %v642, %v644
      %v646 = vrot.slane %v512, 1
      %v647 = vrot.slane %v513, 1
      %v648 = vsel %vm570, %v646, %v647
      %v649 = vrot.slane %v514, 1
      %v650 = vsel %vm570, %v647, %v649
      %s651 = scalar_lea.vmem %s1, 8
      %v652 = vld [vmem:[%s651] sm:$0xff]
      %v653 = vsel %vm378, %v573, 0
      %v655 = vsel %vm378, %v575, 0
      %v657 = vsel %vm378, %v578, 0
      %v659 = vsel %vm378, %v580, 0
      %v661 = vsel %vm378, %v583, 0
      %v663 = vsel %vm378, %v585, 0
      %v665 = vsel %vm378, %v588, 0
      %v667 = vsel %vm378, %v590, 0
      %v669 = vsel %vm378, %v593, 0
      %v671 = vsel %vm378, %v595, 0
      %v673 = vsel %vm378, %v598, 0
      %v675 = vsel %vm378, %v600, 0
      %v677 = vsel %vm378, %v603, 0
      %v679 = vsel %vm378, %v605, 0
      %v681 = vsel %vm378, %v608, 0
      %v683 = vsel %vm378, %v610, 0
      %v685 = vsel %vm378, %v613, 0
      %v687 = vsel %vm378, %v615, 0
      %v689 = vsel %vm378, %v618, 0
      %v691 = vsel %vm378, %v620, 0
      %v693 = vsel %vm378, %v623, 0
      %v695 = vsel %vm378, %v625, 0
      %v697 = vsel %vm378, %v628, 0
      %v699 = vsel %vm378, %v630, 0
      %v701 = vsel %vm378, %v633, 0
      %v703 = vsel %vm378, %v635, 0
      %v705 = vsel %vm378, %v638, 0
      %v707 = vsel %vm378, %v640, 0
      %v709 = vsel %vm378, %v643, 0
      %v711 = vsel %vm378, %v645, 0
      %v713 = vsel %vm378, %v648, 0
      %v715 = vsel %vm378, %v650, 0
      %717 = vmatprep.subr.mxu0 0.0
      %718 = vmatpush1.msra.mxu0 %v652
      %719 = vmatprep.subr.mxu0 0.0
      %720 = vmatpush1.msra.mxu0 0.0
      %721 = vmatprep.subr.mxu0 0.0
      %722 = vmatpush1.msra.mxu0 0.0
      %723 = vmatprep.subr.mxu0 0.0
      %724 = vmatpush1.msra.mxu0 0.0
      %725 = vmatprep.subr.mxu0 0.0
      %726 = vmatpush1.msra.mxu0 0.0
      %727 = vmatprep.subr.mxu0 0.0
      %728 = vmatpush1.msra.mxu0 0.0
      %729 = vmatprep.subr.mxu0 0.0
      %730 = vmatpush1.msra.mxu0 0.0
      %731 = vmatprep.subr.mxu0 0.0
      %732 = vmatpush1.msra.mxu0 0.0
      %733 = vmatprep.subr.mxu0 0.0
      %734 = vmatpush1.msra.mxu0 0.0
      %735 = vmatprep.subr.mxu0 0.0
      %736 = vmatpush1.msra.mxu0 0.0
      %737 = vmatprep.subr.mxu0 0.0
      %738 = vmatpush1.msra.mxu0 0.0
      %739 = vmatprep.subr.mxu0 0.0
      %740 = vmatpush1.msra.mxu0 0.0
      %741 = vmatprep.subr.mxu0 0.0
      %742 = vmatpush1.msra.mxu0 0.0
      %743 = vmatprep.subr.mxu0 0.0
      %744 = vmatpush1.msra.mxu0 0.0
      %745 = vmatprep.subr.mxu0 0.0
      %746 = vmatpush1.msra.mxu0 0.0
      %747 = vmatprep.subr.mxu0 0.0
      %748 = vmatpush1.msra.mxu0 0.0
      %749 = vmatprep.subr.mxu0 0.0
      %750 = vmatpush1.msra.mxu0 0.0
      %751 = vmatprep.subr.mxu0 0.0
      %752 = vmatpush1.msra.mxu0 0.0
      %753 = vmatprep.subr.mxu0 0.0
      %754 = vmatpush1.msra.mxu0 0.0
      %755 = vmatprep.subr.mxu0 0.0
      %756 = vmatpush1.msra.mxu0 0.0
      %757 = vmatprep.subr.mxu0 0.0
      %758 = vmatpush1.msra.mxu0 0.0
      %759 = vmatprep.subr.mxu0 0.0
      %760 = vmatpush1.msra.mxu0 0.0
      %761 = vmatprep.subr.mxu0 0.0
      %762 = vmatpush1.msra.mxu0 0.0
      %763 = vmatprep.subr.mxu0 0.0
      %764 = vmatpush1.msra.mxu0 0.0
      %765 = vmatprep.subr.mxu0 0.0
      %766 = vmatpush1.msra.mxu0 0.0
      %767 = vmatprep.subr.mxu0 0.0
      %768 = vmatpush1.msra.mxu0 0.0
      %769 = vmatprep.subr.mxu0 0.0
      %770 = vmatpush1.msra.mxu0 0.0
      %771 = vmatprep.subr.mxu0 0.0
      %772 = vmatpush1.msra.mxu0 0.0
      %773 = vmatprep.subr.mxu0 0.0
      %774 = vmatpush1.msra.mxu0 0.0
      %775 = vmatprep.subr.mxu0 0.0
      %776 = vmatpush1.msra.mxu0 0.0
      %777 = vmatprep.subr.mxu0 0.0
      %778 = vmatpush1.msra.mxu0 0.0
      %779 = vmatprep.subr.mxu0 0.0
      %780 = vmatpush1.msra.mxu0 0.0
      %781 = vmatprep.mubr.f32.mxu0 0.0
      %782 = vmatmul.mubr.f32.gmra.mrb[0].mxu0 %v653
      %v783 = vpop.f32.mrb[0].mxu0
      %v784 = vadd.f32 0.0, %v783
      %v785 = vpop.f32.mrb[0].mxu0
      %786 = vmatprep.mubr.f32.mxu0 0.0
      %787 = vmatmul.mubr.f32.gmra.mrb[0].mxu0 %v655
      %v788 = vpop.f32.mrb[0].mxu0
      %v789 = vadd.f32 0.0, %v788
      %v790 = vpop.f32.mrb[0].mxu0
      %791 = vmatprep.mubr.f32.mxu0 0.0
      %792 = vmatmul.mubr.f32.gmra.mrb[0].mxu0 %v657
      %v793 = vpop.f32.mrb[0].mxu0
      %v794 = vadd.f32 0.0, %v793
      %v795 = vpop.f32.mrb[0].mxu0
      %796 = vmatprep.mubr.f32.mxu0 0.0
      %797 = vmatmul.mubr.f32.gmra.mrb[0].mxu0 %v659
      %v798 = vpop.f32.mrb[0].mxu0
      %v799 = vadd.f32 0.0, %v798
      %v800 = vpop.f32.mrb[0].mxu0
      %801 = vmatprep.mubr.f32.mxu0 0.0
      %802 = vmatmul.mubr.f32.gmra.mrb[0].mxu0 %v661
      %v803 = vpop.f32.mrb[0].mxu0
      %v804 = vadd.f32 0.0, %v803
      %v805 = vpop.f32.mrb[0].mxu0
      %806 = vmatprep.mubr.f32.mxu0 0.0
      %807 = vmatmul.mubr.f32.gmra.mrb[0].mxu0 %v663
      %v808 = vpop.f32.mrb[0].mxu0
      %v809 = vadd.f32 0.0, %v808
      %v810 = vpop.f32.mrb[0].mxu0
      %811 = vmatprep.mubr.f32.mxu0 0.0
      %812 = vmatmul.mubr.f32.gmra.mrb[0].mxu0 %v665
      %v813 = vpop.f32.mrb[0].mxu0
      %v814 = vadd.f32 0.0, %v813
      %v815 = vpop.f32.mrb[0].mxu0
      %816 = vmatprep.mubr.f32.mxu0 0.0
      %817 = vmatmul.mubr.f32.gmra.mrb[0].mxu0 %v667
      %v818 = vpop.f32.mrb[0].mxu0
      %v819 = vadd.f32 0.0, %v818
      %v820 = vpop.f32.mrb[0].mxu0
      %821 = vmatprep.mubr.f32.mxu0 0.0
      %822 = vmatmul.mubr.f32.gmra.mrb[0].mxu0 %v669
      %v823 = vpop.f32.mrb[0].mxu0
      %v824 = vadd.f32 0.0, %v823
      %v825 = vpop.f32.mrb[0].mxu0
      %826 = vmatprep.mubr.f32.mxu0 0.0
      %827 = vmatmul.mubr.f32.gmra.mrb[0].mxu0 %v671
      %v828 = vpop.f32.mrb[0].mxu0
      %v829 = vadd.f32 0.0, %v828
      %v830 = vpop.f32.mrb[0].mxu0
      %831 = vmatprep.mubr.f32.mxu0 0.0
      %832 = vmatmul.mubr.f32.gmra.mrb[0].mxu0 %v673
      %v833 = vpop.f32.mrb[0].mxu0
      %v834 = vadd.f32 0.0, %v833
      %v835 = vpop.f32.mrb[0].mxu0
      %836 = vmatprep.mubr.f32.mxu0 0.0
      %837 = vmatmul.mubr.f32.gmra.mrb[0].mxu0 %v675
      %v838 = vpop.f32.mrb[0].mxu0
      %v839 = vadd.f32 0.0, %v838
      %v840 = vpop.f32.mrb[0].mxu0
      %841 = vmatprep.mubr.f32.mxu0 0.0
      %842 = vmatmul.mubr.f32.gmra.mrb[0].mxu0 %v677
      %v843 = vpop.f32.mrb[0].mxu0
      %v844 = vadd.f32 0.0, %v843
      %v845 = vpop.f32.mrb[0].mxu0
      %846 = vmatprep.mubr.f32.mxu0 0.0
      %847 = vmatmul.mubr.f32.gmra.mrb[0].mxu0 %v679
      %v848 = vpop.f32.mrb[0].mxu0
      %v849 = vadd.f32 0.0, %v848
      %v850 = vpop.f32.mrb[0].mxu0
      %851 = vmatprep.mubr.f32.mxu0 0.0
      %852 = vmatmul.mubr.f32.gmra.mrb[0].mxu0 %v681
      %v853 = vpop.f32.mrb[0].mxu0
      %v854 = vadd.f32 0.0, %v853
      %v855 = vpop.f32.mrb[0].mxu0
      %856 = vmatprep.mubr.f32.mxu0 0.0
      %857 = vmatmul.mubr.f32.gmra.mrb[0].mxu0 %v683
      %v858 = vpop.f32.mrb[0].mxu0
      %v859 = vadd.f32 0.0, %v858
      %v860 = vpop.f32.mrb[0].mxu0
      %861 = vmatprep.mubr.f32.mxu0 0.0
      %862 = vmatmul.mubr.f32.gmra.mrb[0].mxu0 %v685
      %v863 = vpop.f32.mrb[0].mxu0
      %v864 = vadd.f32 0.0, %v863
      %v865 = vpop.f32.mrb[0].mxu0
      %866 = vmatprep.mubr.f32.mxu0 0.0
      %867 = vmatmul.mubr.f32.gmra.mrb[0].mxu0 %v687
      %v868 = vpop.f32.mrb[0].mxu0
      %v869 = vadd.f32 0.0, %v868
      %v870 = vpop.f32.mrb[0].mxu0
      %871 = vmatprep.mubr.f32.mxu0 0.0
      %872 = vmatmul.mubr.f32.gmra.mrb[0].mxu0 %v689
      %v873 = vpop.f32.mrb[0].mxu0
      %v874 = vadd.f32 0.0, %v873
      %v875 = vpop.f32.mrb[0].mxu0
      %876 = vmatprep.mubr.f32.mxu0 0.0
      %877 = vmatmul.mubr.f32.gmra.mrb[0].mxu0 %v691
      %v878 = vpop.f32.mrb[0].mxu0
      %v879 = vadd.f32 0.0, %v878
      %v880 = vpop.f32.mrb[0].mxu0
      %881 = vmatprep.mubr.f32.mxu0 0.0
      %882 = vmatmul.mubr.f32.gmra.mrb[0].mxu0 %v693
      %v883 = vpop.f32.mrb[0].mxu0
      %v884 = vadd.f32 0.0, %v883
      %v885 = vpop.f32.mrb[0].mxu0
      %886 = vmatprep.mubr.f32.mxu0 0.0
      %887 = vmatmul.mubr.f32.gmra.mrb[0].mxu0 %v695
      %v888 = vpop.f32.mrb[0].mxu0
      %v889 = vadd.f32 0.0, %v888
      %v890 = vpop.f32.mrb[0].mxu0
      %891 = vmatprep.mubr.f32.mxu0 0.0
      %892 = vmatmul.mubr.f32.gmra.mrb[0].mxu0 %v697
      %v893 = vpop.f32.mrb[0].mxu0
      %v894 = vadd.f32 0.0, %v893
      %v895 = vpop.f32.mrb[0].mxu0
      %896 = vmatprep.mubr.f32.mxu0 0.0
      %897 = vmatmul.mubr.f32.gmra.mrb[0].mxu0 %v699
      %v898 = vpop.f32.mrb[0].mxu0
      %v899 = vadd.f32 0.0, %v898
      %v900 = vpop.f32.mrb[0].mxu0
      %901 = vmatprep.mubr.f32.mxu0 0.0
      %902 = vmatmul.mubr.f32.gmra.mrb[0].mxu0 %v701
      %v903 = vpop.f32.mrb[0].mxu0
      %v904 = vadd.f32 0.0, %v903
      %v905 = vpop.f32.mrb[0].mxu0
      %906 = vmatprep.mubr.f32.mxu0 0.0
      %907 = vmatmul.mubr.f32.gmra.mrb[0].mxu0 %v703
      %v908 = vpop.f32.mrb[0].mxu0
      %v909 = vadd.f32 0.0, %v908
      %v910 = vpop.f32.mrb[0].mxu0
      %911 = vmatprep.mubr.f32.mxu0 0.0
      %912 = vmatmul.mubr.f32.gmra.mrb[0].mxu0 %v705
      %v913 = vpop.f32.mrb[0].mxu0
      %v914 = vadd.f32 0.0, %v913
      %v915 = vpop.f32.mrb[0].mxu0
      %916 = vmatprep.mubr.f32.mxu0 0.0
      %917 = vmatmul.mubr.f32.gmra.mrb[0].mxu0 %v707
      %v918 = vpop.f32.mrb[0].mxu0
      %v919 = vadd.f32 0.0, %v918
      %v920 = vpop.f32.mrb[0].mxu0
      %921 = vmatprep.mubr.f32.mxu0 0.0
      %922 = vmatmul.mubr.f32.gmra.mrb[0].mxu0 %v709
      %v923 = vpop.f32.mrb[0].mxu0
      %v924 = vadd.f32 0.0, %v923
      %v925 = vpop.f32.mrb[0].mxu0
      %926 = vmatprep.mubr.f32.mxu0 0.0
      %927 = vmatmul.mubr.f32.gmra.mrb[0].mxu0 %v711
      %v928 = vpop.f32.mrb[0].mxu0
      %v929 = vadd.f32 0.0, %v928
      %v930 = vpop.f32.mrb[0].mxu0
      %931 = vmatprep.mubr.f32.mxu0 0.0
      %932 = vmatmul.mubr.f32.gmra.mrb[0].mxu0 %v713
      %v933 = vpop.f32.mrb[0].mxu0
      %v934 = vadd.f32 0.0, %v933
      %v935 = vpop.f32.mrb[0].mxu0
      %936 = vmatprep.mubr.f32.mxu0 0.0
      %937 = vmatmul.mubr.f32.gmra.mrb[0].mxu0 %v715
      %v938 = vpop.f32.mrb[0].mxu0
      %v939 = vadd.f32 0.0, %v938
      %v940 = vpop.f32.mrb[0].mxu0
      %941 = vdwg.mxu0
      %v942 = vsel %vm378, %v467, 0
      %v944 = vsel %vm378, %v468, 0
      %v946 = vsel %vm378, %v470, 0
      %v948 = vsel %vm378, %v471, 0
      %v950 = vsel %vm378, %v473, 0
      %v952 = vsel %vm378, %v474, 0
      %v954 = vsel %vm378, %v476, 0
      %v956 = vsel %vm378, %v477, 0
      %v958 = vsel %vm378, %v479, 0
      %v960 = vsel %vm378, %v480, 0
      %v962 = vsel %vm378, %v482, 0
      %v964 = vsel %vm378, %v483, 0
      %v966 = vsel %vm378, %v485, 0
      %v968 = vsel %vm378, %v486, 0
      %v970 = vsel %vm378, %v488, 0
      %v972 = vsel %vm378, %v489, 0
      %v974 = vsel %vm378, %v491, 0
      %v976 = vsel %vm378, %v492, 0
      %v978 = vsel %vm378, %v494, 0
      %v980 = vsel %vm378, %v495, 0
      %v982 = vsel %vm378, %v497, 0
      %v984 = vsel %vm378, %v498, 0
      %v986 = vsel %vm378, %v500, 0
      %v988 = vsel %vm378, %v501, 0
      %v990 = vsel %vm378, %v503, 0
      %v992 = vsel %vm378, %v504, 0
      %v994 = vsel %vm378, %v506, 0
      %v996 = vsel %vm378, %v507, 0
      %v998 = vsel %vm378, %v509, 0
      %v1000 = vsel %vm378, %v510, 0
      %v1002 = vsel %vm378, %v512, 0
      %v1004 = vsel %vm378, %v513, 0
      %1006 = vmatprep.subr.mxu0 0.0
      %1007 = vmatpush1.msra.mxu0 %v521
      %1008 = vmatprep.subr.mxu0 0.0
      %1009 = vmatpush1.msra.mxu0 0.0
      %1010 = vmatprep.subr.mxu0 0.0
      %1011 = vmatpush1.msra.mxu0 0.0
      %1012 = vmatprep.subr.mxu0 0.0
      %1013 = vmatpush1.msra.mxu0 0.0
      %1014 = vmatprep.subr.mxu0 0.0
      %1015 = vmatpush1.msra.mxu0 0.0
      %1016 = vmatprep.subr.mxu0 0.0
      %1017 = vmatpush1.msra.mxu0 0.0
      %1018 = vmatprep.subr.mxu0 0.0
      %1019 = vmatpush1.msra.mxu0 0.0
      %1020 = vmatprep.subr.mxu0 0.0
      %1021 = vmatpush1.msra.mxu0 0.0
      %1022 = vmatprep.subr.mxu0 0.0
      %1023 = vmatpush1.msra.mxu0 0.0
      %1024 = vmatprep.subr.mxu0 0.0
      %1025 = vmatpush1.msra.mxu0 0.0
      %1026 = vmatprep.subr.mxu0 0.0
      %1027 = vmatpush1.msra.mxu0 0.0
      %1028 = vmatprep.subr.mxu0 0.0
      %1029 = vmatpush1.msra.mxu0 0.0
      %1030 = vmatprep.subr.mxu0 0.0
      %1031 = vmatpush1.msra.mxu0 0.0
      %1032 = vmatprep.subr.mxu0 0.0
      %1033 = vmatpush1.msra.mxu0 0.0
      %1034 = vmatprep.subr.mxu0 0.0
      %1035 = vmatpush1.msra.mxu0 0.0
      %1036 = vmatprep.subr.mxu0 0.0
      %1037 = vmatpush1.msra.mxu0 0.0
      %1038 = vmatprep.subr.mxu0 0.0
      %1039 = vmatpush1.msra.mxu0 0.0
      %1040 = vmatprep.subr.mxu0 0.0
      %1041 = vmatpush1.msra.mxu0 0.0
      %1042 = vmatprep.subr.mxu0 0.0
      %1043 = vmatpush1.msra.mxu0 0.0
      %1044 = vmatprep.subr.mxu0 0.0
      %1045 = vmatpush1.msra.mxu0 0.0
      %1046 = vmatprep.subr.mxu0 0.0
      %1047 = vmatpush1.msra.mxu0 0.0
      %1048 = vmatprep.subr.mxu0 0.0
      %1049 = vmatpush1.msra.mxu0 0.0
      %1050 = vmatprep.subr.mxu0 0.0
      %1051 = vmatpush1.msra.mxu0 0.0
      %1052 = vmatprep.subr.mxu0 0.0
      %1053 = vmatpush1.msra.mxu0 0.0
      %1054 = vmatprep.subr.mxu0 0.0
      %1055 = vmatpush1.msra.mxu0 0.0
      %1056 = vmatprep.subr.mxu0 0.0
      %1057 = vmatpush1.msra.mxu0 0.0
      %1058 = vmatprep.subr.mxu0 0.0
      %1059 = vmatpush1.msra.mxu0 0.0
      %1060 = vmatprep.subr.mxu0 0.0
      %1061 = vmatpush1.msra.mxu0 0.0
      %1062 = vmatprep.subr.mxu0 0.0
      %1063 = vmatpush1.msra.mxu0 0.0
      %1064 = vmatprep.subr.mxu0 0.0
      %1065 = vmatpush1.msra.mxu0 0.0
      %1066 = vmatprep.subr.mxu0 0.0
      %1067 = vmatpush1.msra.mxu0 0.0
      %1068 = vmatprep.subr.mxu0 0.0
      %1069 = vmatpush1.msra.mxu0 0.0
      %1070 = vmatprep.mubr.f32.mxu0 0.0
      %1071 = vmatmul.mubr.f32.gmra.mrb[0].mxu0 %v942
      %v1072 = vpop.f32.mrb[0].mxu0
      %v1073 = vadd.f32 %v784, %v1072
      %v1074 = vpop.f32.mrb[0].mxu0
      %1075 = vmatprep.mubr.f32.mxu0 0.0
      %1076 = vmatmul.mubr.f32.gmra.mrb[0].mxu0 %v944
      %v1077 = vpop.f32.mrb[0].mxu0
      %v1078 = vadd.f32 %v789, %v1077
      %v1079 = vpop.f32.mrb[0].mxu0
      %1080 = vmatprep.mubr.f32.mxu0 0.0
      %1081 = vmatmul.mubr.f32.gmra.mrb[0].mxu0 %v946
      %v1082 = vpop.f32.mrb[0].mxu0
      %v1083 = vadd.f32 %v794, %v1082
      %v1084 = vpop.f32.mrb[0].mxu0
      %1085 = vmatprep.mubr.f32.mxu0 0.0
      %1086 = vmatmul.mubr.f32.gmra.mrb[0].mxu0 %v948
      %v1087 = vpop.f32.mrb[0].mxu0
      %v1088 = vadd.f32 %v799, %v1087
      %v1089 = vpop.f32.mrb[0].mxu0
      %1090 = vmatprep.mubr.f32.mxu0 0.0
      %1091 = vmatmul.mubr.f32.gmra.mrb[0].mxu0 %v950
      %v1092 = vpop.f32.mrb[0].mxu0
      %v1093 = vadd.f32 %v804, %v1092
      %v1094 = vpop.f32.mrb[0].mxu0
      %1095 = vmatprep.mubr.f32.mxu0 0.0
      %1096 = vmatmul.mubr.f32.gmra.mrb[0].mxu0 %v952
      %v1097 = vpop.f32.mrb[0].mxu0
      %v1098 = vadd.f32 %v809, %v1097
      %v1099 = vpop.f32.mrb[0].mxu0
      %1100 = vmatprep.mubr.f32.mxu0 0.0
      %1101 = vmatmul.mubr.f32.gmra.mrb[0].mxu0 %v954
      %v1102 = vpop.f32.mrb[0].mxu0
      %v1103 = vadd.f32 %v814, %v1102
      %v1104 = vpop.f32.mrb[0].mxu0
      %1105 = vmatprep.mubr.f32.mxu0 0.0
      %1106 = vmatmul.mubr.f32.gmra.mrb[0].mxu0 %v956
      %v1107 = vpop.f32.mrb[0].mxu0
      %v1108 = vadd.f32 %v819, %v1107
      %v1109 = vpop.f32.mrb[0].mxu0
      %1110 = vmatprep.mubr.f32.mxu0 0.0
      %1111 = vmatmul.mubr.f32.gmra.mrb[0].mxu0 %v958
      %v1112 = vpop.f32.mrb[0].mxu0
      %v1113 = vadd.f32 %v824, %v1112
      %v1114 = vpop.f32.mrb[0].mxu0
      %1115 = vmatprep.mubr.f32.mxu0 0.0
      %1116 = vmatmul.mubr.f32.gmra.mrb[0].mxu0 %v960
      %v1117 = vpop.f32.mrb[0].mxu0
      %v1118 = vadd.f32 %v829, %v1117
      %v1119 = vpop.f32.mrb[0].mxu0
      %1120 = vmatprep.mubr.f32.mxu0 0.0
      %1121 = vmatmul.mubr.f32.gmra.mrb[0].mxu0 %v962
      %v1122 = vpop.f32.mrb[0].mxu0
      %v1123 = vadd.f32 %v834, %v1122
      %v1124 = vpop.f32.mrb[0].mxu0
      %1125 = vmatprep.mubr.f32.mxu0 0.0
      %1126 = vmatmul.mubr.f32.gmra.mrb[0].mxu0 %v964
      %v1127 = vpop.f32.mrb[0].mxu0
      %v1128 = vadd.f32 %v839, %v1127
      %v1129 = vpop.f32.mrb[0].mxu0
      %1130 = vmatprep.mubr.f32.mxu0 0.0
      %1131 = vmatmul.mubr.f32.gmra.mrb[0].mxu0 %v966
      %v1132 = vpop.f32.mrb[0].mxu0
      %v1133 = vadd.f32 %v844, %v1132
      %v1134 = vpop.f32.mrb[0].mxu0
      %1135 = vmatprep.mubr.f32.mxu0 0.0
      %1136 = vmatmul.mubr.f32.gmra.mrb[0].mxu0 %v968
      %v1137 = vpop.f32.mrb[0].mxu0
      %v1138 = vadd.f32 %v849, %v1137
      %v1139 = vpop.f32.mrb[0].mxu0
      %1140 = vmatprep.mubr.f32.mxu0 0.0
      %1141 = vmatmul.mubr.f32.gmra.mrb[0].mxu0 %v970
      %v1142 = vpop.f32.mrb[0].mxu0
      %v1143 = vadd.f32 %v854, %v1142
      %v1144 = vpop.f32.mrb[0].mxu0
      %1145 = vmatprep.mubr.f32.mxu0 0.0
      %1146 = vmatmul.mubr.f32.gmra.mrb[0].mxu0 %v972
      %v1147 = vpop.f32.mrb[0].mxu0
      %v1148 = vadd.f32 %v859, %v1147
      %v1149 = vpop.f32.mrb[0].mxu0
      %1150 = vmatprep.mubr.f32.mxu0 0.0
      %1151 = vmatmul.mubr.f32.gmra.mrb[0].mxu0 %v974
      %v1152 = vpop.f32.mrb[0].mxu0
      %v1153 = vadd.f32 %v864, %v1152
      %v1154 = vpop.f32.mrb[0].mxu0
      %1155 = vmatprep.mubr.f32.mxu0 0.0
      %1156 = vmatmul.mubr.f32.gmra.mrb[0].mxu0 %v976
      %v1157 = vpop.f32.mrb[0].mxu0
      %v1158 = vadd.f32 %v869, %v1157
      %v1159 = vpop.f32.mrb[0].mxu0
      %1160 = vmatprep.mubr.f32.mxu0 0.0
      %1161 = vmatmul.mubr.f32.gmra.mrb[0].mxu0 %v978
      %v1162 = vpop.f32.mrb[0].mxu0
      %v1163 = vadd.f32 %v874, %v1162
      %v1164 = vpop.f32.mrb[0].mxu0
      %1165 = vmatprep.mubr.f32.mxu0 0.0
      %1166 = vmatmul.mubr.f32.gmra.mrb[0].mxu0 %v980
      %v1167 = vpop.f32.mrb[0].mxu0
      %v1168 = vadd.f32 %v879, %v1167
      %v1169 = vpop.f32.mrb[0].mxu0
      %1170 = vmatprep.mubr.f32.mxu0 0.0
      %1171 = vmatmul.mubr.f32.gmra.mrb[0].mxu0 %v982
      %v1172 = vpop.f32.mrb[0].mxu0
      %v1173 = vadd.f32 %v884, %v1172
      %v1174 = vpop.f32.mrb[0].mxu0
      %1175 = vmatprep.mubr.f32.mxu0 0.0
      %1176 = vmatmul.mubr.f32.gmra.mrb[0].mxu0 %v984
      %v1177 = vpop.f32.mrb[0].mxu0
      %v1178 = vadd.f32 %v889, %v1177
      %v1179 = vpop.f32.mrb[0].mxu0
      %1180 = vmatprep.mubr.f32.mxu0 0.0
      %1181 = vmatmul.mubr.f32.gmra.mrb[0].mxu0 %v986
      %v1182 = vpop.f32.mrb[0].mxu0
      %v1183 = vadd.f32 %v894, %v1182
      %v1184 = vpop.f32.mrb[0].mxu0
      %1185 = vmatprep.mubr.f32.mxu0 0.0
      %1186 = vmatmul.mubr.f32.gmra.mrb[0].mxu0 %v988
      %v1187 = vpop.f32.mrb[0].mxu0
      %v1188 = vadd.f32 %v899, %v1187
      %v1189 = vpop.f32.mrb[0].mxu0
      %1190 = vmatprep.mubr.f32.mxu0 0.0
      %1191 = vmatmul.mubr.f32.gmra.mrb[0].mxu0 %v990
      %v1192 = vpop.f32.mrb[0].mxu0
      %v1193 = vadd.f32 %v904, %v1192
      %v1194 = vpop.f32.mrb[0].mxu0
      %1195 = vmatprep.mubr.f32.mxu0 0.0
      %1196 = vmatmul.mubr.f32.gmra.mrb[0].mxu0 %v992
      %v1197 = vpop.f32.mrb[0].mxu0
      %v1198 = vadd.f32 %v909, %v1197
      %v1199 = vpop.f32.mrb[0].mxu0
      %1200 = vmatprep.mubr.f32.mxu0 0.0
      %1201 = vmatmul.mubr.f32.gmra.mrb[0].mxu0 %v994
      %v1202 = vpop.f32.mrb[0].mxu0
      %v1203 = vadd.f32 %v914, %v1202
      %v1204 = vpop.f32.mrb[0].mxu0
      %1205 = vmatprep.mubr.f32.mxu0 0.0
      %1206 = vmatmul.mubr.f32.gmra.mrb[0].mxu0 %v996
      %v1207 = vpop.f32.mrb[0].mxu0
      %v1208 = vadd.f32 %v919, %v1207
      %v1209 = vpop.f32.mrb[0].mxu0
      %1210 = vmatprep.mubr.f32.mxu0 0.0
      %1211 = vmatmul.mubr.f32.gmra.mrb[0].mxu0 %v998
      %v1212 = vpop.f32.mrb[0].mxu0
      %v1213 = vadd.f32 %v924, %v1212
      %v1214 = vpop.f32.mrb[0].mxu0
      %1215 = vmatprep.mubr.f32.mxu0 0.0
      %1216 = vmatmul.mubr.f32.gmra.mrb[0].mxu0 %v1000
      %v1217 = vpop.f32.mrb[0].mxu0
      %v1218 = vadd.f32 %v929, %v1217
      %v1219 = vpop.f32.mrb[0].mxu0
      %1220 = vmatprep.mubr.f32.mxu0 0.0
      %1221 = vmatmul.mubr.f32.gmra.mrb[0].mxu0 %v1002
      %v1222 = vpop.f32.mrb[0].mxu0
      %v1223 = vadd.f32 %v934, %v1222
      %v1224 = vpop.f32.mrb[0].mxu0
      %1225 = vmatprep.mubr.f32.mxu0 0.0
      %1226 = vmatmul.mubr.f32.gmra.mrb[0].mxu0 %v1004
      %v1227 = vpop.f32.mrb[0].mxu0
      %v1228 = vadd.f32 %v939, %v1227
      %v1229 = vpop.f32.mrb[0].mxu0
      %1230 = vdwg.mxu0
      %vm1231 = vcmask 1045504
      %v1232 = vrot.slane %v467, 2
      %v1233 = vrot.slane %v468, 2
      %v1234 = vsel %vm1231, %v1232, %v1233
      %v1235 = vrot.slane %v469, 2
      %v1236 = vsel %vm1231, %v1233, %v1235
      %v1237 = vrot.slane %v470, 2
      %v1238 = vrot.slane %v471, 2
      %v1239 = vsel %vm1231, %v1237, %v1238
      %v1240 = vrot.slane %v472, 2
      %v1241 = vsel %vm1231, %v1238, %v1240
      %v1242 = vrot.slane %v473, 2
      %v1243 = vrot.slane %v474, 2
      %v1244 = vsel %vm1231, %v1242, %v1243
      %v1245 = vrot.slane %v475, 2
      %v1246 = vsel %vm1231, %v1243, %v1245
      %v1247 = vrot.slane %v476, 2
      %v1248 = vrot.slane %v477, 2
      %v1249 = vsel %vm1231, %v1247, %v1248
      %v1250 = vrot.slane %v478, 2
      %v1251 = vsel %vm1231, %v1248, %v1250
      %v1252 = vrot.slane %v479, 2
      %v1253 = vrot.slane %v480, 2
      %v1254 = vsel %vm1231, %v1252, %v1253
      %v1255 = vrot.slane %v481, 2
      %v1256 = vsel %vm1231, %v1253, %v1255
      %v1257 = vrot.slane %v482, 2
      %v1258 = vrot.slane %v483, 2
      %v1259 = vsel %vm1231, %v1257, %v1258
      %v1260 = vrot.slane %v484, 2
      %v1261 = vsel %vm1231, %v1258, %v1260
      %v1262 = vrot.slane %v485, 2
      %v1263 = vrot.slane %v486, 2
      %v1264 = vsel %vm1231, %v1262, %v1263
      %v1265 = vrot.slane %v487, 2
      %v1266 = vsel %vm1231, %v1263, %v1265
      %v1267 = vrot.slane %v488, 2
      %v1268 = vrot.slane %v489, 2
      %v1269 = vsel %vm1231, %v1267, %v1268
      %v1270 = vrot.slane %v490, 2
      %v1271 = vsel %vm1231, %v1268, %v1270
      %v1272 = vrot.slane %v491, 2
      %v1273 = vrot.slane %v492, 2
      %v1274 = vsel %vm1231, %v1272, %v1273
      %v1275 = vrot.slane %v493, 2
      %v1276 = vsel %vm1231, %v1273, %v1275
      %v1277 = vrot.slane %v494, 2
      %v1278 = vrot.slane %v495, 2
      %v1279 = vsel %vm1231, %v1277, %v1278
      %v1280 = vrot.slane %v496, 2
      %v1281 = vsel %vm1231, %v1278, %v1280
      %v1282 = vrot.slane %v497, 2
      %v1283 = vrot.slane %v498, 2
      %v1284 = vsel %vm1231, %v1282, %v1283
      %v1285 = vrot.slane %v499, 2
      %v1286 = vsel %vm1231, %v1283, %v1285
      %v1287 = vrot.slane %v500, 2
      %v1288 = vrot.slane %v501, 2
      %v1289 = vsel %vm1231, %v1287, %v1288
      %v1290 = vrot.slane %v502, 2
      %v1291 = vsel %vm1231, %v1288, %v1290
      %v1292 = vrot.slane %v503, 2
      %v1293 = vrot.slane %v504, 2
      %v1294 = vsel %vm1231, %v1292, %v1293
      %v1295 = vrot.slane %v505, 2
      %v1296 = vsel %vm1231, %v1293, %v1295
      %v1297 = vrot.slane %v506, 2
      %v1298 = vrot.slane %v507, 2
      %v1299 = vsel %vm1231, %v1297, %v1298
      %v1300 = vrot.slane %v508, 2
      %v1301 = vsel %vm1231, %v1298, %v1300
      %v1302 = vrot.slane %v509, 2
      %v1303 = vrot.slane %v510, 2
      %v1304 = vsel %vm1231, %v1302, %v1303
      %v1305 = vrot.slane %v511, 2
      %v1306 = vsel %vm1231, %v1303, %v1305
      %v1307 = vrot.slane %v512, 2
      %v1308 = vrot.slane %v513, 2
      %v1309 = vsel %vm1231, %v1307, %v1308
      %v1310 = vrot.slane %v514, 2
      %v1311 = vsel %vm1231, %v1308, %v1310
      %s1312 = scalar_lea.vmem %s1, 16
      %v1313 = vld [vmem:[%s1312] sm:$0xff]
      %v1314 = vsel %vm378, %v1234, 0
      %v1316 = vsel %vm378, %v1236, 0
      %v1318 = vsel %vm378, %v1239, 0
      %v1320 = vsel %vm378, %v1241, 0
      %v1322 = vsel %vm378, %v1244, 0
      %v1324 = vsel %vm378, %v1246, 0
      %v1326 = vsel %vm378, %v1249, 0
      %v1328 = vsel %vm378, %v1251, 0
      %v1330 = vsel %vm378, %v1254, 0
      %v1332 = vsel %vm378, %v1256, 0
      %v1334 = vsel %vm378, %v1259, 0
      %v1336 = vsel %vm378, %v1261, 0
      %v1338 = vsel %vm378, %v1264, 0
      %v1340 = vsel %vm378, %v1266, 0
      %v1342 = vsel %vm378, %v1269, 0
      %v1344 = vsel %vm378, %v1271, 0
      %v1346 = vsel %vm378, %v1274, 0
      %v1348 = vsel %vm378, %v1276, 0
      %v1350 = vsel %vm378, %v1279, 0
      %v1352 = vsel %vm378, %v1281, 0
      %v1354 = vsel %vm378, %v1284, 0
      %v1356 = vsel %vm378, %v1286, 0
      %v1358 = vsel %vm378, %v1289, 0
      %v1360 = vsel %vm378, %v1291, 0
      %v1362 = vsel %vm378, %v1294, 0
      %v1364 = vsel %vm378, %v1296, 0
      %v1366 = vsel %vm378, %v1299, 0
      %v1368 = vsel %vm378, %v1301, 0
      %v1370 = vsel %vm378, %v1304, 0
      %v1372 = vsel %vm378, %v1306, 0
      %v1374 = vsel %vm378, %v1309, 0
      %v1376 = vsel %vm378, %v1311, 0
      %1378 = vmatprep.subr.mxu0 0.0
      %1379 = vmatpush1.msra.mxu0 %v1313
      %1380 = vmatprep.subr.mxu0 0.0
      %1381 = vmatpush1.msra.mxu0 0.0
      %1382 = vmatprep.subr.mxu0 0.0
      %1383 = vmatpush1.msra.mxu0 0.0
      %1384 = vmatprep.subr.mxu0 0.0
      %1385 = vmatpush1.msra.mxu0 0.0
      %1386 = vmatprep.subr.mxu0 0.0
      %1387 = vmatpush1.msra.mxu0 0.0
      %1388 = vmatprep.subr.mxu0 0.0
      %1389 = vmatpush1.msra.mxu0 0.0
      %1390 = vmatprep.subr.mxu0 0.0
      %1391 = vmatpush1.msra.mxu0 0.0
      %1392 = vmatprep.subr.mxu0 0.0
      %1393 = vmatpush1.msra.mxu0 0.0
      %1394 = vmatprep.subr.mxu0 0.0
      %1395 = vmatpush1.msra.mxu0 0.0
      %1396 = vmatprep.subr.mxu0 0.0
      %1397 = vmatpush1.msra.mxu0 0.0
      %1398 = vmatprep.subr.mxu0 0.0
      %1399 = vmatpush1.msra.mxu0 0.0
      %1400 = vmatprep.subr.mxu0 0.0
      %1401 = vmatpush1.msra.mxu0 0.0
      %1402 = vmatprep.subr.mxu0 0.0
      %1403 = vmatpush1.msra.mxu0 0.0
      %1404 = vmatprep.subr.mxu0 0.0
      %1405 = vmatpush1.msra.mxu0 0.0
      %1406 = vmatprep.subr.mxu0 0.0
      %1407 = vmatpush1.msra.mxu0 0.0
      %1408 = vmatprep.subr.mxu0 0.0
      %1409 = vmatpush1.msra.mxu0 0.0
      %1410 = vmatprep.subr.mxu0 0.0
      %1411 = vmatpush1.msra.mxu0 0.0
      %1412 = vmatprep.subr.mxu0 0.0
      %1413 = vmatpush1.msra.mxu0 0.0
      %1414 = vmatprep.subr.mxu0 0.0
      %1415 = vmatpush1.msra.mxu0 0.0
      %1416 = vmatprep.subr.mxu0 0.0
      %1417 = vmatpush1.msra.mxu0 0.0
      %1418 = vmatprep.subr.mxu0 0.0
      %1419 = vmatpush1.msra.mxu0 0.0
      %1420 = vmatprep.subr.mxu0 0.0
      %1421 = vmatpush1.msra.mxu0 0.0
      %1422 = vmatprep.subr.mxu0 0.0
      %1423 = vmatpush1.msra.mxu0 0.0
      %1424 = vmatprep.subr.mxu0 0.0
      %1425 = vmatpush1.msra.mxu0 0.0
      %1426 = vmatprep.subr.mxu0 0.0
      %1427 = vmatpush1.msra.mxu0 0.0
      %1428 = vmatprep.subr.mxu0 0.0
      %1429 = vmatpush1.msra.mxu0 0.0
      %1430 = vmatprep.subr.mxu0 0.0
      %1431 = vmatpush1.msra.mxu0 0.0
      %1432 = vmatprep.subr.mxu0 0.0
      %1433 = vmatpush1.msra.mxu0 0.0
      %1434 = vmatprep.subr.mxu0 0.0
      %1435 = vmatpush1.msra.mxu0 0.0
      %1436 = vmatprep.subr.mxu0 0.0
      %1437 = vmatpush1.msra.mxu0 0.0
      %1438 = vmatprep.subr.mxu0 0.0
      %1439 = vmatpush1.msra.mxu0 0.0
      %1440 = vmatprep.subr.mxu0 0.0
      %1441 = vmatpush1.msra.mxu0 0.0
      %1442 = vmatprep.mubr.f32.mxu0 0.0
      %1443 = vmatmul.mubr.f32.gmra.mrb[0].mxu0 %v1314
      %v1444 = vpop.f32.mrb[0].mxu0
      %v1445 = vadd.f32 0.0, %v1444
      %v1446 = vpop.f32.mrb[0].mxu0
      %1447 = vmatprep.mubr.f32.mxu0 0.0
      %1448 = vmatmul.mubr.f32.gmra.mrb[0].mxu0 %v1316
      %v1449 = vpop.f32.mrb[0].mxu0
      %v1450 = vadd.f32 0.0, %v1449
      %v1451 = vpop.f32.mrb[0].mxu0
      %1452 = vmatprep.mubr.f32.mxu0 0.0
      %1453 = vmatmul.mubr.f32.gmra.mrb[0].mxu0 %v1318
      %v1454 = vpop.f32.mrb[0].mxu0
      %v1455 = vadd.f32 0.0, %v1454
      %v1456 = vpop.f32.mrb[0].mxu0
      %1457 = vmatprep.mubr.f32.mxu0 0.0
      %1458 = vmatmul.mubr.f32.gmra.mrb[0].mxu0 %v1320
      %v1459 = vpop.f32.mrb[0].mxu0
      %v1460 = vadd.f32 0.0, %v1459
      %v1461 = vpop.f32.mrb[0].mxu0
      %1462 = vmatprep.mubr.f32.mxu0 0.0
      %1463 = vmatmul.mubr.f32.gmra.mrb[0].mxu0 %v1322
      %v1464 = vpop.f32.mrb[0].mxu0
      %v1465 = vadd.f32 0.0, %v1464
      %v1466 = vpop.f32.mrb[0].mxu0
      %1467 = vmatprep.mubr.f32.mxu0 0.0
      %1468 = vmatmul.mubr.f32.gmra.mrb[0].mxu0 %v1324
      %v1469 = vpop.f32.mrb[0].mxu0
      %v1470 = vadd.f32 0.0, %v1469
      %v1471 = vpop.f32.mrb[0].mxu0
      %1472 = vmatprep.mubr.f32.mxu0 0.0
      %1473 = vmatmul.mubr.f32.gmra.mrb[0].mxu0 %v1326
      %v1474 = vpop.f32.mrb[0].mxu0
      %v1475 = vadd.f32 0.0, %v1474
      %v1476 = vpop.f32.mrb[0].mxu0
      %1477 = vmatprep.mubr.f32.mxu0 0.0
      %1478 = vmatmul.mubr.f32.gmra.mrb[0].mxu0 %v1328
      %v1479 = vpop.f32.mrb[0].mxu0
      %v1480 = vadd.f32 0.0, %v1479
      %v1481 = vpop.f32.mrb[0].mxu0
      %1482 = vmatprep.mubr.f32.mxu0 0.0
      %1483 = vmatmul.mubr.f32.gmra.mrb[0].mxu0 %v1330
      %v1484 = vpop.f32.mrb[0].mxu0
      %v1485 = vadd.f32 0.0, %v1484
      %v1486 = vpop.f32.mrb[0].mxu0
      %1487 = vmatprep.mubr.f32.mxu0 0.0
      %1488 = vmatmul.mubr.f32.gmra.mrb[0].mxu0 %v1332
      %v1489 = vpop.f32.mrb[0].mxu0
      %v1490 = vadd.f32 0.0, %v1489
      %v1491 = vpop.f32.mrb[0].mxu0
      %1492 = vmatprep.mubr.f32.mxu0 0.0
      %1493 = vmatmul.mubr.f32.gmra.mrb[0].mxu0 %v1334
      %v1494 = vpop.f32.mrb[0].mxu0
      %v1495 = vadd.f32 0.0, %v1494
      %v1496 = vpop.f32.mrb[0].mxu0
      %1497 = vmatprep.mubr.f32.mxu0 0.0
      %1498 = vmatmul.mubr.f32.gmra.mrb[0].mxu0 %v1336
      %v1499 = vpop.f32.mrb[0].mxu0
      %v1500 = vadd.f32 0.0, %v1499
      %v1501 = vpop.f32.mrb[0].mxu0
      %1502 = vmatprep.mubr.f32.mxu0 0.0
      %1503 = vmatmul.mubr.f32.gmra.mrb[0].mxu0 %v1338
      %v1504 = vpop.f32.mrb[0].mxu0
      %v1505 = vadd.f32 0.0, %v1504
      %v1506 = vpop.f32.mrb[0].mxu0
      %1507 = vmatprep.mubr.f32.mxu0 0.0
      %1508 = vmatmul.mubr.f32.gmra.mrb[0].mxu0 %v1340
      %v1509 = vpop.f32.mrb[0].mxu0
      %v1510 = vadd.f32 0.0, %v1509
      %v1511 = vpop.f32.mrb[0].mxu0
      %1512 = vmatprep.mubr.f32.mxu0 0.0
      %1513 = vmatmul.mubr.f32.gmra.mrb[0].mxu0 %v1342
      %v1514 = vpop.f32.mrb[0].mxu0
      %v1515 = vadd.f32 0.0, %v1514
      %v1516 = vpop.f32.mrb[0].mxu0
      %1517 = vmatprep.mubr.f32.mxu0 0.0
      %1518 = vmatmul.mubr.f32.gmra.mrb[0].mxu0 %v1344
      %v1519 = vpop.f32.mrb[0].mxu0
      %v1520 = vadd.f32 0.0, %v1519
      %v1521 = vpop.f32.mrb[0].mxu0
      %1522 = vmatprep.mubr.f32.mxu0 0.0
      %1523 = vmatmul.mubr.f32.gmra.mrb[0].mxu0 %v1346
      %v1524 = vpop.f32.mrb[0].mxu0
      %v1525 = vadd.f32 0.0, %v1524
      %v1526 = vpop.f32.mrb[0].mxu0
      %1527 = vmatprep.mubr.f32.mxu0 0.0
      %1528 = vmatmul.mubr.f32.gmra.mrb[0].mxu0 %v1348
      %v1529 = vpop.f32.mrb[0].mxu0
      %v1530 = vadd.f32 0.0, %v1529
      %v1531 = vpop.f32.mrb[0].mxu0
      %1532 = vmatprep.mubr.f32.mxu0 0.0
      %1533 = vmatmul.mubr.f32.gmra.mrb[0].mxu0 %v1350
      %v1534 = vpop.f32.mrb[0].mxu0
      %v1535 = vadd.f32 0.0, %v1534
      %v1536 = vpop.f32.mrb[0].mxu0
      %1537 = vmatprep.mubr.f32.mxu0 0.0
      %1538 = vmatmul.mubr.f32.gmra.mrb[0].mxu0 %v1352
      %v1539 = vpop.f32.mrb[0].mxu0
      %v1540 = vadd.f32 0.0, %v1539
      %v1541 = vpop.f32.mrb[0].mxu0
      %1542 = vmatprep.mubr.f32.mxu0 0.0
      %1543 = vmatmul.mubr.f32.gmra.mrb[0].mxu0 %v1354
      %v1544 = vpop.f32.mrb[0].mxu0
      %v1545 = vadd.f32 0.0, %v1544
      %v1546 = vpop.f32.mrb[0].mxu0
      %1547 = vmatprep.mubr.f32.mxu0 0.0
      %1548 = vmatmul.mubr.f32.gmra.mrb[0].mxu0 %v1356
      %v1549 = vpop.f32.mrb[0].mxu0
      %v1550 = vadd.f32 0.0, %v1549
      %v1551 = vpop.f32.mrb[0].mxu0
      %1552 = vmatprep.mubr.f32.mxu0 0.0
      %1553 = vmatmul.mubr.f32.gmra.mrb[0].mxu0 %v1358
      %v1554 = vpop.f32.mrb[0].mxu0
      %v1555 = vadd.f32 0.0, %v1554
      %v1556 = vpop.f32.mrb[0].mxu0
      %1557 = vmatprep.mubr.f32.mxu0 0.0
      %1558 = vmatmul.mubr.f32.gmra.mrb[0].mxu0 %v1360
      %v1559 = vpop.f32.mrb[0].mxu0
      %v1560 = vadd.f32 0.0, %v1559
      %v1561 = vpop.f32.mrb[0].mxu0
      %1562 = vmatprep.mubr.f32.mxu0 0.0
      %1563 = vmatmul.mubr.f32.gmra.mrb[0].mxu0 %v1362
      %v1564 = vpop.f32.mrb[0].mxu0
      %v1565 = vadd.f32 0.0, %v1564
      %v1566 = vpop.f32.mrb[0].mxu0
      %1567 = vmatprep.mubr.f32.mxu0 0.0
      %1568 = vmatmul.mubr.f32.gmra.mrb[0].mxu0 %v1364
      %v1569 = vpop.f32.mrb[0].mxu0
      %v1570 = vadd.f32 0.0, %v1569
      %v1571 = vpop.f32.mrb[0].mxu0
      %1572 = vmatprep.mubr.f32.mxu0 0.0
      %1573 = vmatmul.mubr.f32.gmra.mrb[0].mxu0 %v1366
      %v1574 = vpop.f32.mrb[0].mxu0
      %v1575 = vadd.f32 0.0, %v1574
      %v1576 = vpop.f32.mrb[0].mxu0
      %1577 = vmatprep.mubr.f32.mxu0 0.0
      %1578 = vmatmul.mubr.f32.gmra.mrb[0].mxu0 %v1368
      %v1579 = vpop.f32.mrb[0].mxu0
      %v1580 = vadd.f32 0.0, %v1579
      %v1581 = vpop.f32.mrb[0].mxu0
      %1582 = vmatprep.mubr.f32.mxu0 0.0
      %1583 = vmatmul.mubr.f32.gmra.mrb[0].mxu0 %v1370
      %v1584 = vpop.f32.mrb[0].mxu0
      %v1585 = vadd.f32 0.0, %v1584
      %v1586 = vpop.f32.mrb[0].mxu0
      %1587 = vmatprep.mubr.f32.mxu0 0.0
      %1588 = vmatmul.mubr.f32.gmra.mrb[0].mxu0 %v1372
      %v1589 = vpop.f32.mrb[0].mxu0
      %v1590 = vadd.f32 0.0, %v1589
      %v1591 = vpop.f32.mrb[0].mxu0
      %1592 = vmatprep.mubr.f32.mxu0 0.0
      %1593 = vmatmul.mubr.f32.gmra.mrb[0].mxu0 %v1374
      %v1594 = vpop.f32.mrb[0].mxu0
      %v1595 = vadd.f32 0.0, %v1594
      %v1596 = vpop.f32.mrb[0].mxu0
      %1597 = vmatprep.mubr.f32.mxu0 0.0
      %1598 = vmatmul.mubr.f32.gmra.mrb[0].mxu0 %v1376
      %v1599 = vpop.f32.mrb[0].mxu0
      %v1600 = vadd.f32 0.0, %v1599
      %v1601 = vpop.f32.mrb[0].mxu0
      %1602 = vdwg.mxu0
      %v1603 = vadd.f32 %v1073, %v1445
      %v1604 = vadd.f32 %v1078, %v1450
      %v1605 = vadd.f32 %v1083, %v1455
      %v1606 = vadd.f32 %v1088, %v1460
      %v1607 = vadd.f32 %v1093, %v1465
      %v1608 = vadd.f32 %v1098, %v1470
      %v1609 = vadd.f32 %v1103, %v1475
      %v1610 = vadd.f32 %v1108, %v1480
      %v1611 = vadd.f32 %v1113, %v1485
      %v1612 = vadd.f32 %v1118, %v1490
      %v1613 = vadd.f32 %v1123, %v1495
      %v1614 = vadd.f32 %v1128, %v1500
      %v1615 = vadd.f32 %v1133, %v1505
      %v1616 = vadd.f32 %v1138, %v1510
      %v1617 = vadd.f32 %v1143, %v1515
      %v1618 = vadd.f32 %v1148, %v1520
      %v1619 = vadd.f32 %v1153, %v1525
      %v1620 = vadd.f32 %v1158, %v1530
      %v1621 = vadd.f32 %v1163, %v1535
      %v1622 = vadd.f32 %v1168, %v1540
      %v1623 = vadd.f32 %v1173, %v1545
      %v1624 = vadd.f32 %v1178, %v1550
      %v1625 = vadd.f32 %v1183, %v1555
      %v1626 = vadd.f32 %v1188, %v1560
      %v1627 = vadd.f32 %v1193, %v1565
      %v1628 = vadd.f32 %v1198, %v1570
      %v1629 = vadd.f32 %v1203, %v1575
      %v1630 = vadd.f32 %v1208, %v1580
      %v1631 = vadd.f32 %v1213, %v1585
      %v1632 = vadd.f32 %v1218, %v1590
      %v1633 = vadd.f32 %v1223, %v1595
      %v1634 = vadd.f32 %v1228, %v1600
      %s1635 = scalar_lea.vmem %s1, 24
      %v1636 = vld [vmem:[%s1635] sm:$0xff]
      %v1638 = vsel %vm378, %v515, 0
      %v1641 = vsel %vm378, %v516, 0
      %1643 = vmatprep.subr.mxu0 0.0
      %1644 = vmatpush1.msra.mxu0 %v1636
      %1645 = vmatprep.subr.mxu0 0.0
      %1646 = vmatpush1.msra.mxu0 0.0
      %1647 = vmatprep.subr.mxu0 0.0
      %1648 = vmatpush1.msra.mxu0 0.0
      %1649 = vmatprep.subr.mxu0 0.0
      %1650 = vmatpush1.msra.mxu0 0.0
      %1651 = vmatprep.subr.mxu0 0.0
      %1652 = vmatpush1.msra.mxu0 0.0
      %1653 = vmatprep.subr.mxu0 0.0
      %1654 = vmatpush1.msra.mxu0 0.0
      %1655 = vmatprep.subr.mxu0 0.0
      %1656 = vmatpush1.msra.mxu0 0.0
      %1657 = vmatprep.subr.mxu0 0.0
      %1658 = vmatpush1.msra.mxu0 0.0
      %1659 = vmatprep.subr.mxu0 0.0
      %1660 = vmatpush1.msra.mxu0 0.0
      %1661 = vmatprep.subr.mxu0 0.0
      %1662 = vmatpush1.msra.mxu0 0.0
      %1663 = vmatprep.subr.mxu0 0.0
      %1664 = vmatpush1.msra.mxu0 0.0
      %1665 = vmatprep.subr.mxu0 0.0
      %1666 = vmatpush1.msra.mxu0 0.0
      %1667 = vmatprep.subr.mxu0 0.0
      %1668 = vmatpush1.msra.mxu0 0.0
      %1669 = vmatprep.subr.mxu0 0.0
      %1670 = vmatpush1.msra.mxu0 0.0
      %1671 = vmatprep.subr.mxu0 0.0
      %1672 = vmatpush1.msra.mxu0 0.0
      %1673 = vmatprep.subr.mxu0 0.0
      %1674 = vmatpush1.msra.mxu0 0.0
      %1675 = vmatprep.subr.mxu0 0.0
      %1676 = vmatpush1.msra.mxu0 0.0
      %1677 = vmatprep.subr.mxu0 0.0
      %1678 = vmatpush1.msra.mxu0 0.0
      %1679 = vmatprep.subr.mxu0 0.0
      %1680 = vmatpush1.msra.mxu0 0.0
      %1681 = vmatprep.subr.mxu0 0.0
      %1682 = vmatpush1.msra.mxu0 0.0
      %1683 = vmatprep.subr.mxu0 0.0
      %1684 = vmatpush1.msra.mxu0 0.0
      %1685 = vmatprep.subr.mxu0 0.0
      %1686 = vmatpush1.msra.mxu0 0.0
      %1687 = vmatprep.subr.mxu0 0.0
      %1688 = vmatpush1.msra.mxu0 0.0
      %1689 = vmatprep.subr.mxu0 0.0
      %1690 = vmatpush1.msra.mxu0 0.0
      %1691 = vmatprep.subr.mxu0 0.0
      %1692 = vmatpush1.msra.mxu0 0.0
      %1693 = vmatprep.subr.mxu0 0.0
      %1694 = vmatpush1.msra.mxu0 0.0
      %1695 = vmatprep.subr.mxu0 0.0
      %1696 = vmatpush1.msra.mxu0 0.0
      %1697 = vmatprep.subr.mxu0 0.0
      %1698 = vmatpush1.msra.mxu0 0.0
      %1699 = vmatprep.subr.mxu0 0.0
      %1700 = vmatpush1.msra.mxu0 0.0
      %1701 = vmatprep.subr.mxu0 0.0
      %1702 = vmatpush1.msra.mxu0 0.0
      %1703 = vmatprep.subr.mxu0 0.0
      %1704 = vmatpush1.msra.mxu0 0.0
      %1705 = vmatprep.subr.mxu0 0.0
      %1706 = vmatpush1.msra.mxu0 0.0
      %1707 = vmatprep.mubr.f32.mxu0 0.0
      %1708 = vmatmul.mubr.f32.gmra.mrb[0].mxu0 %v946
      %v1709 = vpop.f32.mrb[0].mxu0
      %v1710 = vadd.f32 0.0, %v1709
      %v1711 = vpop.f32.mrb[0].mxu0
      %1712 = vmatprep.mubr.f32.mxu0 0.0
      %1713 = vmatmul.mubr.f32.gmra.mrb[0].mxu0 %v948
      %v1714 = vpop.f32.mrb[0].mxu0
      %v1715 = vadd.f32 0.0, %v1714
      %v1716 = vpop.f32.mrb[0].mxu0
      %1717 = vmatprep.mubr.f32.mxu0 0.0
      %1718 = vmatmul.mubr.f32.gmra.mrb[0].mxu0 %v950
      %v1719 = vpop.f32.mrb[0].mxu0
      %v1720 = vadd.f32 0.0, %v1719
      %v1721 = vpop.f32.mrb[0].mxu0
      %1722 = vmatprep.mubr.f32.mxu0 0.0
      %1723 = vmatmul.mubr.f32.gmra.mrb[0].mxu0 %v952
      %v1724 = vpop.f32.mrb[0].mxu0
      %v1725 = vadd.f32 0.0, %v1724
      %v1726 = vpop.f32.mrb[0].mxu0
      %1727 = vmatprep.mubr.f32.mxu0 0.0
      %1728 = vmatmul.mubr.f32.gmra.mrb[0].mxu0 %v954
      %v1729 = vpop.f32.mrb[0].mxu0
      %v1730 = vadd.f32 0.0, %v1729
      %v1731 = vpop.f32.mrb[0].mxu0
      %1732 = vmatprep.mubr.f32.mxu0 0.0
      %1733 = vmatmul.mubr.f32.gmra.mrb[0].mxu0 %v956
      %v1734 = vpop.f32.mrb[0].mxu0
      %v1735 = vadd.f32 0.0, %v1734
      %v1736 = vpop.f32.mrb[0].mxu0
      %1737 = vmatprep.mubr.f32.mxu0 0.0
      %1738 = vmatmul.mubr.f32.gmra.mrb[0].mxu0 %v958
      %v1739 = vpop.f32.mrb[0].mxu0
      %v1740 = vadd.f32 0.0, %v1739
      %v1741 = vpop.f32.mrb[0].mxu0
      %1742 = vmatprep.mubr.f32.mxu0 0.0
      %1743 = vmatmul.mubr.f32.gmra.mrb[0].mxu0 %v960
      %v1744 = vpop.f32.mrb[0].mxu0
      %v1745 = vadd.f32 0.0, %v1744
      %v1746 = vpop.f32.mrb[0].mxu0
      %1747 = vmatprep.mubr.f32.mxu0 0.0
      %1748 = vmatmul.mubr.f32.gmra.mrb[0].mxu0 %v962
      %v1749 = vpop.f32.mrb[0].mxu0
      %v1750 = vadd.f32 0.0, %v1749
      %v1751 = vpop.f32.mrb[0].mxu0
      %1752 = vmatprep.mubr.f32.mxu0 0.0
      %1753 = vmatmul.mubr.f32.gmra.mrb[0].mxu0 %v964
      %v1754 = vpop.f32.mrb[0].mxu0
      %v1755 = vadd.f32 0.0, %v1754
      %v1756 = vpop.f32.mrb[0].mxu0
      %1757 = vmatprep.mubr.f32.mxu0 0.0
      %1758 = vmatmul.mubr.f32.gmra.mrb[0].mxu0 %v966
      %v1759 = vpop.f32.mrb[0].mxu0
      %v1760 = vadd.f32 0.0, %v1759
      %v1761 = vpop.f32.mrb[0].mxu0
      %1762 = vmatprep.mubr.f32.mxu0 0.0
      %1763 = vmatmul.mubr.f32.gmra.mrb[0].mxu0 %v968
      %v1764 = vpop.f32.mrb[0].mxu0
      %v1765 = vadd.f32 0.0, %v1764
      %v1766 = vpop.f32.mrb[0].mxu0
      %1767 = vmatprep.mubr.f32.mxu0 0.0
      %1768 = vmatmul.mubr.f32.gmra.mrb[0].mxu0 %v970
      %v1769 = vpop.f32.mrb[0].mxu0
      %v1770 = vadd.f32 0.0, %v1769
      %v1771 = vpop.f32.mrb[0].mxu0
      %1772 = vmatprep.mubr.f32.mxu0 0.0
      %1773 = vmatmul.mubr.f32.gmra.mrb[0].mxu0 %v972
      %v1774 = vpop.f32.mrb[0].mxu0
      %v1775 = vadd.f32 0.0, %v1774
      %v1776 = vpop.f32.mrb[0].mxu0
      %1777 = vmatprep.mubr.f32.mxu0 0.0
      %1778 = vmatmul.mubr.f32.gmra.mrb[0].mxu0 %v974
      %v1779 = vpop.f32.mrb[0].mxu0
      %v1780 = vadd.f32 0.0, %v1779
      %v1781 = vpop.f32.mrb[0].mxu0
      %1782 = vmatprep.mubr.f32.mxu0 0.0
      %1783 = vmatmul.mubr.f32.gmra.mrb[0].mxu0 %v976
      %v1784 = vpop.f32.mrb[0].mxu0
      %v1785 = vadd.f32 0.0, %v1784
      %v1786 = vpop.f32.mrb[0].mxu0
      %1787 = vmatprep.mubr.f32.mxu0 0.0
      %1788 = vmatmul.mubr.f32.gmra.mrb[0].mxu0 %v978
      %v1789 = vpop.f32.mrb[0].mxu0
      %v1790 = vadd.f32 0.0, %v1789
      %v1791 = vpop.f32.mrb[0].mxu0
      %1792 = vmatprep.mubr.f32.mxu0 0.0
      %1793 = vmatmul.mubr.f32.gmra.mrb[0].mxu0 %v980
      %v1794 = vpop.f32.mrb[0].mxu0
      %v1795 = vadd.f32 0.0, %v1794
      %v1796 = vpop.f32.mrb[0].mxu0
      %1797 = vmatprep.mubr.f32.mxu0 0.0
      %1798 = vmatmul.mubr.f32.gmra.mrb[0].mxu0 %v982
      %v1799 = vpop.f32.mrb[0].mxu0
      %v1800 = vadd.f32 0.0, %v1799
      %v1801 = vpop.f32.mrb[0].mxu0
      %1802 = vmatprep.mubr.f32.mxu0 0.0
      %1803 = vmatmul.mubr.f32.gmra.mrb[0].mxu0 %v984
      %v1804 = vpop.f32.mrb[0].mxu0
      %v1805 = vadd.f32 0.0, %v1804
      %v1806 = vpop.f32.mrb[0].mxu0
      %1807 = vmatprep.mubr.f32.mxu0 0.0
      %1808 = vmatmul.mubr.f32.gmra.mrb[0].mxu0 %v986
      %v1809 = vpop.f32.mrb[0].mxu0
      %v1810 = vadd.f32 0.0, %v1809
      %v1811 = vpop.f32.mrb[0].mxu0
      %1812 = vmatprep.mubr.f32.mxu0 0.0
      %1813 = vmatmul.mubr.f32.gmra.mrb[0].mxu0 %v988
      %v1814 = vpop.f32.mrb[0].mxu0
      %v1815 = vadd.f32 0.0, %v1814
      %v1816 = vpop.f32.mrb[0].mxu0
      %1817 = vmatprep.mubr.f32.mxu0 0.0
      %1818 = vmatmul.mubr.f32.gmra.mrb[0].mxu0 %v990
      %v1819 = vpop.f32.mrb[0].mxu0
      %v1820 = vadd.f32 0.0, %v1819
      %v1821 = vpop.f32.mrb[0].mxu0
      %1822 = vmatprep.mubr.f32.mxu0 0.0
      %1823 = vmatmul.mubr.f32.gmra.mrb[0].mxu0 %v992
      %v1824 = vpop.f32.mrb[0].mxu0
      %v1825 = vadd.f32 0.0, %v1824
      %v1826 = vpop.f32.mrb[0].mxu0
      %1827 = vmatprep.mubr.f32.mxu0 0.0
      %1828 = vmatmul.mubr.f32.gmra.mrb[0].mxu0 %v994
      %v1829 = vpop.f32.mrb[0].mxu0
      %v1830 = vadd.f32 0.0, %v1829
      %v1831 = vpop.f32.mrb[0].mxu0
      %1832 = vmatprep.mubr.f32.mxu0 0.0
      %1833 = vmatmul.mubr.f32.gmra.mrb[0].mxu0 %v996
      %v1834 = vpop.f32.mrb[0].mxu0
      %v1835 = vadd.f32 0.0, %v1834
      %v1836 = vpop.f32.mrb[0].mxu0
      %1837 = vmatprep.mubr.f32.mxu0 0.0
      %1838 = vmatmul.mubr.f32.gmra.mrb[0].mxu0 %v998
      %v1839 = vpop.f32.mrb[0].mxu0
      %v1840 = vadd.f32 0.0, %v1839
      %v1841 = vpop.f32.mrb[0].mxu0
      %1842 = vmatprep.mubr.f32.mxu0 0.0
      %1843 = vmatmul.mubr.f32.gmra.mrb[0].mxu0 %v1000
      %v1844 = vpop.f32.mrb[0].mxu0
      %v1845 = vadd.f32 0.0, %v1844
      %v1846 = vpop.f32.mrb[0].mxu0
      %1847 = vmatprep.mubr.f32.mxu0 0.0
      %1848 = vmatmul.mubr.f32.gmra.mrb[0].mxu0 %v1002
      %v1849 = vpop.f32.mrb[0].mxu0
      %v1850 = vadd.f32 0.0, %v1849
      %v1851 = vpop.f32.mrb[0].mxu0
      %1852 = vmatprep.mubr.f32.mxu0 0.0
      %1853 = vmatmul.mubr.f32.gmra.mrb[0].mxu0 %v1004
      %v1854 = vpop.f32.mrb[0].mxu0
      %v1855 = vadd.f32 0.0, %v1854
      %v1856 = vpop.f32.mrb[0].mxu0
      %1857 = vmatprep.mubr.f32.mxu0 0.0
      %1858 = vmatmul.mubr.f32.gmra.mrb[0].mxu0 %v1638
      %v1859 = vpop.f32.mrb[0].mxu0
      %v1860 = vadd.f32 0.0, %v1859
      %v1861 = vpop.f32.mrb[0].mxu0
      %1862 = vmatprep.mubr.f32.mxu0 0.0
      %1863 = vmatmul.mubr.f32.gmra.mrb[0].mxu0 %v1641
      %v1864 = vpop.f32.mrb[0].mxu0
      %v1865 = vadd.f32 0.0, %v1864
      %v1866 = vpop.f32.mrb[0].mxu0
      %1867 = vdwg.mxu0
      %v1868 = vadd.f32 %v1603, %v1710
      %v1869 = vadd.f32 %v1604, %v1715
      %v1870 = vadd.f32 %v1605, %v1720
      %v1871 = vadd.f32 %v1606, %v1725
      %v1872 = vadd.f32 %v1607, %v1730
      %v1873 = vadd.f32 %v1608, %v1735
      %v1874 = vadd.f32 %v1609, %v1740
      %v1875 = vadd.f32 %v1610, %v1745
      %v1876 = vadd.f32 %v1611, %v1750
      %v1877 = vadd.f32 %v1612, %v1755
      %v1878 = vadd.f32 %v1613, %v1760
      %v1879 = vadd.f32 %v1614, %v1765
      %v1880 = vadd.f32 %v1615, %v1770
      %v1881 = vadd.f32 %v1616, %v1775
      %v1882 = vadd.f32 %v1617, %v1780
      %v1883 = vadd.f32 %v1618, %v1785
      %v1884 = vadd.f32 %v1619, %v1790
      %v1885 = vadd.f32 %v1620, %v1795
      %v1886 = vadd.f32 %v1621, %v1800
      %v1887 = vadd.f32 %v1622, %v1805
      %v1888 = vadd.f32 %v1623, %v1810
      %v1889 = vadd.f32 %v1624, %v1815
      %v1890 = vadd.f32 %v1625, %v1820
      %v1891 = vadd.f32 %v1626, %v1825
      %v1892 = vadd.f32 %v1627, %v1830
      %v1893 = vadd.f32 %v1628, %v1835
      %v1894 = vadd.f32 %v1629, %v1840
      %v1895 = vadd.f32 %v1630, %v1845
      %v1896 = vadd.f32 %v1631, %v1850
      %v1897 = vadd.f32 %v1632, %v1855
      %v1898 = vadd.f32 %v1633, %v1860
      %v1899 = vadd.f32 %v1634, %v1865
      %v1901 = vrot.slane %v515, 1
      %v1902 = vrot.slane %v516, 1
      %v1903 = vsel %vm570, %v1901, %v1902
      %v1904 = vrot.slane %v517, 1
      %v1905 = vsel %vm570, %v1902, %v1904
      %s1906 = scalar_lea.vmem %s1, 32
      %v1907 = vld [vmem:[%s1906] sm:$0xff]
      %v1908 = vsel %vm378, %v1903, 0
      %v1910 = vsel %vm378, %v1905, 0
      %1912 = vmatprep.subr.mxu0 0.0
      %1913 = vmatpush1.msra.mxu0 %v1907
      %1914 = vmatprep.subr.mxu0 0.0
      %1915 = vmatpush1.msra.mxu0 0.0
      %1916 = vmatprep.subr.mxu0 0.0
      %1917 = vmatpush1.msra.mxu0 0.0
      %1918 = vmatprep.subr.mxu0 0.0
      %1919 = vmatpush1.msra.mxu0 0.0
      %1920 = vmatprep.subr.mxu0 0.0
      %1921 = vmatpush1.msra.mxu0 0.0
      %1922 = vmatprep.subr.mxu0 0.0
      %1923 = vmatpush1.msra.mxu0 0.0
      %1924 = vmatprep.subr.mxu0 0.0
      %1925 = vmatpush1.msra.mxu0 0.0
      %1926 = vmatprep.subr.mxu0 0.0
      %1927 = vmatpush1.msra.mxu0 0.0
      %1928 = vmatprep.subr.mxu0 0.0
      %1929 = vmatpush1.msra.mxu0 0.0
      %1930 = vmatprep.subr.mxu0 0.0
      %1931 = vmatpush1.msra.mxu0 0.0
      %1932 = vmatprep.subr.mxu0 0.0
      %1933 = vmatpush1.msra.mxu0 0.0
      %1934 = vmatprep.subr.mxu0 0.0
      %1935 = vmatpush1.msra.mxu0 0.0
      %1936 = vmatprep.subr.mxu0 0.0
      %1937 = vmatpush1.msra.mxu0 0.0
      %1938 = vmatprep.subr.mxu0 0.0
      %1939 = vmatpush1.msra.mxu0 0.0
      %1940 = vmatprep.subr.mxu0 0.0
      %1941 = vmatpush1.msra.mxu0 0.0
      %1942 = vmatprep.subr.mxu0 0.0
      %1943 = vmatpush1.msra.mxu0 0.0
      %1944 = vmatprep.subr.mxu0 0.0
      %1945 = vmatpush1.msra.mxu0 0.0
      %1946 = vmatprep.subr.mxu0 0.0
      %1947 = vmatpush1.msra.mxu0 0.0
      %1948 = vmatprep.subr.mxu0 0.0
      %1949 = vmatpush1.msra.mxu0 0.0
      %1950 = vmatprep.subr.mxu0 0.0
      %1951 = vmatpush1.msra.mxu0 0.0
      %1952 = vmatprep.subr.mxu0 0.0
      %1953 = vmatpush1.msra.mxu0 0.0
      %1954 = vmatprep.subr.mxu0 0.0
      %1955 = vmatpush1.msra.mxu0 0.0
      %1956 = vmatprep.subr.mxu0 0.0
      %1957 = vmatpush1.msra.mxu0 0.0
      %1958 = vmatprep.subr.mxu0 0.0
      %1959 = vmatpush1.msra.mxu0 0.0
      %1960 = vmatprep.subr.mxu0 0.0
      %1961 = vmatpush1.msra.mxu0 0.0
      %1962 = vmatprep.subr.mxu0 0.0
      %1963 = vmatpush1.msra.mxu0 0.0
      %1964 = vmatprep.subr.mxu0 0.0
      %1965 = vmatpush1.msra.mxu0 0.0
      %1966 = vmatprep.subr.mxu0 0.0
      %1967 = vmatpush1.msra.mxu0 0.0
      %1968 = vmatprep.subr.mxu0 0.0
      %1969 = vmatpush1.msra.mxu0 0.0
      %1970 = vmatprep.subr.mxu0 0.0
      %1971 = vmatpush1.msra.mxu0 0.0
      %1972 = vmatprep.subr.mxu0 0.0
      %1973 = vmatpush1.msra.mxu0 0.0
      %1974 = vmatprep.subr.mxu0 0.0
      %1975 = vmatpush1.msra.mxu0 0.0
      %1976 = vmatprep.mubr.f32.mxu0 0.0
      %1977 = vmatmul.mubr.f32.gmra.mrb[0].mxu0 %v657
      %v1978 = vpop.f32.mrb[0].mxu0
      %v1979 = vadd.f32 0.0, %v1978
      %v1980 = vpop.f32.mrb[0].mxu0
      %1981 = vmatprep.mubr.f32.mxu0 0.0
      %1982 = vmatmul.mubr.f32.gmra.mrb[0].mxu0 %v659
      %v1983 = vpop.f32.mrb[0].mxu0
      %v1984 = vadd.f32 0.0, %v1983
      %v1985 = vpop.f32.mrb[0].mxu0
      %1986 = vmatprep.mubr.f32.mxu0 0.0
      %1987 = vmatmul.mubr.f32.gmra.mrb[0].mxu0 %v661
      %v1988 = vpop.f32.mrb[0].mxu0
      %v1989 = vadd.f32 0.0, %v1988
      %v1990 = vpop.f32.mrb[0].mxu0
      %1991 = vmatprep.mubr.f32.mxu0 0.0
      %1992 = vmatmul.mubr.f32.gmra.mrb[0].mxu0 %v663
      %v1993 = vpop.f32.mrb[0].mxu0
      %v1994 = vadd.f32 0.0, %v1993
      %v1995 = vpop.f32.mrb[0].mxu0
      %1996 = vmatprep.mubr.f32.mxu0 0.0
      %1997 = vmatmul.mubr.f32.gmra.mrb[0].mxu0 %v665
      %v1998 = vpop.f32.mrb[0].mxu0
      %v1999 = vadd.f32 0.0, %v1998
      %v2000 = vpop.f32.mrb[0].mxu0
      %2001 = vmatprep.mubr.f32.mxu0 0.0
      %2002 = vmatmul.mubr.f32.gmra.mrb[0].mxu0 %v667
      %v2003 = vpop.f32.mrb[0].mxu0
      %v2004 = vadd.f32 0.0, %v2003
      %v2005 = vpop.f32.mrb[0].mxu0
      %2006 = vmatprep.mubr.f32.mxu0 0.0
      %2007 = vmatmul.mubr.f32.gmra.mrb[0].mxu0 %v669
      %v2008 = vpop.f32.mrb[0].mxu0
      %v2009 = vadd.f32 0.0, %v2008
      %v2010 = vpop.f32.mrb[0].mxu0
      %2011 = vmatprep.mubr.f32.mxu0 0.0
      %2012 = vmatmul.mubr.f32.gmra.mrb[0].mxu0 %v671
      %v2013 = vpop.f32.mrb[0].mxu0
      %v2014 = vadd.f32 0.0, %v2013
      %v2015 = vpop.f32.mrb[0].mxu0
      %2016 = vmatprep.mubr.f32.mxu0 0.0
      %2017 = vmatmul.mubr.f32.gmra.mrb[0].mxu0 %v673
      %v2018 = vpop.f32.mrb[0].mxu0
      %v2019 = vadd.f32 0.0, %v2018
      %v2020 = vpop.f32.mrb[0].mxu0
      %2021 = vmatprep.mubr.f32.mxu0 0.0
      %2022 = vmatmul.mubr.f32.gmra.mrb[0].mxu0 %v675
      %v2023 = vpop.f32.mrb[0].mxu0
      %v2024 = vadd.f32 0.0, %v2023
      %v2025 = vpop.f32.mrb[0].mxu0
      %2026 = vmatprep.mubr.f32.mxu0 0.0
      %2027 = vmatmul.mubr.f32.gmra.mrb[0].mxu0 %v677
      %v2028 = vpop.f32.mrb[0].mxu0
      %v2029 = vadd.f32 0.0, %v2028
      %v2030 = vpop.f32.mrb[0].mxu0
      %2031 = vmatprep.mubr.f32.mxu0 0.0
      %2032 = vmatmul.mubr.f32.gmra.mrb[0].mxu0 %v679
      %v2033 = vpop.f32.mrb[0].mxu0
      %v2034 = vadd.f32 0.0, %v2033
      %v2035 = vpop.f32.mrb[0].mxu0
      %2036 = vmatprep.mubr.f32.mxu0 0.0
      %2037 = vmatmul.mubr.f32.gmra.mrb[0].mxu0 %v681
      %v2038 = vpop.f32.mrb[0].mxu0
      %v2039 = vadd.f32 0.0, %v2038
      %v2040 = vpop.f32.mrb[0].mxu0
      %2041 = vmatprep.mubr.f32.mxu0 0.0
      %2042 = vmatmul.mubr.f32.gmra.mrb[0].mxu0 %v683
      %v2043 = vpop.f32.mrb[0].mxu0
      %v2044 = vadd.f32 0.0, %v2043
      %v2045 = vpop.f32.mrb[0].mxu0
      %2046 = vmatprep.mubr.f32.mxu0 0.0
      %2047 = vmatmul.mubr.f32.gmra.mrb[0].mxu0 %v685
      %v2048 = vpop.f32.mrb[0].mxu0
      %v2049 = vadd.f32 0.0, %v2048
      %v2050 = vpop.f32.mrb[0].mxu0
      %2051 = vmatprep.mubr.f32.mxu0 0.0
      %2052 = vmatmul.mubr.f32.gmra.mrb[0].mxu0 %v687
      %v2053 = vpop.f32.mrb[0].mxu0
      %v2054 = vadd.f32 0.0, %v2053
      %v2055 = vpop.f32.mrb[0].mxu0
      %2056 = vmatprep.mubr.f32.mxu0 0.0
      %2057 = vmatmul.mubr.f32.gmra.mrb[0].mxu0 %v689
      %v2058 = vpop.f32.mrb[0].mxu0
      %v2059 = vadd.f32 0.0, %v2058
      %v2060 = vpop.f32.mrb[0].mxu0
      %2061 = vmatprep.mubr.f32.mxu0 0.0
      %2062 = vmatmul.mubr.f32.gmra.mrb[0].mxu0 %v691
      %v2063 = vpop.f32.mrb[0].mxu0
      %v2064 = vadd.f32 0.0, %v2063
      %v2065 = vpop.f32.mrb[0].mxu0
      %2066 = vmatprep.mubr.f32.mxu0 0.0
      %2067 = vmatmul.mubr.f32.gmra.mrb[0].mxu0 %v693
      %v2068 = vpop.f32.mrb[0].mxu0
      %v2069 = vadd.f32 0.0, %v2068
      %v2070 = vpop.f32.mrb[0].mxu0
      %2071 = vmatprep.mubr.f32.mxu0 0.0
      %2072 = vmatmul.mubr.f32.gmra.mrb[0].mxu0 %v695
      %v2073 = vpop.f32.mrb[0].mxu0
      %v2074 = vadd.f32 0.0, %v2073
      %v2075 = vpop.f32.mrb[0].mxu0
      %2076 = vmatprep.mubr.f32.mxu0 0.0
      %2077 = vmatmul.mubr.f32.gmra.mrb[0].mxu0 %v697
      %v2078 = vpop.f32.mrb[0].mxu0
      %v2079 = vadd.f32 0.0, %v2078
      %v2080 = vpop.f32.mrb[0].mxu0
      %2081 = vmatprep.mubr.f32.mxu0 0.0
      %2082 = vmatmul.mubr.f32.gmra.mrb[0].mxu0 %v699
      %v2083 = vpop.f32.mrb[0].mxu0
      %v2084 = vadd.f32 0.0, %v2083
      %v2085 = vpop.f32.mrb[0].mxu0
      %2086 = vmatprep.mubr.f32.mxu0 0.0
      %2087 = vmatmul.mubr.f32.gmra.mrb[0].mxu0 %v701
      %v2088 = vpop.f32.mrb[0].mxu0
      %v2089 = vadd.f32 0.0, %v2088
      %v2090 = vpop.f32.mrb[0].mxu0
      %2091 = vmatprep.mubr.f32.mxu0 0.0
      %2092 = vmatmul.mubr.f32.gmra.mrb[0].mxu0 %v703
      %v2093 = vpop.f32.mrb[0].mxu0
      %v2094 = vadd.f32 0.0, %v2093
      %v2095 = vpop.f32.mrb[0].mxu0
      %2096 = vmatprep.mubr.f32.mxu0 0.0
      %2097 = vmatmul.mubr.f32.gmra.mrb[0].mxu0 %v705
      %v2098 = vpop.f32.mrb[0].mxu0
      %v2099 = vadd.f32 0.0, %v2098
      %v2100 = vpop.f32.mrb[0].mxu0
      %2101 = vmatprep.mubr.f32.mxu0 0.0
      %2102 = vmatmul.mubr.f32.gmra.mrb[0].mxu0 %v707
      %v2103 = vpop.f32.mrb[0].mxu0
      %v2104 = vadd.f32 0.0, %v2103
      %v2105 = vpop.f32.mrb[0].mxu0
      %2106 = vmatprep.mubr.f32.mxu0 0.0
      %2107 = vmatmul.mubr.f32.gmra.mrb[0].mxu0 %v709
      %v2108 = vpop.f32.mrb[0].mxu0
      %v2109 = vadd.f32 0.0, %v2108
      %v2110 = vpop.f32.mrb[0].mxu0
      %2111 = vmatprep.mubr.f32.mxu0 0.0
      %2112 = vmatmul.mubr.f32.gmra.mrb[0].mxu0 %v711
      %v2113 = vpop.f32.mrb[0].mxu0
      %v2114 = vadd.f32 0.0, %v2113
      %v2115 = vpop.f32.mrb[0].mxu0
      %2116 = vmatprep.mubr.f32.mxu0 0.0
      %2117 = vmatmul.mubr.f32.gmra.mrb[0].mxu0 %v713
      %v2118 = vpop.f32.mrb[0].mxu0
      %v2119 = vadd.f32 0.0, %v2118
      %v2120 = vpop.f32.mrb[0].mxu0
      %2121 = vmatprep.mubr.f32.mxu0 0.0
      %2122 = vmatmul.mubr.f32.gmra.mrb[0].mxu0 %v715
      %v2123 = vpop.f32.mrb[0].mxu0
      %v2124 = vadd.f32 0.0, %v2123
      %v2125 = vpop.f32.mrb[0].mxu0
      %2126 = vmatprep.mubr.f32.mxu0 0.0
      %2127 = vmatmul.mubr.f32.gmra.mrb[0].mxu0 %v1908
      %v2128 = vpop.f32.mrb[0].mxu0
      %v2129 = vadd.f32 0.0, %v2128
      %v2130 = vpop.f32.mrb[0].mxu0
      %2131 = vmatprep.mubr.f32.mxu0 0.0
      %2132 = vmatmul.mubr.f32.gmra.mrb[0].mxu0 %v1910
      %v2133 = vpop.f32.mrb[0].mxu0
      %v2134 = vadd.f32 0.0, %v2133
      %v2135 = vpop.f32.mrb[0].mxu0
      %2136 = vdwg.mxu0
      %v2137 = vadd.f32 %v1868, %v1979
      %v2138 = vadd.f32 %v1869, %v1984
      %v2139 = vadd.f32 %v1870, %v1989
      %v2140 = vadd.f32 %v1871, %v1994
      %v2141 = vadd.f32 %v1872, %v1999
      %v2142 = vadd.f32 %v1873, %v2004
      %v2143 = vadd.f32 %v1874, %v2009
      %v2144 = vadd.f32 %v1875, %v2014
      %v2145 = vadd.f32 %v1876, %v2019
      %v2146 = vadd.f32 %v1877, %v2024
      %v2147 = vadd.f32 %v1878, %v2029
      %v2148 = vadd.f32 %v1879, %v2034
      %v2149 = vadd.f32 %v1880, %v2039
      %v2150 = vadd.f32 %v1881, %v2044
      %v2151 = vadd.f32 %v1882, %v2049
      %v2152 = vadd.f32 %v1883, %v2054
      %v2153 = vadd.f32 %v1884, %v2059
      %v2154 = vadd.f32 %v1885, %v2064
      %v2155 = vadd.f32 %v1886, %v2069
      %v2156 = vadd.f32 %v1887, %v2074
      %v2157 = vadd.f32 %v1888, %v2079
      %v2158 = vadd.f32 %v1889, %v2084
      %v2159 = vadd.f32 %v1890, %v2089
      %v2160 = vadd.f32 %v1891, %v2094
      %v2161 = vadd.f32 %v1892, %v2099
      %v2162 = vadd.f32 %v1893, %v2104
      %v2163 = vadd.f32 %v1894, %v2109
      %v2164 = vadd.f32 %v1895, %v2114
      %v2165 = vadd.f32 %v1896, %v2119
      %v2166 = vadd.f32 %v1897, %v2124
      %v2167 = vadd.f32 %v1898, %v2129
      %v2168 = vadd.f32 %v1899, %v2134
      %v2169 = vrot.slane %v515, 2
      %v2170 = vrot.slane %v516, 2
      %v2171 = vsel %vm1231, %v2169, %v2170
      %v2172 = vrot.slane %v517, 2
      %v2173 = vsel %vm1231, %v2170, %v2172
      %s2174 = scalar_lea.vmem %s1, 40
      %v2175 = vld [vmem:[%s2174] sm:$0xff]
      %v2176 = vsel %vm378, %v2171, 0
      %v2178 = vsel %vm378, %v2173, 0
      %2180 = vmatprep.subr.mxu0 0.0
      %2181 = vmatpush1.msra.mxu0 %v2175
      %2182 = vmatprep.subr.mxu0 0.0
      %2183 = vmatpush1.msra.mxu0 0.0
      %2184 = vmatprep.subr.mxu0 0.0
      %2185 = vmatpush1.msra.mxu0 0.0
      %2186 = vmatprep.subr.mxu0 0.0
      %2187 = vmatpush1.msra.mxu0 0.0
      %2188 = vmatprep.subr.mxu0 0.0
      %2189 = vmatpush1.msra.mxu0 0.0
      %2190 = vmatprep.subr.mxu0 0.0
      %2191 = vmatpush1.msra.mxu0 0.0
      %2192 = vmatprep.subr.mxu0 0.0
      %2193 = vmatpush1.msra.mxu0 0.0
      %2194 = vmatprep.subr.mxu0 0.0
      %2195 = vmatpush1.msra.mxu0 0.0
      %2196 = vmatprep.subr.mxu0 0.0
      %2197 = vmatpush1.msra.mxu0 0.0
      %2198 = vmatprep.subr.mxu0 0.0
      %2199 = vmatpush1.msra.mxu0 0.0
      %2200 = vmatprep.subr.mxu0 0.0
      %2201 = vmatpush1.msra.mxu0 0.0
      %2202 = vmatprep.subr.mxu0 0.0
      %2203 = vmatpush1.msra.mxu0 0.0
      %2204 = vmatprep.subr.mxu0 0.0
      %2205 = vmatpush1.msra.mxu0 0.0
      %2206 = vmatprep.subr.mxu0 0.0
      %2207 = vmatpush1.msra.mxu0 0.0
      %2208 = vmatprep.subr.mxu0 0.0
      %2209 = vmatpush1.msra.mxu0 0.0
      %2210 = vmatprep.subr.mxu0 0.0
      %2211 = vmatpush1.msra.mxu0 0.0
      %2212 = vmatprep.subr.mxu0 0.0
      %2213 = vmatpush1.msra.mxu0 0.0
      %2214 = vmatprep.subr.mxu0 0.0
      %2215 = vmatpush1.msra.mxu0 0.0
      %2216 = vmatprep.subr.mxu0 0.0
      %2217 = vmatpush1.msra.mxu0 0.0
      %2218 = vmatprep.subr.mxu0 0.0
      %2219 = vmatpush1.msra.mxu0 0.0
      %2220 = vmatprep.subr.mxu0 0.0
      %2221 = vmatpush1.msra.mxu0 0.0
      %2222 = vmatprep.subr.mxu0 0.0
      %2223 = vmatpush1.msra.mxu0 0.0
      %2224 = vmatprep.subr.mxu0 0.0
      %2225 = vmatpush1.msra.mxu0 0.0
      %2226 = vmatprep.subr.mxu0 0.0
      %2227 = vmatpush1.msra.mxu0 0.0
      %2228 = vmatprep.subr.mxu0 0.0
      %2229 = vmatpush1.msra.mxu0 0.0
      %2230 = vmatprep.subr.mxu0 0.0
      %2231 = vmatpush1.msra.mxu0 0.0
      %2232 = vmatprep.subr.mxu0 0.0
      %2233 = vmatpush1.msra.mxu0 0.0
      %2234 = vmatprep.subr.mxu0 0.0
      %2235 = vmatpush1.msra.mxu0 0.0
      %2236 = vmatprep.subr.mxu0 0.0
      %2237 = vmatpush1.msra.mxu0 0.0
      %2238 = vmatprep.subr.mxu0 0.0
      %2239 = vmatpush1.msra.mxu0 0.0
      %2240 = vmatprep.subr.mxu0 0.0
      %2241 = vmatpush1.msra.mxu0 0.0
      %2242 = vmatprep.subr.mxu0 0.0
      %2243 = vmatpush1.msra.mxu0 0.0
      %2244 = vmatprep.mubr.f32.mxu0 0.0
      %2245 = vmatmul.mubr.f32.gmra.mrb[0].mxu0 %v1318
      %v2246 = vpop.f32.mrb[0].mxu0
      %v2247 = vadd.f32 0.0, %v2246
      %v2248 = vpop.f32.mrb[0].mxu0
      %2249 = vmatprep.mubr.f32.mxu0 0.0
      %2250 = vmatmul.mubr.f32.gmra.mrb[0].mxu0 %v1320
      %v2251 = vpop.f32.mrb[0].mxu0
      %v2252 = vadd.f32 0.0, %v2251
      %v2253 = vpop.f32.mrb[0].mxu0
      %2254 = vmatprep.mubr.f32.mxu0 0.0
      %2255 = vmatmul.mubr.f32.gmra.mrb[0].mxu0 %v1322
      %v2256 = vpop.f32.mrb[0].mxu0
      %v2257 = vadd.f32 0.0, %v2256
      %v2258 = vpop.f32.mrb[0].mxu0
      %2259 = vmatprep.mubr.f32.mxu0 0.0
      %2260 = vmatmul.mubr.f32.gmra.mrb[0].mxu0 %v1324
      %v2261 = vpop.f32.mrb[0].mxu0
      %v2262 = vadd.f32 0.0, %v2261
      %v2263 = vpop.f32.mrb[0].mxu0
      %2264 = vmatprep.mubr.f32.mxu0 0.0
      %2265 = vmatmul.mubr.f32.gmra.mrb[0].mxu0 %v1326
      %v2266 = vpop.f32.mrb[0].mxu0
      %v2267 = vadd.f32 0.0, %v2266
      %v2268 = vpop.f32.mrb[0].mxu0
      %2269 = vmatprep.mubr.f32.mxu0 0.0
      %2270 = vmatmul.mubr.f32.gmra.mrb[0].mxu0 %v1328
      %v2271 = vpop.f32.mrb[0].mxu0
      %v2272 = vadd.f32 0.0, %v2271
      %v2273 = vpop.f32.mrb[0].mxu0
      %2274 = vmatprep.mubr.f32.mxu0 0.0
      %2275 = vmatmul.mubr.f32.gmra.mrb[0].mxu0 %v1330
      %v2276 = vpop.f32.mrb[0].mxu0
      %v2277 = vadd.f32 0.0, %v2276
      %v2278 = vpop.f32.mrb[0].mxu0
      %2279 = vmatprep.mubr.f32.mxu0 0.0
      %2280 = vmatmul.mubr.f32.gmra.mrb[0].mxu0 %v1332
      %v2281 = vpop.f32.mrb[0].mxu0
      %v2282 = vadd.f32 0.0, %v2281
      %v2283 = vpop.f32.mrb[0].mxu0
      %2284 = vmatprep.mubr.f32.mxu0 0.0
      %2285 = vmatmul.mubr.f32.gmra.mrb[0].mxu0 %v1334
      %v2286 = vpop.f32.mrb[0].mxu0
      %v2287 = vadd.f32 0.0, %v2286
      %v2288 = vpop.f32.mrb[0].mxu0
      %2289 = vmatprep.mubr.f32.mxu0 0.0
      %2290 = vmatmul.mubr.f32.gmra.mrb[0].mxu0 %v1336
      %v2291 = vpop.f32.mrb[0].mxu0
      %v2292 = vadd.f32 0.0, %v2291
      %v2293 = vpop.f32.mrb[0].mxu0
      %2294 = vmatprep.mubr.f32.mxu0 0.0
      %2295 = vmatmul.mubr.f32.gmra.mrb[0].mxu0 %v1338
      %v2296 = vpop.f32.mrb[0].mxu0
      %v2297 = vadd.f32 0.0, %v2296
      %v2298 = vpop.f32.mrb[0].mxu0
      %2299 = vmatprep.mubr.f32.mxu0 0.0
      %2300 = vmatmul.mubr.f32.gmra.mrb[0].mxu0 %v1340
      %v2301 = vpop.f32.mrb[0].mxu0
      %v2302 = vadd.f32 0.0, %v2301
      %v2303 = vpop.f32.mrb[0].mxu0
      %2304 = vmatprep.mubr.f32.mxu0 0.0
      %2305 = vmatmul.mubr.f32.gmra.mrb[0].mxu0 %v1342
      %v2306 = vpop.f32.mrb[0].mxu0
      %v2307 = vadd.f32 0.0, %v2306
      %v2308 = vpop.f32.mrb[0].mxu0
      %2309 = vmatprep.mubr.f32.mxu0 0.0
      %2310 = vmatmul.mubr.f32.gmra.mrb[0].mxu0 %v1344
      %v2311 = vpop.f32.mrb[0].mxu0
      %v2312 = vadd.f32 0.0, %v2311
      %v2313 = vpop.f32.mrb[0].mxu0
      %2314 = vmatprep.mubr.f32.mxu0 0.0
      %2315 = vmatmul.mubr.f32.gmra.mrb[0].mxu0 %v1346
      %v2316 = vpop.f32.mrb[0].mxu0
      %v2317 = vadd.f32 0.0, %v2316
      %v2318 = vpop.f32.mrb[0].mxu0
      %2319 = vmatprep.mubr.f32.mxu0 0.0
      %2320 = vmatmul.mubr.f32.gmra.mrb[0].mxu0 %v1348
      %v2321 = vpop.f32.mrb[0].mxu0
      %v2322 = vadd.f32 0.0, %v2321
      %v2323 = vpop.f32.mrb[0].mxu0
      %2324 = vmatprep.mubr.f32.mxu0 0.0
      %2325 = vmatmul.mubr.f32.gmra.mrb[0].mxu0 %v1350
      %v2326 = vpop.f32.mrb[0].mxu0
      %v2327 = vadd.f32 0.0, %v2326
      %v2328 = vpop.f32.mrb[0].mxu0
      %2329 = vmatprep.mubr.f32.mxu0 0.0
      %2330 = vmatmul.mubr.f32.gmra.mrb[0].mxu0 %v1352
      %v2331 = vpop.f32.mrb[0].mxu0
      %v2332 = vadd.f32 0.0, %v2331
      %v2333 = vpop.f32.mrb[0].mxu0
      %2334 = vmatprep.mubr.f32.mxu0 0.0
      %2335 = vmatmul.mubr.f32.gmra.mrb[0].mxu0 %v1354
      %v2336 = vpop.f32.mrb[0].mxu0
      %v2337 = vadd.f32 0.0, %v2336
      %v2338 = vpop.f32.mrb[0].mxu0
      %2339 = vmatprep.mubr.f32.mxu0 0.0
      %2340 = vmatmul.mubr.f32.gmra.mrb[0].mxu0 %v1356
      %v2341 = vpop.f32.mrb[0].mxu0
      %v2342 = vadd.f32 0.0, %v2341
      %v2343 = vpop.f32.mrb[0].mxu0
      %2344 = vmatprep.mubr.f32.mxu0 0.0
      %2345 = vmatmul.mubr.f32.gmra.mrb[0].mxu0 %v1358
      %v2346 = vpop.f32.mrb[0].mxu0
      %v2347 = vadd.f32 0.0, %v2346
      %v2348 = vpop.f32.mrb[0].mxu0
      %2349 = vmatprep.mubr.f32.mxu0 0.0
      %2350 = vmatmul.mubr.f32.gmra.mrb[0].mxu0 %v1360
      %v2351 = vpop.f32.mrb[0].mxu0
      %v2352 = vadd.f32 0.0, %v2351
      %v2353 = vpop.f32.mrb[0].mxu0
      %2354 = vmatprep.mubr.f32.mxu0 0.0
      %2355 = vmatmul.mubr.f32.gmra.mrb[0].mxu0 %v1362
      %v2356 = vpop.f32.mrb[0].mxu0
      %v2357 = vadd.f32 0.0, %v2356
      %v2358 = vpop.f32.mrb[0].mxu0
      %2359 = vmatprep.mubr.f32.mxu0 0.0
      %2360 = vmatmul.mubr.f32.gmra.mrb[0].mxu0 %v1364
      %v2361 = vpop.f32.mrb[0].mxu0
      %v2362 = vadd.f32 0.0, %v2361
      %v2363 = vpop.f32.mrb[0].mxu0
      %2364 = vmatprep.mubr.f32.mxu0 0.0
      %2365 = vmatmul.mubr.f32.gmra.mrb[0].mxu0 %v1366
      %v2366 = vpop.f32.mrb[0].mxu0
      %v2367 = vadd.f32 0.0, %v2366
      %v2368 = vpop.f32.mrb[0].mxu0
      %2369 = vmatprep.mubr.f32.mxu0 0.0
      %2370 = vmatmul.mubr.f32.gmra.mrb[0].mxu0 %v1368
      %v2371 = vpop.f32.mrb[0].mxu0
      %v2372 = vadd.f32 0.0, %v2371
      %v2373 = vpop.f32.mrb[0].mxu0
      %2374 = vmatprep.mubr.f32.mxu0 0.0
      %2375 = vmatmul.mubr.f32.gmra.mrb[0].mxu0 %v1370
      %v2376 = vpop.f32.mrb[0].mxu0
      %v2377 = vadd.f32 0.0, %v2376
      %v2378 = vpop.f32.mrb[0].mxu0
      %2379 = vmatprep.mubr.f32.mxu0 0.0
      %2380 = vmatmul.mubr.f32.gmra.mrb[0].mxu0 %v1372
      %v2381 = vpop.f32.mrb[0].mxu0
      %v2382 = vadd.f32 0.0, %v2381
      %v2383 = vpop.f32.mrb[0].mxu0
      %2384 = vmatprep.mubr.f32.mxu0 0.0
      %2385 = vmatmul.mubr.f32.gmra.mrb[0].mxu0 %v1374
      %v2386 = vpop.f32.mrb[0].mxu0
      %v2387 = vadd.f32 0.0, %v2386
      %v2388 = vpop.f32.mrb[0].mxu0
      %2389 = vmatprep.mubr.f32.mxu0 0.0
      %2390 = vmatmul.mubr.f32.gmra.mrb[0].mxu0 %v1376
      %v2391 = vpop.f32.mrb[0].mxu0
      %v2392 = vadd.f32 0.0, %v2391
      %v2393 = vpop.f32.mrb[0].mxu0
      %2394 = vmatprep.mubr.f32.mxu0 0.0
      %2395 = vmatmul.mubr.f32.gmra.mrb[0].mxu0 %v2176
      %v2396 = vpop.f32.mrb[0].mxu0
      %v2397 = vadd.f32 0.0, %v2396
      %v2398 = vpop.f32.mrb[0].mxu0
      %2399 = vmatprep.mubr.f32.mxu0 0.0
      %2400 = vmatmul.mubr.f32.gmra.mrb[0].mxu0 %v2178
      %v2401 = vpop.f32.mrb[0].mxu0
      %v2402 = vadd.f32 0.0, %v2401
      %v2403 = vpop.f32.mrb[0].mxu0
      %2404 = vdwg.mxu0
      %v2405 = vadd.f32 %v2137, %v2247
      %v2406 = vadd.f32 %v2138, %v2252
      %v2407 = vadd.f32 %v2139, %v2257
      %v2408 = vadd.f32 %v2140, %v2262
      %v2409 = vadd.f32 %v2141, %v2267
      %v2410 = vadd.f32 %v2142, %v2272
      %v2411 = vadd.f32 %v2143, %v2277
      %v2412 = vadd.f32 %v2144, %v2282
      %v2413 = vadd.f32 %v2145, %v2287
      %v2414 = vadd.f32 %v2146, %v2292
      %v2415 = vadd.f32 %v2147, %v2297
      %v2416 = vadd.f32 %v2148, %v2302
      %v2417 = vadd.f32 %v2149, %v2307
      %v2418 = vadd.f32 %v2150, %v2312
      %v2419 = vadd.f32 %v2151, %v2317
      %v2420 = vadd.f32 %v2152, %v2322
      %v2421 = vadd.f32 %v2153, %v2327
      %v2422 = vadd.f32 %v2154, %v2332
      %v2423 = vadd.f32 %v2155, %v2337
      %v2424 = vadd.f32 %v2156, %v2342
      %v2425 = vadd.f32 %v2157, %v2347
      %v2426 = vadd.f32 %v2158, %v2352
      %v2427 = vadd.f32 %v2159, %v2357
      %v2428 = vadd.f32 %v2160, %v2362
      %v2429 = vadd.f32 %v2161, %v2367
      %v2430 = vadd.f32 %v2162, %v2372
      %v2431 = vadd.f32 %v2163, %v2377
      %v2432 = vadd.f32 %v2164, %v2382
      %v2433 = vadd.f32 %v2165, %v2387
      %v2434 = vadd.f32 %v2166, %v2392
      %v2435 = vadd.f32 %v2167, %v2397
      %v2436 = vadd.f32 %v2168, %v2402
      %s2437 = scalar_lea.vmem %s1, 48
      %v2438 = vld [vmem:[%s2437] sm:$0xff]
      %v2440 = vsel %vm378, %v518, 0
      %v2443 = vsel %vm378, %v519, 0
      %2445 = vmatprep.subr.mxu0 0.0
      %2446 = vmatpush1.msra.mxu0 %v2438
      %2447 = vmatprep.subr.mxu0 0.0
      %2448 = vmatpush1.msra.mxu0 0.0
      %2449 = vmatprep.subr.mxu0 0.0
      %2450 = vmatpush1.msra.mxu0 0.0
      %2451 = vmatprep.subr.mxu0 0.0
      %2452 = vmatpush1.msra.mxu0 0.0
      %2453 = vmatprep.subr.mxu0 0.0
      %2454 = vmatpush1.msra.mxu0 0.0
      %2455 = vmatprep.subr.mxu0 0.0
      %2456 = vmatpush1.msra.mxu0 0.0
      %2457 = vmatprep.subr.mxu0 0.0
      %2458 = vmatpush1.msra.mxu0 0.0
      %2459 = vmatprep.subr.mxu0 0.0
      %2460 = vmatpush1.msra.mxu0 0.0
      %2461 = vmatprep.subr.mxu0 0.0
      %2462 = vmatpush1.msra.mxu0 0.0
      %2463 = vmatprep.subr.mxu0 0.0
      %2464 = vmatpush1.msra.mxu0 0.0
      %2465 = vmatprep.subr.mxu0 0.0
      %2466 = vmatpush1.msra.mxu0 0.0
      %2467 = vmatprep.subr.mxu0 0.0
      %2468 = vmatpush1.msra.mxu0 0.0
      %2469 = vmatprep.subr.mxu0 0.0
      %2470 = vmatpush1.msra.mxu0 0.0
      %2471 = vmatprep.subr.mxu0 0.0
      %2472 = vmatpush1.msra.mxu0 0.0
      %2473 = vmatprep.subr.mxu0 0.0
      %2474 = vmatpush1.msra.mxu0 0.0
      %2475 = vmatprep.subr.mxu0 0.0
      %2476 = vmatpush1.msra.mxu0 0.0
      %2477 = vmatprep.subr.mxu0 0.0
      %2478 = vmatpush1.msra.mxu0 0.0
      %2479 = vmatprep.subr.mxu0 0.0
      %2480 = vmatpush1.msra.mxu0 0.0
      %2481 = vmatprep.subr.mxu0 0.0
      %2482 = vmatpush1.msra.mxu0 0.0
      %2483 = vmatprep.subr.mxu0 0.0
      %2484 = vmatpush1.msra.mxu0 0.0
      %2485 = vmatprep.subr.mxu0 0.0
      %2486 = vmatpush1.msra.mxu0 0.0
      %2487 = vmatprep.subr.mxu0 0.0
      %2488 = vmatpush1.msra.mxu0 0.0
      %2489 = vmatprep.subr.mxu0 0.0
      %2490 = vmatpush1.msra.mxu0 0.0
      %2491 = vmatprep.subr.mxu0 0.0
      %2492 = vmatpush1.msra.mxu0 0.0
      %2493 = vmatprep.subr.mxu0 0.0
      %2494 = vmatpush1.msra.mxu0 0.0
      %2495 = vmatprep.subr.mxu0 0.0
      %2496 = vmatpush1.msra.mxu0 0.0
      %2497 = vmatprep.subr.mxu0 0.0
      %2498 = vmatpush1.msra.mxu0 0.0
      %2499 = vmatprep.subr.mxu0 0.0
      %2500 = vmatpush1.msra.mxu0 0.0
      %2501 = vmatprep.subr.mxu0 0.0
      %2502 = vmatpush1.msra.mxu0 0.0
      %2503 = vmatprep.subr.mxu0 0.0
      %2504 = vmatpush1.msra.mxu0 0.0
      %2505 = vmatprep.subr.mxu0 0.0
      %2506 = vmatpush1.msra.mxu0 0.0
      %2507 = vmatprep.subr.mxu0 0.0
      %2508 = vmatpush1.msra.mxu0 0.0
      %2509 = vmatprep.mubr.f32.mxu0 0.0
      %2510 = vmatmul.mubr.f32.gmra.mrb[0].mxu0 %v950
      %v2511 = vpop.f32.mrb[0].mxu0
      %v2512 = vadd.f32 0.0, %v2511
      %v2513 = vpop.f32.mrb[0].mxu0
      %2514 = vmatprep.mubr.f32.mxu0 0.0
      %2515 = vmatmul.mubr.f32.gmra.mrb[0].mxu0 %v952
      %v2516 = vpop.f32.mrb[0].mxu0
      %v2517 = vadd.f32 0.0, %v2516
      %v2518 = vpop.f32.mrb[0].mxu0
      %2519 = vmatprep.mubr.f32.mxu0 0.0
      %2520 = vmatmul.mubr.f32.gmra.mrb[0].mxu0 %v954
      %v2521 = vpop.f32.mrb[0].mxu0
      %v2522 = vadd.f32 0.0, %v2521
      %v2523 = vpop.f32.mrb[0].mxu0
      %2524 = vmatprep.mubr.f32.mxu0 0.0
      %2525 = vmatmul.mubr.f32.gmra.mrb[0].mxu0 %v956
      %v2526 = vpop.f32.mrb[0].mxu0
      %v2527 = vadd.f32 0.0, %v2526
      %v2528 = vpop.f32.mrb[0].mxu0
      %2529 = vmatprep.mubr.f32.mxu0 0.0
      %2530 = vmatmul.mubr.f32.gmra.mrb[0].mxu0 %v958
      %v2531 = vpop.f32.mrb[0].mxu0
      %v2532 = vadd.f32 0.0, %v2531
      %v2533 = vpop.f32.mrb[0].mxu0
      %2534 = vmatprep.mubr.f32.mxu0 0.0
      %2535 = vmatmul.mubr.f32.gmra.mrb[0].mxu0 %v960
      %v2536 = vpop.f32.mrb[0].mxu0
      %v2537 = vadd.f32 0.0, %v2536
      %v2538 = vpop.f32.mrb[0].mxu0
      %2539 = vmatprep.mubr.f32.mxu0 0.0
      %2540 = vmatmul.mubr.f32.gmra.mrb[0].mxu0 %v962
      %v2541 = vpop.f32.mrb[0].mxu0
      %v2542 = vadd.f32 0.0, %v2541
      %v2543 = vpop.f32.mrb[0].mxu0
      %2544 = vmatprep.mubr.f32.mxu0 0.0
      %2545 = vmatmul.mubr.f32.gmra.mrb[0].mxu0 %v964
      %v2546 = vpop.f32.mrb[0].mxu0
      %v2547 = vadd.f32 0.0, %v2546
      %v2548 = vpop.f32.mrb[0].mxu0
      %2549 = vmatprep.mubr.f32.mxu0 0.0
      %2550 = vmatmul.mubr.f32.gmra.mrb[0].mxu0 %v966
      %v2551 = vpop.f32.mrb[0].mxu0
      %v2552 = vadd.f32 0.0, %v2551
      %v2553 = vpop.f32.mrb[0].mxu0
      %2554 = vmatprep.mubr.f32.mxu0 0.0
      %2555 = vmatmul.mubr.f32.gmra.mrb[0].mxu0 %v968
      %v2556 = vpop.f32.mrb[0].mxu0
      %v2557 = vadd.f32 0.0, %v2556
      %v2558 = vpop.f32.mrb[0].mxu0
      %2559 = vmatprep.mubr.f32.mxu0 0.0
      %2560 = vmatmul.mubr.f32.gmra.mrb[0].mxu0 %v970
      %v2561 = vpop.f32.mrb[0].mxu0
      %v2562 = vadd.f32 0.0, %v2561
      %v2563 = vpop.f32.mrb[0].mxu0
      %2564 = vmatprep.mubr.f32.mxu0 0.0
      %2565 = vmatmul.mubr.f32.gmra.mrb[0].mxu0 %v972
      %v2566 = vpop.f32.mrb[0].mxu0
      %v2567 = vadd.f32 0.0, %v2566
      %v2568 = vpop.f32.mrb[0].mxu0
      %2569 = vmatprep.mubr.f32.mxu0 0.0
      %2570 = vmatmul.mubr.f32.gmra.mrb[0].mxu0 %v974
      %v2571 = vpop.f32.mrb[0].mxu0
      %v2572 = vadd.f32 0.0, %v2571
      %v2573 = vpop.f32.mrb[0].mxu0
      %2574 = vmatprep.mubr.f32.mxu0 0.0
      %2575 = vmatmul.mubr.f32.gmra.mrb[0].mxu0 %v976
      %v2576 = vpop.f32.mrb[0].mxu0
      %v2577 = vadd.f32 0.0, %v2576
      %v2578 = vpop.f32.mrb[0].mxu0
      %2579 = vmatprep.mubr.f32.mxu0 0.0
      %2580 = vmatmul.mubr.f32.gmra.mrb[0].mxu0 %v978
      %v2581 = vpop.f32.mrb[0].mxu0
      %v2582 = vadd.f32 0.0, %v2581
      %v2583 = vpop.f32.mrb[0].mxu0
      %2584 = vmatprep.mubr.f32.mxu0 0.0
      %2585 = vmatmul.mubr.f32.gmra.mrb[0].mxu0 %v980
      %v2586 = vpop.f32.mrb[0].mxu0
      %v2587 = vadd.f32 0.0, %v2586
      %v2588 = vpop.f32.mrb[0].mxu0
      %2589 = vmatprep.mubr.f32.mxu0 0.0
      %2590 = vmatmul.mubr.f32.gmra.mrb[0].mxu0 %v982
      %v2591 = vpop.f32.mrb[0].mxu0
      %v2592 = vadd.f32 0.0, %v2591
      %v2593 = vpop.f32.mrb[0].mxu0
      %2594 = vmatprep.mubr.f32.mxu0 0.0
      %2595 = vmatmul.mubr.f32.gmra.mrb[0].mxu0 %v984
      %v2596 = vpop.f32.mrb[0].mxu0
      %v2597 = vadd.f32 0.0, %v2596
      %v2598 = vpop.f32.mrb[0].mxu0
      %2599 = vmatprep.mubr.f32.mxu0 0.0
      %2600 = vmatmul.mubr.f32.gmra.mrb[0].mxu0 %v986
      %v2601 = vpop.f32.mrb[0].mxu0
      %v2602 = vadd.f32 0.0, %v2601
      %v2603 = vpop.f32.mrb[0].mxu0
      %2604 = vmatprep.mubr.f32.mxu0 0.0
      %2605 = vmatmul.mubr.f32.gmra.mrb[0].mxu0 %v988
      %v2606 = vpop.f32.mrb[0].mxu0
      %v2607 = vadd.f32 0.0, %v2606
      %v2608 = vpop.f32.mrb[0].mxu0
      %2609 = vmatprep.mubr.f32.mxu0 0.0
      %2610 = vmatmul.mubr.f32.gmra.mrb[0].mxu0 %v990
      %v2611 = vpop.f32.mrb[0].mxu0
      %v2612 = vadd.f32 0.0, %v2611
      %v2613 = vpop.f32.mrb[0].mxu0
      %2614 = vmatprep.mubr.f32.mxu0 0.0
      %2615 = vmatmul.mubr.f32.gmra.mrb[0].mxu0 %v992
      %v2616 = vpop.f32.mrb[0].mxu0
      %v2617 = vadd.f32 0.0, %v2616
      %v2618 = vpop.f32.mrb[0].mxu0
      %2619 = vmatprep.mubr.f32.mxu0 0.0
      %2620 = vmatmul.mubr.f32.gmra.mrb[0].mxu0 %v994
      %v2621 = vpop.f32.mrb[0].mxu0
      %v2622 = vadd.f32 0.0, %v2621
      %v2623 = vpop.f32.mrb[0].mxu0
      %2624 = vmatprep.mubr.f32.mxu0 0.0
      %2625 = vmatmul.mubr.f32.gmra.mrb[0].mxu0 %v996
      %v2626 = vpop.f32.mrb[0].mxu0
      %v2627 = vadd.f32 0.0, %v2626
      %v2628 = vpop.f32.mrb[0].mxu0
      %2629 = vmatprep.mubr.f32.mxu0 0.0
      %2630 = vmatmul.mubr.f32.gmra.mrb[0].mxu0 %v998
      %v2631 = vpop.f32.mrb[0].mxu0
      %v2632 = vadd.f32 0.0, %v2631
      %v2633 = vpop.f32.mrb[0].mxu0
      %2634 = vmatprep.mubr.f32.mxu0 0.0
      %2635 = vmatmul.mubr.f32.gmra.mrb[0].mxu0 %v1000
      %v2636 = vpop.f32.mrb[0].mxu0
      %v2637 = vadd.f32 0.0, %v2636
      %v2638 = vpop.f32.mrb[0].mxu0
      %2639 = vmatprep.mubr.f32.mxu0 0.0
      %2640 = vmatmul.mubr.f32.gmra.mrb[0].mxu0 %v1002
      %v2641 = vpop.f32.mrb[0].mxu0
      %v2642 = vadd.f32 0.0, %v2641
      %v2643 = vpop.f32.mrb[0].mxu0
      %2644 = vmatprep.mubr.f32.mxu0 0.0
      %2645 = vmatmul.mubr.f32.gmra.mrb[0].mxu0 %v1004
      %v2646 = vpop.f32.mrb[0].mxu0
      %v2647 = vadd.f32 0.0, %v2646
      %v2648 = vpop.f32.mrb[0].mxu0
      %2649 = vmatprep.mubr.f32.mxu0 0.0
      %2650 = vmatmul.mubr.f32.gmra.mrb[0].mxu0 %v1638
      %v2651 = vpop.f32.mrb[0].mxu0
      %v2652 = vadd.f32 0.0, %v2651
      %v2653 = vpop.f32.mrb[0].mxu0
      %2654 = vmatprep.mubr.f32.mxu0 0.0
      %2655 = vmatmul.mubr.f32.gmra.mrb[0].mxu0 %v1641
      %v2656 = vpop.f32.mrb[0].mxu0
      %v2657 = vadd.f32 0.0, %v2656
      %v2658 = vpop.f32.mrb[0].mxu0
      %2659 = vmatprep.mubr.f32.mxu0 0.0
      %2660 = vmatmul.mubr.f32.gmra.mrb[0].mxu0 %v2440
      %v2661 = vpop.f32.mrb[0].mxu0
      %v2662 = vadd.f32 0.0, %v2661
      %v2663 = vpop.f32.mrb[0].mxu0
      %2664 = vmatprep.mubr.f32.mxu0 0.0
      %2665 = vmatmul.mubr.f32.gmra.mrb[0].mxu0 %v2443
      %v2666 = vpop.f32.mrb[0].mxu0
      %v2667 = vadd.f32 0.0, %v2666
      %v2668 = vpop.f32.mrb[0].mxu0
      %2669 = vdwg.mxu0
      %v2670 = vadd.f32 %v2405, %v2512
      %v2671 = vadd.f32 %v2406, %v2517
      %v2672 = vadd.f32 %v2407, %v2522
      %v2673 = vadd.f32 %v2408, %v2527
      %v2674 = vadd.f32 %v2409, %v2532
      %v2675 = vadd.f32 %v2410, %v2537
      %v2676 = vadd.f32 %v2411, %v2542
      %v2677 = vadd.f32 %v2412, %v2547
      %v2678 = vadd.f32 %v2413, %v2552
      %v2679 = vadd.f32 %v2414, %v2557
      %v2680 = vadd.f32 %v2415, %v2562
      %v2681 = vadd.f32 %v2416, %v2567
      %v2682 = vadd.f32 %v2417, %v2572
      %v2683 = vadd.f32 %v2418, %v2577
      %v2684 = vadd.f32 %v2419, %v2582
      %v2685 = vadd.f32 %v2420, %v2587
      %v2686 = vadd.f32 %v2421, %v2592
      %v2687 = vadd.f32 %v2422, %v2597
      %v2688 = vadd.f32 %v2423, %v2602
      %v2689 = vadd.f32 %v2424, %v2607
      %v2690 = vadd.f32 %v2425, %v2612
      %v2691 = vadd.f32 %v2426, %v2617
      %v2692 = vadd.f32 %v2427, %v2622
      %v2693 = vadd.f32 %v2428, %v2627
      %v2694 = vadd.f32 %v2429, %v2632
      %v2695 = vadd.f32 %v2430, %v2637
      %v2696 = vadd.f32 %v2431, %v2642
      %v2697 = vadd.f32 %v2432, %v2647
      %v2698 = vadd.f32 %v2433, %v2652
      %v2699 = vadd.f32 %v2434, %v2657
      %v2700 = vadd.f32 %v2435, %v2662
      %v2701 = vadd.f32 %v2436, %v2667
      %v2703 = vrot.slane %v518, 1
      %v2704 = vrot.slane %v519, 1
      %v2705 = vsel %vm570, %v2703, %v2704
      %v2706 = vrot.slane %v520, 1
      %v2707 = vsel %vm570, %v2704, %v2706
      %s2708 = scalar_lea.vmem %s1, 56
      %v2709 = vld [vmem:[%s2708] sm:$0xff]
      %v2710 = vsel %vm378, %v2705, 0
      %v2712 = vsel %vm378, %v2707, 0
      %2714 = vmatprep.subr.mxu0 0.0
      %2715 = vmatpush1.msra.mxu0 %v2709
      %2716 = vmatprep.subr.mxu0 0.0
      %2717 = vmatpush1.msra.mxu0 0.0
      %2718 = vmatprep.subr.mxu0 0.0
      %2719 = vmatpush1.msra.mxu0 0.0
      %2720 = vmatprep.subr.mxu0 0.0
      %2721 = vmatpush1.msra.mxu0 0.0
      %2722 = vmatprep.subr.mxu0 0.0
      %2723 = vmatpush1.msra.mxu0 0.0
      %2724 = vmatprep.subr.mxu0 0.0
      %2725 = vmatpush1.msra.mxu0 0.0
      %2726 = vmatprep.subr.mxu0 0.0
      %2727 = vmatpush1.msra.mxu0 0.0
      %2728 = vmatprep.subr.mxu0 0.0
      %2729 = vmatpush1.msra.mxu0 0.0
      %2730 = vmatprep.subr.mxu0 0.0
      %2731 = vmatpush1.msra.mxu0 0.0
      %2732 = vmatprep.subr.mxu0 0.0
      %2733 = vmatpush1.msra.mxu0 0.0
      %2734 = vmatprep.subr.mxu0 0.0
      %2735 = vmatpush1.msra.mxu0 0.0
      %2736 = vmatprep.subr.mxu0 0.0
      %2737 = vmatpush1.msra.mxu0 0.0
      %2738 = vmatprep.subr.mxu0 0.0
      %2739 = vmatpush1.msra.mxu0 0.0
      %2740 = vmatprep.subr.mxu0 0.0
      %2741 = vmatpush1.msra.mxu0 0.0
      %2742 = vmatprep.subr.mxu0 0.0
      %2743 = vmatpush1.msra.mxu0 0.0
      %2744 = vmatprep.subr.mxu0 0.0
      %2745 = vmatpush1.msra.mxu0 0.0
      %2746 = vmatprep.subr.mxu0 0.0
      %2747 = vmatpush1.msra.mxu0 0.0
      %2748 = vmatprep.subr.mxu0 0.0
      %2749 = vmatpush1.msra.mxu0 0.0
      %2750 = vmatprep.subr.mxu0 0.0
      %2751 = vmatpush1.msra.mxu0 0.0
      %2752 = vmatprep.subr.mxu0 0.0
      %2753 = vmatpush1.msra.mxu0 0.0
      %2754 = vmatprep.subr.mxu0 0.0
      %2755 = vmatpush1.msra.mxu0 0.0
      %2756 = vmatprep.subr.mxu0 0.0
      %2757 = vmatpush1.msra.mxu0 0.0
      %2758 = vmatprep.subr.mxu0 0.0
      %2759 = vmatpush1.msra.mxu0 0.0
      %2760 = vmatprep.subr.mxu0 0.0
      %2761 = vmatpush1.msra.mxu0 0.0
      %2762 = vmatprep.subr.mxu0 0.0
      %2763 = vmatpush1.msra.mxu0 0.0
      %2764 = vmatprep.subr.mxu0 0.0
      %2765 = vmatpush1.msra.mxu0 0.0
      %2766 = vmatprep.subr.mxu0 0.0
      %2767 = vmatpush1.msra.mxu0 0.0
      %2768 = vmatprep.subr.mxu0 0.0
      %2769 = vmatpush1.msra.mxu0 0.0
      %2770 = vmatprep.subr.mxu0 0.0
      %2771 = vmatpush1.msra.mxu0 0.0
      %2772 = vmatprep.subr.mxu0 0.0
      %2773 = vmatpush1.msra.mxu0 0.0
      %2774 = vmatprep.subr.mxu0 0.0
      %2775 = vmatpush1.msra.mxu0 0.0
      %2776 = vmatprep.subr.mxu0 0.0
      %2777 = vmatpush1.msra.mxu0 0.0
      %2778 = vmatprep.mubr.f32.mxu0 0.0
      %2779 = vmatmul.mubr.f32.gmra.mrb[0].mxu0 %v661
      %v2780 = vpop.f32.mrb[0].mxu0
      %v2781 = vadd.f32 0.0, %v2780
      %v2782 = vpop.f32.mrb[0].mxu0
      %2783 = vmatprep.mubr.f32.mxu0 0.0
      %2784 = vmatmul.mubr.f32.gmra.mrb[0].mxu0 %v663
      %v2785 = vpop.f32.mrb[0].mxu0
      %v2786 = vadd.f32 0.0, %v2785
      %v2787 = vpop.f32.mrb[0].mxu0
      %2788 = vmatprep.mubr.f32.mxu0 0.0
      %2789 = vmatmul.mubr.f32.gmra.mrb[0].mxu0 %v665
      %v2790 = vpop.f32.mrb[0].mxu0
      %v2791 = vadd.f32 0.0, %v2790
      %v2792 = vpop.f32.mrb[0].mxu0
      %2793 = vmatprep.mubr.f32.mxu0 0.0
      %2794 = vmatmul.mubr.f32.gmra.mrb[0].mxu0 %v667
      %v2795 = vpop.f32.mrb[0].mxu0
      %v2796 = vadd.f32 0.0, %v2795
      %v2797 = vpop.f32.mrb[0].mxu0
      %2798 = vmatprep.mubr.f32.mxu0 0.0
      %2799 = vmatmul.mubr.f32.gmra.mrb[0].mxu0 %v669
      %v2800 = vpop.f32.mrb[0].mxu0
      %v2801 = vadd.f32 0.0, %v2800
      %v2802 = vpop.f32.mrb[0].mxu0
      %2803 = vmatprep.mubr.f32.mxu0 0.0
      %2804 = vmatmul.mubr.f32.gmra.mrb[0].mxu0 %v671
      %v2805 = vpop.f32.mrb[0].mxu0
      %v2806 = vadd.f32 0.0, %v2805
      %v2807 = vpop.f32.mrb[0].mxu0
      %2808 = vmatprep.mubr.f32.mxu0 0.0
      %2809 = vmatmul.mubr.f32.gmra.mrb[0].mxu0 %v673
      %v2810 = vpop.f32.mrb[0].mxu0
      %v2811 = vadd.f32 0.0, %v2810
      %v2812 = vpop.f32.mrb[0].mxu0
      %2813 = vmatprep.mubr.f32.mxu0 0.0
      %2814 = vmatmul.mubr.f32.gmra.mrb[0].mxu0 %v675
      %v2815 = vpop.f32.mrb[0].mxu0
      %v2816 = vadd.f32 0.0, %v2815
      %v2817 = vpop.f32.mrb[0].mxu0
      %2818 = vmatprep.mubr.f32.mxu0 0.0
      %2819 = vmatmul.mubr.f32.gmra.mrb[0].mxu0 %v677
      %v2820 = vpop.f32.mrb[0].mxu0
      %v2821 = vadd.f32 0.0, %v2820
      %v2822 = vpop.f32.mrb[0].mxu0
      %2823 = vmatprep.mubr.f32.mxu0 0.0
      %2824 = vmatmul.mubr.f32.gmra.mrb[0].mxu0 %v679
      %v2825 = vpop.f32.mrb[0].mxu0
      %v2826 = vadd.f32 0.0, %v2825
      %v2827 = vpop.f32.mrb[0].mxu0
      %2828 = vmatprep.mubr.f32.mxu0 0.0
      %2829 = vmatmul.mubr.f32.gmra.mrb[0].mxu0 %v681
      %v2830 = vpop.f32.mrb[0].mxu0
      %v2831 = vadd.f32 0.0, %v2830
      %v2832 = vpop.f32.mrb[0].mxu0
      %2833 = vmatprep.mubr.f32.mxu0 0.0
      %2834 = vmatmul.mubr.f32.gmra.mrb[0].mxu0 %v683
      %v2835 = vpop.f32.mrb[0].mxu0
      %v2836 = vadd.f32 0.0, %v2835
      %v2837 = vpop.f32.mrb[0].mxu0
      %2838 = vmatprep.mubr.f32.mxu0 0.0
      %2839 = vmatmul.mubr.f32.gmra.mrb[0].mxu0 %v685
      %v2840 = vpop.f32.mrb[0].mxu0
      %v2841 = vadd.f32 0.0, %v2840
      %v2842 = vpop.f32.mrb[0].mxu0
      %2843 = vmatprep.mubr.f32.mxu0 0.0
      %2844 = vmatmul.mubr.f32.gmra.mrb[0].mxu0 %v687
      %v2845 = vpop.f32.mrb[0].mxu0
      %v2846 = vadd.f32 0.0, %v2845
      %v2847 = vpop.f32.mrb[0].mxu0
      %2848 = vmatprep.mubr.f32.mxu0 0.0
      %2849 = vmatmul.mubr.f32.gmra.mrb[0].mxu0 %v689
      %v2850 = vpop.f32.mrb[0].mxu0
      %v2851 = vadd.f32 0.0, %v2850
      %v2852 = vpop.f32.mrb[0].mxu0
      %2853 = vmatprep.mubr.f32.mxu0 0.0
      %2854 = vmatmul.mubr.f32.gmra.mrb[0].mxu0 %v691
      %v2855 = vpop.f32.mrb[0].mxu0
      %v2856 = vadd.f32 0.0, %v2855
      %v2857 = vpop.f32.mrb[0].mxu0
      %2858 = vmatprep.mubr.f32.mxu0 0.0
      %2859 = vmatmul.mubr.f32.gmra.mrb[0].mxu0 %v693
      %v2860 = vpop.f32.mrb[0].mxu0
      %v2861 = vadd.f32 0.0, %v2860
      %v2862 = vpop.f32.mrb[0].mxu0
      %2863 = vmatprep.mubr.f32.mxu0 0.0
      %2864 = vmatmul.mubr.f32.gmra.mrb[0].mxu0 %v695
      %v2865 = vpop.f32.mrb[0].mxu0
      %v2866 = vadd.f32 0.0, %v2865
      %v2867 = vpop.f32.mrb[0].mxu0
      %2868 = vmatprep.mubr.f32.mxu0 0.0
      %2869 = vmatmul.mubr.f32.gmra.mrb[0].mxu0 %v697
      %v2870 = vpop.f32.mrb[0].mxu0
      %v2871 = vadd.f32 0.0, %v2870
      %v2872 = vpop.f32.mrb[0].mxu0
      %2873 = vmatprep.mubr.f32.mxu0 0.0
      %2874 = vmatmul.mubr.f32.gmra.mrb[0].mxu0 %v699
      %v2875 = vpop.f32.mrb[0].mxu0
      %v2876 = vadd.f32 0.0, %v2875
      %v2877 = vpop.f32.mrb[0].mxu0
      %2878 = vmatprep.mubr.f32.mxu0 0.0
      %2879 = vmatmul.mubr.f32.gmra.mrb[0].mxu0 %v701
      %v2880 = vpop.f32.mrb[0].mxu0
      %v2881 = vadd.f32 0.0, %v2880
      %v2882 = vpop.f32.mrb[0].mxu0
      %2883 = vmatprep.mubr.f32.mxu0 0.0
      %2884 = vmatmul.mubr.f32.gmra.mrb[0].mxu0 %v703
      %v2885 = vpop.f32.mrb[0].mxu0
      %v2886 = vadd.f32 0.0, %v2885
      %v2887 = vpop.f32.mrb[0].mxu0
      %2888 = vmatprep.mubr.f32.mxu0 0.0
      %2889 = vmatmul.mubr.f32.gmra.mrb[0].mxu0 %v705
      %v2890 = vpop.f32.mrb[0].mxu0
      %v2891 = vadd.f32 0.0, %v2890
      %v2892 = vpop.f32.mrb[0].mxu0
      %2893 = vmatprep.mubr.f32.mxu0 0.0
      %2894 = vmatmul.mubr.f32.gmra.mrb[0].mxu0 %v707
      %v2895 = vpop.f32.mrb[0].mxu0
      %v2896 = vadd.f32 0.0, %v2895
      %v2897 = vpop.f32.mrb[0].mxu0
      %2898 = vmatprep.mubr.f32.mxu0 0.0
      %2899 = vmatmul.mubr.f32.gmra.mrb[0].mxu0 %v709
      %v2900 = vpop.f32.mrb[0].mxu0
      %v2901 = vadd.f32 0.0, %v2900
      %v2902 = vpop.f32.mrb[0].mxu0
      %2903 = vmatprep.mubr.f32.mxu0 0.0
      %2904 = vmatmul.mubr.f32.gmra.mrb[0].mxu0 %v711
      %v2905 = vpop.f32.mrb[0].mxu0
      %v2906 = vadd.f32 0.0, %v2905
      %v2907 = vpop.f32.mrb[0].mxu0
      %2908 = vmatprep.mubr.f32.mxu0 0.0
      %2909 = vmatmul.mubr.f32.gmra.mrb[0].mxu0 %v713
      %v2910 = vpop.f32.mrb[0].mxu0
      %v2911 = vadd.f32 0.0, %v2910
      %v2912 = vpop.f32.mrb[0].mxu0
      %2913 = vmatprep.mubr.f32.mxu0 0.0
      %2914 = vmatmul.mubr.f32.gmra.mrb[0].mxu0 %v715
      %v2915 = vpop.f32.mrb[0].mxu0
      %v2916 = vadd.f32 0.0, %v2915
      %v2917 = vpop.f32.mrb[0].mxu0
      %2918 = vmatprep.mubr.f32.mxu0 0.0
      %2919 = vmatmul.mubr.f32.gmra.mrb[0].mxu0 %v1908
      %v2920 = vpop.f32.mrb[0].mxu0
      %v2921 = vadd.f32 0.0, %v2920
      %v2922 = vpop.f32.mrb[0].mxu0
      %2923 = vmatprep.mubr.f32.mxu0 0.0
      %2924 = vmatmul.mubr.f32.gmra.mrb[0].mxu0 %v1910
      %v2925 = vpop.f32.mrb[0].mxu0
      %v2926 = vadd.f32 0.0, %v2925
      %v2927 = vpop.f32.mrb[0].mxu0
      %2928 = vmatprep.mubr.f32.mxu0 0.0
      %2929 = vmatmul.mubr.f32.gmra.mrb[0].mxu0 %v2710
      %v2930 = vpop.f32.mrb[0].mxu0
      %v2931 = vadd.f32 0.0, %v2930
      %v2932 = vpop.f32.mrb[0].mxu0
      %2933 = vmatprep.mubr.f32.mxu0 0.0
      %2934 = vmatmul.mubr.f32.gmra.mrb[0].mxu0 %v2712
      %v2935 = vpop.f32.mrb[0].mxu0
      %v2936 = vadd.f32 0.0, %v2935
      %v2937 = vpop.f32.mrb[0].mxu0
      %2938 = vdwg.mxu0
      %v2939 = vadd.f32 %v2670, %v2781
      %v2940 = vadd.f32 %v2671, %v2786
      %v2941 = vadd.f32 %v2672, %v2791
      %v2942 = vadd.f32 %v2673, %v2796
      %v2943 = vadd.f32 %v2674, %v2801
      %v2944 = vadd.f32 %v2675, %v2806
      %v2945 = vadd.f32 %v2676, %v2811
      %v2946 = vadd.f32 %v2677, %v2816
      %v2947 = vadd.f32 %v2678, %v2821
      %v2948 = vadd.f32 %v2679, %v2826
      %v2949 = vadd.f32 %v2680, %v2831
      %v2950 = vadd.f32 %v2681, %v2836
      %v2951 = vadd.f32 %v2682, %v2841
      %v2952 = vadd.f32 %v2683, %v2846
      %v2953 = vadd.f32 %v2684, %v2851
      %v2954 = vadd.f32 %v2685, %v2856
      %v2955 = vadd.f32 %v2686, %v2861
      %v2956 = vadd.f32 %v2687, %v2866
      %v2957 = vadd.f32 %v2688, %v2871
      %v2958 = vadd.f32 %v2689, %v2876
      %v2959 = vadd.f32 %v2690, %v2881
      %v2960 = vadd.f32 %v2691, %v2886
      %v2961 = vadd.f32 %v2692, %v2891
      %v2962 = vadd.f32 %v2693, %v2896
      %v2963 = vadd.f32 %v2694, %v2901
      %v2964 = vadd.f32 %v2695, %v2906
      %v2965 = vadd.f32 %v2696, %v2911
      %v2966 = vadd.f32 %v2697, %v2916
      %v2967 = vadd.f32 %v2698, %v2921
      %v2968 = vadd.f32 %v2699, %v2926
      %v2969 = vadd.f32 %v2700, %v2931
      %v2970 = vadd.f32 %v2701, %v2936
      %v2971 = vrot.slane %v518, 2
      %v2972 = vrot.slane %v519, 2
      %v2973 = vsel %vm1231, %v2971, %v2972
      %v2974 = vrot.slane %v520, 2
      %v2975 = vsel %vm1231, %v2972, %v2974
      %s2976 = scalar_lea.vmem %s1, 64
      %v2977 = vld [vmem:[%s2976] sm:$0xff]
      %v2978 = vsel %vm378, %v2973, 0
      %v2980 = vsel %vm378, %v2975, 0
      %2982 = vmatprep.subr.mxu0 0.0
      %2983 = vmatpush1.msra.mxu0 %v2977
      %2984 = vmatprep.subr.mxu0 0.0
      %2985 = vmatpush1.msra.mxu0 0.0
      %2986 = vmatprep.subr.mxu0 0.0
      %2987 = vmatpush1.msra.mxu0 0.0
      %2988 = vmatprep.subr.mxu0 0.0
      %2989 = vmatpush1.msra.mxu0 0.0
      %2990 = vmatprep.subr.mxu0 0.0
      %2991 = vmatpush1.msra.mxu0 0.0
      %2992 = vmatprep.subr.mxu0 0.0
      %2993 = vmatpush1.msra.mxu0 0.0
      %2994 = vmatprep.subr.mxu0 0.0
      %2995 = vmatpush1.msra.mxu0 0.0
      %2996 = vmatprep.subr.mxu0 0.0
      %2997 = vmatpush1.msra.mxu0 0.0
      %2998 = vmatprep.subr.mxu0 0.0
      %2999 = vmatpush1.msra.mxu0 0.0
      %3000 = vmatprep.subr.mxu0 0.0
      %3001 = vmatpush1.msra.mxu0 0.0
      %3002 = vmatprep.subr.mxu0 0.0
      %3003 = vmatpush1.msra.mxu0 0.0
      %3004 = vmatprep.subr.mxu0 0.0
      %3005 = vmatpush1.msra.mxu0 0.0
      %3006 = vmatprep.subr.mxu0 0.0
      %3007 = vmatpush1.msra.mxu0 0.0
      %3008 = vmatprep.subr.mxu0 0.0
      %3009 = vmatpush1.msra.mxu0 0.0
      %3010 = vmatprep.subr.mxu0 0.0
      %3011 = vmatpush1.msra.mxu0 0.0
      %3012 = vmatprep.subr.mxu0 0.0
      %3013 = vmatpush1.msra.mxu0 0.0
      %3014 = vmatprep.subr.mxu0 0.0
      %3015 = vmatpush1.msra.mxu0 0.0
      %3016 = vmatprep.subr.mxu0 0.0
      %3017 = vmatpush1.msra.mxu0 0.0
      %3018 = vmatprep.subr.mxu0 0.0
      %3019 = vmatpush1.msra.mxu0 0.0
      %3020 = vmatprep.subr.mxu0 0.0
      %3021 = vmatpush1.msra.mxu0 0.0
      %3022 = vmatprep.subr.mxu0 0.0
      %3023 = vmatpush1.msra.mxu0 0.0
      %3024 = vmatprep.subr.mxu0 0.0
      %3025 = vmatpush1.msra.mxu0 0.0
      %3026 = vmatprep.subr.mxu0 0.0
      %3027 = vmatpush1.msra.mxu0 0.0
      %3028 = vmatprep.subr.mxu0 0.0
      %3029 = vmatpush1.msra.mxu0 0.0
      %3030 = vmatprep.subr.mxu0 0.0
      %3031 = vmatpush1.msra.mxu0 0.0
      %3032 = vmatprep.subr.mxu0 0.0
      %3033 = vmatpush1.msra.mxu0 0.0
      %3034 = vmatprep.subr.mxu0 0.0
      %3035 = vmatpush1.msra.mxu0 0.0
      %3036 = vmatprep.subr.mxu0 0.0
      %3037 = vmatpush1.msra.mxu0 0.0
      %3038 = vmatprep.subr.mxu0 0.0
      %3039 = vmatpush1.msra.mxu0 0.0
      %3040 = vmatprep.subr.mxu0 0.0
      %3041 = vmatpush1.msra.mxu0 0.0
      %3042 = vmatprep.subr.mxu0 0.0
      %3043 = vmatpush1.msra.mxu0 0.0
      %3044 = vmatprep.subr.mxu0 0.0
      %3045 = vmatpush1.msra.mxu0 0.0
      %3046 = vmatprep.mubr.f32.mxu0 0.0
      %3047 = vmatmul.mubr.f32.gmra.mrb[0].mxu0 %v1322
      %v3048 = vpop.f32.mrb[0].mxu0
      %v3049 = vadd.f32 0.0, %v3048
      %v3050 = vpop.f32.mrb[0].mxu0
      %3051 = vmatprep.mubr.f32.mxu0 0.0
      %3052 = vmatmul.mubr.f32.gmra.mrb[0].mxu0 %v1324
      %v3053 = vpop.f32.mrb[0].mxu0
      %v3054 = vadd.f32 0.0, %v3053
      %v3055 = vpop.f32.mrb[0].mxu0
      %3056 = vmatprep.mubr.f32.mxu0 0.0
      %3057 = vmatmul.mubr.f32.gmra.mrb[0].mxu0 %v1326
      %v3058 = vpop.f32.mrb[0].mxu0
      %v3059 = vadd.f32 0.0, %v3058
      %v3060 = vpop.f32.mrb[0].mxu0
      %3061 = vmatprep.mubr.f32.mxu0 0.0
      %3062 = vmatmul.mubr.f32.gmra.mrb[0].mxu0 %v1328
      %v3063 = vpop.f32.mrb[0].mxu0
      %v3064 = vadd.f32 0.0, %v3063
      %v3065 = vpop.f32.mrb[0].mxu0
      %3066 = vmatprep.mubr.f32.mxu0 0.0
      %3067 = vmatmul.mubr.f32.gmra.mrb[0].mxu0 %v1330
      %v3068 = vpop.f32.mrb[0].mxu0
      %v3069 = vadd.f32 0.0, %v3068
      %v3070 = vpop.f32.mrb[0].mxu0
      %3071 = vmatprep.mubr.f32.mxu0 0.0
      %3072 = vmatmul.mubr.f32.gmra.mrb[0].mxu0 %v1332
      %v3073 = vpop.f32.mrb[0].mxu0
      %v3074 = vadd.f32 0.0, %v3073
      %v3075 = vpop.f32.mrb[0].mxu0
      %3076 = vmatprep.mubr.f32.mxu0 0.0
      %3077 = vmatmul.mubr.f32.gmra.mrb[0].mxu0 %v1334
      %v3078 = vpop.f32.mrb[0].mxu0
      %v3079 = vadd.f32 0.0, %v3078
      %v3080 = vpop.f32.mrb[0].mxu0
      %3081 = vmatprep.mubr.f32.mxu0 0.0
      %3082 = vmatmul.mubr.f32.gmra.mrb[0].mxu0 %v1336
      %v3083 = vpop.f32.mrb[0].mxu0
      %v3084 = vadd.f32 0.0, %v3083
      %v3085 = vpop.f32.mrb[0].mxu0
      %3086 = vmatprep.mubr.f32.mxu0 0.0
      %3087 = vmatmul.mubr.f32.gmra.mrb[0].mxu0 %v1338
      %v3088 = vpop.f32.mrb[0].mxu0
      %v3089 = vadd.f32 0.0, %v3088
      %v3090 = vpop.f32.mrb[0].mxu0
      %3091 = vmatprep.mubr.f32.mxu0 0.0
      %3092 = vmatmul.mubr.f32.gmra.mrb[0].mxu0 %v1340
      %v3093 = vpop.f32.mrb[0].mxu0
      %v3094 = vadd.f32 0.0, %v3093
      %v3095 = vpop.f32.mrb[0].mxu0
      %3096 = vmatprep.mubr.f32.mxu0 0.0
      %3097 = vmatmul.mubr.f32.gmra.mrb[0].mxu0 %v1342
      %v3098 = vpop.f32.mrb[0].mxu0
      %v3099 = vadd.f32 0.0, %v3098
      %v3100 = vpop.f32.mrb[0].mxu0
      %3101 = vmatprep.mubr.f32.mxu0 0.0
      %3102 = vmatmul.mubr.f32.gmra.mrb[0].mxu0 %v1344
      %v3103 = vpop.f32.mrb[0].mxu0
      %v3104 = vadd.f32 0.0, %v3103
      %v3105 = vpop.f32.mrb[0].mxu0
      %3106 = vmatprep.mubr.f32.mxu0 0.0
      %3107 = vmatmul.mubr.f32.gmra.mrb[0].mxu0 %v1346
      %v3108 = vpop.f32.mrb[0].mxu0
      %v3109 = vadd.f32 0.0, %v3108
      %v3110 = vpop.f32.mrb[0].mxu0
      %3111 = vmatprep.mubr.f32.mxu0 0.0
      %3112 = vmatmul.mubr.f32.gmra.mrb[0].mxu0 %v1348
      %v3113 = vpop.f32.mrb[0].mxu0
      %v3114 = vadd.f32 0.0, %v3113
      %v3115 = vpop.f32.mrb[0].mxu0
      %3116 = vmatprep.mubr.f32.mxu0 0.0
      %3117 = vmatmul.mubr.f32.gmra.mrb[0].mxu0 %v1350
      %v3118 = vpop.f32.mrb[0].mxu0
      %v3119 = vadd.f32 0.0, %v3118
      %v3120 = vpop.f32.mrb[0].mxu0
      %3121 = vmatprep.mubr.f32.mxu0 0.0
      %3122 = vmatmul.mubr.f32.gmra.mrb[0].mxu0 %v1352
      %v3123 = vpop.f32.mrb[0].mxu0
      %v3124 = vadd.f32 0.0, %v3123
      %v3125 = vpop.f32.mrb[0].mxu0
      %3126 = vmatprep.mubr.f32.mxu0 0.0
      %3127 = vmatmul.mubr.f32.gmra.mrb[0].mxu0 %v1354
      %v3128 = vpop.f32.mrb[0].mxu0
      %v3129 = vadd.f32 0.0, %v3128
      %v3130 = vpop.f32.mrb[0].mxu0
      %3131 = vmatprep.mubr.f32.mxu0 0.0
      %3132 = vmatmul.mubr.f32.gmra.mrb[0].mxu0 %v1356
      %v3133 = vpop.f32.mrb[0].mxu0
      %v3134 = vadd.f32 0.0, %v3133
      %v3135 = vpop.f32.mrb[0].mxu0
      %3136 = vmatprep.mubr.f32.mxu0 0.0
      %3137 = vmatmul.mubr.f32.gmra.mrb[0].mxu0 %v1358
      %v3138 = vpop.f32.mrb[0].mxu0
      %v3139 = vadd.f32 0.0, %v3138
      %v3140 = vpop.f32.mrb[0].mxu0
      %3141 = vmatprep.mubr.f32.mxu0 0.0
      %3142 = vmatmul.mubr.f32.gmra.mrb[0].mxu0 %v1360
      %v3143 = vpop.f32.mrb[0].mxu0
      %v3144 = vadd.f32 0.0, %v3143
      %v3145 = vpop.f32.mrb[0].mxu0
      %3146 = vmatprep.mubr.f32.mxu0 0.0
      %3147 = vmatmul.mubr.f32.gmra.mrb[0].mxu0 %v1362
      %v3148 = vpop.f32.mrb[0].mxu0
      %v3149 = vadd.f32 0.0, %v3148
      %v3150 = vpop.f32.mrb[0].mxu0
      %3151 = vmatprep.mubr.f32.mxu0 0.0
      %3152 = vmatmul.mubr.f32.gmra.mrb[0].mxu0 %v1364
      %v3153 = vpop.f32.mrb[0].mxu0
      %v3154 = vadd.f32 0.0, %v3153
      %v3155 = vpop.f32.mrb[0].mxu0
      %3156 = vmatprep.mubr.f32.mxu0 0.0
      %3157 = vmatmul.mubr.f32.gmra.mrb[0].mxu0 %v1366
      %v3158 = vpop.f32.mrb[0].mxu0
      %v3159 = vadd.f32 0.0, %v3158
      %v3160 = vpop.f32.mrb[0].mxu0
      %3161 = vmatprep.mubr.f32.mxu0 0.0
      %3162 = vmatmul.mubr.f32.gmra.mrb[0].mxu0 %v1368
      %v3163 = vpop.f32.mrb[0].mxu0
      %v3164 = vadd.f32 0.0, %v3163
      %v3165 = vpop.f32.mrb[0].mxu0
      %3166 = vmatprep.mubr.f32.mxu0 0.0
      %3167 = vmatmul.mubr.f32.gmra.mrb[0].mxu0 %v1370
      %v3168 = vpop.f32.mrb[0].mxu0
      %v3169 = vadd.f32 0.0, %v3168
      %v3170 = vpop.f32.mrb[0].mxu0
      %3171 = vmatprep.mubr.f32.mxu0 0.0
      %3172 = vmatmul.mubr.f32.gmra.mrb[0].mxu0 %v1372
      %v3173 = vpop.f32.mrb[0].mxu0
      %v3174 = vadd.f32 0.0, %v3173
      %v3175 = vpop.f32.mrb[0].mxu0
      %3176 = vmatprep.mubr.f32.mxu0 0.0
      %3177 = vmatmul.mubr.f32.gmra.mrb[0].mxu0 %v1374
      %v3178 = vpop.f32.mrb[0].mxu0
      %v3179 = vadd.f32 0.0, %v3178
      %v3180 = vpop.f32.mrb[0].mxu0
      %3181 = vmatprep.mubr.f32.mxu0 0.0
      %3182 = vmatmul.mubr.f32.gmra.mrb[0].mxu0 %v1376
      %v3183 = vpop.f32.mrb[0].mxu0
      %v3184 = vadd.f32 0.0, %v3183
      %v3185 = vpop.f32.mrb[0].mxu0
      %3186 = vmatprep.mubr.f32.mxu0 0.0
      %3187 = vmatmul.mubr.f32.gmra.mrb[0].mxu0 %v2176
      %v3188 = vpop.f32.mrb[0].mxu0
      %v3189 = vadd.f32 0.0, %v3188
      %v3190 = vpop.f32.mrb[0].mxu0
      %3191 = vmatprep.mubr.f32.mxu0 0.0
      %3192 = vmatmul.mubr.f32.gmra.mrb[0].mxu0 %v2178
      %v3193 = vpop.f32.mrb[0].mxu0
      %v3194 = vadd.f32 0.0, %v3193
      %v3195 = vpop.f32.mrb[0].mxu0
      %3196 = vmatprep.mubr.f32.mxu0 0.0
      %3197 = vmatmul.mubr.f32.gmra.mrb[0].mxu0 %v2978
      %v3198 = vpop.f32.mrb[0].mxu0
      %v3199 = vadd.f32 0.0, %v3198
      %v3200 = vpop.f32.mrb[0].mxu0
      %3201 = vmatprep.mubr.f32.mxu0 0.0
      %3202 = vmatmul.mubr.f32.gmra.mrb[0].mxu0 %v2980
      %v3203 = vpop.f32.mrb[0].mxu0
      %v3204 = vadd.f32 0.0, %v3203
      %v3205 = vpop.f32.mrb[0].mxu0
      %3206 = vdwg.mxu0
      %v3207 = vadd.f32 %v2939, %v3049
      %v3208 = vadd.f32 %v2940, %v3054
      %v3209 = vadd.f32 %v2941, %v3059
      %v3210 = vadd.f32 %v2942, %v3064
      %v3211 = vadd.f32 %v2943, %v3069
      %v3212 = vadd.f32 %v2944, %v3074
      %v3213 = vadd.f32 %v2945, %v3079
      %v3214 = vadd.f32 %v2946, %v3084
      %v3215 = vadd.f32 %v2947, %v3089
      %v3216 = vadd.f32 %v2948, %v3094
      %v3217 = vadd.f32 %v2949, %v3099
      %v3218 = vadd.f32 %v2950, %v3104
      %v3219 = vadd.f32 %v2951, %v3109
      %v3220 = vadd.f32 %v2952, %v3114
      %v3221 = vadd.f32 %v2953, %v3119
      %v3222 = vadd.f32 %v2954, %v3124
      %v3223 = vadd.f32 %v2955, %v3129
      %v3224 = vadd.f32 %v2956, %v3134
      %v3225 = vadd.f32 %v2957, %v3139
      %v3226 = vadd.f32 %v2958, %v3144
      %v3227 = vadd.f32 %v2959, %v3149
      %v3228 = vadd.f32 %v2960, %v3154
      %v3229 = vadd.f32 %v2961, %v3159
      %v3230 = vadd.f32 %v2962, %v3164
      %v3231 = vadd.f32 %v2963, %v3169
      %v3232 = vadd.f32 %v2964, %v3174
      %v3233 = vadd.f32 %v2965, %v3179
      %v3234 = vadd.f32 %v2966, %v3184
      %v3235 = vadd.f32 %v2967, %v3189
      %v3236 = vadd.f32 %v2968, %v3194
      %v3237 = vadd.f32 %v2969, %v3199
      %v3238 = vadd.f32 %v2970, %v3204
      %3239 = vst.msk [vmem:[%s231] sm:$0xff] %vm378, %v3207
      %3240 = vst.msk [vmem:[%s231 + $0x8] sm:$0xff] %vm378, %v3208
      %3241 = vst.msk [vmem:[%s231 + $0x10] sm:$0xff] %vm378, %v3209
      %3242 = vst.msk [vmem:[%s231 + $0x18] sm:$0xff] %vm378, %v3210
      %3243 = vst.msk [vmem:[%s231 + $0x20] sm:$0xff] %vm378, %v3211
      %3244 = vst.msk [vmem:[%s231 + $0x28] sm:$0xff] %vm378, %v3212
      %3245 = vst.msk [vmem:[%s231 + $0x30] sm:$0xff] %vm378, %v3213
      %3246 = vst.msk [vmem:[%s231 + $0x38] sm:$0xff] %vm378, %v3214
      %3247 = vst.msk [vmem:[%s231 + $0x40] sm:$0xff] %vm378, %v3215
      %3248 = vst.msk [vmem:[%s231 + $0x48] sm:$0xff] %vm378, %v3216
      %3249 = vst.msk [vmem:[%s231 + $0x50] sm:$0xff] %vm378, %v3217
      %3250 = vst.msk [vmem:[%s231 + $0x58] sm:$0xff] %vm378, %v3218
      %3251 = vst.msk [vmem:[%s231 + $0x60] sm:$0xff] %vm378, %v3219
      %3252 = vst.msk [vmem:[%s231 + $0x68] sm:$0xff] %vm378, %v3220
      %3253 = vst.msk [vmem:[%s231 + $0x70] sm:$0xff] %vm378, %v3221
      %3254 = vst.msk [vmem:[%s231 + $0x78] sm:$0xff] %vm378, %v3222
      %3255 = vst.msk [vmem:[%s231 + $0x80] sm:$0xff] %vm378, %v3223
      %3256 = vst.msk [vmem:[%s231 + $0x88] sm:$0xff] %vm378, %v3224
      %3257 = vst.msk [vmem:[%s231 + $0x90] sm:$0xff] %vm378, %v3225
      %3258 = vst.msk [vmem:[%s231 + $0x98] sm:$0xff] %vm378, %v3226
      %3259 = vst.msk [vmem:[%s231 + $0xa0] sm:$0xff] %vm378, %v3227
      %3260 = vst.msk [vmem:[%s231 + $0xa8] sm:$0xff] %vm378, %v3228
      %3261 = vst.msk [vmem:[%s231 + $0xb0] sm:$0xff] %vm378, %v3229
      %3262 = vst.msk [vmem:[%s231 + $0xb8] sm:$0xff] %vm378, %v3230
      %3263 = vst.msk [vmem:[%s231 + $0xc0] sm:$0xff] %vm378, %v3231
      %3264 = vst.msk [vmem:[%s231 + $0xc8] sm:$0xff] %vm378, %v3232
      %3265 = vst.msk [vmem:[%s231 + $0xd0] sm:$0xff] %vm378, %v3233
      %3266 = vst.msk [vmem:[%s231 + $0xd8] sm:$0xff] %vm378, %v3234
      %3267 = vst.msk [vmem:[%s231 + $0xe0] sm:$0xff] %vm378, %v3235
      %3268 = vst.msk [vmem:[%s231 + $0xe8] sm:$0xff] %vm378, %v3236
      %3269 = vst.msk [vmem:[%s231 + $0xf0] sm:$0xff] %vm378, %v3237
      %3270 = vst.msk [vmem:[%s231 + $0xf8] sm:$0xff] %vm378, %v3238
      %v3271 = vsel %vm378, %v3207, 0.0
      %v3272 = vsel %vm378, %v3208, 0.0
      %v3273 = vadd.f32 %v3271, %v3272
      %v3274 = vsel %vm378, %v3209, 0.0
      %v3275 = vadd.f32 %v3273, %v3274
      %v3276 = vsel %vm378, %v3210, 0.0
      %v3277 = vadd.f32 %v3275, %v3276
      %v3278 = vsel %vm378, %v3211, 0.0
      %v3279 = vadd.f32 %v3277, %v3278
      %v3280 = vsel %vm378, %v3212, 0.0
      %v3281 = vadd.f32 %v3279, %v3280
      %v3282 = vsel %vm378, %v3213, 0.0
      %v3283 = vadd.f32 %v3281, %v3282
      %v3284 = vsel %vm378, %v3214, 0.0
      %v3285 = vadd.f32 %v3283, %v3284
      %v3286 = vsel %vm378, %v3215, 0.0
      %v3287 = vadd.f32 %v3285, %v3286
      %v3288 = vsel %vm378, %v3216, 0.0
      %v3289 = vadd.f32 %v3287, %v3288
      %v3290 = vsel %vm378, %v3217, 0.0
      %v3291 = vadd.f32 %v3289, %v3290
      %v3292 = vsel %vm378, %v3218, 0.0
      %v3293 = vadd.f32 %v3291, %v3292
      %v3294 = vsel %vm378, %v3219, 0.0
      %v3295 = vadd.f32 %v3293, %v3294
      %v3296 = vsel %vm378, %v3220, 0.0
      %v3297 = vadd.f32 %v3295, %v3296
      %v3298 = vsel %vm378, %v3221, 0.0
      %v3299 = vadd.f32 %v3297, %v3298
      %v3300 = vsel %vm378, %v3222, 0.0
      %v3301 = vadd.f32 %v3299, %v3300
      %v3302 = vsel %vm378, %v3223, 0.0
      %v3303 = vadd.f32 %v3301, %v3302
      %v3304 = vsel %vm378, %v3224, 0.0
      %v3305 = vadd.f32 %v3303, %v3304
      %v3306 = vsel %vm378, %v3225, 0.0
      %v3307 = vadd.f32 %v3305, %v3306
      %v3308 = vsel %vm378, %v3226, 0.0
      %v3309 = vadd.f32 %v3307, %v3308
      %v3310 = vsel %vm378, %v3227, 0.0
      %v3311 = vadd.f32 %v3309, %v3310
      %v3312 = vsel %vm378, %v3228, 0.0
      %v3313 = vadd.f32 %v3311, %v3312
      %v3314 = vsel %vm378, %v3229, 0.0
      %v3315 = vadd.f32 %v3313, %v3314
      %v3316 = vsel %vm378, %v3230, 0.0
      %v3317 = vadd.f32 %v3315, %v3316
      %v3318 = vsel %vm378, %v3231, 0.0
      %v3319 = vadd.f32 %v3317, %v3318
      %v3320 = vsel %vm378, %v3232, 0.0
      %v3321 = vadd.f32 %v3319, %v3320
      %v3322 = vsel %vm378, %v3233, 0.0
      %v3323 = vadd.f32 %v3321, %v3322
      %v3324 = vsel %vm378, %v3234, 0.0
      %v3325 = vadd.f32 %v3323, %v3324
      %v3326 = vsel %vm378, %v3235, 0.0
      %v3327 = vadd.f32 %v3325, %v3326
      %v3328 = vsel %vm378, %v3236, 0.0
      %v3329 = vadd.f32 %v3327, %v3328
      %v3330 = vsel %vm378, %v3237, 0.0
      %v3331 = vadd.f32 %v3329, %v3330
      %v3332 = vsel %vm378, %v3238, 0.0
      %v3333 = vadd.f32 %v3331, %v3332
      %v3334 = vrot.slane %v3333, 4
      %v3335 = vadd.f32 %v3333, %v3334
      %v3336 = vrot.slane %v3335, 2
      %v3337 = vadd.f32 %v3335, %v3336
      %v3338 = vrot.slane %v3337, 1
      %v3339 = vadd.f32 %v3337, %v3338
      %v3340 = vmul.f32 %v3207, %v3207
      %v3341 = vmul.f32 %v3208, %v3208
      %v3342 = vmul.f32 %v3209, %v3209
      %v3343 = vmul.f32 %v3210, %v3210
      %v3344 = vmul.f32 %v3211, %v3211
      %v3345 = vmul.f32 %v3212, %v3212
      %v3346 = vmul.f32 %v3213, %v3213
      %v3347 = vmul.f32 %v3214, %v3214
      %v3348 = vmul.f32 %v3215, %v3215
      %v3349 = vmul.f32 %v3216, %v3216
      %v3350 = vmul.f32 %v3217, %v3217
      %v3351 = vmul.f32 %v3218, %v3218
      %v3352 = vmul.f32 %v3219, %v3219
      %v3353 = vmul.f32 %v3220, %v3220
      %v3354 = vmul.f32 %v3221, %v3221
      %v3355 = vmul.f32 %v3222, %v3222
      %v3356 = vmul.f32 %v3223, %v3223
      %v3357 = vmul.f32 %v3224, %v3224
      %v3358 = vmul.f32 %v3225, %v3225
      %v3359 = vmul.f32 %v3226, %v3226
      %v3360 = vmul.f32 %v3227, %v3227
      %v3361 = vmul.f32 %v3228, %v3228
      %v3362 = vmul.f32 %v3229, %v3229
      %v3363 = vmul.f32 %v3230, %v3230
      %v3364 = vmul.f32 %v3231, %v3231
      %v3365 = vmul.f32 %v3232, %v3232
      %v3366 = vmul.f32 %v3233, %v3233
      %v3367 = vmul.f32 %v3234, %v3234
      %v3368 = vmul.f32 %v3235, %v3235
      %v3369 = vmul.f32 %v3236, %v3236
      %v3370 = vmul.f32 %v3237, %v3237
      %v3371 = vmul.f32 %v3238, %v3238
      %v3372 = vsel %vm378, %v3340, 0.0
      %v3373 = vsel %vm378, %v3341, 0.0
      %v3374 = vadd.f32 %v3372, %v3373
      %v3375 = vsel %vm378, %v3342, 0.0
      %v3376 = vadd.f32 %v3374, %v3375
      %v3377 = vsel %vm378, %v3343, 0.0
      %v3378 = vadd.f32 %v3376, %v3377
      %v3379 = vsel %vm378, %v3344, 0.0
      %v3380 = vadd.f32 %v3378, %v3379
      %v3381 = vsel %vm378, %v3345, 0.0
      %v3382 = vadd.f32 %v3380, %v3381
      %v3383 = vsel %vm378, %v3346, 0.0
      %v3384 = vadd.f32 %v3382, %v3383
      %v3385 = vsel %vm378, %v3347, 0.0
      %v3386 = vadd.f32 %v3384, %v3385
      %v3387 = vsel %vm378, %v3348, 0.0
      %v3388 = vadd.f32 %v3386, %v3387
      %v3389 = vsel %vm378, %v3349, 0.0
      %v3390 = vadd.f32 %v3388, %v3389
      %v3391 = vsel %vm378, %v3350, 0.0
      %v3392 = vadd.f32 %v3390, %v3391
      %v3393 = vsel %vm378, %v3351, 0.0
      %v3394 = vadd.f32 %v3392, %v3393
      %v3395 = vsel %vm378, %v3352, 0.0
      %v3396 = vadd.f32 %v3394, %v3395
      %v3397 = vsel %vm378, %v3353, 0.0
      %v3398 = vadd.f32 %v3396, %v3397
      %v3399 = vsel %vm378, %v3354, 0.0
      %v3400 = vadd.f32 %v3398, %v3399
      %v3401 = vsel %vm378, %v3355, 0.0
      %v3402 = vadd.f32 %v3400, %v3401
      %v3403 = vsel %vm378, %v3356, 0.0
      %v3404 = vadd.f32 %v3402, %v3403
      %v3405 = vsel %vm378, %v3357, 0.0
      %v3406 = vadd.f32 %v3404, %v3405
      %v3407 = vsel %vm378, %v3358, 0.0
      %v3408 = vadd.f32 %v3406, %v3407
      %v3409 = vsel %vm378, %v3359, 0.0
      %v3410 = vadd.f32 %v3408, %v3409
      %v3411 = vsel %vm378, %v3360, 0.0
      %v3412 = vadd.f32 %v3410, %v3411
      %v3413 = vsel %vm378, %v3361, 0.0
      %v3414 = vadd.f32 %v3412, %v3413
      %v3415 = vsel %vm378, %v3362, 0.0
      %v3416 = vadd.f32 %v3414, %v3415
      %v3417 = vsel %vm378, %v3363, 0.0
      %v3418 = vadd.f32 %v3416, %v3417
      %v3419 = vsel %vm378, %v3364, 0.0
      %v3420 = vadd.f32 %v3418, %v3419
      %v3421 = vsel %vm378, %v3365, 0.0
      %v3422 = vadd.f32 %v3420, %v3421
      %v3423 = vsel %vm378, %v3366, 0.0
      %v3424 = vadd.f32 %v3422, %v3423
      %v3425 = vsel %vm378, %v3367, 0.0
      %v3426 = vadd.f32 %v3424, %v3425
      %v3427 = vsel %vm378, %v3368, 0.0
      %v3428 = vadd.f32 %v3426, %v3427
      %v3429 = vsel %vm378, %v3369, 0.0
      %v3430 = vadd.f32 %v3428, %v3429
      %v3431 = vsel %vm378, %v3370, 0.0
      %v3432 = vadd.f32 %v3430, %v3431
      %v3433 = vsel %vm378, %v3371, 0.0
      %v3434 = vadd.f32 %v3432, %v3433
      %v3435 = vrot.slane %v3434, 4
      %v3436 = vadd.f32 %v3434, %v3435
      %v3437 = vrot.slane %v3436, 2
      %v3438 = vadd.f32 %v3436, %v3437
      %v3439 = vrot.slane %v3438, 1
      %v3440 = vadd.f32 %v3438, %v3439
      %vm3441 = vcmask 1040384
      %v3442 = vsel %vm3441, %v3339, %v3440
      %3443 = vst.msk [vmem:[%s235] sm:$0x3] %vm381, %v3442
      %p3444 = scmp.lt.s32.totalorder %s17, 1
      %s3445 = scalar_select %p3444, %s17, 1
      %s3446 = smul.addr %s3445, 32
      %s3447 = smul.addr %s3446, 8
      %s3448 = scalar_lea.vmem %s4, %s3447
      %p3449 = scmp.lt.s32.totalorder %s17, 1
      %s3450 = scalar_select %p3449, %s17, 1
      %s3451 = smul.addr %s3450, 2
      %s3452 = scalar_lea.vmem %s5, %s3451
      // Predicated region
      $region37: #{double_conv_block.4} parent=35 // pred_check
        %p3453 = pneg %p124
      $region38: #{double_conv_block.4} parent=35 // pred_check_branch
        %3455 = sbr.rel (%p3453) target = $region40
      $region39: #{double_conv_block.4} parent=35 // pred_region
        _
      $region40: #{double_conv_block.4} parent=35 // pred_fallthru
        _
      // Predicated region
      $region41: #{double_conv_block.4} parent=35 // pred_check
        %p3456 = pneg %p150
      $region42: #{double_conv_block.4} parent=35 // pred_check_branch
        %3458 = sbr.rel (%p3456) target = $region44
      $region43: #{double_conv_block.4} parent=35 // pred_region
        _
      $region44: #{double_conv_block.4} parent=35 // pred_fallthru
        _
    $region36: #{double_conv_block.4} parent=5 // pred_fallthru
      _
    %p3459 = scmp.le.s32.totalorder 2, %s12
    // Predicated region
    $region45: #{double_conv_block.4} parent=5 // pred_check
      %p3460 = pneg %p3459
    $region46: #{double_conv_block.4} parent=5 // pred_check_branch
      %3462 = sbr.rel (%p3460) target = $region48
    $region47: #{double_conv_block.4} parent=5 // pred_region
      %s3463 = ssub.s32 %s12, 2
      // Predicated region
      $region49: #{double_conv_block.4} parent=47 // pred_check
        %p3464 = pneg %p130
      $region50: #{double_conv_block.4} parent=47 // pred_check_branch
        %3466 = sbr.rel (%p3464) target = $region52
      $region51: #{double_conv_block.4} parent=47 // pred_region
        %p3467 = scmp.lt.s32.totalorder %s18, 1
        %s3468 = scalar_select %p3467, %s18, 1
        %s3469 = smul.addr %s3468, 32
        %s3470 = smul.addr %s3469, 8
        %s3471 = scalar_lea.vmem %s4, %s3470
      $region52: #{double_conv_block.4} parent=47 // pred_fallthru
        _
      // Predicated region
      $region53: #{double_conv_block.4} parent=47 // pred_check
        %p3472 = pneg %p156
      $region54: #{double_conv_block.4} parent=47 // pred_check_branch
        %3474 = sbr.rel (%p3472) target = $region56
      $region55: #{double_conv_block.4} parent=47 // pred_region
        %p3475 = scmp.lt.s32.totalorder %s18, 1
        %s3476 = scalar_select %p3475, %s18, 1
        %s3477 = smul.addr %s3476, 2
        %s3478 = scalar_lea.vmem %s5, %s3477
      $region56: #{double_conv_block.4} parent=47 // pred_fallthru
        _
    $region48: #{double_conv_block.4} parent=5 // pred_fallthru
      _
  $region6: #{double_conv_block.4} parent=0 // loop_footer
    %s16 = sadd.s32 1, %s12
  $region7: #{double_conv_block.4} parent=0 // loop_footer_branch
    %11 = sbr.rel target = $region3
  $region8: #{double_conv_block.4} parent=0 // loop_exit
    _

</llo_original>
